<compile_context>
chip_gen: v7x
topology: tpu7x:2x2x1
jax: 0.10.0
libtpu: 0.0.40
codegen_flags: <defaults>
</compile_context>

<pallas_src>
import math

import jax
import jax.numpy as jnp
from jax.experimental import pallas as pl
from jax.experimental.pallas import tpu as pltpu

VMEM_SPEC = pl.BlockSpec(memory_space=pltpu.MemorySpace.VMEM)

OUT_LANES = 128       # lane-dense output slab width
N_METRICS = 22        # number of packed per-sample metrics (see column map below)


# ----------------------------------------------------------------------------- #
# Fused Pallas kernel
# ----------------------------------------------------------------------------- #
def fused_quality_kernel(*refs):
    (img_ref, txt_ref, eimg_ref, etxt_ref, mimg_ref, mtxt_ref,
     # image task-relevance + uncertainty nets (merged first layer)
     w_img1, b_img1, w_it2, b_it2, w_it3, b_it3, w_iu2, b_iu2, w_iu3, b_iu3,
     # text task-relevance + uncertainty nets (merged first layer)
     w_txt1, b_txt1, w_tt2, b_tt2, w_tt3, b_tt3, w_tu2, b_tu2, w_tu3, b_tu3,
     # merged cross_modal / consistency projections
     w_proj, b_proj,
     # consistency net (first layer split into img / txt blocks)
     w_c1i, w_c1t, b_c1, w_c2, b_c2, w_c3, b_c3,
     # image generation-quality net (first layer split into orig / enhanced blocks)
     w_ig1a, w_ig1b, b_ig1, w_ig2, b_ig2, w_ig3, b_ig3,
     # text generation-quality net
     w_tg1a, w_tg1b, b_tg1, w_tg2, b_tg2, w_tg3, b_tg3,
     out_ref) = refs

    f32 = jnp.float32
    bf16 = jnp.bfloat16

    img = img_ref[...]            # (B, D_img) f32
    txt = txt_ref[...]            # (B, D_txt) f32
    eimg = eimg_ref[...]
    etxt = etxt_ref[...]
    use_eimg = mimg_ref[...]      # (B, 1) 1.0 where missing_type == 2
    use_etxt = mtxt_ref[...]      # (B, 1) 1.0 where missing_type == 1

    b = img.shape[0]
    d_img = img.shape[-1]
    d_txt = txt.shape[-1]
    h_img_split = d_img // 2
    h_txt_split = d_txt // 2

    def dot_bf16(a_f32, w_ref):
        # bf16 MXU inputs, f32 accumulation.
        return jnp.dot(a_f32.astype(bf16), w_ref[...], preferred_element_type=f32)

    def row_norm(x):
        return jnp.sqrt(jnp.sum(x * x, axis=-1, keepdims=True))

    def row_var(x):  # torch.var default: unbiased
        d = x.shape[-1]
        mean = jnp.mean(x, axis=-1, keepdims=True)
        return jnp.sum((x - mean) ** 2, axis=-1, keepdims=True) / (d - 1)

    def head_sigmoid(h, w3_ref, b3_ref):
        # Linear(H, 1) + Sigmoid as VPU mul + XLU lane reduce + EUP sigmoid (off-MXU).
        z = jnp.sum(h * w3_ref[...], axis=-1, keepdims=True) + b3_ref[...]
        return jax.nn.sigmoid(z)

    def cos01(a_n, b_n):
        return (jnp.sum(a_n * b_n, axis=-1, keepdims=True) + 1.0) * 0.5

    # ---- shared row norms / F.normalize (eps=1e-12), computed once ----
    img_norm = row_norm(img)
    txt_norm = row_norm(txt)
    eimg_norm = row_norm(eimg)
    etxt_norm = row_norm(etxt)
    img_n = img / jnp.maximum(img_norm, 1e-12)
    txt_n = txt / jnp.maximum(txt_norm, 1e-12)
    eimg_n = eimg / jnp.maximum(eimg_norm, 1e-12)
    etxt_n = etxt / jnp.maximum(etxt_norm, 1e-12)

    # ---- merged first layers (task-relevance ++ uncertainty share the input) ----
    h_img1 = jnp.maximum(dot_bf16(img, w_img1) + b_img1[...], 0.0)   # (B, D/2 + 256)
    h_txt1 = jnp.maximum(dot_bf16(txt, w_txt1) + b_txt1[...], 0.0)
    h_it1 = h_img1[:, :h_img_split]
    h_iu1 = h_img1[:, h_img_split:]
    h_tt1 = h_txt1[:, :h_txt_split]
    h_tu1 = h_txt1[:, h_txt_split:]

    # task relevance nets
    h_it2 = jnp.maximum(dot_bf16(h_it1, w_it2) + b_it2[...], 0.0)
    img_task_rel = head_sigmoid(h_it2, w_it3, b_it3)
    h_tt2 = jnp.maximum(dot_bf16(h_tt1, w_tt2) + b_tt2[...], 0.0)
    text_task_rel = head_sigmoid(h_tt2, w_tt3, b_tt3)

    # uncertainty nets (+ variance-based uncertainty)
    h_iu2 = jnp.maximum(dot_bf16(h_iu1, w_iu2) + b_iu2[...], 0.0)
    img_unc_net = head_sigmoid(h_iu2, w_iu3, b_iu3)
    h_tu2 = jnp.maximum(dot_bf16(h_tu1, w_tu2) + b_tu2[...], 0.0)
    text_unc_net = head_sigmoid(h_tu2, w_tu3, b_tu3)
    img_uncertainty = (img_unc_net + (1.0 - jax.nn.sigmoid(row_var(img)))) * 0.5
    text_uncertainty = (text_unc_net + (1.0 - jax.nn.sigmoid(row_var(txt)))) * 0.5

    # ---- merged projections of the normalized text (cross_modal ++ consistency) ----
    proj_all = dot_bf16(txt_n, w_proj) + b_proj[...]     # (B, 2*D_img)
    proj_cm = proj_all[:, :d_img]
    proj_cons = proj_all[:, d_img:]

    proj_cm_n = proj_cm / jnp.maximum(row_norm(proj_cm), 1e-12)
    proj_cons_norm = row_norm(proj_cons)
    proj_cons_n = proj_cons / jnp.maximum(proj_cons_norm, 1e-12)

    cross_modal_synergy = cos01(img_n, proj_cm_n)
    semantic_alignment = cos01(img_n, proj_cons_n)
    feat_dist = row_norm(img - proj_cons)
    distance_quality = 1.0 - feat_dist / (img_norm + proj_cons_norm + 1e-8)

    # consistency net: cat([img, txt]) @ W1 == img @ W1[:D_img] + txt @ W1[D_img:]
    h_c1 = jnp.maximum(dot_bf16(img, w_c1i) + dot_bf16(txt, w_c1t) + b_c1[...], 0.0)
    h_c2 = jnp.maximum(dot_bf16(h_c1, w_c2) + b_c2[...], 0.0)
    network_consistency = head_sigmoid(h_c2, w_c3, b_c3)
    overall_consistency = (semantic_alignment + distance_quality + network_consistency) / 3.0

    # ---- mathematical quality on the "current" (possibly enhanced) embeddings ----
    cur_img = jnp.where(use_eimg > 0.5, eimg, img)
    cur_txt = jnp.where(use_etxt > 0.5, etxt, txt)

    def math_quality(x):
        d = x.shape[-1]
        ideal = math.sqrt(d)
        ax = jnp.abs(x)
        norms = row_norm(x)
        norm_diff = jnp.abs(norms - ideal) / (ideal + 1e-8)
        ns = jnp.clip(jnp.exp(-jnp.clip(norm_diff, 0.0, 10.0)), 1e-6, 1.0)
        # entropy of softmax(|x| + 1e-8)
        axe = ax + 1e-8
        m = jnp.max(axe, axis=-1, keepdims=True)
        e = jnp.exp(axe - m)
        p = e / jnp.sum(e, axis=-1, keepdims=True)
        ent = -jnp.sum(p * jnp.log(p + 1e-8), axis=-1, keepdims=True)
        ent = jnp.clip(ent / math.log(d), 1e-6, 1.0)
        sparsity = jnp.mean((ax < 0.01).astype(f32), axis=-1, keepdims=True)
        sp = jnp.clip(jnp.exp(-jnp.abs(sparsity - 0.1) / (0.1 + 1e-8)), 1e-6, 1.0)
        var = jnp.clip(jax.nn.sigmoid(row_var(x) - 0.1), 1e-6, 1.0)
        conc = jnp.max(ax, axis=-1, keepdims=True) / (jnp.mean(ax, axis=-1, keepdims=True) + 1e-8)
        conc = jnp.clip(jax.nn.sigmoid(5.0 - conc), 1e-6, 1.0)
        return [ns, ent, sp, var, conc]

    img_math = math_quality(cur_img)
    txt_math = math_quality(cur_txt)

    # ---- generation confidence (only used where the modality was generated) ----
    ig_cos = cos01(img_n, eimg_n)
    ig_dist = 1.0 - row_norm(img - eimg) / (img_norm + eimg_norm + 1e-8)
    h_ig1 = jnp.maximum(dot_bf16(img, w_ig1a) + dot_bf16(eimg, w_ig1b) + b_ig1[...], 0.0)
    h_ig2 = jnp.maximum(dot_bf16(h_ig1, w_ig2) + b_ig2[...], 0.0)
    ig_net = head_sigmoid(h_ig2, w_ig3, b_ig3)
    img_gen = jnp.clip(0.4 * ig_cos + 0.3 * ig_dist + 0.3 * ig_net, 0.1, 0.95)
    img_gen_conf = jnp.where(use_eimg > 0.5, img_gen, 0.95)

    tg_cos = cos01(txt_n, etxt_n)
    tg_dist = 1.0 - row_norm(txt - etxt) / (txt_norm + etxt_norm + 1e-8)
    h_tg1 = jnp.maximum(dot_bf16(txt, w_tg1a) + dot_bf16(etxt, w_tg1b) + b_tg1[...], 0.0)
    h_tg2 = jnp.maximum(dot_bf16(h_tg1, w_tg2) + b_tg2[...], 0.0)
    tg_net = head_sigmoid(h_tg2, w_tg3, b_tg3)
    text_gen = jnp.clip(0.4 * tg_cos + 0.3 * tg_dist + 0.3 * tg_net, 0.1, 0.95)
    text_gen_conf = jnp.where(use_etxt > 0.5, text_gen, 0.95)

    # ---- overall confidence ----
    img_overall = (img_math[0] * 0.2 + img_math[1] * 0.2
                   + img_task_rel * 0.3 + (1.0 - img_uncertainty) * 0.3)
    text_overall = (txt_math[0] * 0.2 + txt_math[1] * 0.2
                    + text_task_rel * 0.3 + (1.0 - text_uncertainty) * 0.3)
    overall_confidence = (img_overall + text_overall + overall_consistency) / 3.0

    # ---- pack all 22 metrics into one lane-dense (B, 128) slab (single full store) ----
    # column map:
    #  0-4  img math (ns, ent, sparsity, variance, concentration)
    #  5-9  text math
    #  10   img_task_rel        11  text_task_rel
    #  12   img_uncertainty     13  text_uncertainty
    #  14   img_gen_conf        15  text_gen_conf
    #  16   cross_modal_synergy
    #  17   semantic_alignment  18  distance_quality
    #  19   network_consistency 20  overall_consistency
    #  21   overall_confidence
    cols = (img_math + txt_math
            + [img_task_rel, text_task_rel,
               img_uncertainty, text_uncertainty,
               img_gen_conf, text_gen_conf,
               cross_modal_synergy,
               semantic_alignment, distance_quality,
               network_consistency, overall_consistency,
               overall_confidence])
    lane = jax.lax.broadcasted_iota(jnp.int32, (1, out_ref.shape[-1]), 1)
    slab = jnp.zeros((b, out_ref.shape[-1]), f32)
    for i, v in enumerate(cols):          # pure VPU select/add; no relayouts
        slab = slab + jnp.where(lane == i, v, 0.0)
    out_ref[...] = slab


# ----------------------------------------------------------------------------- #
# Parameters (nn.Linear-style uniform init; MXU weights stored in bf16)
# ----------------------------------------------------------------------------- #
def _uniform(key, shape, fan_in, dtype):
    bound = 1.0 / math.sqrt(fan_in)
    return jax.random.uniform(key, shape, jnp.float32, -bound, bound).astype(dtype)


def _linear(key, fan_in, fan_out, w_dtype=jnp.bfloat16):
    kw, kb = jax.random.split(key)
    w = _uniform(kw, (fan_in, fan_out), fan_in, w_dtype)
    b = _uniform(kb, (1, fan_out), fan_in, jnp.float32)
    return w, b


def _head(key, fan_in):
    # final Linear(fan_in, 1): kept f32 as a (1, fan_in) row (VPU lane reduce, off-MXU)
    w, b = _linear(key, fan_in, 1, w_dtype=jnp.float32)
    return w.reshape(1, fan_in), b          # b has shape (1, 1)


def _split_linear(key, fan_a, fan_b, fan_out):
    # Linear(fan_a + fan_b, fan_out) whose weight is split along the input axis so the
    # kernel can replace the concat([a, b]) @ W with two dots.
    kw, kb = jax.random.split(key)
    w = _uniform(kw, (fan_a + fan_b, fan_out), fan_a + fan_b, jnp.bfloat16)
    b = _uniform(kb, (1, fan_out), fan_a + fan_b, jnp.float32)
    return w[:fan_a], w[fan_a:], b


def init_params(key, image_embed_dim=768, text_embed_dim=512):
    d_i, d_t = image_embed_dim, text_embed_dim
    h_i, h_t = d_i // 2, d_t // 2
    keys = iter(jax.random.split(key, 32))
    nk = lambda: next(keys)
    p = []

    # image task-relevance + uncertainty nets (first layers merged along out axis)
    w_it1, b_it1 = _linear(nk(), d_i, h_i)
    w_iu1, b_iu1 = _linear(nk(), d_i, 256)
    p += [jnp.concatenate([w_it1, w_iu1], -1), jnp.concatenate([b_it1, b_iu1], -1)]
    p += list(_linear(nk(), h_i, 64)) + list(_head(nk(), 64))      # task-rel L2, L3
    p += list(_linear(nk(), 256, 64)) + list(_head(nk(), 64))      # uncertainty L2, L3

    # text task-relevance + uncertainty nets
    w_tt1, b_tt1 = _linear(nk(), d_t, h_t)
    w_tu1, b_tu1 = _linear(nk(), d_t, 256)
    p += [jnp.concatenate([w_tt1, w_tu1], -1), jnp.concatenate([b_tt1, b_tu1], -1)]
    p += list(_linear(nk(), h_t, 64)) + list(_head(nk(), 64))
    p += list(_linear(nk(), 256, 64)) + list(_head(nk(), 64))

    # cross_modal_projection ++ consistency_projection (both d_t -> d_i), merged
    w_cm, b_cm = _linear(nk(), d_t, d_i)
    w_cp, b_cp = _linear(nk(), d_t, d_i)
    p += [jnp.concatenate([w_cm, w_cp], -1), jnp.concatenate([b_cm, b_cp], -1)]

    # consistency net
    p += list(_split_linear(nk(), d_i, d_t, 512))
    p += list(_linear(nk(), 512, 128)) + list(_head(nk(), 128))

    # image generation-quality net
    p += list(_split_linear(nk(), d_i, d_i, 512))
    p += list(_linear(nk(), 512, 128)) + list(_head(nk(), 128))

    # text generation-quality net
    p += list(_split_linear(nk(), d_t, d_t, 512))
    p += list(_linear(nk(), 512, 128)) + list(_head(nk(), 128))

    return tuple(p)    # 43 arrays, order matches the kernel unpack


# ----------------------------------------------------------------------------- #
# Forward (single fused pallas_call; batched equivalent of PyTorch's List[Dict])
# ----------------------------------------------------------------------------- #
def _mean3(x):
    return x.mean(axis=1) if x.ndim == 3 else x


def forward(params, img_embeddings, text_embeddings, enhanced_img_embeddings,
            enhanced_text_embeddings, missing_type):
    img = _mean3(img_embeddings)
    txt = _mean3(text_embeddings)
    enh_img = _mean3(enhanced_img_embeddings)
    enh_txt = _mean3(enhanced_text_embeddings)

    b = img.shape[0]
    use_eimg = (missing_type == 2).astype(jnp.float32)[:, None]   # (B, 1)
    use_etxt = (missing_type == 1).astype(jnp.float32)[:, None]

    out = pl.pallas_call(
        fused_quality_kernel,
        out_shape=jax.ShapeDtypeStruct((b, OUT_LANES), jnp.float32),
        in_specs=[VMEM_SPEC] * (6 + len(params)),
        out_specs=VMEM_SPEC,
    )(img, txt, enh_img, enh_txt, use_eimg, use_etxt, *params)

    c = lambda i: out[:, i]
    img_math = {"norm_stability": c(0), "information_entropy": c(1),
                "sparsity_quality": c(2), "variance_quality": c(3),
                "concentration_quality": c(4)}
    text_math = {"norm_stability": c(5), "information_entropy": c(6),
                 "sparsity_quality": c(7), "variance_quality": c(8),
                 "concentration_quality": c(9)}
    # Batched equivalent of the PyTorch List[Dict] output (index i gives sample i's dict).
    return {
        "image_quality": {
            "mathematical": img_math,
            "task_relevance": c(10),
            "uncertainty": c(12),
            "generation_confidence": c(14),
        },
        "text_quality": {
            "mathematical": text_math,
            "task_relevance": c(11),
            "uncertainty": c(13),
            "generation_confidence": c(15),
        },
        "cross_modal_consistency": {
            "semantic_alignment": c(17),
            "distance_quality": c(18),
            "network_consistency": c(19),
            "overall_consistency": c(20),
        },
        "cross_modal_synergy": c(16),
        "overall_confidence": c(21),
    }


if __name__ == "__main__":
    key = jax.random.PRNGKey(0)
    B, IMG_DIM, TXT_DIM = 4, 256, 256
    kp, k1, k2, k3, k4 = jax.random.split(key, 5)

    params = init_params(kp, IMG_DIM, TXT_DIM)
    img = jax.random.normal(k1, (B, IMG_DIM), jnp.float32)
    txt = jax.random.normal(k2, (B, TXT_DIM), jnp.float32)
    enh_img = jax.random.normal(k3, (B, IMG_DIM), jnp.float32)
    enh_txt = jax.random.normal(k4, (B, TXT_DIM), jnp.float32)
    missing_type = jnp.array([0, 1, 2, 0], dtype=jnp.int32)

    out = jax.jit(forward)(params, img, txt, enh_img, enh_txt, missing_type)
    jax.block_until_ready(out)
    print("KERNEL_OK")
</pallas_src>

<mosaic_0001>
module attributes {stable_mosaic.version = 11 : i64} {
  func.func @fused_quality_kernel(%arg0: memref<4x256xf32, #tpu.memory_space<vmem>>, %arg1: memref<4x256xf32, #tpu.memory_space<vmem>>, %arg2: memref<4x256xf32, #tpu.memory_space<vmem>>, %arg3: memref<4x256xf32, #tpu.memory_space<vmem>>, %arg4: memref<4x1xf32, #tpu.memory_space<vmem>>, %arg5: memref<4x1xf32, #tpu.memory_space<vmem>>, %arg6: memref<256x384xbf16, #tpu.memory_space<vmem>>, %arg7: memref<1x384xf32, #tpu.memory_space<vmem>>, %arg8: memref<128x64xbf16, #tpu.memory_space<vmem>>, %arg9: memref<1x64xf32, #tpu.memory_space<vmem>>, %arg10: memref<1x64xf32, #tpu.memory_space<vmem>>, %arg11: memref<1x1xf32, #tpu.memory_space<vmem>>, %arg12: memref<256x64xbf16, #tpu.memory_space<vmem>>, %arg13: memref<1x64xf32, #tpu.memory_space<vmem>>, %arg14: memref<1x64xf32, #tpu.memory_space<vmem>>, %arg15: memref<1x1xf32, #tpu.memory_space<vmem>>, %arg16: memref<256x384xbf16, #tpu.memory_space<vmem>>, %arg17: memref<1x384xf32, #tpu.memory_space<vmem>>, %arg18: memref<128x64xbf16, #tpu.memory_space<vmem>>, %arg19: memref<1x64xf32, #tpu.memory_space<vmem>>, %arg20: memref<1x64xf32, #tpu.memory_space<vmem>>, %arg21: memref<1x1xf32, #tpu.memory_space<vmem>>, %arg22: memref<256x64xbf16, #tpu.memory_space<vmem>>, %arg23: memref<1x64xf32, #tpu.memory_space<vmem>>, %arg24: memref<1x64xf32, #tpu.memory_space<vmem>>, %arg25: memref<1x1xf32, #tpu.memory_space<vmem>>, %arg26: memref<256x512xbf16, #tpu.memory_space<vmem>>, %arg27: memref<1x512xf32, #tpu.memory_space<vmem>>, %arg28: memref<256x512xbf16, #tpu.memory_space<vmem>>, %arg29: memref<256x512xbf16, #tpu.memory_space<vmem>>, %arg30: memref<1x512xf32, #tpu.memory_space<vmem>>, %arg31: memref<512x128xbf16, #tpu.memory_space<vmem>>, %arg32: memref<1x128xf32, #tpu.memory_space<vmem>>, %arg33: memref<1x128xf32, #tpu.memory_space<vmem>>, %arg34: memref<1x1xf32, #tpu.memory_space<vmem>>, %arg35: memref<256x512xbf16, #tpu.memory_space<vmem>>, %arg36: memref<256x512xbf16, #tpu.memory_space<vmem>>, %arg37: memref<1x512xf32, #tpu.memory_space<vmem>>, %arg38: memref<512x128xbf16, #tpu.memory_space<vmem>>, %arg39: memref<1x128xf32, #tpu.memory_space<vmem>>, %arg40: memref<1x128xf32, #tpu.memory_space<vmem>>, %arg41: memref<1x1xf32, #tpu.memory_space<vmem>>, %arg42: memref<256x512xbf16, #tpu.memory_space<vmem>>, %arg43: memref<256x512xbf16, #tpu.memory_space<vmem>>, %arg44: memref<1x512xf32, #tpu.memory_space<vmem>>, %arg45: memref<512x128xbf16, #tpu.memory_space<vmem>>, %arg46: memref<1x128xf32, #tpu.memory_space<vmem>>, %arg47: memref<1x128xf32, #tpu.memory_space<vmem>>, %arg48: memref<1x1xf32, #tpu.memory_space<vmem>>, %arg49: memref<4x128xf32, #tpu.memory_space<vmem>>) attributes {dimension_semantics = [], scalar_prefetch = 0 : i64, scratch_operands = 0 : i64, tpu.core_type = #tpu.core_type<tc>} {
    %c0 = arith.constant 0 : index
    %c0_0 = arith.constant 0 : index
    %0 = vector.load %arg0[%c0, %c0_0] : memref<4x256xf32, #tpu.memory_space<vmem>>, vector<4x256xf32>
    %c0_1 = arith.constant 0 : index
    %c0_2 = arith.constant 0 : index
    %1 = vector.load %arg1[%c0_1, %c0_2] : memref<4x256xf32, #tpu.memory_space<vmem>>, vector<4x256xf32>
    %c0_3 = arith.constant 0 : index
    %c0_4 = arith.constant 0 : index
    %2 = vector.load %arg2[%c0_3, %c0_4] : memref<4x256xf32, #tpu.memory_space<vmem>>, vector<4x256xf32>
    %c0_5 = arith.constant 0 : index
    %c0_6 = arith.constant 0 : index
    %3 = vector.load %arg3[%c0_5, %c0_6] : memref<4x256xf32, #tpu.memory_space<vmem>>, vector<4x256xf32>
    %c0_7 = arith.constant 0 : index
    %c0_8 = arith.constant 0 : index
    %4 = vector.load %arg4[%c0_7, %c0_8] : memref<4x1xf32, #tpu.memory_space<vmem>>, vector<4x1xf32>
    %c0_9 = arith.constant 0 : index
    %c0_10 = arith.constant 0 : index
    %5 = vector.load %arg5[%c0_9, %c0_10] : memref<4x1xf32, #tpu.memory_space<vmem>>, vector<4x1xf32>
    %6 = arith.mulf %0, %0 : vector<4x256xf32>
    %cst = arith.constant dense<0.000000e+00> : vector<4xf32>
    %7 = vector.multi_reduction <add>, %6, %cst [1] : vector<4x256xf32> to vector<4xf32>
    %8 = vector.shape_cast %7 : vector<4xf32> to vector<4x1xf32>
    %9 = math.sqrt %8 : vector<4x1xf32>
    %10 = arith.mulf %1, %1 : vector<4x256xf32>
    %cst_11 = arith.constant dense<0.000000e+00> : vector<4xf32>
    %11 = vector.multi_reduction <add>, %10, %cst_11 [1] : vector<4x256xf32> to vector<4xf32>
    %12 = vector.shape_cast %11 : vector<4xf32> to vector<4x1xf32>
    %13 = math.sqrt %12 : vector<4x1xf32>
    %14 = arith.mulf %2, %2 : vector<4x256xf32>
    %cst_12 = arith.constant dense<0.000000e+00> : vector<4xf32>
    %15 = vector.multi_reduction <add>, %14, %cst_12 [1] : vector<4x256xf32> to vector<4xf32>
    %16 = vector.shape_cast %15 : vector<4xf32> to vector<4x1xf32>
    %17 = math.sqrt %16 : vector<4x1xf32>
    %18 = arith.mulf %3, %3 : vector<4x256xf32>
    %cst_13 = arith.constant dense<0.000000e+00> : vector<4xf32>
    %19 = vector.multi_reduction <add>, %18, %cst_13 [1] : vector<4x256xf32> to vector<4xf32>
    %20 = vector.shape_cast %19 : vector<4xf32> to vector<4x1xf32>
    %21 = math.sqrt %20 : vector<4x1xf32>
    %cst_14 = arith.constant 9.99999996E-13 : f32
    %22 = vector.broadcast %cst_14 : f32 to vector<4x1xf32>
    %23 = arith.maximumf %9, %22 : vector<4x1xf32>
    %24 = vector.broadcast %23 : vector<4x1xf32> to vector<4x256xf32>
    %25 = arith.divf %0, %24 : vector<4x256xf32>
    %cst_15 = arith.constant 9.99999996E-13 : f32
    %26 = vector.broadcast %cst_15 : f32 to vector<4x1xf32>
    %27 = arith.maximumf %13, %26 : vector<4x1xf32>
    %28 = vector.broadcast %27 : vector<4x1xf32> to vector<4x256xf32>
    %29 = arith.divf %1, %28 : vector<4x256xf32>
    %cst_16 = arith.constant 9.99999996E-13 : f32
    %30 = vector.broadcast %cst_16 : f32 to vector<4x1xf32>
    %31 = arith.maximumf %17, %30 : vector<4x1xf32>
    %32 = vector.broadcast %31 : vector<4x1xf32> to vector<4x256xf32>
    %33 = arith.divf %2, %32 : vector<4x256xf32>
    %cst_17 = arith.constant 9.99999996E-13 : f32
    %34 = vector.broadcast %cst_17 : f32 to vector<4x1xf32>
    %35 = arith.maximumf %21, %34 : vector<4x1xf32>
    %36 = vector.broadcast %35 : vector<4x1xf32> to vector<4x256xf32>
    %37 = arith.divf %3, %36 : vector<4x256xf32>
    %38 = arith.truncf %0 : vector<4x256xf32> to vector<4x256xbf16>
    %c0_18 = arith.constant 0 : index
    %c0_19 = arith.constant 0 : index
    %39 = vector.load %arg6[%c0_18, %c0_19] : memref<256x384xbf16, #tpu.memory_space<vmem>>, vector<256x384xbf16>
    %cst_20 = arith.constant dense<0.000000e+00> : vector<4x384xf32>
    %40 = tpu.matmul %38, %39, %cst_20 {dimension_numbers = #tpu.dot_dimension_numbers<[1], [0], [0], [1], [0, 0, 1, 1], [], []>} : vector<4x256xbf16>, vector<256x384xbf16>, vector<4x384xf32> -> vector<4x384xf32>
    %c0_21 = arith.constant 0 : index
    %c0_22 = arith.constant 0 : index
    %41 = vector.load %arg7[%c0_21, %c0_22] : memref<1x384xf32, #tpu.memory_space<vmem>>, vector<1x384xf32>
    %42 = vector.broadcast %41 : vector<1x384xf32> to vector<4x384xf32>
    %43 = arith.addf %40, %42 : vector<4x384xf32>
    %cst_23 = arith.constant 0.000000e+00 : f32
    %44 = vector.broadcast %cst_23 : f32 to vector<4x384xf32>
    %45 = arith.maximumf %43, %44 : vector<4x384xf32>
    %46 = arith.truncf %1 : vector<4x256xf32> to vector<4x256xbf16>
    %c0_24 = arith.constant 0 : index
    %c0_25 = arith.constant 0 : index
    %47 = vector.load %arg16[%c0_24, %c0_25] : memref<256x384xbf16, #tpu.memory_space<vmem>>, vector<256x384xbf16>
    %cst_26 = arith.constant dense<0.000000e+00> : vector<4x384xf32>
    %48 = tpu.matmul %46, %47, %cst_26 {dimension_numbers = #tpu.dot_dimension_numbers<[1], [0], [0], [1], [0, 0, 1, 1], [], []>} : vector<4x256xbf16>, vector<256x384xbf16>, vector<4x384xf32> -> vector<4x384xf32>
    %c0_27 = arith.constant 0 : index
    %c0_28 = arith.constant 0 : index
    %49 = vector.load %arg17[%c0_27, %c0_28] : memref<1x384xf32, #tpu.memory_space<vmem>>, vector<1x384xf32>
    %50 = vector.broadcast %49 : vector<1x384xf32> to vector<4x384xf32>
    %51 = arith.addf %48, %50 : vector<4x384xf32>
    %cst_29 = arith.constant 0.000000e+00 : f32
    %52 = vector.broadcast %cst_29 : f32 to vector<4x384xf32>
    %53 = arith.maximumf %51, %52 : vector<4x384xf32>
    %54 = vector.extract_strided_slice %45 {offsets = [0, 0], sizes = [4, 128], strides = [1, 1]} : vector<4x384xf32> to vector<4x128xf32>
    %55 = vector.extract_strided_slice %45 {offsets = [0, 128], sizes = [4, 256], strides = [1, 1]} : vector<4x384xf32> to vector<4x256xf32>
    %56 = vector.extract_strided_slice %53 {offsets = [0, 0], sizes = [4, 128], strides = [1, 1]} : vector<4x384xf32> to vector<4x128xf32>
    %57 = vector.extract_strided_slice %53 {offsets = [0, 128], sizes = [4, 256], strides = [1, 1]} : vector<4x384xf32> to vector<4x256xf32>
    %58 = arith.truncf %54 : vector<4x128xf32> to vector<4x128xbf16>
    %c0_30 = arith.constant 0 : index
    %c0_31 = arith.constant 0 : index
    %59 = vector.load %arg8[%c0_30, %c0_31] : memref<128x64xbf16, #tpu.memory_space<vmem>>, vector<128x64xbf16>
    %cst_32 = arith.constant dense<0.000000e+00> : vector<4x64xf32>
    %60 = tpu.matmul %58, %59, %cst_32 {dimension_numbers = #tpu.dot_dimension_numbers<[1], [0], [0], [1], [0, 0, 1, 1], [], []>} : vector<4x128xbf16>, vector<128x64xbf16>, vector<4x64xf32> -> vector<4x64xf32>
    %c0_33 = arith.constant 0 : index
    %c0_34 = arith.constant 0 : index
    %61 = vector.load %arg9[%c0_33, %c0_34] : memref<1x64xf32, #tpu.memory_space<vmem>>, vector<1x64xf32>
    %62 = vector.broadcast %61 : vector<1x64xf32> to vector<4x64xf32>
    %63 = arith.addf %60, %62 : vector<4x64xf32>
    %cst_35 = arith.constant 0.000000e+00 : f32
    %64 = vector.broadcast %cst_35 : f32 to vector<4x64xf32>
    %65 = arith.maximumf %63, %64 : vector<4x64xf32>
    %c0_36 = arith.constant 0 : index
    %c0_37 = arith.constant 0 : index
    %66 = vector.load %arg10[%c0_36, %c0_37] : memref<1x64xf32, #tpu.memory_space<vmem>>, vector<1x64xf32>
    %67 = vector.broadcast %66 : vector<1x64xf32> to vector<4x64xf32>
    %68 = arith.mulf %65, %67 : vector<4x64xf32>
    %cst_38 = arith.constant dense<0.000000e+00> : vector<4xf32>
    %69 = vector.multi_reduction <add>, %68, %cst_38 [1] : vector<4x64xf32> to vector<4xf32>
    %70 = vector.shape_cast %69 : vector<4xf32> to vector<4x1xf32>
    %c0_39 = arith.constant 0 : index
    %c0_40 = arith.constant 0 : index
    %71 = vector.load %arg11[%c0_39, %c0_40] : memref<1x1xf32, #tpu.memory_space<vmem>>, vector<1x1xf32>
    %72 = vector.broadcast %71 : vector<1x1xf32> to vector<4x1xf32>
    %73 = arith.addf %70, %72 : vector<4x1xf32>
    %74 = arith.negf %73 : vector<4x1xf32>
    %75 = math.exp %74 : vector<4x1xf32>
    %cst_41 = arith.constant 1.000000e+00 : f32
    %76 = vector.broadcast %cst_41 : f32 to vector<4x1xf32>
    %77 = arith.addf %76, %75 : vector<4x1xf32>
    %78 = arith.divf %76, %77 : vector<4x1xf32>
    %79 = arith.truncf %56 : vector<4x128xf32> to vector<4x128xbf16>
    %c0_42 = arith.constant 0 : index
    %c0_43 = arith.constant 0 : index
    %80 = vector.load %arg18[%c0_42, %c0_43] : memref<128x64xbf16, #tpu.memory_space<vmem>>, vector<128x64xbf16>
    %cst_44 = arith.constant dense<0.000000e+00> : vector<4x64xf32>
    %81 = tpu.matmul %79, %80, %cst_44 {dimension_numbers = #tpu.dot_dimension_numbers<[1], [0], [0], [1], [0, 0, 1, 1], [], []>} : vector<4x128xbf16>, vector<128x64xbf16>, vector<4x64xf32> -> vector<4x64xf32>
    %c0_45 = arith.constant 0 : index
    %c0_46 = arith.constant 0 : index
    %82 = vector.load %arg19[%c0_45, %c0_46] : memref<1x64xf32, #tpu.memory_space<vmem>>, vector<1x64xf32>
    %83 = vector.broadcast %82 : vector<1x64xf32> to vector<4x64xf32>
    %84 = arith.addf %81, %83 : vector<4x64xf32>
    %cst_47 = arith.constant 0.000000e+00 : f32
    %85 = vector.broadcast %cst_47 : f32 to vector<4x64xf32>
    %86 = arith.maximumf %84, %85 : vector<4x64xf32>
    %c0_48 = arith.constant 0 : index
    %c0_49 = arith.constant 0 : index
    %87 = vector.load %arg20[%c0_48, %c0_49] : memref<1x64xf32, #tpu.memory_space<vmem>>, vector<1x64xf32>
    %88 = vector.broadcast %87 : vector<1x64xf32> to vector<4x64xf32>
    %89 = arith.mulf %86, %88 : vector<4x64xf32>
    %cst_50 = arith.constant dense<0.000000e+00> : vector<4xf32>
    %90 = vector.multi_reduction <add>, %89, %cst_50 [1] : vector<4x64xf32> to vector<4xf32>
    %91 = vector.shape_cast %90 : vector<4xf32> to vector<4x1xf32>
    %c0_51 = arith.constant 0 : index
    %c0_52 = arith.constant 0 : index
    %92 = vector.load %arg21[%c0_51, %c0_52] : memref<1x1xf32, #tpu.memory_space<vmem>>, vector<1x1xf32>
    %93 = vector.broadcast %92 : vector<1x1xf32> to vector<4x1xf32>
    %94 = arith.addf %91, %93 : vector<4x1xf32>
    %95 = arith.negf %94 : vector<4x1xf32>
    %96 = math.exp %95 : vector<4x1xf32>
    %cst_53 = arith.constant 1.000000e+00 : f32
    %97 = vector.broadcast %cst_53 : f32 to vector<4x1xf32>
    %98 = arith.addf %97, %96 : vector<4x1xf32>
    %99 = arith.divf %97, %98 : vector<4x1xf32>
    %100 = arith.truncf %55 : vector<4x256xf32> to vector<4x256xbf16>
    %c0_54 = arith.constant 0 : index
    %c0_55 = arith.constant 0 : index
    %101 = vector.load %arg12[%c0_54, %c0_55] : memref<256x64xbf16, #tpu.memory_space<vmem>>, vector<256x64xbf16>
    %cst_56 = arith.constant dense<0.000000e+00> : vector<4x64xf32>
    %102 = tpu.matmul %100, %101, %cst_56 {dimension_numbers = #tpu.dot_dimension_numbers<[1], [0], [0], [1], [0, 0, 1, 1], [], []>} : vector<4x256xbf16>, vector<256x64xbf16>, vector<4x64xf32> -> vector<4x64xf32>
    %c0_57 = arith.constant 0 : index
    %c0_58 = arith.constant 0 : index
    %103 = vector.load %arg13[%c0_57, %c0_58] : memref<1x64xf32, #tpu.memory_space<vmem>>, vector<1x64xf32>
    %104 = vector.broadcast %103 : vector<1x64xf32> to vector<4x64xf32>
    %105 = arith.addf %102, %104 : vector<4x64xf32>
    %cst_59 = arith.constant 0.000000e+00 : f32
    %106 = vector.broadcast %cst_59 : f32 to vector<4x64xf32>
    %107 = arith.maximumf %105, %106 : vector<4x64xf32>
    %c0_60 = arith.constant 0 : index
    %c0_61 = arith.constant 0 : index
    %108 = vector.load %arg14[%c0_60, %c0_61] : memref<1x64xf32, #tpu.memory_space<vmem>>, vector<1x64xf32>
    %109 = vector.broadcast %108 : vector<1x64xf32> to vector<4x64xf32>
    %110 = arith.mulf %107, %109 : vector<4x64xf32>
    %cst_62 = arith.constant dense<0.000000e+00> : vector<4xf32>
    %111 = vector.multi_reduction <add>, %110, %cst_62 [1] : vector<4x64xf32> to vector<4xf32>
    %112 = vector.shape_cast %111 : vector<4xf32> to vector<4x1xf32>
    %c0_63 = arith.constant 0 : index
    %c0_64 = arith.constant 0 : index
    %113 = vector.load %arg15[%c0_63, %c0_64] : memref<1x1xf32, #tpu.memory_space<vmem>>, vector<1x1xf32>
    %114 = vector.broadcast %113 : vector<1x1xf32> to vector<4x1xf32>
    %115 = arith.addf %112, %114 : vector<4x1xf32>
    %116 = arith.negf %115 : vector<4x1xf32>
    %117 = math.exp %116 : vector<4x1xf32>
    %cst_65 = arith.constant 1.000000e+00 : f32
    %118 = vector.broadcast %cst_65 : f32 to vector<4x1xf32>
    %119 = arith.addf %118, %117 : vector<4x1xf32>
    %120 = arith.divf %118, %119 : vector<4x1xf32>
    %121 = arith.truncf %57 : vector<4x256xf32> to vector<4x256xbf16>
    %c0_66 = arith.constant 0 : index
    %c0_67 = arith.constant 0 : index
    %122 = vector.load %arg22[%c0_66, %c0_67] : memref<256x64xbf16, #tpu.memory_space<vmem>>, vector<256x64xbf16>
    %cst_68 = arith.constant dense<0.000000e+00> : vector<4x64xf32>
    %123 = tpu.matmul %121, %122, %cst_68 {dimension_numbers = #tpu.dot_dimension_numbers<[1], [0], [0], [1], [0, 0, 1, 1], [], []>} : vector<4x256xbf16>, vector<256x64xbf16>, vector<4x64xf32> -> vector<4x64xf32>
    %c0_69 = arith.constant 0 : index
    %c0_70 = arith.constant 0 : index
    %124 = vector.load %arg23[%c0_69, %c0_70] : memref<1x64xf32, #tpu.memory_space<vmem>>, vector<1x64xf32>
    %125 = vector.broadcast %124 : vector<1x64xf32> to vector<4x64xf32>
    %126 = arith.addf %123, %125 : vector<4x64xf32>
    %cst_71 = arith.constant 0.000000e+00 : f32
    %127 = vector.broadcast %cst_71 : f32 to vector<4x64xf32>
    %128 = arith.maximumf %126, %127 : vector<4x64xf32>
    %c0_72 = arith.constant 0 : index
    %c0_73 = arith.constant 0 : index
    %129 = vector.load %arg24[%c0_72, %c0_73] : memref<1x64xf32, #tpu.memory_space<vmem>>, vector<1x64xf32>
    %130 = vector.broadcast %129 : vector<1x64xf32> to vector<4x64xf32>
    %131 = arith.mulf %128, %130 : vector<4x64xf32>
    %cst_74 = arith.constant dense<0.000000e+00> : vector<4xf32>
    %132 = vector.multi_reduction <add>, %131, %cst_74 [1] : vector<4x64xf32> to vector<4xf32>
    %133 = vector.shape_cast %132 : vector<4xf32> to vector<4x1xf32>
    %c0_75 = arith.constant 0 : index
    %c0_76 = arith.constant 0 : index
    %134 = vector.load %arg25[%c0_75, %c0_76] : memref<1x1xf32, #tpu.memory_space<vmem>>, vector<1x1xf32>
    %135 = vector.broadcast %134 : vector<1x1xf32> to vector<4x1xf32>
    %136 = arith.addf %133, %135 : vector<4x1xf32>
    %137 = arith.negf %136 : vector<4x1xf32>
    %138 = math.exp %137 : vector<4x1xf32>
    %cst_77 = arith.constant 1.000000e+00 : f32
    %139 = vector.broadcast %cst_77 : f32 to vector<4x1xf32>
    %140 = arith.addf %139, %138 : vector<4x1xf32>
    %141 = arith.divf %139, %140 : vector<4x1xf32>
    %cst_78 = arith.constant dense<0.000000e+00> : vector<4xf32>
    %142 = vector.multi_reduction <add>, %0, %cst_78 [1] : vector<4x256xf32> to vector<4xf32>
    %143 = vector.shape_cast %142 : vector<4xf32> to vector<4x1xf32>
    %cst_79 = arith.constant 2.560000e+02 : f32
    %144 = vector.broadcast %cst_79 : f32 to vector<4x1xf32>
    %145 = arith.divf %143, %144 : vector<4x1xf32>
    %146 = vector.broadcast %145 : vector<4x1xf32> to vector<4x256xf32>
    %147 = arith.subf %0, %146 : vector<4x256xf32>
    %148 = arith.mulf %147, %147 : vector<4x256xf32>
    %cst_80 = arith.constant dense<0.000000e+00> : vector<4xf32>
    %149 = vector.multi_reduction <add>, %148, %cst_80 [1] : vector<4x256xf32> to vector<4xf32>
    %150 = vector.shape_cast %149 : vector<4xf32> to vector<4x1xf32>
    %cst_81 = arith.constant 2.550000e+02 : f32
    %151 = vector.broadcast %cst_81 : f32 to vector<4x1xf32>
    %152 = arith.divf %150, %151 : vector<4x1xf32>
    %153 = arith.negf %152 : vector<4x1xf32>
    %154 = math.exp %153 : vector<4x1xf32>
    %cst_82 = arith.constant 1.000000e+00 : f32
    %155 = vector.broadcast %cst_82 : f32 to vector<4x1xf32>
    %156 = arith.addf %155, %154 : vector<4x1xf32>
    %157 = arith.divf %155, %156 : vector<4x1xf32>
    %cst_83 = arith.constant 1.000000e+00 : f32
    %158 = vector.broadcast %cst_83 : f32 to vector<4x1xf32>
    %159 = arith.subf %158, %157 : vector<4x1xf32>
    %160 = arith.addf %120, %159 : vector<4x1xf32>
    %cst_84 = arith.constant 5.000000e-01 : f32
    %161 = vector.broadcast %cst_84 : f32 to vector<4x1xf32>
    %162 = arith.mulf %160, %161 : vector<4x1xf32>
    %cst_85 = arith.constant dense<0.000000e+00> : vector<4xf32>
    %163 = vector.multi_reduction <add>, %1, %cst_85 [1] : vector<4x256xf32> to vector<4xf32>
    %164 = vector.shape_cast %163 : vector<4xf32> to vector<4x1xf32>
    %cst_86 = arith.constant 2.560000e+02 : f32
    %165 = vector.broadcast %cst_86 : f32 to vector<4x1xf32>
    %166 = arith.divf %164, %165 : vector<4x1xf32>
    %167 = vector.broadcast %166 : vector<4x1xf32> to vector<4x256xf32>
    %168 = arith.subf %1, %167 : vector<4x256xf32>
    %169 = arith.mulf %168, %168 : vector<4x256xf32>
    %cst_87 = arith.constant dense<0.000000e+00> : vector<4xf32>
    %170 = vector.multi_reduction <add>, %169, %cst_87 [1] : vector<4x256xf32> to vector<4xf32>
    %171 = vector.shape_cast %170 : vector<4xf32> to vector<4x1xf32>
    %cst_88 = arith.constant 2.550000e+02 : f32
    %172 = vector.broadcast %cst_88 : f32 to vector<4x1xf32>
    %173 = arith.divf %171, %172 : vector<4x1xf32>
    %174 = arith.negf %173 : vector<4x1xf32>
    %175 = math.exp %174 : vector<4x1xf32>
    %cst_89 = arith.constant 1.000000e+00 : f32
    %176 = vector.broadcast %cst_89 : f32 to vector<4x1xf32>
    %177 = arith.addf %176, %175 : vector<4x1xf32>
    %178 = arith.divf %176, %177 : vector<4x1xf32>
    %cst_90 = arith.constant 1.000000e+00 : f32
    %179 = vector.broadcast %cst_90 : f32 to vector<4x1xf32>
    %180 = arith.subf %179, %178 : vector<4x1xf32>
    %181 = arith.addf %141, %180 : vector<4x1xf32>
    %cst_91 = arith.constant 5.000000e-01 : f32
    %182 = vector.broadcast %cst_91 : f32 to vector<4x1xf32>
    %183 = arith.mulf %181, %182 : vector<4x1xf32>
    %184 = arith.truncf %29 : vector<4x256xf32> to vector<4x256xbf16>
    %c0_92 = arith.constant 0 : index
    %c0_93 = arith.constant 0 : index
    %185 = vector.load %arg26[%c0_92, %c0_93] : memref<256x512xbf16, #tpu.memory_space<vmem>>, vector<256x512xbf16>
    %cst_94 = arith.constant dense<0.000000e+00> : vector<4x512xf32>
    %186 = tpu.matmul %184, %185, %cst_94 {dimension_numbers = #tpu.dot_dimension_numbers<[1], [0], [0], [1], [0, 0, 1, 1], [], []>} : vector<4x256xbf16>, vector<256x512xbf16>, vector<4x512xf32> -> vector<4x512xf32>
    %c0_95 = arith.constant 0 : index
    %c0_96 = arith.constant 0 : index
    %187 = vector.load %arg27[%c0_95, %c0_96] : memref<1x512xf32, #tpu.memory_space<vmem>>, vector<1x512xf32>
    %188 = vector.broadcast %187 : vector<1x512xf32> to vector<4x512xf32>
    %189 = arith.addf %186, %188 : vector<4x512xf32>
    %190 = vector.extract_strided_slice %189 {offsets = [0, 0], sizes = [4, 256], strides = [1, 1]} : vector<4x512xf32> to vector<4x256xf32>
    %191 = vector.extract_strided_slice %189 {offsets = [0, 256], sizes = [4, 256], strides = [1, 1]} : vector<4x512xf32> to vector<4x256xf32>
    %192 = arith.mulf %190, %190 : vector<4x256xf32>
    %cst_97 = arith.constant dense<0.000000e+00> : vector<4xf32>
    %193 = vector.multi_reduction <add>, %192, %cst_97 [1] : vector<4x256xf32> to vector<4xf32>
    %194 = vector.shape_cast %193 : vector<4xf32> to vector<4x1xf32>
    %195 = math.sqrt %194 : vector<4x1xf32>
    %cst_98 = arith.constant 9.99999996E-13 : f32
    %196 = vector.broadcast %cst_98 : f32 to vector<4x1xf32>
    %197 = arith.maximumf %195, %196 : vector<4x1xf32>
    %198 = vector.broadcast %197 : vector<4x1xf32> to vector<4x256xf32>
    %199 = arith.divf %190, %198 : vector<4x256xf32>
    %200 = arith.mulf %191, %191 : vector<4x256xf32>
    %cst_99 = arith.constant dense<0.000000e+00> : vector<4xf32>
    %201 = vector.multi_reduction <add>, %200, %cst_99 [1] : vector<4x256xf32> to vector<4xf32>
    %202 = vector.shape_cast %201 : vector<4xf32> to vector<4x1xf32>
    %203 = math.sqrt %202 : vector<4x1xf32>
    %cst_100 = arith.constant 9.99999996E-13 : f32
    %204 = vector.broadcast %cst_100 : f32 to vector<4x1xf32>
    %205 = arith.maximumf %203, %204 : vector<4x1xf32>
    %206 = vector.broadcast %205 : vector<4x1xf32> to vector<4x256xf32>
    %207 = arith.divf %191, %206 : vector<4x256xf32>
    %208 = arith.mulf %25, %199 : vector<4x256xf32>
    %cst_101 = arith.constant dense<0.000000e+00> : vector<4xf32>
    %209 = vector.multi_reduction <add>, %208, %cst_101 [1] : vector<4x256xf32> to vector<4xf32>
    %210 = vector.shape_cast %209 : vector<4xf32> to vector<4x1xf32>
    %cst_102 = arith.constant 1.000000e+00 : f32
    %211 = vector.broadcast %cst_102 : f32 to vector<4x1xf32>
    %212 = arith.addf %210, %211 : vector<4x1xf32>
    %cst_103 = arith.constant 5.000000e-01 : f32
    %213 = vector.broadcast %cst_103 : f32 to vector<4x1xf32>
    %214 = arith.mulf %212, %213 : vector<4x1xf32>
    %215 = arith.mulf %25, %207 : vector<4x256xf32>
    %cst_104 = arith.constant dense<0.000000e+00> : vector<4xf32>
    %216 = vector.multi_reduction <add>, %215, %cst_104 [1] : vector<4x256xf32> to vector<4xf32>
    %217 = vector.shape_cast %216 : vector<4xf32> to vector<4x1xf32>
    %cst_105 = arith.constant 1.000000e+00 : f32
    %218 = vector.broadcast %cst_105 : f32 to vector<4x1xf32>
    %219 = arith.addf %217, %218 : vector<4x1xf32>
    %cst_106 = arith.constant 5.000000e-01 : f32
    %220 = vector.broadcast %cst_106 : f32 to vector<4x1xf32>
    %221 = arith.mulf %219, %220 : vector<4x1xf32>
    %222 = arith.subf %0, %191 : vector<4x256xf32>
    %223 = arith.mulf %222, %222 : vector<4x256xf32>
    %cst_107 = arith.constant dense<0.000000e+00> : vector<4xf32>
    %224 = vector.multi_reduction <add>, %223, %cst_107 [1] : vector<4x256xf32> to vector<4xf32>
    %225 = vector.shape_cast %224 : vector<4xf32> to vector<4x1xf32>
    %226 = math.sqrt %225 : vector<4x1xf32>
    %227 = arith.addf %9, %203 : vector<4x1xf32>
    %cst_108 = arith.constant 9.99999993E-9 : f32
    %228 = vector.broadcast %cst_108 : f32 to vector<4x1xf32>
    %229 = arith.addf %227, %228 : vector<4x1xf32>
    %230 = arith.divf %226, %229 : vector<4x1xf32>
    %cst_109 = arith.constant 1.000000e+00 : f32
    %231 = vector.broadcast %cst_109 : f32 to vector<4x1xf32>
    %232 = arith.subf %231, %230 : vector<4x1xf32>
    %233 = arith.truncf %0 : vector<4x256xf32> to vector<4x256xbf16>
    %c0_110 = arith.constant 0 : index
    %c0_111 = arith.constant 0 : index
    %234 = vector.load %arg28[%c0_110, %c0_111] : memref<256x512xbf16, #tpu.memory_space<vmem>>, vector<256x512xbf16>
    %cst_112 = arith.constant dense<0.000000e+00> : vector<4x512xf32>
    %235 = tpu.matmul %233, %234, %cst_112 {dimension_numbers = #tpu.dot_dimension_numbers<[1], [0], [0], [1], [0, 0, 1, 1], [], []>} : vector<4x256xbf16>, vector<256x512xbf16>, vector<4x512xf32> -> vector<4x512xf32>
    %236 = arith.truncf %1 : vector<4x256xf32> to vector<4x256xbf16>
    %c0_113 = arith.constant 0 : index
    %c0_114 = arith.constant 0 : index
    %237 = vector.load %arg29[%c0_113, %c0_114] : memref<256x512xbf16, #tpu.memory_space<vmem>>, vector<256x512xbf16>
    %cst_115 = arith.constant dense<0.000000e+00> : vector<4x512xf32>
    %238 = tpu.matmul %236, %237, %cst_115 {dimension_numbers = #tpu.dot_dimension_numbers<[1], [0], [0], [1], [0, 0, 1, 1], [], []>} : vector<4x256xbf16>, vector<256x512xbf16>, vector<4x512xf32> -> vector<4x512xf32>
    %239 = arith.addf %235, %238 : vector<4x512xf32>
    %c0_116 = arith.constant 0 : index
    %c0_117 = arith.constant 0 : index
    %240 = vector.load %arg30[%c0_116, %c0_117] : memref<1x512xf32, #tpu.memory_space<vmem>>, vector<1x512xf32>
    %241 = vector.broadcast %240 : vector<1x512xf32> to vector<4x512xf32>
    %242 = arith.addf %239, %241 : vector<4x512xf32>
    %cst_118 = arith.constant 0.000000e+00 : f32
    %243 = vector.broadcast %cst_118 : f32 to vector<4x512xf32>
    %244 = arith.maximumf %242, %243 : vector<4x512xf32>
    %245 = arith.truncf %244 : vector<4x512xf32> to vector<4x512xbf16>
    %c0_119 = arith.constant 0 : index
    %c0_120 = arith.constant 0 : index
    %246 = vector.load %arg31[%c0_119, %c0_120] : memref<512x128xbf16, #tpu.memory_space<vmem>>, vector<512x128xbf16>
    %cst_121 = arith.constant dense<0.000000e+00> : vector<4x128xf32>
    %247 = tpu.matmul %245, %246, %cst_121 {dimension_numbers = #tpu.dot_dimension_numbers<[1], [0], [0], [1], [0, 0, 1, 1], [], []>} : vector<4x512xbf16>, vector<512x128xbf16>, vector<4x128xf32> -> vector<4x128xf32>
    %c0_122 = arith.constant 0 : index
    %c0_123 = arith.constant 0 : index
    %248 = vector.load %arg32[%c0_122, %c0_123] : memref<1x128xf32, #tpu.memory_space<vmem>>, vector<1x128xf32>
    %249 = vector.broadcast %248 : vector<1x128xf32> to vector<4x128xf32>
    %250 = arith.addf %247, %249 : vector<4x128xf32>
    %cst_124 = arith.constant 0.000000e+00 : f32
    %251 = vector.broadcast %cst_124 : f32 to vector<4x128xf32>
    %252 = arith.maximumf %250, %251 : vector<4x128xf32>
    %c0_125 = arith.constant 0 : index
    %c0_126 = arith.constant 0 : index
    %253 = vector.load %arg33[%c0_125, %c0_126] : memref<1x128xf32, #tpu.memory_space<vmem>>, vector<1x128xf32>
    %254 = vector.broadcast %253 : vector<1x128xf32> to vector<4x128xf32>
    %255 = arith.mulf %252, %254 : vector<4x128xf32>
    %cst_127 = arith.constant dense<0.000000e+00> : vector<4xf32>
    %256 = vector.multi_reduction <add>, %255, %cst_127 [1] : vector<4x128xf32> to vector<4xf32>
    %257 = vector.shape_cast %256 : vector<4xf32> to vector<4x1xf32>
    %c0_128 = arith.constant 0 : index
    %c0_129 = arith.constant 0 : index
    %258 = vector.load %arg34[%c0_128, %c0_129] : memref<1x1xf32, #tpu.memory_space<vmem>>, vector<1x1xf32>
    %259 = vector.broadcast %258 : vector<1x1xf32> to vector<4x1xf32>
    %260 = arith.addf %257, %259 : vector<4x1xf32>
    %261 = arith.negf %260 : vector<4x1xf32>
    %262 = math.exp %261 : vector<4x1xf32>
    %cst_130 = arith.constant 1.000000e+00 : f32
    %263 = vector.broadcast %cst_130 : f32 to vector<4x1xf32>
    %264 = arith.addf %263, %262 : vector<4x1xf32>
    %265 = arith.divf %263, %264 : vector<4x1xf32>
    %266 = arith.addf %221, %232 : vector<4x1xf32>
    %267 = arith.addf %266, %265 : vector<4x1xf32>
    %cst_131 = arith.constant 3.000000e+00 : f32
    %268 = vector.broadcast %cst_131 : f32 to vector<4x1xf32>
    %269 = arith.divf %267, %268 : vector<4x1xf32>
    %cst_132 = arith.constant 5.000000e-01 : f32
    %270 = vector.broadcast %cst_132 : f32 to vector<4x1xf32>
    %271 = arith.cmpf ogt, %4, %270 : vector<4x1xf32>
    %272 = vector.shape_cast %271 : vector<4x1xi1> to vector<4x1xi1>
    %273 = vector.broadcast %272 : vector<4x1xi1> to vector<4x256xi1>
    %274 = arith.select %273, %2, %0 : vector<4x256xi1>, vector<4x256xf32>
    %cst_133 = arith.constant 5.000000e-01 : f32
    %275 = vector.broadcast %cst_133 : f32 to vector<4x1xf32>
    %276 = arith.cmpf ogt, %5, %275 : vector<4x1xf32>
    %277 = vector.shape_cast %276 : vector<4x1xi1> to vector<4x1xi1>
    %278 = vector.broadcast %277 : vector<4x1xi1> to vector<4x256xi1>
    %279 = arith.select %278, %3, %1 : vector<4x256xi1>, vector<4x256xf32>
    %280 = math.absf %274 : vector<4x256xf32>
    %281 = arith.mulf %274, %274 : vector<4x256xf32>
    %cst_134 = arith.constant dense<0.000000e+00> : vector<4xf32>
    %282 = vector.multi_reduction <add>, %281, %cst_134 [1] : vector<4x256xf32> to vector<4xf32>
    %283 = vector.shape_cast %282 : vector<4xf32> to vector<4x1xf32>
    %284 = math.sqrt %283 : vector<4x1xf32>
    %cst_135 = arith.constant 1.600000e+01 : f32
    %285 = vector.broadcast %cst_135 : f32 to vector<4x1xf32>
    %286 = arith.subf %284, %285 : vector<4x1xf32>
    %287 = math.absf %286 : vector<4x1xf32>
    %cst_136 = arith.constant 1.600000e+01 : f32
    %288 = vector.broadcast %cst_136 : f32 to vector<4x1xf32>
    %289 = arith.divf %287, %288 : vector<4x1xf32>
    %cst_137 = arith.constant 0.000000e+00 : f32
    %cst_138 = arith.constant 1.000000e+01 : f32
    %290 = vector.broadcast %cst_137 : f32 to vector<4x1xf32>
    %291 = arith.maximumf %290, %289 : vector<4x1xf32>
    %292 = vector.broadcast %cst_138 : f32 to vector<4x1xf32>
    %293 = arith.minimumf %292, %291 : vector<4x1xf32>
    %cst_139 = arith.constant 0.000000e+00 : f32
    %294 = vector.broadcast %cst_139 : f32 to vector<4x1xf32>
    %295 = arith.subf %294, %293 : vector<4x1xf32>
    %296 = math.exp %295 : vector<4x1xf32>
    %cst_140 = arith.constant 9.99999997E-7 : f32
    %cst_141 = arith.constant 1.000000e+00 : f32
    %297 = vector.broadcast %cst_140 : f32 to vector<4x1xf32>
    %298 = arith.maximumf %297, %296 : vector<4x1xf32>
    %299 = vector.broadcast %cst_141 : f32 to vector<4x1xf32>
    %300 = arith.minimumf %299, %298 : vector<4x1xf32>
    %cst_142 = arith.constant 9.99999993E-9 : f32
    %301 = vector.broadcast %cst_142 : f32 to vector<4x256xf32>
    %302 = arith.addf %280, %301 : vector<4x256xf32>
    %cst_143 = arith.constant dense<0xFF800000> : vector<4xf32>
    %303 = vector.multi_reduction <maximumf>, %302, %cst_143 [1] : vector<4x256xf32> to vector<4xf32>
    %304 = vector.shape_cast %303 : vector<4xf32> to vector<4x1xf32>
    %305 = vector.broadcast %304 : vector<4x1xf32> to vector<4x256xf32>
    %306 = arith.subf %302, %305 : vector<4x256xf32>
    %307 = math.exp %306 : vector<4x256xf32>
    %cst_144 = arith.constant dense<0.000000e+00> : vector<4xf32>
    %308 = vector.multi_reduction <add>, %307, %cst_144 [1] : vector<4x256xf32> to vector<4xf32>
    %309 = vector.shape_cast %308 : vector<4xf32> to vector<4x1xf32>
    %310 = vector.broadcast %309 : vector<4x1xf32> to vector<4x256xf32>
    %311 = arith.divf %307, %310 : vector<4x256xf32>
    %cst_145 = arith.constant 9.99999993E-9 : f32
    %312 = vector.broadcast %cst_145 : f32 to vector<4x256xf32>
    %313 = arith.addf %311, %312 : vector<4x256xf32>
    %314 = math.log %313 : vector<4x256xf32>
    %315 = arith.mulf %311, %314 : vector<4x256xf32>
    %cst_146 = arith.constant dense<0.000000e+00> : vector<4xf32>
    %316 = vector.multi_reduction <add>, %315, %cst_146 [1] : vector<4x256xf32> to vector<4xf32>
    %317 = vector.shape_cast %316 : vector<4xf32> to vector<4x1xf32>
    %cst_147 = arith.constant 0.000000e+00 : f32
    %318 = vector.broadcast %cst_147 : f32 to vector<4x1xf32>
    %319 = arith.subf %318, %317 : vector<4x1xf32>
    %cst_148 = arith.constant 5.54517746 : f32
    %320 = vector.broadcast %cst_148 : f32 to vector<4x1xf32>
    %321 = arith.divf %319, %320 : vector<4x1xf32>
    %cst_149 = arith.constant 9.99999997E-7 : f32
    %cst_150 = arith.constant 1.000000e+00 : f32
    %322 = vector.broadcast %cst_149 : f32 to vector<4x1xf32>
    %323 = arith.maximumf %322, %321 : vector<4x1xf32>
    %324 = vector.broadcast %cst_150 : f32 to vector<4x1xf32>
    %325 = arith.minimumf %324, %323 : vector<4x1xf32>
    %cst_151 = arith.constant 0.00999999977 : f32
    %326 = vector.broadcast %cst_151 : f32 to vector<4x256xf32>
    %327 = arith.cmpf olt, %280, %326 : vector<4x256xf32>
    %328 = arith.extui %327 : vector<4x256xi1> to vector<4x256xi32>
    %329 = arith.sitofp %328 : vector<4x256xi32> to vector<4x256xf32>
    %cst_152 = arith.constant dense<0.000000e+00> : vector<4xf32>
    %330 = vector.multi_reduction <add>, %329, %cst_152 [1] : vector<4x256xf32> to vector<4xf32>
    %331 = vector.shape_cast %330 : vector<4xf32> to vector<4x1xf32>
    %cst_153 = arith.constant 2.560000e+02 : f32
    %332 = vector.broadcast %cst_153 : f32 to vector<4x1xf32>
    %333 = arith.divf %331, %332 : vector<4x1xf32>
    %cst_154 = arith.constant 1.000000e-01 : f32
    %334 = vector.broadcast %cst_154 : f32 to vector<4x1xf32>
    %335 = arith.subf %333, %334 : vector<4x1xf32>
    %336 = math.absf %335 : vector<4x1xf32>
    %cst_155 = arith.constant 0.000000e+00 : f32
    %337 = vector.broadcast %cst_155 : f32 to vector<4x1xf32>
    %338 = arith.subf %337, %336 : vector<4x1xf32>
    %cst_156 = arith.constant 0.100000009 : f32
    %339 = vector.broadcast %cst_156 : f32 to vector<4x1xf32>
    %340 = arith.divf %338, %339 : vector<4x1xf32>
    %341 = math.exp %340 : vector<4x1xf32>
    %cst_157 = arith.constant 9.99999997E-7 : f32
    %cst_158 = arith.constant 1.000000e+00 : f32
    %342 = vector.broadcast %cst_157 : f32 to vector<4x1xf32>
    %343 = arith.maximumf %342, %341 : vector<4x1xf32>
    %344 = vector.broadcast %cst_158 : f32 to vector<4x1xf32>
    %345 = arith.minimumf %344, %343 : vector<4x1xf32>
    %cst_159 = arith.constant dense<0.000000e+00> : vector<4xf32>
    %346 = vector.multi_reduction <add>, %274, %cst_159 [1] : vector<4x256xf32> to vector<4xf32>
    %347 = vector.shape_cast %346 : vector<4xf32> to vector<4x1xf32>
    %cst_160 = arith.constant 2.560000e+02 : f32
    %348 = vector.broadcast %cst_160 : f32 to vector<4x1xf32>
    %349 = arith.divf %347, %348 : vector<4x1xf32>
    %350 = vector.broadcast %349 : vector<4x1xf32> to vector<4x256xf32>
    %351 = arith.subf %274, %350 : vector<4x256xf32>
    %352 = arith.mulf %351, %351 : vector<4x256xf32>
    %cst_161 = arith.constant dense<0.000000e+00> : vector<4xf32>
    %353 = vector.multi_reduction <add>, %352, %cst_161 [1] : vector<4x256xf32> to vector<4xf32>
    %354 = vector.shape_cast %353 : vector<4xf32> to vector<4x1xf32>
    %cst_162 = arith.constant 2.550000e+02 : f32
    %355 = vector.broadcast %cst_162 : f32 to vector<4x1xf32>
    %356 = arith.divf %354, %355 : vector<4x1xf32>
    %cst_163 = arith.constant 1.000000e-01 : f32
    %357 = vector.broadcast %cst_163 : f32 to vector<4x1xf32>
    %358 = arith.subf %356, %357 : vector<4x1xf32>
    %359 = arith.negf %358 : vector<4x1xf32>
    %360 = math.exp %359 : vector<4x1xf32>
    %cst_164 = arith.constant 1.000000e+00 : f32
    %361 = vector.broadcast %cst_164 : f32 to vector<4x1xf32>
    %362 = arith.addf %361, %360 : vector<4x1xf32>
    %363 = arith.divf %361, %362 : vector<4x1xf32>
    %cst_165 = arith.constant 9.99999997E-7 : f32
    %cst_166 = arith.constant 1.000000e+00 : f32
    %364 = vector.broadcast %cst_165 : f32 to vector<4x1xf32>
    %365 = arith.maximumf %364, %363 : vector<4x1xf32>
    %366 = vector.broadcast %cst_166 : f32 to vector<4x1xf32>
    %367 = arith.minimumf %366, %365 : vector<4x1xf32>
    %cst_167 = arith.constant dense<0xFF800000> : vector<4xf32>
    %368 = vector.multi_reduction <maximumf>, %280, %cst_167 [1] : vector<4x256xf32> to vector<4xf32>
    %369 = vector.shape_cast %368 : vector<4xf32> to vector<4x1xf32>
    %cst_168 = arith.constant dense<0.000000e+00> : vector<4xf32>
    %370 = vector.multi_reduction <add>, %280, %cst_168 [1] : vector<4x256xf32> to vector<4xf32>
    %371 = vector.shape_cast %370 : vector<4xf32> to vector<4x1xf32>
    %cst_169 = arith.constant 2.560000e+02 : f32
    %372 = vector.broadcast %cst_169 : f32 to vector<4x1xf32>
    %373 = arith.divf %371, %372 : vector<4x1xf32>
    %cst_170 = arith.constant 9.99999993E-9 : f32
    %374 = vector.broadcast %cst_170 : f32 to vector<4x1xf32>
    %375 = arith.addf %373, %374 : vector<4x1xf32>
    %376 = arith.divf %369, %375 : vector<4x1xf32>
    %cst_171 = arith.constant 5.000000e+00 : f32
    %377 = vector.broadcast %cst_171 : f32 to vector<4x1xf32>
    %378 = arith.subf %377, %376 : vector<4x1xf32>
    %379 = arith.negf %378 : vector<4x1xf32>
    %380 = math.exp %379 : vector<4x1xf32>
    %cst_172 = arith.constant 1.000000e+00 : f32
    %381 = vector.broadcast %cst_172 : f32 to vector<4x1xf32>
    %382 = arith.addf %381, %380 : vector<4x1xf32>
    %383 = arith.divf %381, %382 : vector<4x1xf32>
    %cst_173 = arith.constant 9.99999997E-7 : f32
    %cst_174 = arith.constant 1.000000e+00 : f32
    %384 = vector.broadcast %cst_173 : f32 to vector<4x1xf32>
    %385 = arith.maximumf %384, %383 : vector<4x1xf32>
    %386 = vector.broadcast %cst_174 : f32 to vector<4x1xf32>
    %387 = arith.minimumf %386, %385 : vector<4x1xf32>
    %388 = math.absf %279 : vector<4x256xf32>
    %389 = arith.mulf %279, %279 : vector<4x256xf32>
    %cst_175 = arith.constant dense<0.000000e+00> : vector<4xf32>
    %390 = vector.multi_reduction <add>, %389, %cst_175 [1] : vector<4x256xf32> to vector<4xf32>
    %391 = vector.shape_cast %390 : vector<4xf32> to vector<4x1xf32>
    %392 = math.sqrt %391 : vector<4x1xf32>
    %cst_176 = arith.constant 1.600000e+01 : f32
    %393 = vector.broadcast %cst_176 : f32 to vector<4x1xf32>
    %394 = arith.subf %392, %393 : vector<4x1xf32>
    %395 = math.absf %394 : vector<4x1xf32>
    %cst_177 = arith.constant 1.600000e+01 : f32
    %396 = vector.broadcast %cst_177 : f32 to vector<4x1xf32>
    %397 = arith.divf %395, %396 : vector<4x1xf32>
    %cst_178 = arith.constant 0.000000e+00 : f32
    %cst_179 = arith.constant 1.000000e+01 : f32
    %398 = vector.broadcast %cst_178 : f32 to vector<4x1xf32>
    %399 = arith.maximumf %398, %397 : vector<4x1xf32>
    %400 = vector.broadcast %cst_179 : f32 to vector<4x1xf32>
    %401 = arith.minimumf %400, %399 : vector<4x1xf32>
    %cst_180 = arith.constant 0.000000e+00 : f32
    %402 = vector.broadcast %cst_180 : f32 to vector<4x1xf32>
    %403 = arith.subf %402, %401 : vector<4x1xf32>
    %404 = math.exp %403 : vector<4x1xf32>
    %cst_181 = arith.constant 9.99999997E-7 : f32
    %cst_182 = arith.constant 1.000000e+00 : f32
    %405 = vector.broadcast %cst_181 : f32 to vector<4x1xf32>
    %406 = arith.maximumf %405, %404 : vector<4x1xf32>
    %407 = vector.broadcast %cst_182 : f32 to vector<4x1xf32>
    %408 = arith.minimumf %407, %406 : vector<4x1xf32>
    %cst_183 = arith.constant 9.99999993E-9 : f32
    %409 = vector.broadcast %cst_183 : f32 to vector<4x256xf32>
    %410 = arith.addf %388, %409 : vector<4x256xf32>
    %cst_184 = arith.constant dense<0xFF800000> : vector<4xf32>
    %411 = vector.multi_reduction <maximumf>, %410, %cst_184 [1] : vector<4x256xf32> to vector<4xf32>
    %412 = vector.shape_cast %411 : vector<4xf32> to vector<4x1xf32>
    %413 = vector.broadcast %412 : vector<4x1xf32> to vector<4x256xf32>
    %414 = arith.subf %410, %413 : vector<4x256xf32>
    %415 = math.exp %414 : vector<4x256xf32>
    %cst_185 = arith.constant dense<0.000000e+00> : vector<4xf32>
    %416 = vector.multi_reduction <add>, %415, %cst_185 [1] : vector<4x256xf32> to vector<4xf32>
    %417 = vector.shape_cast %416 : vector<4xf32> to vector<4x1xf32>
    %418 = vector.broadcast %417 : vector<4x1xf32> to vector<4x256xf32>
    %419 = arith.divf %415, %418 : vector<4x256xf32>
    %cst_186 = arith.constant 9.99999993E-9 : f32
    %420 = vector.broadcast %cst_186 : f32 to vector<4x256xf32>
    %421 = arith.addf %419, %420 : vector<4x256xf32>
    %422 = math.log %421 : vector<4x256xf32>
    %423 = arith.mulf %419, %422 : vector<4x256xf32>
    %cst_187 = arith.constant dense<0.000000e+00> : vector<4xf32>
    %424 = vector.multi_reduction <add>, %423, %cst_187 [1] : vector<4x256xf32> to vector<4xf32>
    %425 = vector.shape_cast %424 : vector<4xf32> to vector<4x1xf32>
    %cst_188 = arith.constant 0.000000e+00 : f32
    %426 = vector.broadcast %cst_188 : f32 to vector<4x1xf32>
    %427 = arith.subf %426, %425 : vector<4x1xf32>
    %cst_189 = arith.constant 5.54517746 : f32
    %428 = vector.broadcast %cst_189 : f32 to vector<4x1xf32>
    %429 = arith.divf %427, %428 : vector<4x1xf32>
    %cst_190 = arith.constant 9.99999997E-7 : f32
    %cst_191 = arith.constant 1.000000e+00 : f32
    %430 = vector.broadcast %cst_190 : f32 to vector<4x1xf32>
    %431 = arith.maximumf %430, %429 : vector<4x1xf32>
    %432 = vector.broadcast %cst_191 : f32 to vector<4x1xf32>
    %433 = arith.minimumf %432, %431 : vector<4x1xf32>
    %cst_192 = arith.constant 0.00999999977 : f32
    %434 = vector.broadcast %cst_192 : f32 to vector<4x256xf32>
    %435 = arith.cmpf olt, %388, %434 : vector<4x256xf32>
    %436 = arith.extui %435 : vector<4x256xi1> to vector<4x256xi32>
    %437 = arith.sitofp %436 : vector<4x256xi32> to vector<4x256xf32>
    %cst_193 = arith.constant dense<0.000000e+00> : vector<4xf32>
    %438 = vector.multi_reduction <add>, %437, %cst_193 [1] : vector<4x256xf32> to vector<4xf32>
    %439 = vector.shape_cast %438 : vector<4xf32> to vector<4x1xf32>
    %cst_194 = arith.constant 2.560000e+02 : f32
    %440 = vector.broadcast %cst_194 : f32 to vector<4x1xf32>
    %441 = arith.divf %439, %440 : vector<4x1xf32>
    %cst_195 = arith.constant 1.000000e-01 : f32
    %442 = vector.broadcast %cst_195 : f32 to vector<4x1xf32>
    %443 = arith.subf %441, %442 : vector<4x1xf32>
    %444 = math.absf %443 : vector<4x1xf32>
    %cst_196 = arith.constant 0.000000e+00 : f32
    %445 = vector.broadcast %cst_196 : f32 to vector<4x1xf32>
    %446 = arith.subf %445, %444 : vector<4x1xf32>
    %cst_197 = arith.constant 0.100000009 : f32
    %447 = vector.broadcast %cst_197 : f32 to vector<4x1xf32>
    %448 = arith.divf %446, %447 : vector<4x1xf32>
    %449 = math.exp %448 : vector<4x1xf32>
    %cst_198 = arith.constant 9.99999997E-7 : f32
    %cst_199 = arith.constant 1.000000e+00 : f32
    %450 = vector.broadcast %cst_198 : f32 to vector<4x1xf32>
    %451 = arith.maximumf %450, %449 : vector<4x1xf32>
    %452 = vector.broadcast %cst_199 : f32 to vector<4x1xf32>
    %453 = arith.minimumf %452, %451 : vector<4x1xf32>
    %cst_200 = arith.constant dense<0.000000e+00> : vector<4xf32>
    %454 = vector.multi_reduction <add>, %279, %cst_200 [1] : vector<4x256xf32> to vector<4xf32>
    %455 = vector.shape_cast %454 : vector<4xf32> to vector<4x1xf32>
    %cst_201 = arith.constant 2.560000e+02 : f32
    %456 = vector.broadcast %cst_201 : f32 to vector<4x1xf32>
    %457 = arith.divf %455, %456 : vector<4x1xf32>
    %458 = vector.broadcast %457 : vector<4x1xf32> to vector<4x256xf32>
    %459 = arith.subf %279, %458 : vector<4x256xf32>
    %460 = arith.mulf %459, %459 : vector<4x256xf32>
    %cst_202 = arith.constant dense<0.000000e+00> : vector<4xf32>
    %461 = vector.multi_reduction <add>, %460, %cst_202 [1] : vector<4x256xf32> to vector<4xf32>
    %462 = vector.shape_cast %461 : vector<4xf32> to vector<4x1xf32>
    %cst_203 = arith.constant 2.550000e+02 : f32
    %463 = vector.broadcast %cst_203 : f32 to vector<4x1xf32>
    %464 = arith.divf %462, %463 : vector<4x1xf32>
    %cst_204 = arith.constant 1.000000e-01 : f32
    %465 = vector.broadcast %cst_204 : f32 to vector<4x1xf32>
    %466 = arith.subf %464, %465 : vector<4x1xf32>
    %467 = arith.negf %466 : vector<4x1xf32>
    %468 = math.exp %467 : vector<4x1xf32>
    %cst_205 = arith.constant 1.000000e+00 : f32
    %469 = vector.broadcast %cst_205 : f32 to vector<4x1xf32>
    %470 = arith.addf %469, %468 : vector<4x1xf32>
    %471 = arith.divf %469, %470 : vector<4x1xf32>
    %cst_206 = arith.constant 9.99999997E-7 : f32
    %cst_207 = arith.constant 1.000000e+00 : f32
    %472 = vector.broadcast %cst_206 : f32 to vector<4x1xf32>
    %473 = arith.maximumf %472, %471 : vector<4x1xf32>
    %474 = vector.broadcast %cst_207 : f32 to vector<4x1xf32>
    %475 = arith.minimumf %474, %473 : vector<4x1xf32>
    %cst_208 = arith.constant dense<0xFF800000> : vector<4xf32>
    %476 = vector.multi_reduction <maximumf>, %388, %cst_208 [1] : vector<4x256xf32> to vector<4xf32>
    %477 = vector.shape_cast %476 : vector<4xf32> to vector<4x1xf32>
    %cst_209 = arith.constant dense<0.000000e+00> : vector<4xf32>
    %478 = vector.multi_reduction <add>, %388, %cst_209 [1] : vector<4x256xf32> to vector<4xf32>
    %479 = vector.shape_cast %478 : vector<4xf32> to vector<4x1xf32>
    %cst_210 = arith.constant 2.560000e+02 : f32
    %480 = vector.broadcast %cst_210 : f32 to vector<4x1xf32>
    %481 = arith.divf %479, %480 : vector<4x1xf32>
    %cst_211 = arith.constant 9.99999993E-9 : f32
    %482 = vector.broadcast %cst_211 : f32 to vector<4x1xf32>
    %483 = arith.addf %481, %482 : vector<4x1xf32>
    %484 = arith.divf %477, %483 : vector<4x1xf32>
    %cst_212 = arith.constant 5.000000e+00 : f32
    %485 = vector.broadcast %cst_212 : f32 to vector<4x1xf32>
    %486 = arith.subf %485, %484 : vector<4x1xf32>
    %487 = arith.negf %486 : vector<4x1xf32>
    %488 = math.exp %487 : vector<4x1xf32>
    %cst_213 = arith.constant 1.000000e+00 : f32
    %489 = vector.broadcast %cst_213 : f32 to vector<4x1xf32>
    %490 = arith.addf %489, %488 : vector<4x1xf32>
    %491 = arith.divf %489, %490 : vector<4x1xf32>
    %cst_214 = arith.constant 9.99999997E-7 : f32
    %cst_215 = arith.constant 1.000000e+00 : f32
    %492 = vector.broadcast %cst_214 : f32 to vector<4x1xf32>
    %493 = arith.maximumf %492, %491 : vector<4x1xf32>
    %494 = vector.broadcast %cst_215 : f32 to vector<4x1xf32>
    %495 = arith.minimumf %494, %493 : vector<4x1xf32>
    %496 = arith.mulf %25, %33 : vector<4x256xf32>
    %cst_216 = arith.constant dense<0.000000e+00> : vector<4xf32>
    %497 = vector.multi_reduction <add>, %496, %cst_216 [1] : vector<4x256xf32> to vector<4xf32>
    %498 = vector.shape_cast %497 : vector<4xf32> to vector<4x1xf32>
    %cst_217 = arith.constant 1.000000e+00 : f32
    %499 = vector.broadcast %cst_217 : f32 to vector<4x1xf32>
    %500 = arith.addf %498, %499 : vector<4x1xf32>
    %cst_218 = arith.constant 5.000000e-01 : f32
    %501 = vector.broadcast %cst_218 : f32 to vector<4x1xf32>
    %502 = arith.mulf %500, %501 : vector<4x1xf32>
    %503 = arith.subf %0, %2 : vector<4x256xf32>
    %504 = arith.mulf %503, %503 : vector<4x256xf32>
    %cst_219 = arith.constant dense<0.000000e+00> : vector<4xf32>
    %505 = vector.multi_reduction <add>, %504, %cst_219 [1] : vector<4x256xf32> to vector<4xf32>
    %506 = vector.shape_cast %505 : vector<4xf32> to vector<4x1xf32>
    %507 = math.sqrt %506 : vector<4x1xf32>
    %508 = arith.addf %9, %17 : vector<4x1xf32>
    %cst_220 = arith.constant 9.99999993E-9 : f32
    %509 = vector.broadcast %cst_220 : f32 to vector<4x1xf32>
    %510 = arith.addf %508, %509 : vector<4x1xf32>
    %511 = arith.divf %507, %510 : vector<4x1xf32>
    %cst_221 = arith.constant 1.000000e+00 : f32
    %512 = vector.broadcast %cst_221 : f32 to vector<4x1xf32>
    %513 = arith.subf %512, %511 : vector<4x1xf32>
    %514 = arith.truncf %0 : vector<4x256xf32> to vector<4x256xbf16>
    %c0_222 = arith.constant 0 : index
    %c0_223 = arith.constant 0 : index
    %515 = vector.load %arg35[%c0_222, %c0_223] : memref<256x512xbf16, #tpu.memory_space<vmem>>, vector<256x512xbf16>
    %cst_224 = arith.constant dense<0.000000e+00> : vector<4x512xf32>
    %516 = tpu.matmul %514, %515, %cst_224 {dimension_numbers = #tpu.dot_dimension_numbers<[1], [0], [0], [1], [0, 0, 1, 1], [], []>} : vector<4x256xbf16>, vector<256x512xbf16>, vector<4x512xf32> -> vector<4x512xf32>
    %517 = arith.truncf %2 : vector<4x256xf32> to vector<4x256xbf16>
    %c0_225 = arith.constant 0 : index
    %c0_226 = arith.constant 0 : index
    %518 = vector.load %arg36[%c0_225, %c0_226] : memref<256x512xbf16, #tpu.memory_space<vmem>>, vector<256x512xbf16>
    %cst_227 = arith.constant dense<0.000000e+00> : vector<4x512xf32>
    %519 = tpu.matmul %517, %518, %cst_227 {dimension_numbers = #tpu.dot_dimension_numbers<[1], [0], [0], [1], [0, 0, 1, 1], [], []>} : vector<4x256xbf16>, vector<256x512xbf16>, vector<4x512xf32> -> vector<4x512xf32>
    %520 = arith.addf %516, %519 : vector<4x512xf32>
    %c0_228 = arith.constant 0 : index
    %c0_229 = arith.constant 0 : index
    %521 = vector.load %arg37[%c0_228, %c0_229] : memref<1x512xf32, #tpu.memory_space<vmem>>, vector<1x512xf32>
    %522 = vector.broadcast %521 : vector<1x512xf32> to vector<4x512xf32>
    %523 = arith.addf %520, %522 : vector<4x512xf32>
    %cst_230 = arith.constant 0.000000e+00 : f32
    %524 = vector.broadcast %cst_230 : f32 to vector<4x512xf32>
    %525 = arith.maximumf %523, %524 : vector<4x512xf32>
    %526 = arith.truncf %525 : vector<4x512xf32> to vector<4x512xbf16>
    %c0_231 = arith.constant 0 : index
    %c0_232 = arith.constant 0 : index
    %527 = vector.load %arg38[%c0_231, %c0_232] : memref<512x128xbf16, #tpu.memory_space<vmem>>, vector<512x128xbf16>
    %cst_233 = arith.constant dense<0.000000e+00> : vector<4x128xf32>
    %528 = tpu.matmul %526, %527, %cst_233 {dimension_numbers = #tpu.dot_dimension_numbers<[1], [0], [0], [1], [0, 0, 1, 1], [], []>} : vector<4x512xbf16>, vector<512x128xbf16>, vector<4x128xf32> -> vector<4x128xf32>
    %c0_234 = arith.constant 0 : index
    %c0_235 = arith.constant 0 : index
    %529 = vector.load %arg39[%c0_234, %c0_235] : memref<1x128xf32, #tpu.memory_space<vmem>>, vector<1x128xf32>
    %530 = vector.broadcast %529 : vector<1x128xf32> to vector<4x128xf32>
    %531 = arith.addf %528, %530 : vector<4x128xf32>
    %cst_236 = arith.constant 0.000000e+00 : f32
    %532 = vector.broadcast %cst_236 : f32 to vector<4x128xf32>
    %533 = arith.maximumf %531, %532 : vector<4x128xf32>
    %c0_237 = arith.constant 0 : index
    %c0_238 = arith.constant 0 : index
    %534 = vector.load %arg40[%c0_237, %c0_238] : memref<1x128xf32, #tpu.memory_space<vmem>>, vector<1x128xf32>
    %535 = vector.broadcast %534 : vector<1x128xf32> to vector<4x128xf32>
    %536 = arith.mulf %533, %535 : vector<4x128xf32>
    %cst_239 = arith.constant dense<0.000000e+00> : vector<4xf32>
    %537 = vector.multi_reduction <add>, %536, %cst_239 [1] : vector<4x128xf32> to vector<4xf32>
    %538 = vector.shape_cast %537 : vector<4xf32> to vector<4x1xf32>
    %c0_240 = arith.constant 0 : index
    %c0_241 = arith.constant 0 : index
    %539 = vector.load %arg41[%c0_240, %c0_241] : memref<1x1xf32, #tpu.memory_space<vmem>>, vector<1x1xf32>
    %540 = vector.broadcast %539 : vector<1x1xf32> to vector<4x1xf32>
    %541 = arith.addf %538, %540 : vector<4x1xf32>
    %542 = arith.negf %541 : vector<4x1xf32>
    %543 = math.exp %542 : vector<4x1xf32>
    %cst_242 = arith.constant 1.000000e+00 : f32
    %544 = vector.broadcast %cst_242 : f32 to vector<4x1xf32>
    %545 = arith.addf %544, %543 : vector<4x1xf32>
    %546 = arith.divf %544, %545 : vector<4x1xf32>
    %cst_243 = arith.constant 4.000000e-01 : f32
    %547 = vector.broadcast %cst_243 : f32 to vector<4x1xf32>
    %548 = arith.mulf %547, %502 : vector<4x1xf32>
    %cst_244 = arith.constant 3.000000e-01 : f32
    %549 = vector.broadcast %cst_244 : f32 to vector<4x1xf32>
    %550 = arith.mulf %549, %513 : vector<4x1xf32>
    %551 = arith.addf %548, %550 : vector<4x1xf32>
    %cst_245 = arith.constant 3.000000e-01 : f32
    %552 = vector.broadcast %cst_245 : f32 to vector<4x1xf32>
    %553 = arith.mulf %552, %546 : vector<4x1xf32>
    %554 = arith.addf %551, %553 : vector<4x1xf32>
    %cst_246 = arith.constant 1.000000e-01 : f32
    %cst_247 = arith.constant 0.949999988 : f32
    %555 = vector.broadcast %cst_246 : f32 to vector<4x1xf32>
    %556 = arith.maximumf %555, %554 : vector<4x1xf32>
    %557 = vector.broadcast %cst_247 : f32 to vector<4x1xf32>
    %558 = arith.minimumf %557, %556 : vector<4x1xf32>
    %cst_248 = arith.constant 5.000000e-01 : f32
    %559 = vector.broadcast %cst_248 : f32 to vector<4x1xf32>
    %560 = arith.cmpf ogt, %4, %559 : vector<4x1xf32>
    %cst_249 = arith.constant 0.949999988 : f32
    %561 = vector.broadcast %cst_249 : f32 to vector<4x1xf32>
    %562 = arith.select %560, %558, %561 : vector<4x1xi1>, vector<4x1xf32>
    %563 = arith.mulf %29, %37 : vector<4x256xf32>
    %cst_250 = arith.constant dense<0.000000e+00> : vector<4xf32>
    %564 = vector.multi_reduction <add>, %563, %cst_250 [1] : vector<4x256xf32> to vector<4xf32>
    %565 = vector.shape_cast %564 : vector<4xf32> to vector<4x1xf32>
    %cst_251 = arith.constant 1.000000e+00 : f32
    %566 = vector.broadcast %cst_251 : f32 to vector<4x1xf32>
    %567 = arith.addf %565, %566 : vector<4x1xf32>
    %cst_252 = arith.constant 5.000000e-01 : f32
    %568 = vector.broadcast %cst_252 : f32 to vector<4x1xf32>
    %569 = arith.mulf %567, %568 : vector<4x1xf32>
    %570 = arith.subf %1, %3 : vector<4x256xf32>
    %571 = arith.mulf %570, %570 : vector<4x256xf32>
    %cst_253 = arith.constant dense<0.000000e+00> : vector<4xf32>
    %572 = vector.multi_reduction <add>, %571, %cst_253 [1] : vector<4x256xf32> to vector<4xf32>
    %573 = vector.shape_cast %572 : vector<4xf32> to vector<4x1xf32>
    %574 = math.sqrt %573 : vector<4x1xf32>
    %575 = arith.addf %13, %21 : vector<4x1xf32>
    %cst_254 = arith.constant 9.99999993E-9 : f32
    %576 = vector.broadcast %cst_254 : f32 to vector<4x1xf32>
    %577 = arith.addf %575, %576 : vector<4x1xf32>
    %578 = arith.divf %574, %577 : vector<4x1xf32>
    %cst_255 = arith.constant 1.000000e+00 : f32
    %579 = vector.broadcast %cst_255 : f32 to vector<4x1xf32>
    %580 = arith.subf %579, %578 : vector<4x1xf32>
    %581 = arith.truncf %1 : vector<4x256xf32> to vector<4x256xbf16>
    %c0_256 = arith.constant 0 : index
    %c0_257 = arith.constant 0 : index
    %582 = vector.load %arg42[%c0_256, %c0_257] : memref<256x512xbf16, #tpu.memory_space<vmem>>, vector<256x512xbf16>
    %cst_258 = arith.constant dense<0.000000e+00> : vector<4x512xf32>
    %583 = tpu.matmul %581, %582, %cst_258 {dimension_numbers = #tpu.dot_dimension_numbers<[1], [0], [0], [1], [0, 0, 1, 1], [], []>} : vector<4x256xbf16>, vector<256x512xbf16>, vector<4x512xf32> -> vector<4x512xf32>
    %584 = arith.truncf %3 : vector<4x256xf32> to vector<4x256xbf16>
    %c0_259 = arith.constant 0 : index
    %c0_260 = arith.constant 0 : index
    %585 = vector.load %arg43[%c0_259, %c0_260] : memref<256x512xbf16, #tpu.memory_space<vmem>>, vector<256x512xbf16>
    %cst_261 = arith.constant dense<0.000000e+00> : vector<4x512xf32>
    %586 = tpu.matmul %584, %585, %cst_261 {dimension_numbers = #tpu.dot_dimension_numbers<[1], [0], [0], [1], [0, 0, 1, 1], [], []>} : vector<4x256xbf16>, vector<256x512xbf16>, vector<4x512xf32> -> vector<4x512xf32>
    %587 = arith.addf %583, %586 : vector<4x512xf32>
    %c0_262 = arith.constant 0 : index
    %c0_263 = arith.constant 0 : index
    %588 = vector.load %arg44[%c0_262, %c0_263] : memref<1x512xf32, #tpu.memory_space<vmem>>, vector<1x512xf32>
    %589 = vector.broadcast %588 : vector<1x512xf32> to vector<4x512xf32>
    %590 = arith.addf %587, %589 : vector<4x512xf32>
    %cst_264 = arith.constant 0.000000e+00 : f32
    %591 = vector.broadcast %cst_264 : f32 to vector<4x512xf32>
    %592 = arith.maximumf %590, %591 : vector<4x512xf32>
    %593 = arith.truncf %592 : vector<4x512xf32> to vector<4x512xbf16>
    %c0_265 = arith.constant 0 : index
    %c0_266 = arith.constant 0 : index
    %594 = vector.load %arg45[%c0_265, %c0_266] : memref<512x128xbf16, #tpu.memory_space<vmem>>, vector<512x128xbf16>
    %cst_267 = arith.constant dense<0.000000e+00> : vector<4x128xf32>
    %595 = tpu.matmul %593, %594, %cst_267 {dimension_numbers = #tpu.dot_dimension_numbers<[1], [0], [0], [1], [0, 0, 1, 1], [], []>} : vector<4x512xbf16>, vector<512x128xbf16>, vector<4x128xf32> -> vector<4x128xf32>
    %c0_268 = arith.constant 0 : index
    %c0_269 = arith.constant 0 : index
    %596 = vector.load %arg46[%c0_268, %c0_269] : memref<1x128xf32, #tpu.memory_space<vmem>>, vector<1x128xf32>
    %597 = vector.broadcast %596 : vector<1x128xf32> to vector<4x128xf32>
    %598 = arith.addf %595, %597 : vector<4x128xf32>
    %cst_270 = arith.constant 0.000000e+00 : f32
    %599 = vector.broadcast %cst_270 : f32 to vector<4x128xf32>
    %600 = arith.maximumf %598, %599 : vector<4x128xf32>
    %c0_271 = arith.constant 0 : index
    %c0_272 = arith.constant 0 : index
    %601 = vector.load %arg47[%c0_271, %c0_272] : memref<1x128xf32, #tpu.memory_space<vmem>>, vector<1x128xf32>
    %602 = vector.broadcast %601 : vector<1x128xf32> to vector<4x128xf32>
    %603 = arith.mulf %600, %602 : vector<4x128xf32>
    %cst_273 = arith.constant dense<0.000000e+00> : vector<4xf32>
    %604 = vector.multi_reduction <add>, %603, %cst_273 [1] : vector<4x128xf32> to vector<4xf32>
    %605 = vector.shape_cast %604 : vector<4xf32> to vector<4x1xf32>
    %c0_274 = arith.constant 0 : index
    %c0_275 = arith.constant 0 : index
    %606 = vector.load %arg48[%c0_274, %c0_275] : memref<1x1xf32, #tpu.memory_space<vmem>>, vector<1x1xf32>
    %607 = vector.broadcast %606 : vector<1x1xf32> to vector<4x1xf32>
    %608 = arith.addf %605, %607 : vector<4x1xf32>
    %609 = arith.negf %608 : vector<4x1xf32>
    %610 = math.exp %609 : vector<4x1xf32>
    %cst_276 = arith.constant 1.000000e+00 : f32
    %611 = vector.broadcast %cst_276 : f32 to vector<4x1xf32>
    %612 = arith.addf %611, %610 : vector<4x1xf32>
    %613 = arith.divf %611, %612 : vector<4x1xf32>
    %cst_277 = arith.constant 4.000000e-01 : f32
    %614 = vector.broadcast %cst_277 : f32 to vector<4x1xf32>
    %615 = arith.mulf %614, %569 : vector<4x1xf32>
    %cst_278 = arith.constant 3.000000e-01 : f32
    %616 = vector.broadcast %cst_278 : f32 to vector<4x1xf32>
    %617 = arith.mulf %616, %580 : vector<4x1xf32>
    %618 = arith.addf %615, %617 : vector<4x1xf32>
    %cst_279 = arith.constant 3.000000e-01 : f32
    %619 = vector.broadcast %cst_279 : f32 to vector<4x1xf32>
    %620 = arith.mulf %619, %613 : vector<4x1xf32>
    %621 = arith.addf %618, %620 : vector<4x1xf32>
    %cst_280 = arith.constant 1.000000e-01 : f32
    %cst_281 = arith.constant 0.949999988 : f32
    %622 = vector.broadcast %cst_280 : f32 to vector<4x1xf32>
    %623 = arith.maximumf %622, %621 : vector<4x1xf32>
    %624 = vector.broadcast %cst_281 : f32 to vector<4x1xf32>
    %625 = arith.minimumf %624, %623 : vector<4x1xf32>
    %cst_282 = arith.constant 5.000000e-01 : f32
    %626 = vector.broadcast %cst_282 : f32 to vector<4x1xf32>
    %627 = arith.cmpf ogt, %5, %626 : vector<4x1xf32>
    %cst_283 = arith.constant 0.949999988 : f32
    %628 = vector.broadcast %cst_283 : f32 to vector<4x1xf32>
    %629 = arith.select %627, %625, %628 : vector<4x1xi1>, vector<4x1xf32>
    %cst_284 = arith.constant 2.000000e-01 : f32
    %630 = vector.broadcast %cst_284 : f32 to vector<4x1xf32>
    %631 = arith.mulf %300, %630 : vector<4x1xf32>
    %cst_285 = arith.constant 2.000000e-01 : f32
    %632 = vector.broadcast %cst_285 : f32 to vector<4x1xf32>
    %633 = arith.mulf %325, %632 : vector<4x1xf32>
    %634 = arith.addf %631, %633 : vector<4x1xf32>
    %cst_286 = arith.constant 3.000000e-01 : f32
    %635 = vector.broadcast %cst_286 : f32 to vector<4x1xf32>
    %636 = arith.mulf %78, %635 : vector<4x1xf32>
    %637 = arith.addf %634, %636 : vector<4x1xf32>
    %cst_287 = arith.constant 1.000000e+00 : f32
    %638 = vector.broadcast %cst_287 : f32 to vector<4x1xf32>
    %639 = arith.subf %638, %162 : vector<4x1xf32>
    %cst_288 = arith.constant 3.000000e-01 : f32
    %640 = vector.broadcast %cst_288 : f32 to vector<4x1xf32>
    %641 = arith.mulf %639, %640 : vector<4x1xf32>
    %642 = arith.addf %637, %641 : vector<4x1xf32>
    %cst_289 = arith.constant 2.000000e-01 : f32
    %643 = vector.broadcast %cst_289 : f32 to vector<4x1xf32>
    %644 = arith.mulf %408, %643 : vector<4x1xf32>
    %cst_290 = arith.constant 2.000000e-01 : f32
    %645 = vector.broadcast %cst_290 : f32 to vector<4x1xf32>
    %646 = arith.mulf %433, %645 : vector<4x1xf32>
    %647 = arith.addf %644, %646 : vector<4x1xf32>
    %cst_291 = arith.constant 3.000000e-01 : f32
    %648 = vector.broadcast %cst_291 : f32 to vector<4x1xf32>
    %649 = arith.mulf %99, %648 : vector<4x1xf32>
    %650 = arith.addf %647, %649 : vector<4x1xf32>
    %cst_292 = arith.constant 1.000000e+00 : f32
    %651 = vector.broadcast %cst_292 : f32 to vector<4x1xf32>
    %652 = arith.subf %651, %183 : vector<4x1xf32>
    %cst_293 = arith.constant 3.000000e-01 : f32
    %653 = vector.broadcast %cst_293 : f32 to vector<4x1xf32>
    %654 = arith.mulf %652, %653 : vector<4x1xf32>
    %655 = arith.addf %650, %654 : vector<4x1xf32>
    %656 = arith.addf %642, %655 : vector<4x1xf32>
    %657 = arith.addf %656, %269 : vector<4x1xf32>
    %cst_294 = arith.constant 3.000000e+00 : f32
    %658 = vector.broadcast %cst_294 : f32 to vector<4x1xf32>
    %659 = arith.divf %657, %658 : vector<4x1xf32>
    %660 = tpu.iota {dimensions = array<i32: 1>} : vector<1x128xi32>
    %cst_295 = arith.constant 0.000000e+00 : f32
    %661 = vector.broadcast %cst_295 : f32 to vector<4x128xf32>
    %c0_i32 = arith.constant 0 : i32
    %662 = vector.broadcast %c0_i32 : i32 to vector<1x128xi32>
    %663 = arith.cmpi eq, %660, %662 : vector<1x128xi32>
    %cst_296 = arith.constant 0.000000e+00 : f32
    %664 = vector.shape_cast %663 : vector<1x128xi1> to vector<1x128xi1>
    %665 = vector.broadcast %664 : vector<1x128xi1> to vector<4x128xi1>
    %666 = vector.shape_cast %300 : vector<4x1xf32> to vector<4x1xf32>
    %667 = vector.broadcast %666 : vector<4x1xf32> to vector<4x128xf32>
    %668 = vector.broadcast %cst_296 : f32 to vector<4x128xf32>
    %669 = arith.select %665, %667, %668 : vector<4x128xi1>, vector<4x128xf32>
    %670 = arith.addf %661, %669 : vector<4x128xf32>
    %c1_i32 = arith.constant 1 : i32
    %671 = vector.broadcast %c1_i32 : i32 to vector<1x128xi32>
    %672 = arith.cmpi eq, %660, %671 : vector<1x128xi32>
    %cst_297 = arith.constant 0.000000e+00 : f32
    %673 = vector.shape_cast %672 : vector<1x128xi1> to vector<1x128xi1>
    %674 = vector.broadcast %673 : vector<1x128xi1> to vector<4x128xi1>
    %675 = vector.shape_cast %325 : vector<4x1xf32> to vector<4x1xf32>
    %676 = vector.broadcast %675 : vector<4x1xf32> to vector<4x128xf32>
    %677 = vector.broadcast %cst_297 : f32 to vector<4x128xf32>
    %678 = arith.select %674, %676, %677 : vector<4x128xi1>, vector<4x128xf32>
    %679 = arith.addf %670, %678 : vector<4x128xf32>
    %c2_i32 = arith.constant 2 : i32
    %680 = vector.broadcast %c2_i32 : i32 to vector<1x128xi32>
    %681 = arith.cmpi eq, %660, %680 : vector<1x128xi32>
    %cst_298 = arith.constant 0.000000e+00 : f32
    %682 = vector.shape_cast %681 : vector<1x128xi1> to vector<1x128xi1>
    %683 = vector.broadcast %682 : vector<1x128xi1> to vector<4x128xi1>
    %684 = vector.shape_cast %345 : vector<4x1xf32> to vector<4x1xf32>
    %685 = vector.broadcast %684 : vector<4x1xf32> to vector<4x128xf32>
    %686 = vector.broadcast %cst_298 : f32 to vector<4x128xf32>
    %687 = arith.select %683, %685, %686 : vector<4x128xi1>, vector<4x128xf32>
    %688 = arith.addf %679, %687 : vector<4x128xf32>
    %c3_i32 = arith.constant 3 : i32
    %689 = vector.broadcast %c3_i32 : i32 to vector<1x128xi32>
    %690 = arith.cmpi eq, %660, %689 : vector<1x128xi32>
    %cst_299 = arith.constant 0.000000e+00 : f32
    %691 = vector.shape_cast %690 : vector<1x128xi1> to vector<1x128xi1>
    %692 = vector.broadcast %691 : vector<1x128xi1> to vector<4x128xi1>
    %693 = vector.shape_cast %367 : vector<4x1xf32> to vector<4x1xf32>
    %694 = vector.broadcast %693 : vector<4x1xf32> to vector<4x128xf32>
    %695 = vector.broadcast %cst_299 : f32 to vector<4x128xf32>
    %696 = arith.select %692, %694, %695 : vector<4x128xi1>, vector<4x128xf32>
    %697 = arith.addf %688, %696 : vector<4x128xf32>
    %c4_i32 = arith.constant 4 : i32
    %698 = vector.broadcast %c4_i32 : i32 to vector<1x128xi32>
    %699 = arith.cmpi eq, %660, %698 : vector<1x128xi32>
    %cst_300 = arith.constant 0.000000e+00 : f32
    %700 = vector.shape_cast %699 : vector<1x128xi1> to vector<1x128xi1>
    %701 = vector.broadcast %700 : vector<1x128xi1> to vector<4x128xi1>
    %702 = vector.shape_cast %387 : vector<4x1xf32> to vector<4x1xf32>
    %703 = vector.broadcast %702 : vector<4x1xf32> to vector<4x128xf32>
    %704 = vector.broadcast %cst_300 : f32 to vector<4x128xf32>
    %705 = arith.select %701, %703, %704 : vector<4x128xi1>, vector<4x128xf32>
    %706 = arith.addf %697, %705 : vector<4x128xf32>
    %c5_i32 = arith.constant 5 : i32
    %707 = vector.broadcast %c5_i32 : i32 to vector<1x128xi32>
    %708 = arith.cmpi eq, %660, %707 : vector<1x128xi32>
    %cst_301 = arith.constant 0.000000e+00 : f32
    %709 = vector.shape_cast %708 : vector<1x128xi1> to vector<1x128xi1>
    %710 = vector.broadcast %709 : vector<1x128xi1> to vector<4x128xi1>
    %711 = vector.shape_cast %408 : vector<4x1xf32> to vector<4x1xf32>
    %712 = vector.broadcast %711 : vector<4x1xf32> to vector<4x128xf32>
    %713 = vector.broadcast %cst_301 : f32 to vector<4x128xf32>
    %714 = arith.select %710, %712, %713 : vector<4x128xi1>, vector<4x128xf32>
    %715 = arith.addf %706, %714 : vector<4x128xf32>
    %c6_i32 = arith.constant 6 : i32
    %716 = vector.broadcast %c6_i32 : i32 to vector<1x128xi32>
    %717 = arith.cmpi eq, %660, %716 : vector<1x128xi32>
    %cst_302 = arith.constant 0.000000e+00 : f32
    %718 = vector.shape_cast %717 : vector<1x128xi1> to vector<1x128xi1>
    %719 = vector.broadcast %718 : vector<1x128xi1> to vector<4x128xi1>
    %720 = vector.shape_cast %433 : vector<4x1xf32> to vector<4x1xf32>
    %721 = vector.broadcast %720 : vector<4x1xf32> to vector<4x128xf32>
    %722 = vector.broadcast %cst_302 : f32 to vector<4x128xf32>
    %723 = arith.select %719, %721, %722 : vector<4x128xi1>, vector<4x128xf32>
    %724 = arith.addf %715, %723 : vector<4x128xf32>
    %c7_i32 = arith.constant 7 : i32
    %725 = vector.broadcast %c7_i32 : i32 to vector<1x128xi32>
    %726 = arith.cmpi eq, %660, %725 : vector<1x128xi32>
    %cst_303 = arith.constant 0.000000e+00 : f32
    %727 = vector.shape_cast %726 : vector<1x128xi1> to vector<1x128xi1>
    %728 = vector.broadcast %727 : vector<1x128xi1> to vector<4x128xi1>
    %729 = vector.shape_cast %453 : vector<4x1xf32> to vector<4x1xf32>
    %730 = vector.broadcast %729 : vector<4x1xf32> to vector<4x128xf32>
    %731 = vector.broadcast %cst_303 : f32 to vector<4x128xf32>
    %732 = arith.select %728, %730, %731 : vector<4x128xi1>, vector<4x128xf32>
    %733 = arith.addf %724, %732 : vector<4x128xf32>
    %c8_i32 = arith.constant 8 : i32
    %734 = vector.broadcast %c8_i32 : i32 to vector<1x128xi32>
    %735 = arith.cmpi eq, %660, %734 : vector<1x128xi32>
    %cst_304 = arith.constant 0.000000e+00 : f32
    %736 = vector.shape_cast %735 : vector<1x128xi1> to vector<1x128xi1>
    %737 = vector.broadcast %736 : vector<1x128xi1> to vector<4x128xi1>
    %738 = vector.shape_cast %475 : vector<4x1xf32> to vector<4x1xf32>
    %739 = vector.broadcast %738 : vector<4x1xf32> to vector<4x128xf32>
    %740 = vector.broadcast %cst_304 : f32 to vector<4x128xf32>
    %741 = arith.select %737, %739, %740 : vector<4x128xi1>, vector<4x128xf32>
    %742 = arith.addf %733, %741 : vector<4x128xf32>
    %c9_i32 = arith.constant 9 : i32
    %743 = vector.broadcast %c9_i32 : i32 to vector<1x128xi32>
    %744 = arith.cmpi eq, %660, %743 : vector<1x128xi32>
    %cst_305 = arith.constant 0.000000e+00 : f32
    %745 = vector.shape_cast %744 : vector<1x128xi1> to vector<1x128xi1>
    %746 = vector.broadcast %745 : vector<1x128xi1> to vector<4x128xi1>
    %747 = vector.shape_cast %495 : vector<4x1xf32> to vector<4x1xf32>
    %748 = vector.broadcast %747 : vector<4x1xf32> to vector<4x128xf32>
    %749 = vector.broadcast %cst_305 : f32 to vector<4x128xf32>
    %750 = arith.select %746, %748, %749 : vector<4x128xi1>, vector<4x128xf32>
    %751 = arith.addf %742, %750 : vector<4x128xf32>
    %c10_i32 = arith.constant 10 : i32
    %752 = vector.broadcast %c10_i32 : i32 to vector<1x128xi32>
    %753 = arith.cmpi eq, %660, %752 : vector<1x128xi32>
    %cst_306 = arith.constant 0.000000e+00 : f32
    %754 = vector.shape_cast %753 : vector<1x128xi1> to vector<1x128xi1>
    %755 = vector.broadcast %754 : vector<1x128xi1> to vector<4x128xi1>
    %756 = vector.shape_cast %78 : vector<4x1xf32> to vector<4x1xf32>
    %757 = vector.broadcast %756 : vector<4x1xf32> to vector<4x128xf32>
    %758 = vector.broadcast %cst_306 : f32 to vector<4x128xf32>
    %759 = arith.select %755, %757, %758 : vector<4x128xi1>, vector<4x128xf32>
    %760 = arith.addf %751, %759 : vector<4x128xf32>
    %c11_i32 = arith.constant 11 : i32
    %761 = vector.broadcast %c11_i32 : i32 to vector<1x128xi32>
    %762 = arith.cmpi eq, %660, %761 : vector<1x128xi32>
    %cst_307 = arith.constant 0.000000e+00 : f32
    %763 = vector.shape_cast %762 : vector<1x128xi1> to vector<1x128xi1>
    %764 = vector.broadcast %763 : vector<1x128xi1> to vector<4x128xi1>
    %765 = vector.shape_cast %99 : vector<4x1xf32> to vector<4x1xf32>
    %766 = vector.broadcast %765 : vector<4x1xf32> to vector<4x128xf32>
    %767 = vector.broadcast %cst_307 : f32 to vector<4x128xf32>
    %768 = arith.select %764, %766, %767 : vector<4x128xi1>, vector<4x128xf32>
    %769 = arith.addf %760, %768 : vector<4x128xf32>
    %c12_i32 = arith.constant 12 : i32
    %770 = vector.broadcast %c12_i32 : i32 to vector<1x128xi32>
    %771 = arith.cmpi eq, %660, %770 : vector<1x128xi32>
    %cst_308 = arith.constant 0.000000e+00 : f32
    %772 = vector.shape_cast %771 : vector<1x128xi1> to vector<1x128xi1>
    %773 = vector.broadcast %772 : vector<1x128xi1> to vector<4x128xi1>
    %774 = vector.shape_cast %162 : vector<4x1xf32> to vector<4x1xf32>
    %775 = vector.broadcast %774 : vector<4x1xf32> to vector<4x128xf32>
    %776 = vector.broadcast %cst_308 : f32 to vector<4x128xf32>
    %777 = arith.select %773, %775, %776 : vector<4x128xi1>, vector<4x128xf32>
    %778 = arith.addf %769, %777 : vector<4x128xf32>
    %c13_i32 = arith.constant 13 : i32
    %779 = vector.broadcast %c13_i32 : i32 to vector<1x128xi32>
    %780 = arith.cmpi eq, %660, %779 : vector<1x128xi32>
    %cst_309 = arith.constant 0.000000e+00 : f32
    %781 = vector.shape_cast %780 : vector<1x128xi1> to vector<1x128xi1>
    %782 = vector.broadcast %781 : vector<1x128xi1> to vector<4x128xi1>
    %783 = vector.shape_cast %183 : vector<4x1xf32> to vector<4x1xf32>
    %784 = vector.broadcast %783 : vector<4x1xf32> to vector<4x128xf32>
    %785 = vector.broadcast %cst_309 : f32 to vector<4x128xf32>
    %786 = arith.select %782, %784, %785 : vector<4x128xi1>, vector<4x128xf32>
    %787 = arith.addf %778, %786 : vector<4x128xf32>
    %c14_i32 = arith.constant 14 : i32
    %788 = vector.broadcast %c14_i32 : i32 to vector<1x128xi32>
    %789 = arith.cmpi eq, %660, %788 : vector<1x128xi32>
    %cst_310 = arith.constant 0.000000e+00 : f32
    %790 = vector.shape_cast %789 : vector<1x128xi1> to vector<1x128xi1>
    %791 = vector.broadcast %790 : vector<1x128xi1> to vector<4x128xi1>
    %792 = vector.shape_cast %562 : vector<4x1xf32> to vector<4x1xf32>
    %793 = vector.broadcast %792 : vector<4x1xf32> to vector<4x128xf32>
    %794 = vector.broadcast %cst_310 : f32 to vector<4x128xf32>
    %795 = arith.select %791, %793, %794 : vector<4x128xi1>, vector<4x128xf32>
    %796 = arith.addf %787, %795 : vector<4x128xf32>
    %c15_i32 = arith.constant 15 : i32
    %797 = vector.broadcast %c15_i32 : i32 to vector<1x128xi32>
    %798 = arith.cmpi eq, %660, %797 : vector<1x128xi32>
    %cst_311 = arith.constant 0.000000e+00 : f32
    %799 = vector.shape_cast %798 : vector<1x128xi1> to vector<1x128xi1>
    %800 = vector.broadcast %799 : vector<1x128xi1> to vector<4x128xi1>
    %801 = vector.shape_cast %629 : vector<4x1xf32> to vector<4x1xf32>
    %802 = vector.broadcast %801 : vector<4x1xf32> to vector<4x128xf32>
    %803 = vector.broadcast %cst_311 : f32 to vector<4x128xf32>
    %804 = arith.select %800, %802, %803 : vector<4x128xi1>, vector<4x128xf32>
    %805 = arith.addf %796, %804 : vector<4x128xf32>
    %c16_i32 = arith.constant 16 : i32
    %806 = vector.broadcast %c16_i32 : i32 to vector<1x128xi32>
    %807 = arith.cmpi eq, %660, %806 : vector<1x128xi32>
    %cst_312 = arith.constant 0.000000e+00 : f32
    %808 = vector.shape_cast %807 : vector<1x128xi1> to vector<1x128xi1>
    %809 = vector.broadcast %808 : vector<1x128xi1> to vector<4x128xi1>
    %810 = vector.shape_cast %214 : vector<4x1xf32> to vector<4x1xf32>
    %811 = vector.broadcast %810 : vector<4x1xf32> to vector<4x128xf32>
    %812 = vector.broadcast %cst_312 : f32 to vector<4x128xf32>
    %813 = arith.select %809, %811, %812 : vector<4x128xi1>, vector<4x128xf32>
    %814 = arith.addf %805, %813 : vector<4x128xf32>
    %c17_i32 = arith.constant 17 : i32
    %815 = vector.broadcast %c17_i32 : i32 to vector<1x128xi32>
    %816 = arith.cmpi eq, %660, %815 : vector<1x128xi32>
    %cst_313 = arith.constant 0.000000e+00 : f32
    %817 = vector.shape_cast %816 : vector<1x128xi1> to vector<1x128xi1>
    %818 = vector.broadcast %817 : vector<1x128xi1> to vector<4x128xi1>
    %819 = vector.shape_cast %221 : vector<4x1xf32> to vector<4x1xf32>
    %820 = vector.broadcast %819 : vector<4x1xf32> to vector<4x128xf32>
    %821 = vector.broadcast %cst_313 : f32 to vector<4x128xf32>
    %822 = arith.select %818, %820, %821 : vector<4x128xi1>, vector<4x128xf32>
    %823 = arith.addf %814, %822 : vector<4x128xf32>
    %c18_i32 = arith.constant 18 : i32
    %824 = vector.broadcast %c18_i32 : i32 to vector<1x128xi32>
    %825 = arith.cmpi eq, %660, %824 : vector<1x128xi32>
    %cst_314 = arith.constant 0.000000e+00 : f32
    %826 = vector.shape_cast %825 : vector<1x128xi1> to vector<1x128xi1>
    %827 = vector.broadcast %826 : vector<1x128xi1> to vector<4x128xi1>
    %828 = vector.shape_cast %232 : vector<4x1xf32> to vector<4x1xf32>
    %829 = vector.broadcast %828 : vector<4x1xf32> to vector<4x128xf32>
    %830 = vector.broadcast %cst_314 : f32 to vector<4x128xf32>
    %831 = arith.select %827, %829, %830 : vector<4x128xi1>, vector<4x128xf32>
    %832 = arith.addf %823, %831 : vector<4x128xf32>
    %c19_i32 = arith.constant 19 : i32
    %833 = vector.broadcast %c19_i32 : i32 to vector<1x128xi32>
    %834 = arith.cmpi eq, %660, %833 : vector<1x128xi32>
    %cst_315 = arith.constant 0.000000e+00 : f32
    %835 = vector.shape_cast %834 : vector<1x128xi1> to vector<1x128xi1>
    %836 = vector.broadcast %835 : vector<1x128xi1> to vector<4x128xi1>
    %837 = vector.shape_cast %265 : vector<4x1xf32> to vector<4x1xf32>
    %838 = vector.broadcast %837 : vector<4x1xf32> to vector<4x128xf32>
    %839 = vector.broadcast %cst_315 : f32 to vector<4x128xf32>
    %840 = arith.select %836, %838, %839 : vector<4x128xi1>, vector<4x128xf32>
    %841 = arith.addf %832, %840 : vector<4x128xf32>
    %c20_i32 = arith.constant 20 : i32
    %842 = vector.broadcast %c20_i32 : i32 to vector<1x128xi32>
    %843 = arith.cmpi eq, %660, %842 : vector<1x128xi32>
    %cst_316 = arith.constant 0.000000e+00 : f32
    %844 = vector.shape_cast %843 : vector<1x128xi1> to vector<1x128xi1>
    %845 = vector.broadcast %844 : vector<1x128xi1> to vector<4x128xi1>
    %846 = vector.shape_cast %269 : vector<4x1xf32> to vector<4x1xf32>
    %847 = vector.broadcast %846 : vector<4x1xf32> to vector<4x128xf32>
    %848 = vector.broadcast %cst_316 : f32 to vector<4x128xf32>
    %849 = arith.select %845, %847, %848 : vector<4x128xi1>, vector<4x128xf32>
    %850 = arith.addf %841, %849 : vector<4x128xf32>
    %c21_i32 = arith.constant 21 : i32
    %851 = vector.broadcast %c21_i32 : i32 to vector<1x128xi32>
    %852 = arith.cmpi eq, %660, %851 : vector<1x128xi32>
    %cst_317 = arith.constant 0.000000e+00 : f32
    %853 = vector.shape_cast %852 : vector<1x128xi1> to vector<1x128xi1>
    %854 = vector.broadcast %853 : vector<1x128xi1> to vector<4x128xi1>
    %855 = vector.shape_cast %659 : vector<4x1xf32> to vector<4x1xf32>
    %856 = vector.broadcast %855 : vector<4x1xf32> to vector<4x128xf32>
    %857 = vector.broadcast %cst_317 : f32 to vector<4x128xf32>
    %858 = arith.select %854, %856, %857 : vector<4x128xi1>, vector<4x128xf32>
    %859 = arith.addf %850, %858 : vector<4x128xf32>
    %c0_318 = arith.constant 0 : index
    %c0_319 = arith.constant 0 : index
    %860 = vector.load %arg49[%c0_318, %c0_319] : memref<4x128xf32, #tpu.memory_space<vmem>>, vector<4x128xf32>
    tpu.vector_store %arg49[%c0_318, %c0_319], %859 {strides = array<i32>} : memref<4x128xf32, #tpu.memory_space<vmem>>, vector<4x128xf32>,
    return
  }
}

</mosaic_0001>

<llo_original>
// kernel: forward.1
$region0: #{forward.1}
  #allocation0 [shape = 'u32[]', space=smem, size = 0x4, offset = 0x4, fixed_abs, tag = 'smem constant byte address 0x4 - core index']
  #allocation1 [shape = 'u32[144,128]{1,0:T(1,128)}', space=vmem, size = 0x12000, scoped, tag = 'internal scratch']
  #allocation2 [shape = 'f32[1,1]{1,0:T(1,128)S(1)}', space=vmem, size = 0x200, scoped, tag = 'scoped memory for forward.1']
  #allocation3 [shape = 'f32[1,1]{1,0:T(1,128)S(1)}', space=vmem, size = 0x200, scoped, tag = 'scoped memory for forward.1']
  #allocation4 [shape = 'f32[1,1]{1,0:T(1,128)S(1)}', space=vmem, size = 0x200, scoped, tag = 'scoped memory for forward.1']
  #allocation5 [shape = 'f32[1,1]{1,0:T(1,128)S(1)}', space=vmem, size = 0x200, scoped, tag = 'scoped memory for forward.1']
  #allocation6 [shape = 'f32[1,1]{1,0:T(1,128)S(1)}', space=vmem, size = 0x200, scoped, tag = 'scoped memory for forward.1']
  #allocation7 [shape = 'f32[1,1]{1,0:T(1,128)S(1)}', space=vmem, size = 0x200, scoped, tag = 'scoped memory for forward.1']
  #allocation8 [shape = 'f32[1,1]{1,0:T(1,128)S(1)}', space=vmem, size = 0x200, scoped, tag = 'scoped memory for forward.1']
  %s0 = inlined_call_operand.smem [shape: u32[50], index: -1, kind: input, shape index: {}]
  %s1 = sld [smem:[%s0]]
  %s2 = scalar_lea.smem %s0, 1
  %s3 = sld [smem:[%s2]]
  %s4 = scalar_lea.smem %s0, 2
  %s5 = sld [smem:[%s4]]
  %s6 = scalar_lea.smem %s0, 3
  %s7 = sld [smem:[%s6]]
  %s8 = scalar_lea.smem %s0, 4
  %s9 = sld [smem:[%s8]]
  %s10 = scalar_lea.smem %s0, 5
  %s11 = sld [smem:[%s10]]
  %s12 = scalar_lea.smem %s0, 6
  %s13 = sld [smem:[%s12]]
  %s14 = scalar_lea.smem %s0, 7
  %s15 = sld [smem:[%s14]]
  %s16 = scalar_lea.smem %s0, 8
  %s17 = sld [smem:[%s16]]
  %s18 = scalar_lea.smem %s0, 9
  %s19 = sld [smem:[%s18]]
  %s20 = scalar_lea.smem %s0, 10
  %s21 = sld [smem:[%s20]]
  %s22 = scalar_lea.smem %s0, 11
  %s23 = sld [smem:[%s22]]
  %s24 = scalar_lea.smem %s0, 12
  %s25 = sld [smem:[%s24]]
  %s26 = scalar_lea.smem %s0, 13
  %s27 = sld [smem:[%s26]]
  %s28 = scalar_lea.smem %s0, 14
  %s29 = sld [smem:[%s28]]
  %s30 = scalar_lea.smem %s0, 15
  %s31 = sld [smem:[%s30]]
  %s32 = scalar_lea.smem %s0, 16
  %s33 = sld [smem:[%s32]]
  %s34 = scalar_lea.smem %s0, 17
  %s35 = sld [smem:[%s34]]
  %s36 = scalar_lea.smem %s0, 18
  %s37 = sld [smem:[%s36]]
  %s38 = scalar_lea.smem %s0, 19
  %s39 = sld [smem:[%s38]]
  %s40 = scalar_lea.smem %s0, 20
  %s41 = sld [smem:[%s40]]
  %s42 = scalar_lea.smem %s0, 21
  %s43 = sld [smem:[%s42]]
  %s44 = scalar_lea.smem %s0, 22
  %s45 = sld [smem:[%s44]]
  %s46 = scalar_lea.smem %s0, 23
  %s47 = sld [smem:[%s46]]
  %s48 = scalar_lea.smem %s0, 24
  %s49 = sld [smem:[%s48]]
  %s50 = scalar_lea.smem %s0, 25
  %s51 = sld [smem:[%s50]]
  %s52 = scalar_lea.smem %s0, 26
  %s53 = sld [smem:[%s52]]
  %s54 = scalar_lea.smem %s0, 27
  %s55 = sld [smem:[%s54]]
  %s56 = scalar_lea.smem %s0, 28
  %s57 = sld [smem:[%s56]]
  %s58 = scalar_lea.smem %s0, 29
  %s59 = sld [smem:[%s58]]
  %s60 = scalar_lea.smem %s0, 30
  %s61 = sld [smem:[%s60]]
  %s62 = scalar_lea.smem %s0, 31
  %s63 = sld [smem:[%s62]]
  %s64 = scalar_lea.smem %s0, 32
  %s65 = sld [smem:[%s64]]
  %s66 = scalar_lea.smem %s0, 33
  %s67 = sld [smem:[%s66]]
  %s68 = scalar_lea.smem %s0, 34
  %s69 = sld [smem:[%s68]]
  %s70 = scalar_lea.smem %s0, 35
  %s71 = sld [smem:[%s70]]
  %s72 = scalar_lea.smem %s0, 36
  %s73 = sld [smem:[%s72]]
  %s74 = scalar_lea.smem %s0, 37
  %s75 = sld [smem:[%s74]]
  %s76 = scalar_lea.smem %s0, 38
  %s77 = sld [smem:[%s76]]
  %s78 = scalar_lea.smem %s0, 39
  %s79 = sld [smem:[%s78]]
  %s80 = scalar_lea.smem %s0, 40
  %s81 = sld [smem:[%s80]]
  %s82 = scalar_lea.smem %s0, 41
  %s83 = sld [smem:[%s82]]
  %s84 = scalar_lea.smem %s0, 42
  %s85 = sld [smem:[%s84]]
  %s86 = scalar_lea.smem %s0, 43
  %s87 = sld [smem:[%s86]]
  %s88 = scalar_lea.smem %s0, 44
  %s89 = sld [smem:[%s88]]
  %s90 = scalar_lea.smem %s0, 45
  %s91 = sld [smem:[%s90]]
  %s92 = scalar_lea.smem %s0, 46
  %s93 = sld [smem:[%s92]]
  %s94 = scalar_lea.smem %s0, 47
  %s95 = sld [smem:[%s94]]
  %s96 = scalar_lea.smem %s0, 48
  %s97 = sld [smem:[%s96]]
  %s98 = scalar_lea.smem %s0, 49
  %s99 = sld [smem:[%s98]]
  %s100 = sld [smem:[#allocation0]]
  $region250: #{forward.1} parent=0
    _
  %s102 = ssub.s32 1, %s100
  %s103 = scalar_select 0, %s102, %s100
  %v104 = vstv %s23
  %105 = vst [vmem:[#allocation2] sm:$0x1] %v104
  %v106 = vstv %s31
  %107 = vst [vmem:[#allocation3] sm:$0x1] %v106
  %v108 = vstv %s43
  %109 = vst [vmem:[#allocation4] sm:$0x1] %v108
  %v110 = vstv %s51
  %111 = vst [vmem:[#allocation5] sm:$0x1] %v110
  %v112 = vstv %s69
  %113 = vst [vmem:[#allocation6] sm:$0x1] %v112
  %v114 = vstv %s83
  %115 = vst [vmem:[#allocation7] sm:$0x1] %v114
  %v116 = vstv %s97
  %117 = vst [vmem:[#allocation8] sm:$0x1] %v116
  $region1: #{forward.1} parent=0
    #allocation9 [shape = 'u8[196608]{0}', space=vmem, size = 0x30000, scoped, tag = 'input window, operand 6, single buffered']
    #allocation10 [shape = 's32[1]{0}', space=sflag, size = 0x4, scoped, tag = 'scoped memory for forward.1']
    #allocation11 [shape = 'u8[196608]{0}', space=vmem, size = 0x30000, scoped, tag = 'input window, operand 16, single buffered']
    #allocation12 [shape = 's32[1]{0}', space=sflag, size = 0x4, scoped, tag = 'scoped memory for forward.1']
    #allocation13 [shape = 'u8[262144]{0}', space=vmem, size = 0x40000, scoped, tag = 'input window, operand 28, single buffered']
    #allocation14 [shape = 'u8[262144]{0}', space=vmem, size = 0x40000, scoped, tag = 'input window, operand 29, single buffered']
    #allocation15 [shape = 's32[1]{0}', space=sflag, size = 0x4, scoped, tag = 'scoped memory for forward.1']
    #allocation16 [shape = 'u8[131072]{0}', space=vmem, size = 0x20000, scoped, tag = 'input window, operand 31, single buffered']
    #allocation17 [shape = 'u8[262144]{0}', space=vmem, size = 0x40000, scoped, tag = 'input window, operand 35, single buffered']
    #allocation18 [shape = 's32[1]{0}', space=sflag, size = 0x4, scoped, tag = 'scoped memory for forward.1']
    #allocation19 [shape = 'u8[262144]{0}', space=vmem, size = 0x40000, scoped, tag = 'input window, operand 36, single buffered']
    #allocation20 [shape = 'u8[131072]{0}', space=vmem, size = 0x20000, scoped, tag = 'input window, operand 38, single buffered']
    #allocation21 [shape = 's32[1]{0}', space=sflag, size = 0x4, scoped, tag = 'scoped memory for forward.1']
    #allocation22 [shape = 'u8[262144]{0}', space=vmem, size = 0x40000, scoped, tag = 'input window, operand 42, single buffered']
    #allocation23 [shape = 'u8[262144]{0}', space=vmem, size = 0x40000, scoped, tag = 'input window, operand 43, single buffered']
    #allocation24 [shape = 's32[1]{0}', space=sflag, size = 0x4, scoped, tag = 'scoped memory for forward.1']
    #allocation25 [shape = 'u8[131072]{0}', space=vmem, size = 0x20000, scoped, tag = 'input window, operand 45, single buffered']
    %118 = vsyncpa [#allocation10], 0
    %119 = vsyncpa [#allocation12], 0
    %120 = vsyncpa [#allocation15], 0
    %121 = vsyncpa [#allocation18], 0
    %122 = vsyncpa [#allocation21], 0
    %123 = vsyncpa [#allocation24], 0
    // Predicated region
    $region2: #{forward.1} parent=1 // pred_check
      _
    $region3: #{forward.1} parent=1 // pred_check_branch
      %125 = sbr.rel (0) target = $region5
    $region4: #{forward.1} parent=1 // pred_region
      _
    $region5: #{forward.1} parent=1 // pred_fallthru
      _
    // Predicated region
    $region6: #{forward.1} parent=1 // pred_check
      _
    $region7: #{forward.1} parent=1 // pred_check_branch
      %127 = sbr.rel (0) target = $region9
    $region8: #{forward.1} parent=1 // pred_region
      _
    $region9: #{forward.1} parent=1 // pred_fallthru
      _
    // Predicated region
    $region10: #{forward.1} parent=1 // pred_check
      _
    $region11: #{forward.1} parent=1 // pred_check_branch
      %129 = sbr.rel (0) target = $region13
    $region12: #{forward.1} parent=1 // pred_region
      _
    $region13: #{forward.1} parent=1 // pred_fallthru
      _
    // Predicated region
    $region14: #{forward.1} parent=1 // pred_check
      _
    $region15: #{forward.1} parent=1 // pred_check_branch
      %131 = sbr.rel (0) target = $region17
    $region16: #{forward.1} parent=1 // pred_region
      _
    $region17: #{forward.1} parent=1 // pred_fallthru
      _
    // Predicated region
    $region18: #{forward.1} parent=1 // pred_check
      _
    $region19: #{forward.1} parent=1 // pred_check_branch
      %133 = sbr.rel (0) target = $region21
    $region20: #{forward.1} parent=1 // pred_region
      _
    $region21: #{forward.1} parent=1 // pred_fallthru
      _
    // Predicated region
    $region22: #{forward.1} parent=1 // pred_check
      _
    $region23: #{forward.1} parent=1 // pred_check_branch
      %135 = sbr.rel (0) target = $region25
    $region24: #{forward.1} parent=1 // pred_region
      _
    $region25: #{forward.1} parent=1 // pred_fallthru
      _
    // Predicated region
    $region26: #{forward.1} parent=1 // pred_check
      _
    $region27: #{forward.1} parent=1 // pred_check_branch
      %137 = sbr.rel (0) target = $region29
    $region28: #{forward.1} parent=1 // pred_region
      %s139 = ssub.s32 6144, 6144
      %140 = vsyncadd [#allocation10], %s139
      %s141 = sshll.u32 [#allocation9], 4
      %s142 = int_to_ptr.vmem [resolvable:$true] %s141
      %147 = dma.hbm_to_vmem [thread:$0]  %s13, 6144, %s142, [#allocation10], 192, 192, 12
    $region29: #{forward.1} parent=1 // pred_fallthru
      _
    // Predicated region
    $region30: #{forward.1} parent=1 // pred_check
      _
    $region31: #{forward.1} parent=1 // pred_check_branch
      %149 = sbr.rel (0) target = $region33
    $region32: #{forward.1} parent=1 // pred_region
      _
    $region33: #{forward.1} parent=1 // pred_fallthru
      _
    // Predicated region
    $region34: #{forward.1} parent=1 // pred_check
      _
    $region35: #{forward.1} parent=1 // pred_check_branch
      %151 = sbr.rel (0) target = $region37
    $region36: #{forward.1} parent=1 // pred_region
      _
    $region37: #{forward.1} parent=1 // pred_fallthru
      _
    // Predicated region
    $region38: #{forward.1} parent=1 // pred_check
      _
    $region39: #{forward.1} parent=1 // pred_check_branch
      %153 = sbr.rel (0) target = $region41
    $region40: #{forward.1} parent=1 // pred_region
      _
    $region41: #{forward.1} parent=1 // pred_fallthru
      _
    // Predicated region
    $region42: #{forward.1} parent=1 // pred_check
      _
    $region43: #{forward.1} parent=1 // pred_check_branch
      %155 = sbr.rel (0) target = $region45
    $region44: #{forward.1} parent=1 // pred_region
      _
    $region45: #{forward.1} parent=1 // pred_fallthru
      _
    // Predicated region
    $region46: #{forward.1} parent=1 // pred_check
      _
    $region47: #{forward.1} parent=1 // pred_check_branch
      %157 = sbr.rel (0) target = $region49
    $region48: #{forward.1} parent=1 // pred_region
      _
    $region49: #{forward.1} parent=1 // pred_fallthru
      _
    // Predicated region
    $region50: #{forward.1} parent=1 // pred_check
      _
    $region51: #{forward.1} parent=1 // pred_check_branch
      %159 = sbr.rel (0) target = $region53
    $region52: #{forward.1} parent=1 // pred_region
      _
    $region53: #{forward.1} parent=1 // pred_fallthru
      _
    // Predicated region
    $region54: #{forward.1} parent=1 // pred_check
      _
    $region55: #{forward.1} parent=1 // pred_check_branch
      %161 = sbr.rel (0) target = $region57
    $region56: #{forward.1} parent=1 // pred_region
      _
    $region57: #{forward.1} parent=1 // pred_fallthru
      _
    // Predicated region
    $region58: #{forward.1} parent=1 // pred_check
      _
    $region59: #{forward.1} parent=1 // pred_check_branch
      %163 = sbr.rel (0) target = $region61
    $region60: #{forward.1} parent=1 // pred_region
      _
    $region61: #{forward.1} parent=1 // pred_fallthru
      _
    // Predicated region
    $region62: #{forward.1} parent=1 // pred_check
      _
    $region63: #{forward.1} parent=1 // pred_check_branch
      %165 = sbr.rel (0) target = $region65
    $region64: #{forward.1} parent=1 // pred_region
      _
    $region65: #{forward.1} parent=1 // pred_fallthru
      _
    // Predicated region
    $region66: #{forward.1} parent=1 // pred_check
      _
    $region67: #{forward.1} parent=1 // pred_check_branch
      %167 = sbr.rel (0) target = $region69
    $region68: #{forward.1} parent=1 // pred_region
      %s169 = ssub.s32 6144, 6144
      %170 = vsyncadd [#allocation12], %s169
      %s171 = sshll.u32 [#allocation11], 4
      %s172 = int_to_ptr.vmem [resolvable:$true] %s171
      %177 = dma.hbm_to_vmem [thread:$0]  %s33, 6144, %s172, [#allocation12], 192, 192, 12
    $region69: #{forward.1} parent=1 // pred_fallthru
      _
    // Predicated region
    $region70: #{forward.1} parent=1 // pred_check
      _
    $region71: #{forward.1} parent=1 // pred_check_branch
      %179 = sbr.rel (0) target = $region73
    $region72: #{forward.1} parent=1 // pred_region
      _
    $region73: #{forward.1} parent=1 // pred_fallthru
      _
    // Predicated region
    $region74: #{forward.1} parent=1 // pred_check
      _
    $region75: #{forward.1} parent=1 // pred_check_branch
      %181 = sbr.rel (0) target = $region77
    $region76: #{forward.1} parent=1 // pred_region
      _
    $region77: #{forward.1} parent=1 // pred_fallthru
      _
    // Predicated region
    $region78: #{forward.1} parent=1 // pred_check
      _
    $region79: #{forward.1} parent=1 // pred_check_branch
      %183 = sbr.rel (0) target = $region81
    $region80: #{forward.1} parent=1 // pred_region
      _
    $region81: #{forward.1} parent=1 // pred_fallthru
      _
    // Predicated region
    $region82: #{forward.1} parent=1 // pred_check
      _
    $region83: #{forward.1} parent=1 // pred_check_branch
      %185 = sbr.rel (0) target = $region85
    $region84: #{forward.1} parent=1 // pred_region
      _
    $region85: #{forward.1} parent=1 // pred_fallthru
      _
    // Predicated region
    $region86: #{forward.1} parent=1 // pred_check
      _
    $region87: #{forward.1} parent=1 // pred_check_branch
      %187 = sbr.rel (0) target = $region89
    $region88: #{forward.1} parent=1 // pred_region
      _
    $region89: #{forward.1} parent=1 // pred_fallthru
      _
    // Predicated region
    $region90: #{forward.1} parent=1 // pred_check
      _
    $region91: #{forward.1} parent=1 // pred_check_branch
      %189 = sbr.rel (0) target = $region93
    $region92: #{forward.1} parent=1 // pred_region
      _
    $region93: #{forward.1} parent=1 // pred_fallthru
      _
    // Predicated region
    $region94: #{forward.1} parent=1 // pred_check
      _
    $region95: #{forward.1} parent=1 // pred_check_branch
      %191 = sbr.rel (0) target = $region97
    $region96: #{forward.1} parent=1 // pred_region
      _
    $region97: #{forward.1} parent=1 // pred_fallthru
      _
    // Predicated region
    $region98: #{forward.1} parent=1 // pred_check
      _
    $region99: #{forward.1} parent=1 // pred_check_branch
      %193 = sbr.rel (0) target = $region101
    $region100: #{forward.1} parent=1 // pred_region
      _
    $region101: #{forward.1} parent=1 // pred_fallthru
      _
    // Predicated region
    $region102: #{forward.1} parent=1 // pred_check
      _
    $region103: #{forward.1} parent=1 // pred_check_branch
      %195 = sbr.rel (0) target = $region105
    $region104: #{forward.1} parent=1 // pred_region
      _
    $region105: #{forward.1} parent=1 // pred_fallthru
      _
    // Predicated region
    $region106: #{forward.1} parent=1 // pred_check
      _
    $region107: #{forward.1} parent=1 // pred_check_branch
      %197 = sbr.rel (0) target = $region109
    $region108: #{forward.1} parent=1 // pred_region
      _
    $region109: #{forward.1} parent=1 // pred_fallthru
      _
    // Predicated region
    $region110: #{forward.1} parent=1 // pred_check
      _
    $region111: #{forward.1} parent=1 // pred_check_branch
      %199 = sbr.rel (0) target = $region113
    $region112: #{forward.1} parent=1 // pred_region
      _
    $region113: #{forward.1} parent=1 // pred_fallthru
      _
    // Predicated region
    $region114: #{forward.1} parent=1 // pred_check
      _
    $region115: #{forward.1} parent=1 // pred_check_branch
      %201 = sbr.rel (0) target = $region117
    $region116: #{forward.1} parent=1 // pred_region
      %s203 = ssub.s32 8192, 8192
      %204 = vsyncadd [#allocation12], %s203
      %s205 = sshll.u32 [#allocation13], 4
      %s206 = int_to_ptr.vmem [resolvable:$true] %s205
      %211 = dma.hbm_to_vmem [thread:$0]  %s57, 8192, %s206, [#allocation12], 256, 256, 16
    $region117: #{forward.1} parent=1 // pred_fallthru
      _
    // Predicated region
    $region118: #{forward.1} parent=1 // pred_check
      _
    $region119: #{forward.1} parent=1 // pred_check_branch
      %213 = sbr.rel (0) target = $region121
    $region120: #{forward.1} parent=1 // pred_region
      %s215 = ssub.s32 8192, 8192
      %216 = vsyncadd [#allocation15], %s215
      %s217 = sshll.u32 [#allocation14], 4
      %s218 = int_to_ptr.vmem [resolvable:$true] %s217
      %223 = dma.hbm_to_vmem [thread:$0]  %s59, 8192, %s218, [#allocation15], 256, 256, 16
    $region121: #{forward.1} parent=1 // pred_fallthru
      _
    // Predicated region
    $region122: #{forward.1} parent=1 // pred_check
      _
    $region123: #{forward.1} parent=1 // pred_check_branch
      %225 = sbr.rel (0) target = $region125
    $region124: #{forward.1} parent=1 // pred_region
      _
    $region125: #{forward.1} parent=1 // pred_fallthru
      _
    // Predicated region
    $region126: #{forward.1} parent=1 // pred_check
      _
    $region127: #{forward.1} parent=1 // pred_check_branch
      %227 = sbr.rel (0) target = $region129
    $region128: #{forward.1} parent=1 // pred_region
      %s229 = ssub.s32 4096, 4096
      %230 = vsyncadd [#allocation15], %s229
      %s231 = sshll.u32 [#allocation16], 4
      %s232 = int_to_ptr.vmem [resolvable:$true] %s231
      %237 = dma.hbm_to_vmem [thread:$0]  %s63, 4096, %s232, [#allocation15], 64, 64, 4
    $region129: #{forward.1} parent=1 // pred_fallthru
      _
    // Predicated region
    $region130: #{forward.1} parent=1 // pred_check
      _
    $region131: #{forward.1} parent=1 // pred_check_branch
      %239 = sbr.rel (0) target = $region133
    $region132: #{forward.1} parent=1 // pred_region
      _
    $region133: #{forward.1} parent=1 // pred_fallthru
      _
    // Predicated region
    $region134: #{forward.1} parent=1 // pred_check
      _
    $region135: #{forward.1} parent=1 // pred_check_branch
      %241 = sbr.rel (0) target = $region137
    $region136: #{forward.1} parent=1 // pred_region
      _
    $region137: #{forward.1} parent=1 // pred_fallthru
      _
    // Predicated region
    $region138: #{forward.1} parent=1 // pred_check
      _
    $region139: #{forward.1} parent=1 // pred_check_branch
      %243 = sbr.rel (0) target = $region141
    $region140: #{forward.1} parent=1 // pred_region
      _
    $region141: #{forward.1} parent=1 // pred_fallthru
      _
    // Predicated region
    $region142: #{forward.1} parent=1 // pred_check
      _
    $region143: #{forward.1} parent=1 // pred_check_branch
      %245 = sbr.rel (0) target = $region145
    $region144: #{forward.1} parent=1 // pred_region
      %s247 = ssub.s32 8192, 8192
      %248 = vsyncadd [#allocation18], %s247
      %s249 = sshll.u32 [#allocation17], 4
      %s250 = int_to_ptr.vmem [resolvable:$true] %s249
      %255 = dma.hbm_to_vmem [thread:$0]  %s71, 8192, %s250, [#allocation18], 256, 256, 16
    $region145: #{forward.1} parent=1 // pred_fallthru
      _
    // Predicated region
    $region146: #{forward.1} parent=1 // pred_check
      _
    $region147: #{forward.1} parent=1 // pred_check_branch
      %257 = sbr.rel (0) target = $region149
    $region148: #{forward.1} parent=1 // pred_region
      %s259 = ssub.s32 8192, 8192
      %260 = vsyncadd [#allocation18], %s259
      %s261 = sshll.u32 [#allocation19], 4
      %s262 = int_to_ptr.vmem [resolvable:$true] %s261
      %267 = dma.hbm_to_vmem [thread:$0]  %s73, 8192, %s262, [#allocation18], 256, 256, 16
    $region149: #{forward.1} parent=1 // pred_fallthru
      _
    // Predicated region
    $region150: #{forward.1} parent=1 // pred_check
      _
    $region151: #{forward.1} parent=1 // pred_check_branch
      %269 = sbr.rel (0) target = $region153
    $region152: #{forward.1} parent=1 // pred_region
      _
    $region153: #{forward.1} parent=1 // pred_fallthru
      _
    // Predicated region
    $region154: #{forward.1} parent=1 // pred_check
      _
    $region155: #{forward.1} parent=1 // pred_check_branch
      %271 = sbr.rel (0) target = $region157
    $region156: #{forward.1} parent=1 // pred_region
      %s273 = ssub.s32 4096, 4096
      %274 = vsyncadd [#allocation21], %s273
      %s275 = sshll.u32 [#allocation20], 4
      %s276 = int_to_ptr.vmem [resolvable:$true] %s275
      %281 = dma.hbm_to_vmem [thread:$0]  %s77, 4096, %s276, [#allocation21], 64, 64, 4
    $region157: #{forward.1} parent=1 // pred_fallthru
      _
    // Predicated region
    $region158: #{forward.1} parent=1 // pred_check
      _
    $region159: #{forward.1} parent=1 // pred_check_branch
      %283 = sbr.rel (0) target = $region161
    $region160: #{forward.1} parent=1 // pred_region
      _
    $region161: #{forward.1} parent=1 // pred_fallthru
      _
    // Predicated region
    $region162: #{forward.1} parent=1 // pred_check
      _
    $region163: #{forward.1} parent=1 // pred_check_branch
      %285 = sbr.rel (0) target = $region165
    $region164: #{forward.1} parent=1 // pred_region
      _
    $region165: #{forward.1} parent=1 // pred_fallthru
      _
    // Predicated region
    $region166: #{forward.1} parent=1 // pred_check
      _
    $region167: #{forward.1} parent=1 // pred_check_branch
      %287 = sbr.rel (0) target = $region169
    $region168: #{forward.1} parent=1 // pred_region
      _
    $region169: #{forward.1} parent=1 // pred_fallthru
      _
    // Predicated region
    $region170: #{forward.1} parent=1 // pred_check
      _
    $region171: #{forward.1} parent=1 // pred_check_branch
      %289 = sbr.rel (0) target = $region173
    $region172: #{forward.1} parent=1 // pred_region
      %s291 = ssub.s32 8192, 8192
      %292 = vsyncadd [#allocation21], %s291
      %s293 = sshll.u32 [#allocation22], 4
      %s294 = int_to_ptr.vmem [resolvable:$true] %s293
      %299 = dma.hbm_to_vmem [thread:$0]  %s85, 8192, %s294, [#allocation21], 256, 256, 16
    $region173: #{forward.1} parent=1 // pred_fallthru
      _
    // Predicated region
    $region174: #{forward.1} parent=1 // pred_check
      _
    $region175: #{forward.1} parent=1 // pred_check_branch
      %301 = sbr.rel (0) target = $region177
    $region176: #{forward.1} parent=1 // pred_region
      %s303 = ssub.s32 8192, 8192
      %304 = vsyncadd [#allocation24], %s303
      %s305 = sshll.u32 [#allocation23], 4
      %s306 = int_to_ptr.vmem [resolvable:$true] %s305
      %311 = dma.hbm_to_vmem [thread:$0]  %s87, 8192, %s306, [#allocation24], 256, 256, 16
    $region177: #{forward.1} parent=1 // pred_fallthru
      _
    // Predicated region
    $region178: #{forward.1} parent=1 // pred_check
      _
    $region179: #{forward.1} parent=1 // pred_check_branch
      %313 = sbr.rel (0) target = $region181
    $region180: #{forward.1} parent=1 // pred_region
      _
    $region181: #{forward.1} parent=1 // pred_fallthru
      _
    // Predicated region
    $region182: #{forward.1} parent=1 // pred_check
      _
    $region183: #{forward.1} parent=1 // pred_check_branch
      %315 = sbr.rel (0) target = $region185
    $region184: #{forward.1} parent=1 // pred_region
      %s317 = ssub.s32 4096, 4096
      %318 = vsyncadd [#allocation24], %s317
      %s319 = sshll.u32 [#allocation25], 4
      %s320 = int_to_ptr.vmem [resolvable:$true] %s319
      %325 = dma.hbm_to_vmem [thread:$0]  %s91, 4096, %s320, [#allocation24], 64, 64, 4
    $region185: #{forward.1} parent=1 // pred_fallthru
      _
    // Predicated region
    $region186: #{forward.1} parent=1 // pred_check
      _
    $region187: #{forward.1} parent=1 // pred_check_branch
      %327 = sbr.rel (0) target = $region189
    $region188: #{forward.1} parent=1 // pred_region
      _
    $region189: #{forward.1} parent=1 // pred_fallthru
      _
    // Predicated region
    $region190: #{forward.1} parent=1 // pred_check
      _
    $region191: #{forward.1} parent=1 // pred_check_branch
      %329 = sbr.rel (0) target = $region193
    $region192: #{forward.1} parent=1 // pred_region
      _
    $region193: #{forward.1} parent=1 // pred_fallthru
      _
    // Predicated region
    $region194: #{forward.1} parent=1 // pred_check
      _
    $region195: #{forward.1} parent=1 // pred_check_branch
      %331 = sbr.rel (0) target = $region197
    $region196: #{forward.1} parent=1 // pred_region
      _
    $region197: #{forward.1} parent=1 // pred_fallthru
      _
    // Predicated region
    $region198: #{forward.1} parent=1 // pred_check
      _
    $region199: #{forward.1} parent=1 // pred_check_branch
      %333 = sbr.rel (0) target = $region201
    $region200: #{forward.1} parent=1 // pred_region
      %334 = dma.done [#allocation10], 6144
    $region201: #{forward.1} parent=1 // pred_fallthru
      _
    // Predicated region
    $region202: #{forward.1} parent=1 // pred_check
      _
    $region203: #{forward.1} parent=1 // pred_check_branch
      %336 = sbr.rel (0) target = $region205
    $region204: #{forward.1} parent=1 // pred_region
      %337 = dma.done [#allocation12], 6144
    $region205: #{forward.1} parent=1 // pred_fallthru
      _
    // Predicated region
    $region206: #{forward.1} parent=1 // pred_check
      _
    $region207: #{forward.1} parent=1 // pred_check_branch
      %339 = sbr.rel (0) target = $region209
    $region208: #{forward.1} parent=1 // pred_region
      %340 = dma.done [#allocation12], 8192
    $region209: #{forward.1} parent=1 // pred_fallthru
      _
    // Predicated region
    $region210: #{forward.1} parent=1 // pred_check
      _
    $region211: #{forward.1} parent=1 // pred_check_branch
      %342 = sbr.rel (0) target = $region213
    $region212: #{forward.1} parent=1 // pred_region
      %343 = dma.done [#allocation15], 8192
    $region213: #{forward.1} parent=1 // pred_fallthru
      _
    // Predicated region
    $region214: #{forward.1} parent=1 // pred_check
      _
    $region215: #{forward.1} parent=1 // pred_check_branch
      %345 = sbr.rel (0) target = $region217
    $region216: #{forward.1} parent=1 // pred_region
      %346 = dma.done [#allocation15], 4096
    $region217: #{forward.1} parent=1 // pred_fallthru
      _
    // Predicated region
    $region218: #{forward.1} parent=1 // pred_check
      _
    $region219: #{forward.1} parent=1 // pred_check_branch
      %348 = sbr.rel (0) target = $region221
    $region220: #{forward.1} parent=1 // pred_region
      %349 = dma.done [#allocation18], 8192
    $region221: #{forward.1} parent=1 // pred_fallthru
      _
    // Predicated region
    $region222: #{forward.1} parent=1 // pred_check
      _
    $region223: #{forward.1} parent=1 // pred_check_branch
      %351 = sbr.rel (0) target = $region225
    $region224: #{forward.1} parent=1 // pred_region
      %352 = dma.done [#allocation18], 8192
    $region225: #{forward.1} parent=1 // pred_fallthru
      _
    // Predicated region
    $region226: #{forward.1} parent=1 // pred_check
      _
    $region227: #{forward.1} parent=1 // pred_check_branch
      %354 = sbr.rel (0) target = $region229
    $region228: #{forward.1} parent=1 // pred_region
      %355 = dma.done [#allocation21], 4096
    $region229: #{forward.1} parent=1 // pred_fallthru
      _
    // Predicated region
    $region230: #{forward.1} parent=1 // pred_check
      _
    $region231: #{forward.1} parent=1 // pred_check_branch
      %357 = sbr.rel (0) target = $region233
    $region232: #{forward.1} parent=1 // pred_region
      %358 = dma.done [#allocation21], 8192
    $region233: #{forward.1} parent=1 // pred_fallthru
      _
    // Predicated region
    $region234: #{forward.1} parent=1 // pred_check
      _
    $region235: #{forward.1} parent=1 // pred_check_branch
      %360 = sbr.rel (0) target = $region237
    $region236: #{forward.1} parent=1 // pred_region
      %361 = dma.done [#allocation24], 8192
    $region237: #{forward.1} parent=1 // pred_fallthru
      _
    // Predicated region
    $region238: #{forward.1} parent=1 // pred_check
      _
    $region239: #{forward.1} parent=1 // pred_check_branch
      %363 = sbr.rel (0) target = $region241
    $region240: #{forward.1} parent=1 // pred_region
      %364 = dma.done [#allocation24], 4096
    $region241: #{forward.1} parent=1 // pred_fallthru
      _
    %v366 = vld [vmem:[%s1] sm:$0xff]
    %v367 = vld [vmem:[%s3] sm:$0xff]
    %v368 = vld [vmem:[%s5] sm:$0xff]
    %v369 = vld [vmem:[%s7] sm:$0xff]
    %v370 = vld [vmem:[%s9] sm:$0xf]
    %v371 = vld [vmem:[%s11] sm:$0xf]
    %v372 = vmul.f32 %v366, %v366
    %v374 = vcombine.high %v372, %v372
    %vm376 = vcmask 1043456
    %v377 = vsel %vm376, %v372, 0.0
    %v378 = vsel %vm376, %v374, 0.0
    %v379 = vadd.f32 %v377, %v378
    %380 = vadd.xlane.f32.xlu0 %v379
    %v381 = vpop.xlane.xlu0 %380
    %v382 = vrsqrt.pop %v381
    %v383 = vmul.f32 %v381, %v382
    %vm384 = vcmp.eq.f32.partialorder %v381, inf
    %v385 = vsel %vm384, %v381, %v383
    %vm386 = vcmp.eq.f32.partialorder %v381, 0.0
    %v387 = vand.u32 %v381, 2147483648
    %v388 = vsel %vm386, %v387, %v385
    %v389 = vmul.f32 %v367, %v367
    %v391 = vcombine.high %v389, %v389
    %v393 = vsel %vm376, %v389, 0.0
    %v394 = vsel %vm376, %v391, 0.0
    %v395 = vadd.f32 %v393, %v394
    %396 = vadd.xlane.f32.xlu0 %v395
    %v397 = vpop.xlane.xlu0 %396
    %v398 = vrsqrt.pop %v397
    %v399 = vmul.f32 %v397, %v398
    %vm400 = vcmp.eq.f32.partialorder %v397, inf
    %v401 = vsel %vm400, %v397, %v399
    %vm402 = vcmp.eq.f32.partialorder %v397, 0.0
    %v403 = vand.u32 %v397, 2147483648
    %v404 = vsel %vm402, %v403, %v401
    %v405 = vmul.f32 %v368, %v368
    %v407 = vcombine.high %v405, %v405
    %v409 = vsel %vm376, %v405, 0.0
    %v410 = vsel %vm376, %v407, 0.0
    %v411 = vadd.f32 %v409, %v410
    %412 = vadd.xlane.f32.xlu0 %v411
    %v413 = vpop.xlane.xlu0 %412
    %v414 = vrsqrt.pop %v413
    %v415 = vmul.f32 %v413, %v414
    %vm416 = vcmp.eq.f32.partialorder %v413, inf
    %v417 = vsel %vm416, %v413, %v415
    %vm418 = vcmp.eq.f32.partialorder %v413, 0.0
    %v419 = vand.u32 %v413, 2147483648
    %v420 = vsel %vm418, %v419, %v417
    %v421 = vmul.f32 %v369, %v369
    %v423 = vcombine.high %v421, %v421
    %v425 = vsel %vm376, %v421, 0.0
    %v426 = vsel %vm376, %v423, 0.0
    %v427 = vadd.f32 %v425, %v426
    %428 = vadd.xlane.f32.xlu0 %v427
    %v429 = vpop.xlane.xlu0 %428
    %v430 = vrsqrt.pop %v429
    %v431 = vmul.f32 %v429, %v430
    %vm432 = vcmp.eq.f32.partialorder %v429, inf
    %v433 = vsel %vm432, %v429, %v431
    %vm434 = vcmp.eq.f32.partialorder %v429, 0.0
    %v435 = vand.u32 %v429, 2147483648
    %v436 = vsel %vm434, %v435, %v433
    %v437 = vmax.f32 %v388, 1e-12
    %v440 = vunpack.c.l.s4 839922192
    %v441 = vunpack.c.0.s8 %v440
    %v442 = vlaneseq
    %v443 = vshrl.u32 %v442, 7
    %v444 = vsub.s32 %v441, %v443
    %v445 = vrot.slane %v437, %v444
    %v447 = vrcp.pop %v445
    %v448 = vmul.f32 %v366, %v447
    %v449 = vmax.f32 %v404, 1e-12
    %v452 = vunpack.c.l.s4 839922192
    %v453 = vunpack.c.0.s8 %v452
    %v454 = vlaneseq
    %v455 = vshrl.u32 %v454, 7
    %v456 = vsub.s32 %v453, %v455
    %v457 = vrot.slane %v449, %v456
    %v459 = vrcp.pop %v457
    %v460 = vmul.f32 %v367, %v459
    %v461 = vmax.f32 %v420, 1e-12
    %v464 = vunpack.c.l.s4 839922192
    %v465 = vunpack.c.0.s8 %v464
    %v466 = vlaneseq
    %v467 = vshrl.u32 %v466, 7
    %v468 = vsub.s32 %v465, %v467
    %v469 = vrot.slane %v461, %v468
    %v471 = vrcp.pop %v469
    %v472 = vmul.f32 %v368, %v471
    %v473 = vmax.f32 %v436, 1e-12
    %v476 = vunpack.c.l.s4 839922192
    %v477 = vunpack.c.0.s8 %v476
    %v478 = vlaneseq
    %v479 = vshrl.u32 %v478, 7
    %v480 = vsub.s32 %v477, %v479
    %v481 = vrot.slane %v473, %v480
    %v483 = vrcp.pop %v481
    %v484 = vmul.f32 %v369, %v483
    %v486 = vcombine.high %v366, %v366
    %v488 = vpack.c.bf16 %v366, %v366
    %v489 = vpack.c.bf16 %v486, %v486
    %v490 = vld [vmem:[#allocation9] sm:$0xff]
    %v491 = vld [vmem:[#allocation9 + $0x8] sm:$0xf]
    %v492 = vld [vmem:[#allocation9 + $0xc] sm:$0xff]
    %v493 = vld [vmem:[#allocation9 + $0x14] sm:$0xf]
    %v494 = vld [vmem:[#allocation9 + $0x18] sm:$0xff]
    %v495 = vld [vmem:[#allocation9 + $0x20] sm:$0xf]
    %v496 = vld [vmem:[#allocation9 + $0x24] sm:$0xff]
    %v497 = vld [vmem:[#allocation9 + $0x2c] sm:$0xf]
    %v498 = vld [vmem:[#allocation9 + $0x30] sm:$0xff]
    %v499 = vld [vmem:[#allocation9 + $0x38] sm:$0xf]
    %v500 = vld [vmem:[#allocation9 + $0x3c] sm:$0xff]
    %v501 = vld [vmem:[#allocation9 + $0x44] sm:$0xf]
    %v502 = vld [vmem:[#allocation9 + $0x48] sm:$0xff]
    %v503 = vld [vmem:[#allocation9 + $0x50] sm:$0xf]
    %v504 = vld [vmem:[#allocation9 + $0x54] sm:$0xff]
    %v505 = vld [vmem:[#allocation9 + $0x5c] sm:$0xf]
    %v506 = vld [vmem:[#allocation9 + $0x60] sm:$0xff]
    %v507 = vld [vmem:[#allocation9 + $0x68] sm:$0xf]
    %v508 = vld [vmem:[#allocation9 + $0x6c] sm:$0xff]
    %v509 = vld [vmem:[#allocation9 + $0x74] sm:$0xf]
    %v510 = vld [vmem:[#allocation9 + $0x78] sm:$0xff]
    %v511 = vld [vmem:[#allocation9 + $0x80] sm:$0xf]
    %v512 = vld [vmem:[#allocation9 + $0x84] sm:$0xff]
    %v513 = vld [vmem:[#allocation9 + $0x8c] sm:$0xf]
    %v514 = vld [vmem:[#allocation9 + $0x90] sm:$0xff]
    %v515 = vld [vmem:[#allocation9 + $0x98] sm:$0xf]
    %v516 = vld [vmem:[#allocation9 + $0x9c] sm:$0xff]
    %v517 = vld [vmem:[#allocation9 + $0xa4] sm:$0xf]
    %v518 = vld [vmem:[#allocation9 + $0xa8] sm:$0xff]
    %v519 = vld [vmem:[#allocation9 + $0xb0] sm:$0xf]
    %v520 = vld [vmem:[#allocation9 + $0xb4] sm:$0xff]
    %v521 = vld [vmem:[#allocation9 + $0xbc] sm:$0xf]
    %v522 = vld [vmem:[#allocation9 + $0xc0] sm:$0xff]
    %v523 = vld [vmem:[#allocation9 + $0xc8] sm:$0xf]
    %v524 = vld [vmem:[#allocation9 + $0xcc] sm:$0xff]
    %v525 = vld [vmem:[#allocation9 + $0xd4] sm:$0xf]
    %v526 = vld [vmem:[#allocation9 + $0xd8] sm:$0xff]
    %v527 = vld [vmem:[#allocation9 + $0xe0] sm:$0xf]
    %v528 = vld [vmem:[#allocation9 + $0xe4] sm:$0xff]
    %v529 = vld [vmem:[#allocation9 + $0xec] sm:$0xf]
    %v530 = vld [vmem:[#allocation9 + $0xf0] sm:$0xff]
    %v531 = vld [vmem:[#allocation9 + $0xf8] sm:$0xf]
    %v532 = vld [vmem:[#allocation9 + $0xfc] sm:$0xff]
    %v533 = vld [vmem:[#allocation9 + $0x104] sm:$0xf]
    %v534 = vld [vmem:[#allocation9 + $0x108] sm:$0xff]
    %v535 = vld [vmem:[#allocation9 + $0x110] sm:$0xf]
    %v536 = vld [vmem:[#allocation9 + $0x114] sm:$0xff]
    %v537 = vld [vmem:[#allocation9 + $0x11c] sm:$0xf]
    %v538 = vld [vmem:[#allocation9 + $0x120] sm:$0xff]
    %v539 = vld [vmem:[#allocation9 + $0x128] sm:$0xf]
    %v540 = vld [vmem:[#allocation9 + $0x12c] sm:$0xff]
    %v541 = vld [vmem:[#allocation9 + $0x134] sm:$0xf]
    %v542 = vld [vmem:[#allocation9 + $0x138] sm:$0xff]
    %v543 = vld [vmem:[#allocation9 + $0x140] sm:$0xf]
    %v544 = vld [vmem:[#allocation9 + $0x144] sm:$0xff]
    %v545 = vld [vmem:[#allocation9 + $0x14c] sm:$0xf]
    %v546 = vld [vmem:[#allocation9 + $0x150] sm:$0xff]
    %v547 = vld [vmem:[#allocation9 + $0x158] sm:$0xf]
    %v548 = vld [vmem:[#allocation9 + $0x15c] sm:$0xff]
    %v549 = vld [vmem:[#allocation9 + $0x164] sm:$0xf]
    %v550 = vld [vmem:[#allocation9 + $0x168] sm:$0xff]
    %v551 = vld [vmem:[#allocation9 + $0x170] sm:$0xf]
    %v552 = vld [vmem:[#allocation9 + $0x174] sm:$0xff]
    %v553 = vld [vmem:[#allocation9 + $0x17c] sm:$0xf]
    %v554 = vld [vmem:[%s15] sm:$0x7]
    %v556 = vlaneseq
    %v557 = vshrl.u32 %v556, 7
    %v558 = vsub.s32 0, %v557
    %v559 = vrot.slane %v554, %v558
    %v560 = vlaneseq
    %v561 = vshrl.u32 %v560, 7
    %v562 = vsub.s32 1, %v561
    %v563 = vrot.slane %v554, %v562
    %v564 = vlaneseq
    %v565 = vshrl.u32 %v564, 7
    %v566 = vsub.s32 2, %v565
    %v567 = vrot.slane %v554, %v566
    %v635 = vunpack.c.l.b16 %v490
    %v636 = vunpack.c.h.b16 %v490
    %v637 = vunpack.c.l.b16 %v491
    %v638 = vunpack.c.l.b16 %v492
    %v639 = vunpack.c.h.b16 %v492
    %v640 = vunpack.c.l.b16 %v493
    %v641 = vunpack.c.l.b16 %v494
    %v642 = vunpack.c.h.b16 %v494
    %v643 = vunpack.c.l.b16 %v495
    %v644 = vunpack.c.l.b16 %v496
    %v645 = vunpack.c.h.b16 %v496
    %v646 = vunpack.c.l.b16 %v497
    %v647 = vunpack.c.l.b16 %v498
    %v648 = vunpack.c.h.b16 %v498
    %v649 = vunpack.c.l.b16 %v499
    %v650 = vunpack.c.l.b16 %v500
    %v651 = vunpack.c.h.b16 %v500
    %v652 = vunpack.c.l.b16 %v501
    %v653 = vunpack.c.l.b16 %v502
    %v654 = vunpack.c.h.b16 %v502
    %v655 = vunpack.c.l.b16 %v503
    %v656 = vunpack.c.l.b16 %v504
    %v657 = vunpack.c.h.b16 %v504
    %v658 = vunpack.c.l.b16 %v505
    %v659 = vunpack.c.l.b16 %v506
    %v660 = vunpack.c.h.b16 %v506
    %v661 = vunpack.c.l.b16 %v507
    %v662 = vunpack.c.l.b16 %v508
    %v663 = vunpack.c.h.b16 %v508
    %v664 = vunpack.c.l.b16 %v509
    %v665 = vunpack.c.l.b16 %v510
    %v666 = vunpack.c.h.b16 %v510
    %v667 = vunpack.c.l.b16 %v511
    %v668 = vunpack.c.l.b16 %v512
    %v669 = vunpack.c.h.b16 %v512
    %v670 = vunpack.c.l.b16 %v513
    %v671 = vunpack.c.l.b16 %v514
    %v672 = vunpack.c.h.b16 %v514
    %v673 = vunpack.c.l.b16 %v515
    %v674 = vunpack.c.l.b16 %v516
    %v675 = vunpack.c.h.b16 %v516
    %v676 = vunpack.c.l.b16 %v517
    %v677 = vunpack.c.l.b16 %v518
    %v678 = vunpack.c.h.b16 %v518
    %v679 = vunpack.c.l.b16 %v519
    %v680 = vunpack.c.l.b16 %v520
    %v681 = vunpack.c.h.b16 %v520
    %v682 = vunpack.c.l.b16 %v521
    %v683 = vunpack.c.l.b16 %v522
    %v684 = vunpack.c.h.b16 %v522
    %v685 = vunpack.c.l.b16 %v523
    %v686 = vunpack.c.l.b16 %v524
    %v687 = vunpack.c.h.b16 %v524
    %v688 = vunpack.c.l.b16 %v525
    %v689 = vunpack.c.l.b16 %v526
    %v690 = vunpack.c.h.b16 %v526
    %v691 = vunpack.c.l.b16 %v527
    %v692 = vunpack.c.l.b16 %v528
    %v693 = vunpack.c.h.b16 %v528
    %v694 = vunpack.c.l.b16 %v529
    %v695 = vunpack.c.l.b16 %v530
    %v696 = vunpack.c.h.b16 %v530
    %v697 = vunpack.c.l.b16 %v531
    %v698 = vunpack.c.l.b16 %v532
    %v699 = vunpack.c.h.b16 %v532
    %v700 = vunpack.c.l.b16 %v533
    %v701 = vunpack.c.l.b16 %v534
    %v702 = vunpack.c.h.b16 %v534
    %v703 = vunpack.c.l.b16 %v535
    %v704 = vunpack.c.l.b16 %v536
    %v705 = vunpack.c.h.b16 %v536
    %v706 = vunpack.c.l.b16 %v537
    %v707 = vunpack.c.l.b16 %v538
    %v708 = vunpack.c.h.b16 %v538
    %v709 = vunpack.c.l.b16 %v539
    %v710 = vunpack.c.l.b16 %v540
    %v711 = vunpack.c.h.b16 %v540
    %v712 = vunpack.c.l.b16 %v541
    %v713 = vunpack.c.l.b16 %v542
    %v714 = vunpack.c.h.b16 %v542
    %v715 = vunpack.c.l.b16 %v543
    %v716 = vunpack.c.l.b16 %v544
    %v717 = vunpack.c.h.b16 %v544
    %v718 = vunpack.c.l.b16 %v545
    %v719 = vunpack.c.l.b16 %v546
    %v720 = vunpack.c.h.b16 %v546
    %v721 = vunpack.c.l.b16 %v547
    %v722 = vunpack.c.l.b16 %v548
    %v723 = vunpack.c.h.b16 %v548
    %v724 = vunpack.c.l.b16 %v549
    %v725 = vunpack.c.l.b16 %v550
    %v726 = vunpack.c.h.b16 %v550
    %v727 = vunpack.c.l.b16 %v551
    %v728 = vunpack.c.l.b16 %v552
    %v729 = vunpack.c.h.b16 %v552
    %v730 = vunpack.c.l.b16 %v553
    %v731 = vpack.c.b16 %v638, %v635
    %v732 = vpack.c.b16 %v639, %v636
    %v733 = vpack.c.b16 %v640, %v637
    %v734 = vpack.c.b16 %v644, %v641
    %v735 = vpack.c.b16 %v645, %v642
    %v736 = vpack.c.b16 %v646, %v643
    %v737 = vpack.c.b16 %v650, %v647
    %v738 = vpack.c.b16 %v651, %v648
    %v739 = vpack.c.b16 %v652, %v649
    %v740 = vpack.c.b16 %v656, %v653
    %v741 = vpack.c.b16 %v657, %v654
    %v742 = vpack.c.b16 %v658, %v655
    %v743 = vpack.c.b16 %v662, %v659
    %v744 = vpack.c.b16 %v663, %v660
    %v745 = vpack.c.b16 %v664, %v661
    %v746 = vpack.c.b16 %v668, %v665
    %v747 = vpack.c.b16 %v669, %v666
    %v748 = vpack.c.b16 %v670, %v667
    %v749 = vpack.c.b16 %v674, %v671
    %v750 = vpack.c.b16 %v675, %v672
    %v751 = vpack.c.b16 %v676, %v673
    %v752 = vpack.c.b16 %v680, %v677
    %v753 = vpack.c.b16 %v681, %v678
    %v754 = vpack.c.b16 %v682, %v679
    %v755 = vpack.c.b16 %v686, %v683
    %v756 = vpack.c.b16 %v687, %v684
    %v757 = vpack.c.b16 %v688, %v685
    %v758 = vpack.c.b16 %v692, %v689
    %v759 = vpack.c.b16 %v693, %v690
    %v760 = vpack.c.b16 %v694, %v691
    %v761 = vpack.c.b16 %v698, %v695
    %v762 = vpack.c.b16 %v699, %v696
    %v763 = vpack.c.b16 %v700, %v697
    %v764 = vpack.c.b16 %v704, %v701
    %v765 = vpack.c.b16 %v705, %v702
    %v766 = vpack.c.b16 %v706, %v703
    %v767 = vpack.c.b16 %v710, %v707
    %v768 = vpack.c.b16 %v711, %v708
    %v769 = vpack.c.b16 %v712, %v709
    %v770 = vpack.c.b16 %v716, %v713
    %v771 = vpack.c.b16 %v717, %v714
    %v772 = vpack.c.b16 %v718, %v715
    %v773 = vpack.c.b16 %v722, %v719
    %v774 = vpack.c.b16 %v723, %v720
    %v775 = vpack.c.b16 %v724, %v721
    %v776 = vpack.c.b16 %v728, %v725
    %v777 = vpack.c.b16 %v729, %v726
    %v778 = vpack.c.b16 %v730, %v727
    %827 = vmatprep.subr.bf16.mxu0 %v732
    %828 = vmatpush1.bf16.msra.mxu0 %v731
    %829 = vmatprep.subr.bf16.mxu0 %v735
    %830 = vmatpush1.bf16.msra.mxu0 %v734
    %831 = vmatprep.subr.bf16.mxu0 %v738
    %832 = vmatpush1.bf16.msra.mxu0 %v737
    %833 = vmatprep.subr.bf16.mxu0 %v741
    %834 = vmatpush1.bf16.msra.mxu0 %v740
    %835 = vmatprep.subr.bf16.mxu0 %v744
    %836 = vmatpush1.bf16.msra.mxu0 %v743
    %837 = vmatprep.subr.bf16.mxu0 %v747
    %838 = vmatpush1.bf16.msra.mxu0 %v746
    %839 = vmatprep.subr.bf16.mxu0 %v750
    %840 = vmatpush1.bf16.msra.mxu0 %v749
    %841 = vmatprep.subr.bf16.mxu0 %v753
    %842 = vmatpush1.bf16.msra.mxu0 %v752
    %843 = vmatprep.subr.bf16.mxu0 %v756
    %844 = vmatpush1.bf16.msra.mxu0 %v755
    %845 = vmatprep.subr.bf16.mxu0 %v759
    %846 = vmatpush1.bf16.msra.mxu0 %v758
    %847 = vmatprep.subr.bf16.mxu0 %v762
    %848 = vmatpush1.bf16.msra.mxu0 %v761
    %849 = vmatprep.subr.bf16.mxu0 %v765
    %850 = vmatpush1.bf16.msra.mxu0 %v764
    %851 = vmatprep.subr.bf16.mxu0 %v768
    %852 = vmatpush1.bf16.msra.mxu0 %v767
    %853 = vmatprep.subr.bf16.mxu0 %v771
    %854 = vmatpush1.bf16.msra.mxu0 %v770
    %855 = vmatprep.subr.bf16.mxu0 %v774
    %856 = vmatpush1.bf16.msra.mxu0 %v773
    %857 = vmatprep.subr.bf16.mxu0 %v777
    %858 = vmatpush1.bf16.msra.mxu0 %v776
    %859 = vmatprep.mubr.bf16.mxu0 %v489
    %860 = vmatmul.mubr.bf16.gmra.mrb[0].mxu0 %v488
    %v861 = vpop.f32.mrb[0].mxu0
    %v862 = vadd.f32 %v559, %v861
    %v863 = vpop.f32.mrb[0].mxu0
    %v864 = vadd.f32 %v563, %v863
    %v865 = vpop.f32.mrb[0].mxu0
    %v866 = vpop.f32.mrb[0].mxu0
    %867 = vdwg.mxu0
    %868 = vmatprep.subr.bf16.mxu0 0
    %869 = vmatpush1.bf16.msra.mxu0 %v733
    %870 = vmatprep.subr.bf16.mxu0 0
    %871 = vmatpush1.bf16.msra.mxu0 %v736
    %872 = vmatprep.subr.bf16.mxu0 0
    %873 = vmatpush1.bf16.msra.mxu0 %v739
    %874 = vmatprep.subr.bf16.mxu0 0
    %875 = vmatpush1.bf16.msra.mxu0 %v742
    %876 = vmatprep.subr.bf16.mxu0 0
    %877 = vmatpush1.bf16.msra.mxu0 %v745
    %878 = vmatprep.subr.bf16.mxu0 0
    %879 = vmatpush1.bf16.msra.mxu0 %v748
    %880 = vmatprep.subr.bf16.mxu0 0
    %881 = vmatpush1.bf16.msra.mxu0 %v751
    %882 = vmatprep.subr.bf16.mxu0 0
    %883 = vmatpush1.bf16.msra.mxu0 %v754
    %884 = vmatprep.subr.bf16.mxu0 0
    %885 = vmatpush1.bf16.msra.mxu0 %v757
    %886 = vmatprep.subr.bf16.mxu0 0
    %887 = vmatpush1.bf16.msra.mxu0 %v760
    %888 = vmatprep.subr.bf16.mxu0 0
    %889 = vmatpush1.bf16.msra.mxu0 %v763
    %890 = vmatprep.subr.bf16.mxu0 0
    %891 = vmatpush1.bf16.msra.mxu0 %v766
    %892 = vmatprep.subr.bf16.mxu0 0
    %893 = vmatpush1.bf16.msra.mxu0 %v769
    %894 = vmatprep.subr.bf16.mxu0 0
    %895 = vmatpush1.bf16.msra.mxu0 %v772
    %896 = vmatprep.subr.bf16.mxu0 0
    %897 = vmatpush1.bf16.msra.mxu0 %v775
    %898 = vmatprep.subr.bf16.mxu0 0
    %899 = vmatpush1.bf16.msra.mxu0 %v778
    %900 = vmatprep.mubr.bf16.mxu0 %v489
    %901 = vmatmul.mubr.bf16.gmra.mrb[0].mxu0 %v488
    %v902 = vpop.f32.mrb[0].mxu0
    %v903 = vadd.f32 %v567, %v902
    %v904 = vpop.f32.mrb[0].mxu0
    %v905 = vpop.f32.mrb[0].mxu0
    %v906 = vpop.f32.mrb[0].mxu0
    %907 = vdwg.mxu0
    %v908 = vmax.f32 %v862, 0.0
    %v909 = vmax.f32 %v864, 0.0
    %v910 = vmax.f32 %v903, 0.0
    %v912 = vcombine.high %v367, %v367
    %v914 = vpack.c.bf16 %v367, %v367
    %v915 = vpack.c.bf16 %v912, %v912
    %v916 = vld [vmem:[#allocation11] sm:$0xff]
    %v917 = vld [vmem:[#allocation11 + $0x8] sm:$0xf]
    %v918 = vld [vmem:[#allocation11 + $0xc] sm:$0xff]
    %v919 = vld [vmem:[#allocation11 + $0x14] sm:$0xf]
    %v920 = vld [vmem:[#allocation11 + $0x18] sm:$0xff]
    %v921 = vld [vmem:[#allocation11 + $0x20] sm:$0xf]
    %v922 = vld [vmem:[#allocation11 + $0x24] sm:$0xff]
    %v923 = vld [vmem:[#allocation11 + $0x2c] sm:$0xf]
    %v924 = vld [vmem:[#allocation11 + $0x30] sm:$0xff]
    %v925 = vld [vmem:[#allocation11 + $0x38] sm:$0xf]
    %v926 = vld [vmem:[#allocation11 + $0x3c] sm:$0xff]
    %v927 = vld [vmem:[#allocation11 + $0x44] sm:$0xf]
    %v928 = vld [vmem:[#allocation11 + $0x48] sm:$0xff]
    %v929 = vld [vmem:[#allocation11 + $0x50] sm:$0xf]
    %v930 = vld [vmem:[#allocation11 + $0x54] sm:$0xff]
    %v931 = vld [vmem:[#allocation11 + $0x5c] sm:$0xf]
    %v932 = vld [vmem:[#allocation11 + $0x60] sm:$0xff]
    %v933 = vld [vmem:[#allocation11 + $0x68] sm:$0xf]
    %v934 = vld [vmem:[#allocation11 + $0x6c] sm:$0xff]
    %v935 = vld [vmem:[#allocation11 + $0x74] sm:$0xf]
    %v936 = vld [vmem:[#allocation11 + $0x78] sm:$0xff]
    %v937 = vld [vmem:[#allocation11 + $0x80] sm:$0xf]
    %v938 = vld [vmem:[#allocation11 + $0x84] sm:$0xff]
    %v939 = vld [vmem:[#allocation11 + $0x8c] sm:$0xf]
    %v940 = vld [vmem:[#allocation11 + $0x90] sm:$0xff]
    %v941 = vld [vmem:[#allocation11 + $0x98] sm:$0xf]
    %v942 = vld [vmem:[#allocation11 + $0x9c] sm:$0xff]
    %v943 = vld [vmem:[#allocation11 + $0xa4] sm:$0xf]
    %v944 = vld [vmem:[#allocation11 + $0xa8] sm:$0xff]
    %v945 = vld [vmem:[#allocation11 + $0xb0] sm:$0xf]
    %v946 = vld [vmem:[#allocation11 + $0xb4] sm:$0xff]
    %v947 = vld [vmem:[#allocation11 + $0xbc] sm:$0xf]
    %v948 = vld [vmem:[#allocation11 + $0xc0] sm:$0xff]
    %v949 = vld [vmem:[#allocation11 + $0xc8] sm:$0xf]
    %v950 = vld [vmem:[#allocation11 + $0xcc] sm:$0xff]
    %v951 = vld [vmem:[#allocation11 + $0xd4] sm:$0xf]
    %v952 = vld [vmem:[#allocation11 + $0xd8] sm:$0xff]
    %v953 = vld [vmem:[#allocation11 + $0xe0] sm:$0xf]
    %v954 = vld [vmem:[#allocation11 + $0xe4] sm:$0xff]
    %v955 = vld [vmem:[#allocation11 + $0xec] sm:$0xf]
    %v956 = vld [vmem:[#allocation11 + $0xf0] sm:$0xff]
    %v957 = vld [vmem:[#allocation11 + $0xf8] sm:$0xf]
    %v958 = vld [vmem:[#allocation11 + $0xfc] sm:$0xff]
    %v959 = vld [vmem:[#allocation11 + $0x104] sm:$0xf]
    %v960 = vld [vmem:[#allocation11 + $0x108] sm:$0xff]
    %v961 = vld [vmem:[#allocation11 + $0x110] sm:$0xf]
    %v962 = vld [vmem:[#allocation11 + $0x114] sm:$0xff]
    %v963 = vld [vmem:[#allocation11 + $0x11c] sm:$0xf]
    %v964 = vld [vmem:[#allocation11 + $0x120] sm:$0xff]
    %v965 = vld [vmem:[#allocation11 + $0x128] sm:$0xf]
    %v966 = vld [vmem:[#allocation11 + $0x12c] sm:$0xff]
    %v967 = vld [vmem:[#allocation11 + $0x134] sm:$0xf]
    %v968 = vld [vmem:[#allocation11 + $0x138] sm:$0xff]
    %v969 = vld [vmem:[#allocation11 + $0x140] sm:$0xf]
    %v970 = vld [vmem:[#allocation11 + $0x144] sm:$0xff]
    %v971 = vld [vmem:[#allocation11 + $0x14c] sm:$0xf]
    %v972 = vld [vmem:[#allocation11 + $0x150] sm:$0xff]
    %v973 = vld [vmem:[#allocation11 + $0x158] sm:$0xf]
    %v974 = vld [vmem:[#allocation11 + $0x15c] sm:$0xff]
    %v975 = vld [vmem:[#allocation11 + $0x164] sm:$0xf]
    %v976 = vld [vmem:[#allocation11 + $0x168] sm:$0xff]
    %v977 = vld [vmem:[#allocation11 + $0x170] sm:$0xf]
    %v978 = vld [vmem:[#allocation11 + $0x174] sm:$0xff]
    %v979 = vld [vmem:[#allocation11 + $0x17c] sm:$0xf]
    %v980 = vld [vmem:[%s35] sm:$0x7]
    %v982 = vlaneseq
    %v983 = vshrl.u32 %v982, 7
    %v984 = vsub.s32 0, %v983
    %v985 = vrot.slane %v980, %v984
    %v986 = vlaneseq
    %v987 = vshrl.u32 %v986, 7
    %v988 = vsub.s32 1, %v987
    %v989 = vrot.slane %v980, %v988
    %v990 = vlaneseq
    %v991 = vshrl.u32 %v990, 7
    %v992 = vsub.s32 2, %v991
    %v993 = vrot.slane %v980, %v992
    %v1061 = vunpack.c.l.b16 %v916
    %v1062 = vunpack.c.h.b16 %v916
    %v1063 = vunpack.c.l.b16 %v917
    %v1064 = vunpack.c.l.b16 %v918
    %v1065 = vunpack.c.h.b16 %v918
    %v1066 = vunpack.c.l.b16 %v919
    %v1067 = vunpack.c.l.b16 %v920
    %v1068 = vunpack.c.h.b16 %v920
    %v1069 = vunpack.c.l.b16 %v921
    %v1070 = vunpack.c.l.b16 %v922
    %v1071 = vunpack.c.h.b16 %v922
    %v1072 = vunpack.c.l.b16 %v923
    %v1073 = vunpack.c.l.b16 %v924
    %v1074 = vunpack.c.h.b16 %v924
    %v1075 = vunpack.c.l.b16 %v925
    %v1076 = vunpack.c.l.b16 %v926
    %v1077 = vunpack.c.h.b16 %v926
    %v1078 = vunpack.c.l.b16 %v927
    %v1079 = vunpack.c.l.b16 %v928
    %v1080 = vunpack.c.h.b16 %v928
    %v1081 = vunpack.c.l.b16 %v929
    %v1082 = vunpack.c.l.b16 %v930
    %v1083 = vunpack.c.h.b16 %v930
    %v1084 = vunpack.c.l.b16 %v931
    %v1085 = vunpack.c.l.b16 %v932
    %v1086 = vunpack.c.h.b16 %v932
    %v1087 = vunpack.c.l.b16 %v933
    %v1088 = vunpack.c.l.b16 %v934
    %v1089 = vunpack.c.h.b16 %v934
    %v1090 = vunpack.c.l.b16 %v935
    %v1091 = vunpack.c.l.b16 %v936
    %v1092 = vunpack.c.h.b16 %v936
    %v1093 = vunpack.c.l.b16 %v937
    %v1094 = vunpack.c.l.b16 %v938
    %v1095 = vunpack.c.h.b16 %v938
    %v1096 = vunpack.c.l.b16 %v939
    %v1097 = vunpack.c.l.b16 %v940
    %v1098 = vunpack.c.h.b16 %v940
    %v1099 = vunpack.c.l.b16 %v941
    %v1100 = vunpack.c.l.b16 %v942
    %v1101 = vunpack.c.h.b16 %v942
    %v1102 = vunpack.c.l.b16 %v943
    %v1103 = vunpack.c.l.b16 %v944
    %v1104 = vunpack.c.h.b16 %v944
    %v1105 = vunpack.c.l.b16 %v945
    %v1106 = vunpack.c.l.b16 %v946
    %v1107 = vunpack.c.h.b16 %v946
    %v1108 = vunpack.c.l.b16 %v947
    %v1109 = vunpack.c.l.b16 %v948
    %v1110 = vunpack.c.h.b16 %v948
    %v1111 = vunpack.c.l.b16 %v949
    %v1112 = vunpack.c.l.b16 %v950
    %v1113 = vunpack.c.h.b16 %v950
    %v1114 = vunpack.c.l.b16 %v951
    %v1115 = vunpack.c.l.b16 %v952
    %v1116 = vunpack.c.h.b16 %v952
    %v1117 = vunpack.c.l.b16 %v953
    %v1118 = vunpack.c.l.b16 %v954
    %v1119 = vunpack.c.h.b16 %v954
    %v1120 = vunpack.c.l.b16 %v955
    %v1121 = vunpack.c.l.b16 %v956
    %v1122 = vunpack.c.h.b16 %v956
    %v1123 = vunpack.c.l.b16 %v957
    %v1124 = vunpack.c.l.b16 %v958
    %v1125 = vunpack.c.h.b16 %v958
    %v1126 = vunpack.c.l.b16 %v959
    %v1127 = vunpack.c.l.b16 %v960
    %v1128 = vunpack.c.h.b16 %v960
    %v1129 = vunpack.c.l.b16 %v961
    %v1130 = vunpack.c.l.b16 %v962
    %v1131 = vunpack.c.h.b16 %v962
    %v1132 = vunpack.c.l.b16 %v963
    %v1133 = vunpack.c.l.b16 %v964
    %v1134 = vunpack.c.h.b16 %v964
    %v1135 = vunpack.c.l.b16 %v965
    %v1136 = vunpack.c.l.b16 %v966
    %v1137 = vunpack.c.h.b16 %v966
    %v1138 = vunpack.c.l.b16 %v967
    %v1139 = vunpack.c.l.b16 %v968
    %v1140 = vunpack.c.h.b16 %v968
    %v1141 = vunpack.c.l.b16 %v969
    %v1142 = vunpack.c.l.b16 %v970
    %v1143 = vunpack.c.h.b16 %v970
    %v1144 = vunpack.c.l.b16 %v971
    %v1145 = vunpack.c.l.b16 %v972
    %v1146 = vunpack.c.h.b16 %v972
    %v1147 = vunpack.c.l.b16 %v973
    %v1148 = vunpack.c.l.b16 %v974
    %v1149 = vunpack.c.h.b16 %v974
    %v1150 = vunpack.c.l.b16 %v975
    %v1151 = vunpack.c.l.b16 %v976
    %v1152 = vunpack.c.h.b16 %v976
    %v1153 = vunpack.c.l.b16 %v977
    %v1154 = vunpack.c.l.b16 %v978
    %v1155 = vunpack.c.h.b16 %v978
    %v1156 = vunpack.c.l.b16 %v979
    %v1157 = vpack.c.b16 %v1064, %v1061
    %v1158 = vpack.c.b16 %v1065, %v1062
    %v1159 = vpack.c.b16 %v1066, %v1063
    %v1160 = vpack.c.b16 %v1070, %v1067
    %v1161 = vpack.c.b16 %v1071, %v1068
    %v1162 = vpack.c.b16 %v1072, %v1069
    %v1163 = vpack.c.b16 %v1076, %v1073
    %v1164 = vpack.c.b16 %v1077, %v1074
    %v1165 = vpack.c.b16 %v1078, %v1075
    %v1166 = vpack.c.b16 %v1082, %v1079
    %v1167 = vpack.c.b16 %v1083, %v1080
    %v1168 = vpack.c.b16 %v1084, %v1081
    %v1169 = vpack.c.b16 %v1088, %v1085
    %v1170 = vpack.c.b16 %v1089, %v1086
    %v1171 = vpack.c.b16 %v1090, %v1087
    %v1172 = vpack.c.b16 %v1094, %v1091
    %v1173 = vpack.c.b16 %v1095, %v1092
    %v1174 = vpack.c.b16 %v1096, %v1093
    %v1175 = vpack.c.b16 %v1100, %v1097
    %v1176 = vpack.c.b16 %v1101, %v1098
    %v1177 = vpack.c.b16 %v1102, %v1099
    %v1178 = vpack.c.b16 %v1106, %v1103
    %v1179 = vpack.c.b16 %v1107, %v1104
    %v1180 = vpack.c.b16 %v1108, %v1105
    %v1181 = vpack.c.b16 %v1112, %v1109
    %v1182 = vpack.c.b16 %v1113, %v1110
    %v1183 = vpack.c.b16 %v1114, %v1111
    %v1184 = vpack.c.b16 %v1118, %v1115
    %v1185 = vpack.c.b16 %v1119, %v1116
    %v1186 = vpack.c.b16 %v1120, %v1117
    %v1187 = vpack.c.b16 %v1124, %v1121
    %v1188 = vpack.c.b16 %v1125, %v1122
    %v1189 = vpack.c.b16 %v1126, %v1123
    %v1190 = vpack.c.b16 %v1130, %v1127
    %v1191 = vpack.c.b16 %v1131, %v1128
    %v1192 = vpack.c.b16 %v1132, %v1129
    %v1193 = vpack.c.b16 %v1136, %v1133
    %v1194 = vpack.c.b16 %v1137, %v1134
    %v1195 = vpack.c.b16 %v1138, %v1135
    %v1196 = vpack.c.b16 %v1142, %v1139
    %v1197 = vpack.c.b16 %v1143, %v1140
    %v1198 = vpack.c.b16 %v1144, %v1141
    %v1199 = vpack.c.b16 %v1148, %v1145
    %v1200 = vpack.c.b16 %v1149, %v1146
    %v1201 = vpack.c.b16 %v1150, %v1147
    %v1202 = vpack.c.b16 %v1154, %v1151
    %v1203 = vpack.c.b16 %v1155, %v1152
    %v1204 = vpack.c.b16 %v1156, %v1153
    %1253 = vmatprep.subr.bf16.mxu0 %v1158
    %1254 = vmatpush1.bf16.msra.mxu0 %v1157
    %1255 = vmatprep.subr.bf16.mxu0 %v1161
    %1256 = vmatpush1.bf16.msra.mxu0 %v1160
    %1257 = vmatprep.subr.bf16.mxu0 %v1164
    %1258 = vmatpush1.bf16.msra.mxu0 %v1163
    %1259 = vmatprep.subr.bf16.mxu0 %v1167
    %1260 = vmatpush1.bf16.msra.mxu0 %v1166
    %1261 = vmatprep.subr.bf16.mxu0 %v1170
    %1262 = vmatpush1.bf16.msra.mxu0 %v1169
    %1263 = vmatprep.subr.bf16.mxu0 %v1173
    %1264 = vmatpush1.bf16.msra.mxu0 %v1172
    %1265 = vmatprep.subr.bf16.mxu0 %v1176
    %1266 = vmatpush1.bf16.msra.mxu0 %v1175
    %1267 = vmatprep.subr.bf16.mxu0 %v1179
    %1268 = vmatpush1.bf16.msra.mxu0 %v1178
    %1269 = vmatprep.subr.bf16.mxu0 %v1182
    %1270 = vmatpush1.bf16.msra.mxu0 %v1181
    %1271 = vmatprep.subr.bf16.mxu0 %v1185
    %1272 = vmatpush1.bf16.msra.mxu0 %v1184
    %1273 = vmatprep.subr.bf16.mxu0 %v1188
    %1274 = vmatpush1.bf16.msra.mxu0 %v1187
    %1275 = vmatprep.subr.bf16.mxu0 %v1191
    %1276 = vmatpush1.bf16.msra.mxu0 %v1190
    %1277 = vmatprep.subr.bf16.mxu0 %v1194
    %1278 = vmatpush1.bf16.msra.mxu0 %v1193
    %1279 = vmatprep.subr.bf16.mxu0 %v1197
    %1280 = vmatpush1.bf16.msra.mxu0 %v1196
    %1281 = vmatprep.subr.bf16.mxu0 %v1200
    %1282 = vmatpush1.bf16.msra.mxu0 %v1199
    %1283 = vmatprep.subr.bf16.mxu0 %v1203
    %1284 = vmatpush1.bf16.msra.mxu0 %v1202
    %1285 = vmatprep.mubr.bf16.mxu0 %v915
    %1286 = vmatmul.mubr.bf16.gmra.mrb[0].mxu0 %v914
    %v1287 = vpop.f32.mrb[0].mxu0
    %v1288 = vadd.f32 %v985, %v1287
    %v1289 = vpop.f32.mrb[0].mxu0
    %v1290 = vadd.f32 %v989, %v1289
    %v1291 = vpop.f32.mrb[0].mxu0
    %v1292 = vpop.f32.mrb[0].mxu0
    %1293 = vdwg.mxu0
    %1294 = vmatprep.subr.bf16.mxu0 0
    %1295 = vmatpush1.bf16.msra.mxu0 %v1159
    %1296 = vmatprep.subr.bf16.mxu0 0
    %1297 = vmatpush1.bf16.msra.mxu0 %v1162
    %1298 = vmatprep.subr.bf16.mxu0 0
    %1299 = vmatpush1.bf16.msra.mxu0 %v1165
    %1300 = vmatprep.subr.bf16.mxu0 0
    %1301 = vmatpush1.bf16.msra.mxu0 %v1168
    %1302 = vmatprep.subr.bf16.mxu0 0
    %1303 = vmatpush1.bf16.msra.mxu0 %v1171
    %1304 = vmatprep.subr.bf16.mxu0 0
    %1305 = vmatpush1.bf16.msra.mxu0 %v1174
    %1306 = vmatprep.subr.bf16.mxu0 0
    %1307 = vmatpush1.bf16.msra.mxu0 %v1177
    %1308 = vmatprep.subr.bf16.mxu0 0
    %1309 = vmatpush1.bf16.msra.mxu0 %v1180
    %1310 = vmatprep.subr.bf16.mxu0 0
    %1311 = vmatpush1.bf16.msra.mxu0 %v1183
    %1312 = vmatprep.subr.bf16.mxu0 0
    %1313 = vmatpush1.bf16.msra.mxu0 %v1186
    %1314 = vmatprep.subr.bf16.mxu0 0
    %1315 = vmatpush1.bf16.msra.mxu0 %v1189
    %1316 = vmatprep.subr.bf16.mxu0 0
    %1317 = vmatpush1.bf16.msra.mxu0 %v1192
    %1318 = vmatprep.subr.bf16.mxu0 0
    %1319 = vmatpush1.bf16.msra.mxu0 %v1195
    %1320 = vmatprep.subr.bf16.mxu0 0
    %1321 = vmatpush1.bf16.msra.mxu0 %v1198
    %1322 = vmatprep.subr.bf16.mxu0 0
    %1323 = vmatpush1.bf16.msra.mxu0 %v1201
    %1324 = vmatprep.subr.bf16.mxu0 0
    %1325 = vmatpush1.bf16.msra.mxu0 %v1204
    %1326 = vmatprep.mubr.bf16.mxu0 %v915
    %1327 = vmatmul.mubr.bf16.gmra.mrb[0].mxu0 %v914
    %v1328 = vpop.f32.mrb[0].mxu0
    %v1329 = vadd.f32 %v993, %v1328
    %v1330 = vpop.f32.mrb[0].mxu0
    %v1331 = vpop.f32.mrb[0].mxu0
    %v1332 = vpop.f32.mrb[0].mxu0
    %1333 = vdwg.mxu0
    %v1334 = vmax.f32 %v1288, 0.0
    %v1335 = vmax.f32 %v1290, 0.0
    %v1336 = vmax.f32 %v1329, 0.0
    %v1337 = vpack.c.bf16 %v908, %v908
    %v1338 = vld [vmem:[%s17] sm:$0xf]
    %v1339 = vld [vmem:[%s17 + $0x4] sm:$0xf]
    %v1340 = vld [vmem:[%s17 + $0x8] sm:$0xf]
    %v1341 = vld [vmem:[%s17 + $0xc] sm:$0xf]
    %v1342 = vld [vmem:[%s17 + $0x10] sm:$0xf]
    %v1343 = vld [vmem:[%s17 + $0x14] sm:$0xf]
    %v1344 = vld [vmem:[%s17 + $0x18] sm:$0xf]
    %v1345 = vld [vmem:[%s17 + $0x1c] sm:$0xf]
    %v1346 = vld [vmem:[%s17 + $0x20] sm:$0xf]
    %v1347 = vld [vmem:[%s17 + $0x24] sm:$0xf]
    %v1348 = vld [vmem:[%s17 + $0x28] sm:$0xf]
    %v1349 = vld [vmem:[%s17 + $0x2c] sm:$0xf]
    %v1350 = vld [vmem:[%s17 + $0x30] sm:$0xf]
    %v1351 = vld [vmem:[%s17 + $0x34] sm:$0xf]
    %v1352 = vld [vmem:[%s17 + $0x38] sm:$0xf]
    %v1353 = vld [vmem:[%s17 + $0x3c] sm:$0xf]
    %v1354 = vld [vmem:[%s19] sm:$0x1]
    %v1356 = vlaneseq
    %v1357 = vshrl.u32 %v1356, 7
    %v1358 = vsub.s32 0, %v1357
    %v1359 = vrot.slane %v1354, %v1358
    %v1377 = vunpack.c.l.b16 %v1338
    %v1378 = vunpack.c.l.b16 %v1339
    %v1379 = vunpack.c.l.b16 %v1340
    %v1380 = vunpack.c.l.b16 %v1341
    %v1381 = vunpack.c.l.b16 %v1342
    %v1382 = vunpack.c.l.b16 %v1343
    %v1383 = vunpack.c.l.b16 %v1344
    %v1384 = vunpack.c.l.b16 %v1345
    %v1385 = vunpack.c.l.b16 %v1346
    %v1386 = vunpack.c.l.b16 %v1347
    %v1387 = vunpack.c.l.b16 %v1348
    %v1388 = vunpack.c.l.b16 %v1349
    %v1389 = vunpack.c.l.b16 %v1350
    %v1390 = vunpack.c.l.b16 %v1351
    %v1391 = vunpack.c.l.b16 %v1352
    %v1392 = vunpack.c.l.b16 %v1353
    %v1393 = vpack.c.b16 %v1378, %v1377
    %v1394 = vpack.c.b16 %v1380, %v1379
    %v1395 = vpack.c.b16 %v1382, %v1381
    %v1396 = vpack.c.b16 %v1384, %v1383
    %v1397 = vpack.c.b16 %v1386, %v1385
    %v1398 = vpack.c.b16 %v1388, %v1387
    %v1399 = vpack.c.b16 %v1390, %v1389
    %v1400 = vpack.c.b16 %v1392, %v1391
    %1409 = vmatprep.subr.bf16.mxu0 0
    %1410 = vmatpush1.bf16.msra.mxu0 %v1393
    %1411 = vmatprep.subr.bf16.mxu0 0
    %1412 = vmatpush1.bf16.msra.mxu0 %v1394
    %1413 = vmatprep.subr.bf16.mxu0 0
    %1414 = vmatpush1.bf16.msra.mxu0 %v1395
    %1415 = vmatprep.subr.bf16.mxu0 0
    %1416 = vmatpush1.bf16.msra.mxu0 %v1396
    %1417 = vmatprep.subr.bf16.mxu0 0
    %1418 = vmatpush1.bf16.msra.mxu0 %v1397
    %1419 = vmatprep.subr.bf16.mxu0 0
    %1420 = vmatpush1.bf16.msra.mxu0 %v1398
    %1421 = vmatprep.subr.bf16.mxu0 0
    %1422 = vmatpush1.bf16.msra.mxu0 %v1399
    %1423 = vmatprep.subr.bf16.mxu0 0
    %1424 = vmatpush1.bf16.msra.mxu0 %v1400
    %1425 = vmatprep.subr.bf16.mxu0 0
    %1426 = vmatpush1.bf16.msra.mxu0 0
    %1427 = vmatprep.subr.bf16.mxu0 0
    %1428 = vmatpush1.bf16.msra.mxu0 0
    %1429 = vmatprep.subr.bf16.mxu0 0
    %1430 = vmatpush1.bf16.msra.mxu0 0
    %1431 = vmatprep.subr.bf16.mxu0 0
    %1432 = vmatpush1.bf16.msra.mxu0 0
    %1433 = vmatprep.subr.bf16.mxu0 0
    %1434 = vmatpush1.bf16.msra.mxu0 0
    %1435 = vmatprep.subr.bf16.mxu0 0
    %1436 = vmatpush1.bf16.msra.mxu0 0
    %1437 = vmatprep.subr.bf16.mxu0 0
    %1438 = vmatpush1.bf16.msra.mxu0 0
    %1439 = vmatprep.subr.bf16.mxu0 0
    %1440 = vmatpush1.bf16.msra.mxu0 0
    %1441 = vmatprep.mubr.bf16.mxu0 0
    %1442 = vmatmul.mubr.bf16.gmra.mrb[0].mxu0 %v1337
    %v1443 = vpop.f32.mrb[0].mxu0
    %v1444 = vadd.f32 %v1359, %v1443
    %v1445 = vpop.f32.mrb[0].mxu0
    %v1446 = vpop.f32.mrb[0].mxu0
    %v1447 = vpop.f32.mrb[0].mxu0
    %1448 = vdwg.mxu0
    %v1449 = vmax.f32 %v1444, 0.0
    %v1450 = vld [vmem:[%s21] sm:$0x1]
    %v1452 = vlaneseq
    %v1453 = vshrl.u32 %v1452, 7
    %v1454 = vsub.s32 0, %v1453
    %v1455 = vrot.slane %v1450, %v1454
    %v1457 = vmul.f32 %v1449, %v1455
    %vm1458 = vcmask 519168
    %v1459 = vsel %vm1458, %v1457, 0.0
    %1460 = vadd.xlane.f32.xlu0 %v1459
    %v1461 = vpop.xlane.xlu0 %1460
    %v1462 = vld [vmem:[#allocation2] sm:$0x1]
    %v1464 = vlaneseq
    %v1465 = vshrl.u32 %v1464, 7
    %v1466 = vsub.s32 0, %v1465
    %v1467 = vrot.slane %v1462, %v1466
    %v1469 = vadd.f32 %v1461, %v1467
    %v1470 = vxor.u32 %v1469, 2147483648
    %v1471 = vmul.f32 %v1470, 1.442695
    %v1472 = vpow.pop %v1471
    %v1473 = vadd.f32 %v1472, 1.0
    %v1474 = vrcp.pop %v1473
    %v1475 = vmul.f32 1.0, %v1474
    %v1476 = vpack.c.bf16 %v1334, %v1334
    %v1477 = vld [vmem:[%s37] sm:$0xf]
    %v1478 = vld [vmem:[%s37 + $0x4] sm:$0xf]
    %v1479 = vld [vmem:[%s37 + $0x8] sm:$0xf]
    %v1480 = vld [vmem:[%s37 + $0xc] sm:$0xf]
    %v1481 = vld [vmem:[%s37 + $0x10] sm:$0xf]
    %v1482 = vld [vmem:[%s37 + $0x14] sm:$0xf]
    %v1483 = vld [vmem:[%s37 + $0x18] sm:$0xf]
    %v1484 = vld [vmem:[%s37 + $0x1c] sm:$0xf]
    %v1485 = vld [vmem:[%s37 + $0x20] sm:$0xf]
    %v1486 = vld [vmem:[%s37 + $0x24] sm:$0xf]
    %v1487 = vld [vmem:[%s37 + $0x28] sm:$0xf]
    %v1488 = vld [vmem:[%s37 + $0x2c] sm:$0xf]
    %v1489 = vld [vmem:[%s37 + $0x30] sm:$0xf]
    %v1490 = vld [vmem:[%s37 + $0x34] sm:$0xf]
    %v1491 = vld [vmem:[%s37 + $0x38] sm:$0xf]
    %v1492 = vld [vmem:[%s37 + $0x3c] sm:$0xf]
    %v1493 = vld [vmem:[%s39] sm:$0x1]
    %v1495 = vlaneseq
    %v1496 = vshrl.u32 %v1495, 7
    %v1497 = vsub.s32 0, %v1496
    %v1498 = vrot.slane %v1493, %v1497
    %v1516 = vunpack.c.l.b16 %v1477
    %v1517 = vunpack.c.l.b16 %v1478
    %v1518 = vunpack.c.l.b16 %v1479
    %v1519 = vunpack.c.l.b16 %v1480
    %v1520 = vunpack.c.l.b16 %v1481
    %v1521 = vunpack.c.l.b16 %v1482
    %v1522 = vunpack.c.l.b16 %v1483
    %v1523 = vunpack.c.l.b16 %v1484
    %v1524 = vunpack.c.l.b16 %v1485
    %v1525 = vunpack.c.l.b16 %v1486
    %v1526 = vunpack.c.l.b16 %v1487
    %v1527 = vunpack.c.l.b16 %v1488
    %v1528 = vunpack.c.l.b16 %v1489
    %v1529 = vunpack.c.l.b16 %v1490
    %v1530 = vunpack.c.l.b16 %v1491
    %v1531 = vunpack.c.l.b16 %v1492
    %v1532 = vpack.c.b16 %v1517, %v1516
    %v1533 = vpack.c.b16 %v1519, %v1518
    %v1534 = vpack.c.b16 %v1521, %v1520
    %v1535 = vpack.c.b16 %v1523, %v1522
    %v1536 = vpack.c.b16 %v1525, %v1524
    %v1537 = vpack.c.b16 %v1527, %v1526
    %v1538 = vpack.c.b16 %v1529, %v1528
    %v1539 = vpack.c.b16 %v1531, %v1530
    %1548 = vmatprep.subr.bf16.mxu0 0
    %1549 = vmatpush1.bf16.msra.mxu0 %v1532
    %1550 = vmatprep.subr.bf16.mxu0 0
    %1551 = vmatpush1.bf16.msra.mxu0 %v1533
    %1552 = vmatprep.subr.bf16.mxu0 0
    %1553 = vmatpush1.bf16.msra.mxu0 %v1534
    %1554 = vmatprep.subr.bf16.mxu0 0
    %1555 = vmatpush1.bf16.msra.mxu0 %v1535
    %1556 = vmatprep.subr.bf16.mxu0 0
    %1557 = vmatpush1.bf16.msra.mxu0 %v1536
    %1558 = vmatprep.subr.bf16.mxu0 0
    %1559 = vmatpush1.bf16.msra.mxu0 %v1537
    %1560 = vmatprep.subr.bf16.mxu0 0
    %1561 = vmatpush1.bf16.msra.mxu0 %v1538
    %1562 = vmatprep.subr.bf16.mxu0 0
    %1563 = vmatpush1.bf16.msra.mxu0 %v1539
    %1564 = vmatprep.subr.bf16.mxu0 0
    %1565 = vmatpush1.bf16.msra.mxu0 0
    %1566 = vmatprep.subr.bf16.mxu0 0
    %1567 = vmatpush1.bf16.msra.mxu0 0
    %1568 = vmatprep.subr.bf16.mxu0 0
    %1569 = vmatpush1.bf16.msra.mxu0 0
    %1570 = vmatprep.subr.bf16.mxu0 0
    %1571 = vmatpush1.bf16.msra.mxu0 0
    %1572 = vmatprep.subr.bf16.mxu0 0
    %1573 = vmatpush1.bf16.msra.mxu0 0
    %1574 = vmatprep.subr.bf16.mxu0 0
    %1575 = vmatpush1.bf16.msra.mxu0 0
    %1576 = vmatprep.subr.bf16.mxu0 0
    %1577 = vmatpush1.bf16.msra.mxu0 0
    %1578 = vmatprep.subr.bf16.mxu0 0
    %1579 = vmatpush1.bf16.msra.mxu0 0
    %1580 = vmatprep.mubr.bf16.mxu0 0
    %1581 = vmatmul.mubr.bf16.gmra.mrb[0].mxu0 %v1476
    %v1582 = vpop.f32.mrb[0].mxu0
    %v1583 = vadd.f32 %v1498, %v1582
    %v1584 = vpop.f32.mrb[0].mxu0
    %v1585 = vpop.f32.mrb[0].mxu0
    %v1586 = vpop.f32.mrb[0].mxu0
    %1587 = vdwg.mxu0
    %v1588 = vmax.f32 %v1583, 0.0
    %v1589 = vld [vmem:[%s41] sm:$0x1]
    %v1591 = vlaneseq
    %v1592 = vshrl.u32 %v1591, 7
    %v1593 = vsub.s32 0, %v1592
    %v1594 = vrot.slane %v1589, %v1593
    %v1596 = vmul.f32 %v1588, %v1594
    %v1597 = vsel %vm1458, %v1596, 0.0
    %1598 = vadd.xlane.f32.xlu0 %v1597
    %v1599 = vpop.xlane.xlu0 %1598
    %v1600 = vld [vmem:[#allocation4] sm:$0x1]
    %v1602 = vlaneseq
    %v1603 = vshrl.u32 %v1602, 7
    %v1604 = vsub.s32 0, %v1603
    %v1605 = vrot.slane %v1600, %v1604
    %v1607 = vadd.f32 %v1599, %v1605
    %v1608 = vxor.u32 %v1607, 2147483648
    %v1609 = vmul.f32 %v1608, 1.442695
    %v1610 = vpow.pop %v1609
    %v1611 = vadd.f32 %v1610, 1.0
    %v1612 = vrcp.pop %v1611
    %v1613 = vmul.f32 1.0, %v1612
    %v1614 = vpack.c.bf16 %v909, %v909
    %v1615 = vpack.c.bf16 %v910, %v910
    %v1616 = vld [vmem:[%s25] sm:$0xf]
    %v1617 = vld [vmem:[%s25 + $0x4] sm:$0xf]
    %v1618 = vld [vmem:[%s25 + $0x8] sm:$0xf]
    %v1619 = vld [vmem:[%s25 + $0xc] sm:$0xf]
    %v1620 = vld [vmem:[%s25 + $0x10] sm:$0xf]
    %v1621 = vld [vmem:[%s25 + $0x14] sm:$0xf]
    %v1622 = vld [vmem:[%s25 + $0x18] sm:$0xf]
    %v1623 = vld [vmem:[%s25 + $0x1c] sm:$0xf]
    %v1624 = vld [vmem:[%s25 + $0x20] sm:$0xf]
    %v1625 = vld [vmem:[%s25 + $0x24] sm:$0xf]
    %v1626 = vld [vmem:[%s25 + $0x28] sm:$0xf]
    %v1627 = vld [vmem:[%s25 + $0x2c] sm:$0xf]
    %v1628 = vld [vmem:[%s25 + $0x30] sm:$0xf]
    %v1629 = vld [vmem:[%s25 + $0x34] sm:$0xf]
    %v1630 = vld [vmem:[%s25 + $0x38] sm:$0xf]
    %v1631 = vld [vmem:[%s25 + $0x3c] sm:$0xf]
    %v1632 = vld [vmem:[%s25 + $0x40] sm:$0xf]
    %v1633 = vld [vmem:[%s25 + $0x44] sm:$0xf]
    %v1634 = vld [vmem:[%s25 + $0x48] sm:$0xf]
    %v1635 = vld [vmem:[%s25 + $0x4c] sm:$0xf]
    %v1636 = vld [vmem:[%s25 + $0x50] sm:$0xf]
    %v1637 = vld [vmem:[%s25 + $0x54] sm:$0xf]
    %v1638 = vld [vmem:[%s25 + $0x58] sm:$0xf]
    %v1639 = vld [vmem:[%s25 + $0x5c] sm:$0xf]
    %v1640 = vld [vmem:[%s25 + $0x60] sm:$0xf]
    %v1641 = vld [vmem:[%s25 + $0x64] sm:$0xf]
    %v1642 = vld [vmem:[%s25 + $0x68] sm:$0xf]
    %v1643 = vld [vmem:[%s25 + $0x6c] sm:$0xf]
    %v1644 = vld [vmem:[%s25 + $0x70] sm:$0xf]
    %v1645 = vld [vmem:[%s25 + $0x74] sm:$0xf]
    %v1646 = vld [vmem:[%s25 + $0x78] sm:$0xf]
    %v1647 = vld [vmem:[%s25 + $0x7c] sm:$0xf]
    %v1648 = vld [vmem:[%s27] sm:$0x1]
    %v1650 = vlaneseq
    %v1651 = vshrl.u32 %v1650, 7
    %v1652 = vsub.s32 0, %v1651
    %v1653 = vrot.slane %v1648, %v1652
    %v1687 = vunpack.c.l.b16 %v1616
    %v1688 = vunpack.c.l.b16 %v1617
    %v1689 = vunpack.c.l.b16 %v1618
    %v1690 = vunpack.c.l.b16 %v1619
    %v1691 = vunpack.c.l.b16 %v1620
    %v1692 = vunpack.c.l.b16 %v1621
    %v1693 = vunpack.c.l.b16 %v1622
    %v1694 = vunpack.c.l.b16 %v1623
    %v1695 = vunpack.c.l.b16 %v1624
    %v1696 = vunpack.c.l.b16 %v1625
    %v1697 = vunpack.c.l.b16 %v1626
    %v1698 = vunpack.c.l.b16 %v1627
    %v1699 = vunpack.c.l.b16 %v1628
    %v1700 = vunpack.c.l.b16 %v1629
    %v1701 = vunpack.c.l.b16 %v1630
    %v1702 = vunpack.c.l.b16 %v1631
    %v1703 = vunpack.c.l.b16 %v1632
    %v1704 = vunpack.c.l.b16 %v1633
    %v1705 = vunpack.c.l.b16 %v1634
    %v1706 = vunpack.c.l.b16 %v1635
    %v1707 = vunpack.c.l.b16 %v1636
    %v1708 = vunpack.c.l.b16 %v1637
    %v1709 = vunpack.c.l.b16 %v1638
    %v1710 = vunpack.c.l.b16 %v1639
    %v1711 = vunpack.c.l.b16 %v1640
    %v1712 = vunpack.c.l.b16 %v1641
    %v1713 = vunpack.c.l.b16 %v1642
    %v1714 = vunpack.c.l.b16 %v1643
    %v1715 = vunpack.c.l.b16 %v1644
    %v1716 = vunpack.c.l.b16 %v1645
    %v1717 = vunpack.c.l.b16 %v1646
    %v1718 = vunpack.c.l.b16 %v1647
    %v1719 = vpack.c.b16 %v1688, %v1687
    %v1720 = vpack.c.b16 %v1690, %v1689
    %v1721 = vpack.c.b16 %v1692, %v1691
    %v1722 = vpack.c.b16 %v1694, %v1693
    %v1723 = vpack.c.b16 %v1696, %v1695
    %v1724 = vpack.c.b16 %v1698, %v1697
    %v1725 = vpack.c.b16 %v1700, %v1699
    %v1726 = vpack.c.b16 %v1702, %v1701
    %v1727 = vpack.c.b16 %v1704, %v1703
    %v1728 = vpack.c.b16 %v1706, %v1705
    %v1729 = vpack.c.b16 %v1708, %v1707
    %v1730 = vpack.c.b16 %v1710, %v1709
    %v1731 = vpack.c.b16 %v1712, %v1711
    %v1732 = vpack.c.b16 %v1714, %v1713
    %v1733 = vpack.c.b16 %v1716, %v1715
    %v1734 = vpack.c.b16 %v1718, %v1717
    %1751 = vmatprep.subr.bf16.mxu0 0
    %1752 = vmatpush1.bf16.msra.mxu0 %v1719
    %1753 = vmatprep.subr.bf16.mxu0 0
    %1754 = vmatpush1.bf16.msra.mxu0 %v1720
    %1755 = vmatprep.subr.bf16.mxu0 0
    %1756 = vmatpush1.bf16.msra.mxu0 %v1721
    %1757 = vmatprep.subr.bf16.mxu0 0
    %1758 = vmatpush1.bf16.msra.mxu0 %v1722
    %1759 = vmatprep.subr.bf16.mxu0 0
    %1760 = vmatpush1.bf16.msra.mxu0 %v1723
    %1761 = vmatprep.subr.bf16.mxu0 0
    %1762 = vmatpush1.bf16.msra.mxu0 %v1724
    %1763 = vmatprep.subr.bf16.mxu0 0
    %1764 = vmatpush1.bf16.msra.mxu0 %v1725
    %1765 = vmatprep.subr.bf16.mxu0 0
    %1766 = vmatpush1.bf16.msra.mxu0 %v1726
    %1767 = vmatprep.subr.bf16.mxu0 0
    %1768 = vmatpush1.bf16.msra.mxu0 %v1727
    %1769 = vmatprep.subr.bf16.mxu0 0
    %1770 = vmatpush1.bf16.msra.mxu0 %v1728
    %1771 = vmatprep.subr.bf16.mxu0 0
    %1772 = vmatpush1.bf16.msra.mxu0 %v1729
    %1773 = vmatprep.subr.bf16.mxu0 0
    %1774 = vmatpush1.bf16.msra.mxu0 %v1730
    %1775 = vmatprep.subr.bf16.mxu0 0
    %1776 = vmatpush1.bf16.msra.mxu0 %v1731
    %1777 = vmatprep.subr.bf16.mxu0 0
    %1778 = vmatpush1.bf16.msra.mxu0 %v1732
    %1779 = vmatprep.subr.bf16.mxu0 0
    %1780 = vmatpush1.bf16.msra.mxu0 %v1733
    %1781 = vmatprep.subr.bf16.mxu0 0
    %1782 = vmatpush1.bf16.msra.mxu0 %v1734
    %1783 = vmatprep.mubr.bf16.mxu0 %v1615
    %1784 = vmatmul.mubr.bf16.gmra.mrb[0].mxu0 %v1614
    %v1785 = vpop.f32.mrb[0].mxu0
    %v1786 = vadd.f32 %v1653, %v1785
    %v1787 = vpop.f32.mrb[0].mxu0
    %v1788 = vpop.f32.mrb[0].mxu0
    %v1789 = vpop.f32.mrb[0].mxu0
    %1790 = vdwg.mxu0
    %v1791 = vmax.f32 %v1786, 0.0
    %v1792 = vld [vmem:[%s29] sm:$0x1]
    %v1794 = vlaneseq
    %v1795 = vshrl.u32 %v1794, 7
    %v1796 = vsub.s32 0, %v1795
    %v1797 = vrot.slane %v1792, %v1796
    %v1799 = vmul.f32 %v1791, %v1797
    %v1800 = vsel %vm1458, %v1799, 0.0
    %1801 = vadd.xlane.f32.xlu0 %v1800
    %v1802 = vpop.xlane.xlu0 %1801
    %v1803 = vld [vmem:[#allocation3] sm:$0x1]
    %v1805 = vlaneseq
    %v1806 = vshrl.u32 %v1805, 7
    %v1807 = vsub.s32 0, %v1806
    %v1808 = vrot.slane %v1803, %v1807
    %v1810 = vadd.f32 %v1802, %v1808
    %v1811 = vxor.u32 %v1810, 2147483648
    %v1812 = vmul.f32 %v1811, 1.442695
    %v1813 = vpow.pop %v1812
    %v1814 = vadd.f32 %v1813, 1.0
    %v1815 = vrcp.pop %v1814
    %v1816 = vmul.f32 1.0, %v1815
    %v1817 = vpack.c.bf16 %v1335, %v1335
    %v1818 = vpack.c.bf16 %v1336, %v1336
    %v1819 = vld [vmem:[%s45] sm:$0xf]
    %v1820 = vld [vmem:[%s45 + $0x4] sm:$0xf]
    %v1821 = vld [vmem:[%s45 + $0x8] sm:$0xf]
    %v1822 = vld [vmem:[%s45 + $0xc] sm:$0xf]
    %v1823 = vld [vmem:[%s45 + $0x10] sm:$0xf]
    %v1824 = vld [vmem:[%s45 + $0x14] sm:$0xf]
    %v1825 = vld [vmem:[%s45 + $0x18] sm:$0xf]
    %v1826 = vld [vmem:[%s45 + $0x1c] sm:$0xf]
    %v1827 = vld [vmem:[%s45 + $0x20] sm:$0xf]
    %v1828 = vld [vmem:[%s45 + $0x24] sm:$0xf]
    %v1829 = vld [vmem:[%s45 + $0x28] sm:$0xf]
    %v1830 = vld [vmem:[%s45 + $0x2c] sm:$0xf]
    %v1831 = vld [vmem:[%s45 + $0x30] sm:$0xf]
    %v1832 = vld [vmem:[%s45 + $0x34] sm:$0xf]
    %v1833 = vld [vmem:[%s45 + $0x38] sm:$0xf]
    %v1834 = vld [vmem:[%s45 + $0x3c] sm:$0xf]
    %v1835 = vld [vmem:[%s45 + $0x40] sm:$0xf]
    %v1836 = vld [vmem:[%s45 + $0x44] sm:$0xf]
    %v1837 = vld [vmem:[%s45 + $0x48] sm:$0xf]
    %v1838 = vld [vmem:[%s45 + $0x4c] sm:$0xf]
    %v1839 = vld [vmem:[%s45 + $0x50] sm:$0xf]
    %v1840 = vld [vmem:[%s45 + $0x54] sm:$0xf]
    %v1841 = vld [vmem:[%s45 + $0x58] sm:$0xf]
    %v1842 = vld [vmem:[%s45 + $0x5c] sm:$0xf]
    %v1843 = vld [vmem:[%s45 + $0x60] sm:$0xf]
    %v1844 = vld [vmem:[%s45 + $0x64] sm:$0xf]
    %v1845 = vld [vmem:[%s45 + $0x68] sm:$0xf]
    %v1846 = vld [vmem:[%s45 + $0x6c] sm:$0xf]
    %v1847 = vld [vmem:[%s45 + $0x70] sm:$0xf]
    %v1848 = vld [vmem:[%s45 + $0x74] sm:$0xf]
    %v1849 = vld [vmem:[%s45 + $0x78] sm:$0xf]
    %v1850 = vld [vmem:[%s45 + $0x7c] sm:$0xf]
    %v1851 = vld [vmem:[%s47] sm:$0x1]
    %v1853 = vlaneseq
    %v1854 = vshrl.u32 %v1853, 7
    %v1855 = vsub.s32 0, %v1854
    %v1856 = vrot.slane %v1851, %v1855
    %v1890 = vunpack.c.l.b16 %v1819
    %v1891 = vunpack.c.l.b16 %v1820
    %v1892 = vunpack.c.l.b16 %v1821
    %v1893 = vunpack.c.l.b16 %v1822
    %v1894 = vunpack.c.l.b16 %v1823
    %v1895 = vunpack.c.l.b16 %v1824
    %v1896 = vunpack.c.l.b16 %v1825
    %v1897 = vunpack.c.l.b16 %v1826
    %v1898 = vunpack.c.l.b16 %v1827
    %v1899 = vunpack.c.l.b16 %v1828
    %v1900 = vunpack.c.l.b16 %v1829
    %v1901 = vunpack.c.l.b16 %v1830
    %v1902 = vunpack.c.l.b16 %v1831
    %v1903 = vunpack.c.l.b16 %v1832
    %v1904 = vunpack.c.l.b16 %v1833
    %v1905 = vunpack.c.l.b16 %v1834
    %v1906 = vunpack.c.l.b16 %v1835
    %v1907 = vunpack.c.l.b16 %v1836
    %v1908 = vunpack.c.l.b16 %v1837
    %v1909 = vunpack.c.l.b16 %v1838
    %v1910 = vunpack.c.l.b16 %v1839
    %v1911 = vunpack.c.l.b16 %v1840
    %v1912 = vunpack.c.l.b16 %v1841
    %v1913 = vunpack.c.l.b16 %v1842
    %v1914 = vunpack.c.l.b16 %v1843
    %v1915 = vunpack.c.l.b16 %v1844
    %v1916 = vunpack.c.l.b16 %v1845
    %v1917 = vunpack.c.l.b16 %v1846
    %v1918 = vunpack.c.l.b16 %v1847
    %v1919 = vunpack.c.l.b16 %v1848
    %v1920 = vunpack.c.l.b16 %v1849
    %v1921 = vunpack.c.l.b16 %v1850
    %v1922 = vpack.c.b16 %v1891, %v1890
    %v1923 = vpack.c.b16 %v1893, %v1892
    %v1924 = vpack.c.b16 %v1895, %v1894
    %v1925 = vpack.c.b16 %v1897, %v1896
    %v1926 = vpack.c.b16 %v1899, %v1898
    %v1927 = vpack.c.b16 %v1901, %v1900
    %v1928 = vpack.c.b16 %v1903, %v1902
    %v1929 = vpack.c.b16 %v1905, %v1904
    %v1930 = vpack.c.b16 %v1907, %v1906
    %v1931 = vpack.c.b16 %v1909, %v1908
    %v1932 = vpack.c.b16 %v1911, %v1910
    %v1933 = vpack.c.b16 %v1913, %v1912
    %v1934 = vpack.c.b16 %v1915, %v1914
    %v1935 = vpack.c.b16 %v1917, %v1916
    %v1936 = vpack.c.b16 %v1919, %v1918
    %v1937 = vpack.c.b16 %v1921, %v1920
    %1954 = vmatprep.subr.bf16.mxu0 0
    %1955 = vmatpush1.bf16.msra.mxu0 %v1922
    %1956 = vmatprep.subr.bf16.mxu0 0
    %1957 = vmatpush1.bf16.msra.mxu0 %v1923
    %1958 = vmatprep.subr.bf16.mxu0 0
    %1959 = vmatpush1.bf16.msra.mxu0 %v1924
    %1960 = vmatprep.subr.bf16.mxu0 0
    %1961 = vmatpush1.bf16.msra.mxu0 %v1925
    %1962 = vmatprep.subr.bf16.mxu0 0
    %1963 = vmatpush1.bf16.msra.mxu0 %v1926
    %1964 = vmatprep.subr.bf16.mxu0 0
    %1965 = vmatpush1.bf16.msra.mxu0 %v1927
    %1966 = vmatprep.subr.bf16.mxu0 0
    %1967 = vmatpush1.bf16.msra.mxu0 %v1928
    %1968 = vmatprep.subr.bf16.mxu0 0
    %1969 = vmatpush1.bf16.msra.mxu0 %v1929
    %1970 = vmatprep.subr.bf16.mxu0 0
    %1971 = vmatpush1.bf16.msra.mxu0 %v1930
    %1972 = vmatprep.subr.bf16.mxu0 0
    %1973 = vmatpush1.bf16.msra.mxu0 %v1931
    %1974 = vmatprep.subr.bf16.mxu0 0
    %1975 = vmatpush1.bf16.msra.mxu0 %v1932
    %1976 = vmatprep.subr.bf16.mxu0 0
    %1977 = vmatpush1.bf16.msra.mxu0 %v1933
    %1978 = vmatprep.subr.bf16.mxu0 0
    %1979 = vmatpush1.bf16.msra.mxu0 %v1934
    %1980 = vmatprep.subr.bf16.mxu0 0
    %1981 = vmatpush1.bf16.msra.mxu0 %v1935
    %1982 = vmatprep.subr.bf16.mxu0 0
    %1983 = vmatpush1.bf16.msra.mxu0 %v1936
    %1984 = vmatprep.subr.bf16.mxu0 0
    %1985 = vmatpush1.bf16.msra.mxu0 %v1937
    %1986 = vmatprep.mubr.bf16.mxu0 %v1818
    %1987 = vmatmul.mubr.bf16.gmra.mrb[0].mxu0 %v1817
    %v1988 = vpop.f32.mrb[0].mxu0
    %v1989 = vadd.f32 %v1856, %v1988
    %v1990 = vpop.f32.mrb[0].mxu0
    %v1991 = vpop.f32.mrb[0].mxu0
    %v1992 = vpop.f32.mrb[0].mxu0
    %1993 = vdwg.mxu0
    %v1994 = vmax.f32 %v1989, 0.0
    %v1995 = vld [vmem:[%s49] sm:$0x1]
    %v1997 = vlaneseq
    %v1998 = vshrl.u32 %v1997, 7
    %v1999 = vsub.s32 0, %v1998
    %v2000 = vrot.slane %v1995, %v1999
    %v2002 = vmul.f32 %v1994, %v2000
    %v2003 = vsel %vm1458, %v2002, 0.0
    %2004 = vadd.xlane.f32.xlu0 %v2003
    %v2005 = vpop.xlane.xlu0 %2004
    %v2006 = vld [vmem:[#allocation5] sm:$0x1]
    %v2008 = vlaneseq
    %v2009 = vshrl.u32 %v2008, 7
    %v2010 = vsub.s32 0, %v2009
    %v2011 = vrot.slane %v2006, %v2010
    %v2013 = vadd.f32 %v2005, %v2011
    %v2014 = vxor.u32 %v2013, 2147483648
    %v2015 = vmul.f32 %v2014, 1.442695
    %v2016 = vpow.pop %v2015
    %v2017 = vadd.f32 %v2016, 1.0
    %v2018 = vrcp.pop %v2017
    %v2019 = vmul.f32 1.0, %v2018
    %v2020 = vsel %vm376, %v366, 0.0
    %v2021 = vsel %vm376, %v486, 0.0
    %v2022 = vadd.f32 %v2020, %v2021
    %2023 = vadd.xlane.f32.xlu0 %v2022
    %v2024 = vpop.xlane.xlu0 %2023
    %v2025 = vrcp.pop 256.0
    %v2026 = vmul.f32 %v2024, %v2025
    %v2029 = vunpack.c.l.s4 839922192
    %v2030 = vunpack.c.0.s8 %v2029
    %v2031 = vlaneseq
    %v2032 = vshrl.u32 %v2031, 7
    %v2033 = vsub.s32 %v2030, %v2032
    %v2034 = vrot.slane %v2026, %v2033
    %v2036 = vsub.f32 %v366, %v2034
    %v2037 = vmul.f32 %v2036, %v2036
    %v2039 = vcombine.high %v2037, %v2037
    %v2041 = vsel %vm376, %v2037, 0.0
    %v2042 = vsel %vm376, %v2039, 0.0
    %v2043 = vadd.f32 %v2041, %v2042
    %2044 = vadd.xlane.f32.xlu0 %v2043
    %v2045 = vpop.xlane.xlu0 %2044
    %v2046 = vrcp.pop 255.0
    %v2047 = vmul.f32 %v2045, %v2046
    %v2048 = vxor.u32 %v2047, 2147483648
    %v2049 = vmul.f32 %v2048, 1.442695
    %v2050 = vpow.pop %v2049
    %v2051 = vadd.f32 %v2050, 1.0
    %v2052 = vrcp.pop %v2051
    %v2053 = vmul.f32 1.0, %v2052
    %v2054 = vsub.f32 1.0, %v2053
    %v2055 = vadd.f32 %v1816, %v2054
    %v2056 = vmul.f32 %v2055, 0.5
    %v2057 = vsel %vm376, %v367, 0.0
    %v2058 = vsel %vm376, %v912, 0.0
    %v2059 = vadd.f32 %v2057, %v2058
    %2060 = vadd.xlane.f32.xlu0 %v2059
    %v2061 = vpop.xlane.xlu0 %2060
    %v2062 = vmul.f32 %v2061, %v2025
    %v2065 = vunpack.c.l.s4 839922192
    %v2066 = vunpack.c.0.s8 %v2065
    %v2067 = vlaneseq
    %v2068 = vshrl.u32 %v2067, 7
    %v2069 = vsub.s32 %v2066, %v2068
    %v2070 = vrot.slane %v2062, %v2069
    %v2072 = vsub.f32 %v367, %v2070
    %v2073 = vmul.f32 %v2072, %v2072
    %v2075 = vcombine.high %v2073, %v2073
    %v2077 = vsel %vm376, %v2073, 0.0
    %v2078 = vsel %vm376, %v2075, 0.0
    %v2079 = vadd.f32 %v2077, %v2078
    %2080 = vadd.xlane.f32.xlu0 %v2079
    %v2081 = vpop.xlane.xlu0 %2080
    %v2082 = vmul.f32 %v2081, %v2046
    %v2083 = vxor.u32 %v2082, 2147483648
    %v2084 = vmul.f32 %v2083, 1.442695
    %v2085 = vpow.pop %v2084
    %v2086 = vadd.f32 %v2085, 1.0
    %v2087 = vrcp.pop %v2086
    %v2088 = vmul.f32 1.0, %v2087
    %v2089 = vsub.f32 1.0, %v2088
    %v2090 = vadd.f32 %v2019, %v2089
    %v2091 = vmul.f32 %v2090, 0.5
    %v2093 = vcombine.high %v460, %v460
    %v2095 = vpack.c.bf16 %v460, %v460
    %v2096 = vpack.c.bf16 %v2093, %v2093
    %v2097 = vld [vmem:[%s53] sm:$0xff]
    %v2098 = vld [vmem:[%s53 + $0x8] sm:$0xff]
    %v2099 = vld [vmem:[%s53 + $0x10] sm:$0xff]
    %v2100 = vld [vmem:[%s53 + $0x18] sm:$0xff]
    %v2101 = vld [vmem:[%s53 + $0x20] sm:$0xff]
    %v2102 = vld [vmem:[%s53 + $0x28] sm:$0xff]
    %v2103 = vld [vmem:[%s53 + $0x30] sm:$0xff]
    %v2104 = vld [vmem:[%s53 + $0x38] sm:$0xff]
    %v2105 = vld [vmem:[%s53 + $0x40] sm:$0xff]
    %v2106 = vld [vmem:[%s53 + $0x48] sm:$0xff]
    %v2107 = vld [vmem:[%s53 + $0x50] sm:$0xff]
    %v2108 = vld [vmem:[%s53 + $0x58] sm:$0xff]
    %v2109 = vld [vmem:[%s53 + $0x60] sm:$0xff]
    %v2110 = vld [vmem:[%s53 + $0x68] sm:$0xff]
    %v2111 = vld [vmem:[%s53 + $0x70] sm:$0xff]
    %v2112 = vld [vmem:[%s53 + $0x78] sm:$0xff]
    %v2113 = vld [vmem:[%s53 + $0x80] sm:$0xff]
    %v2114 = vld [vmem:[%s53 + $0x88] sm:$0xff]
    %v2115 = vld [vmem:[%s53 + $0x90] sm:$0xff]
    %v2116 = vld [vmem:[%s53 + $0x98] sm:$0xff]
    %v2117 = vld [vmem:[%s53 + $0xa0] sm:$0xff]
    %v2118 = vld [vmem:[%s53 + $0xa8] sm:$0xff]
    %v2119 = vld [vmem:[%s53 + $0xb0] sm:$0xff]
    %v2120 = vld [vmem:[%s53 + $0xb8] sm:$0xff]
    %v2121 = vld [vmem:[%s53 + $0xc0] sm:$0xff]
    %v2122 = vld [vmem:[%s53 + $0xc8] sm:$0xff]
    %v2123 = vld [vmem:[%s53 + $0xd0] sm:$0xff]
    %v2124 = vld [vmem:[%s53 + $0xd8] sm:$0xff]
    %v2125 = vld [vmem:[%s53 + $0xe0] sm:$0xff]
    %v2126 = vld [vmem:[%s53 + $0xe8] sm:$0xff]
    %v2127 = vld [vmem:[%s53 + $0xf0] sm:$0xff]
    %v2128 = vld [vmem:[%s53 + $0xf8] sm:$0xff]
    %v2129 = vld [vmem:[%s53 + $0x100] sm:$0xff]
    %v2130 = vld [vmem:[%s53 + $0x108] sm:$0xff]
    %v2131 = vld [vmem:[%s53 + $0x110] sm:$0xff]
    %v2132 = vld [vmem:[%s53 + $0x118] sm:$0xff]
    %v2133 = vld [vmem:[%s53 + $0x120] sm:$0xff]
    %v2134 = vld [vmem:[%s53 + $0x128] sm:$0xff]
    %v2135 = vld [vmem:[%s53 + $0x130] sm:$0xff]
    %v2136 = vld [vmem:[%s53 + $0x138] sm:$0xff]
    %v2137 = vld [vmem:[%s53 + $0x140] sm:$0xff]
    %v2138 = vld [vmem:[%s53 + $0x148] sm:$0xff]
    %v2139 = vld [vmem:[%s53 + $0x150] sm:$0xff]
    %v2140 = vld [vmem:[%s53 + $0x158] sm:$0xff]
    %v2141 = vld [vmem:[%s53 + $0x160] sm:$0xff]
    %v2142 = vld [vmem:[%s53 + $0x168] sm:$0xff]
    %v2143 = vld [vmem:[%s53 + $0x170] sm:$0xff]
    %v2144 = vld [vmem:[%s53 + $0x178] sm:$0xff]
    %v2145 = vld [vmem:[%s53 + $0x180] sm:$0xff]
    %v2146 = vld [vmem:[%s53 + $0x188] sm:$0xff]
    %v2147 = vld [vmem:[%s53 + $0x190] sm:$0xff]
    %v2148 = vld [vmem:[%s53 + $0x198] sm:$0xff]
    %v2149 = vld [vmem:[%s53 + $0x1a0] sm:$0xff]
    %v2150 = vld [vmem:[%s53 + $0x1a8] sm:$0xff]
    %v2151 = vld [vmem:[%s53 + $0x1b0] sm:$0xff]
    %v2152 = vld [vmem:[%s53 + $0x1b8] sm:$0xff]
    %v2153 = vld [vmem:[%s53 + $0x1c0] sm:$0xff]
    %v2154 = vld [vmem:[%s53 + $0x1c8] sm:$0xff]
    %v2155 = vld [vmem:[%s53 + $0x1d0] sm:$0xff]
    %v2156 = vld [vmem:[%s53 + $0x1d8] sm:$0xff]
    %v2157 = vld [vmem:[%s53 + $0x1e0] sm:$0xff]
    %v2158 = vld [vmem:[%s53 + $0x1e8] sm:$0xff]
    %v2159 = vld [vmem:[%s53 + $0x1f0] sm:$0xff]
    %v2160 = vld [vmem:[%s53 + $0x1f8] sm:$0xff]
    %v2161 = vld [vmem:[%s55] sm:$0xf]
    %v2163 = vlaneseq
    %v2164 = vshrl.u32 %v2163, 7
    %v2165 = vsub.s32 0, %v2164
    %v2166 = vrot.slane %v2161, %v2165
    %v2167 = vlaneseq
    %v2168 = vshrl.u32 %v2167, 7
    %v2169 = vsub.s32 1, %v2168
    %v2170 = vrot.slane %v2161, %v2169
    %v2171 = vlaneseq
    %v2172 = vshrl.u32 %v2171, 7
    %v2173 = vsub.s32 2, %v2172
    %v2174 = vrot.slane %v2161, %v2173
    %v2175 = vlaneseq
    %v2176 = vshrl.u32 %v2175, 7
    %v2177 = vsub.s32 3, %v2176
    %v2178 = vrot.slane %v2161, %v2177
    %v2247 = vunpack.c.l.b16 %v2097
    %v2248 = vunpack.c.h.b16 %v2097
    %v2249 = vunpack.c.l.b16 %v2098
    %v2250 = vunpack.c.h.b16 %v2098
    %v2251 = vunpack.c.l.b16 %v2099
    %v2252 = vunpack.c.h.b16 %v2099
    %v2253 = vunpack.c.l.b16 %v2100
    %v2254 = vunpack.c.h.b16 %v2100
    %v2255 = vunpack.c.l.b16 %v2101
    %v2256 = vunpack.c.h.b16 %v2101
    %v2257 = vunpack.c.l.b16 %v2102
    %v2258 = vunpack.c.h.b16 %v2102
    %v2259 = vunpack.c.l.b16 %v2103
    %v2260 = vunpack.c.h.b16 %v2103
    %v2261 = vunpack.c.l.b16 %v2104
    %v2262 = vunpack.c.h.b16 %v2104
    %v2263 = vunpack.c.l.b16 %v2105
    %v2264 = vunpack.c.h.b16 %v2105
    %v2265 = vunpack.c.l.b16 %v2106
    %v2266 = vunpack.c.h.b16 %v2106
    %v2267 = vunpack.c.l.b16 %v2107
    %v2268 = vunpack.c.h.b16 %v2107
    %v2269 = vunpack.c.l.b16 %v2108
    %v2270 = vunpack.c.h.b16 %v2108
    %v2271 = vunpack.c.l.b16 %v2109
    %v2272 = vunpack.c.h.b16 %v2109
    %v2273 = vunpack.c.l.b16 %v2110
    %v2274 = vunpack.c.h.b16 %v2110
    %v2275 = vunpack.c.l.b16 %v2111
    %v2276 = vunpack.c.h.b16 %v2111
    %v2277 = vunpack.c.l.b16 %v2112
    %v2278 = vunpack.c.h.b16 %v2112
    %v2279 = vunpack.c.l.b16 %v2113
    %v2280 = vunpack.c.h.b16 %v2113
    %v2281 = vunpack.c.l.b16 %v2114
    %v2282 = vunpack.c.h.b16 %v2114
    %v2283 = vunpack.c.l.b16 %v2115
    %v2284 = vunpack.c.h.b16 %v2115
    %v2285 = vunpack.c.l.b16 %v2116
    %v2286 = vunpack.c.h.b16 %v2116
    %v2287 = vunpack.c.l.b16 %v2117
    %v2288 = vunpack.c.h.b16 %v2117
    %v2289 = vunpack.c.l.b16 %v2118
    %v2290 = vunpack.c.h.b16 %v2118
    %v2291 = vunpack.c.l.b16 %v2119
    %v2292 = vunpack.c.h.b16 %v2119
    %v2293 = vunpack.c.l.b16 %v2120
    %v2294 = vunpack.c.h.b16 %v2120
    %v2295 = vunpack.c.l.b16 %v2121
    %v2296 = vunpack.c.h.b16 %v2121
    %v2297 = vunpack.c.l.b16 %v2122
    %v2298 = vunpack.c.h.b16 %v2122
    %v2299 = vunpack.c.l.b16 %v2123
    %v2300 = vunpack.c.h.b16 %v2123
    %v2301 = vunpack.c.l.b16 %v2124
    %v2302 = vunpack.c.h.b16 %v2124
    %v2303 = vunpack.c.l.b16 %v2125
    %v2304 = vunpack.c.h.b16 %v2125
    %v2305 = vunpack.c.l.b16 %v2126
    %v2306 = vunpack.c.h.b16 %v2126
    %v2307 = vunpack.c.l.b16 %v2127
    %v2308 = vunpack.c.h.b16 %v2127
    %v2309 = vunpack.c.l.b16 %v2128
    %v2310 = vunpack.c.h.b16 %v2128
    %v2311 = vunpack.c.l.b16 %v2129
    %v2312 = vunpack.c.h.b16 %v2129
    %v2313 = vunpack.c.l.b16 %v2130
    %v2314 = vunpack.c.h.b16 %v2130
    %v2315 = vunpack.c.l.b16 %v2131
    %v2316 = vunpack.c.h.b16 %v2131
    %v2317 = vunpack.c.l.b16 %v2132
    %v2318 = vunpack.c.h.b16 %v2132
    %v2319 = vunpack.c.l.b16 %v2133
    %v2320 = vunpack.c.h.b16 %v2133
    %v2321 = vunpack.c.l.b16 %v2134
    %v2322 = vunpack.c.h.b16 %v2134
    %v2323 = vunpack.c.l.b16 %v2135
    %v2324 = vunpack.c.h.b16 %v2135
    %v2325 = vunpack.c.l.b16 %v2136
    %v2326 = vunpack.c.h.b16 %v2136
    %v2327 = vunpack.c.l.b16 %v2137
    %v2328 = vunpack.c.h.b16 %v2137
    %v2329 = vunpack.c.l.b16 %v2138
    %v2330 = vunpack.c.h.b16 %v2138
    %v2331 = vunpack.c.l.b16 %v2139
    %v2332 = vunpack.c.h.b16 %v2139
    %v2333 = vunpack.c.l.b16 %v2140
    %v2334 = vunpack.c.h.b16 %v2140
    %v2335 = vunpack.c.l.b16 %v2141
    %v2336 = vunpack.c.h.b16 %v2141
    %v2337 = vunpack.c.l.b16 %v2142
    %v2338 = vunpack.c.h.b16 %v2142
    %v2339 = vunpack.c.l.b16 %v2143
    %v2340 = vunpack.c.h.b16 %v2143
    %v2341 = vunpack.c.l.b16 %v2144
    %v2342 = vunpack.c.h.b16 %v2144
    %v2343 = vunpack.c.l.b16 %v2145
    %v2344 = vunpack.c.h.b16 %v2145
    %v2345 = vunpack.c.l.b16 %v2146
    %v2346 = vunpack.c.h.b16 %v2146
    %v2347 = vunpack.c.l.b16 %v2147
    %v2348 = vunpack.c.h.b16 %v2147
    %v2349 = vunpack.c.l.b16 %v2148
    %v2350 = vunpack.c.h.b16 %v2148
    %v2351 = vunpack.c.l.b16 %v2149
    %v2352 = vunpack.c.h.b16 %v2149
    %v2353 = vunpack.c.l.b16 %v2150
    %v2354 = vunpack.c.h.b16 %v2150
    %v2355 = vunpack.c.l.b16 %v2151
    %v2356 = vunpack.c.h.b16 %v2151
    %v2357 = vunpack.c.l.b16 %v2152
    %v2358 = vunpack.c.h.b16 %v2152
    %v2359 = vunpack.c.l.b16 %v2153
    %v2360 = vunpack.c.h.b16 %v2153
    %v2361 = vunpack.c.l.b16 %v2154
    %v2362 = vunpack.c.h.b16 %v2154
    %v2363 = vunpack.c.l.b16 %v2155
    %v2364 = vunpack.c.h.b16 %v2155
    %v2365 = vunpack.c.l.b16 %v2156
    %v2366 = vunpack.c.h.b16 %v2156
    %v2367 = vunpack.c.l.b16 %v2157
    %v2368 = vunpack.c.h.b16 %v2157
    %v2369 = vunpack.c.l.b16 %v2158
    %v2370 = vunpack.c.h.b16 %v2158
    %v2371 = vunpack.c.l.b16 %v2159
    %v2372 = vunpack.c.h.b16 %v2159
    %v2373 = vunpack.c.l.b16 %v2160
    %v2374 = vunpack.c.h.b16 %v2160
    %v2375 = vpack.c.b16 %v2251, %v2247
    %v2376 = vpack.c.b16 %v2252, %v2248
    %v2377 = vpack.c.b16 %v2253, %v2249
    %v2378 = vpack.c.b16 %v2254, %v2250
    %v2379 = vpack.c.b16 %v2259, %v2255
    %v2380 = vpack.c.b16 %v2260, %v2256
    %v2381 = vpack.c.b16 %v2261, %v2257
    %v2382 = vpack.c.b16 %v2262, %v2258
    %v2383 = vpack.c.b16 %v2267, %v2263
    %v2384 = vpack.c.b16 %v2268, %v2264
    %v2385 = vpack.c.b16 %v2269, %v2265
    %v2386 = vpack.c.b16 %v2270, %v2266
    %v2387 = vpack.c.b16 %v2275, %v2271
    %v2388 = vpack.c.b16 %v2276, %v2272
    %v2389 = vpack.c.b16 %v2277, %v2273
    %v2390 = vpack.c.b16 %v2278, %v2274
    %v2391 = vpack.c.b16 %v2283, %v2279
    %v2392 = vpack.c.b16 %v2284, %v2280
    %v2393 = vpack.c.b16 %v2285, %v2281
    %v2394 = vpack.c.b16 %v2286, %v2282
    %v2395 = vpack.c.b16 %v2291, %v2287
    %v2396 = vpack.c.b16 %v2292, %v2288
    %v2397 = vpack.c.b16 %v2293, %v2289
    %v2398 = vpack.c.b16 %v2294, %v2290
    %v2399 = vpack.c.b16 %v2299, %v2295
    %v2400 = vpack.c.b16 %v2300, %v2296
    %v2401 = vpack.c.b16 %v2301, %v2297
    %v2402 = vpack.c.b16 %v2302, %v2298
    %v2403 = vpack.c.b16 %v2307, %v2303
    %v2404 = vpack.c.b16 %v2308, %v2304
    %v2405 = vpack.c.b16 %v2309, %v2305
    %v2406 = vpack.c.b16 %v2310, %v2306
    %v2407 = vpack.c.b16 %v2315, %v2311
    %v2408 = vpack.c.b16 %v2316, %v2312
    %v2409 = vpack.c.b16 %v2317, %v2313
    %v2410 = vpack.c.b16 %v2318, %v2314
    %v2411 = vpack.c.b16 %v2323, %v2319
    %v2412 = vpack.c.b16 %v2324, %v2320
    %v2413 = vpack.c.b16 %v2325, %v2321
    %v2414 = vpack.c.b16 %v2326, %v2322
    %v2415 = vpack.c.b16 %v2331, %v2327
    %v2416 = vpack.c.b16 %v2332, %v2328
    %v2417 = vpack.c.b16 %v2333, %v2329
    %v2418 = vpack.c.b16 %v2334, %v2330
    %v2419 = vpack.c.b16 %v2339, %v2335
    %v2420 = vpack.c.b16 %v2340, %v2336
    %v2421 = vpack.c.b16 %v2341, %v2337
    %v2422 = vpack.c.b16 %v2342, %v2338
    %v2423 = vpack.c.b16 %v2347, %v2343
    %v2424 = vpack.c.b16 %v2348, %v2344
    %v2425 = vpack.c.b16 %v2349, %v2345
    %v2426 = vpack.c.b16 %v2350, %v2346
    %v2427 = vpack.c.b16 %v2355, %v2351
    %v2428 = vpack.c.b16 %v2356, %v2352
    %v2429 = vpack.c.b16 %v2357, %v2353
    %v2430 = vpack.c.b16 %v2358, %v2354
    %v2431 = vpack.c.b16 %v2363, %v2359
    %v2432 = vpack.c.b16 %v2364, %v2360
    %v2433 = vpack.c.b16 %v2365, %v2361
    %v2434 = vpack.c.b16 %v2366, %v2362
    %v2435 = vpack.c.b16 %v2371, %v2367
    %v2436 = vpack.c.b16 %v2372, %v2368
    %v2437 = vpack.c.b16 %v2373, %v2369
    %v2438 = vpack.c.b16 %v2374, %v2370
    %2503 = vmatprep.subr.bf16.mxu0 %v2376
    %2504 = vmatpush1.bf16.msra.mxu0 %v2375
    %2505 = vmatprep.subr.bf16.mxu0 %v2380
    %2506 = vmatpush1.bf16.msra.mxu0 %v2379
    %2507 = vmatprep.subr.bf16.mxu0 %v2384
    %2508 = vmatpush1.bf16.msra.mxu0 %v2383
    %2509 = vmatprep.subr.bf16.mxu0 %v2388
    %2510 = vmatpush1.bf16.msra.mxu0 %v2387
    %2511 = vmatprep.subr.bf16.mxu0 %v2392
    %2512 = vmatpush1.bf16.msra.mxu0 %v2391
    %2513 = vmatprep.subr.bf16.mxu0 %v2396
    %2514 = vmatpush1.bf16.msra.mxu0 %v2395
    %2515 = vmatprep.subr.bf16.mxu0 %v2400
    %2516 = vmatpush1.bf16.msra.mxu0 %v2399
    %2517 = vmatprep.subr.bf16.mxu0 %v2404
    %2518 = vmatpush1.bf16.msra.mxu0 %v2403
    %2519 = vmatprep.subr.bf16.mxu0 %v2408
    %2520 = vmatpush1.bf16.msra.mxu0 %v2407
    %2521 = vmatprep.subr.bf16.mxu0 %v2412
    %2522 = vmatpush1.bf16.msra.mxu0 %v2411
    %2523 = vmatprep.subr.bf16.mxu0 %v2416
    %2524 = vmatpush1.bf16.msra.mxu0 %v2415
    %2525 = vmatprep.subr.bf16.mxu0 %v2420
    %2526 = vmatpush1.bf16.msra.mxu0 %v2419
    %2527 = vmatprep.subr.bf16.mxu0 %v2424
    %2528 = vmatpush1.bf16.msra.mxu0 %v2423
    %2529 = vmatprep.subr.bf16.mxu0 %v2428
    %2530 = vmatpush1.bf16.msra.mxu0 %v2427
    %2531 = vmatprep.subr.bf16.mxu0 %v2432
    %2532 = vmatpush1.bf16.msra.mxu0 %v2431
    %2533 = vmatprep.subr.bf16.mxu0 %v2436
    %2534 = vmatpush1.bf16.msra.mxu0 %v2435
    %2535 = vmatprep.mubr.bf16.mxu0 %v2096
    %2536 = vmatmul.mubr.bf16.gmra.mrb[0].mxu0 %v2095
    %v2537 = vpop.f32.mrb[0].mxu0
    %v2538 = vadd.f32 %v2166, %v2537
    %v2539 = vpop.f32.mrb[0].mxu0
    %v2540 = vadd.f32 %v2170, %v2539
    %v2541 = vpop.f32.mrb[0].mxu0
    %v2542 = vpop.f32.mrb[0].mxu0
    %2543 = vdwg.mxu0
    %2544 = vmatprep.subr.bf16.mxu0 %v2378
    %2545 = vmatpush1.bf16.msra.mxu0 %v2377
    %2546 = vmatprep.subr.bf16.mxu0 %v2382
    %2547 = vmatpush1.bf16.msra.mxu0 %v2381
    %2548 = vmatprep.subr.bf16.mxu0 %v2386
    %2549 = vmatpush1.bf16.msra.mxu0 %v2385
    %2550 = vmatprep.subr.bf16.mxu0 %v2390
    %2551 = vmatpush1.bf16.msra.mxu0 %v2389
    %2552 = vmatprep.subr.bf16.mxu0 %v2394
    %2553 = vmatpush1.bf16.msra.mxu0 %v2393
    %2554 = vmatprep.subr.bf16.mxu0 %v2398
    %2555 = vmatpush1.bf16.msra.mxu0 %v2397
    %2556 = vmatprep.subr.bf16.mxu0 %v2402
    %2557 = vmatpush1.bf16.msra.mxu0 %v2401
    %2558 = vmatprep.subr.bf16.mxu0 %v2406
    %2559 = vmatpush1.bf16.msra.mxu0 %v2405
    %2560 = vmatprep.subr.bf16.mxu0 %v2410
    %2561 = vmatpush1.bf16.msra.mxu0 %v2409
    %2562 = vmatprep.subr.bf16.mxu0 %v2414
    %2563 = vmatpush1.bf16.msra.mxu0 %v2413
    %2564 = vmatprep.subr.bf16.mxu0 %v2418
    %2565 = vmatpush1.bf16.msra.mxu0 %v2417
    %2566 = vmatprep.subr.bf16.mxu0 %v2422
    %2567 = vmatpush1.bf16.msra.mxu0 %v2421
    %2568 = vmatprep.subr.bf16.mxu0 %v2426
    %2569 = vmatpush1.bf16.msra.mxu0 %v2425
    %2570 = vmatprep.subr.bf16.mxu0 %v2430
    %2571 = vmatpush1.bf16.msra.mxu0 %v2429
    %2572 = vmatprep.subr.bf16.mxu0 %v2434
    %2573 = vmatpush1.bf16.msra.mxu0 %v2433
    %2574 = vmatprep.subr.bf16.mxu0 %v2438
    %2575 = vmatpush1.bf16.msra.mxu0 %v2437
    %2576 = vmatprep.mubr.bf16.mxu0 %v2096
    %2577 = vmatmul.mubr.bf16.gmra.mrb[0].mxu0 %v2095
    %v2578 = vpop.f32.mrb[0].mxu0
    %v2579 = vadd.f32 %v2174, %v2578
    %v2580 = vpop.f32.mrb[0].mxu0
    %v2581 = vadd.f32 %v2178, %v2580
    %v2582 = vpop.f32.mrb[0].mxu0
    %v2583 = vpop.f32.mrb[0].mxu0
    %2584 = vdwg.mxu0
    %v2585 = vmul.f32 %v2538, %v2538
    %v2586 = vmul.f32 %v2540, %v2540
    %v2587 = vsel %vm376, %v2585, 0.0
    %v2588 = vsel %vm376, %v2586, 0.0
    %v2589 = vadd.f32 %v2587, %v2588
    %2590 = vadd.xlane.f32.xlu0 %v2589
    %v2591 = vpop.xlane.xlu0 %2590
    %v2592 = vrsqrt.pop %v2591
    %v2593 = vmul.f32 %v2591, %v2592
    %vm2594 = vcmp.eq.f32.partialorder %v2591, inf
    %v2595 = vsel %vm2594, %v2591, %v2593
    %vm2596 = vcmp.eq.f32.partialorder %v2591, 0.0
    %v2597 = vand.u32 %v2591, 2147483648
    %v2598 = vsel %vm2596, %v2597, %v2595
    %v2599 = vmax.f32 %v2598, 1e-12
    %v2600 = vrcp.pop %v2599
    %v2601 = vmul.f32 %v2538, %v2600
    %v2602 = vmul.f32 %v2540, %v2600
    %v2603 = vmul.f32 %v2579, %v2579
    %v2604 = vmul.f32 %v2581, %v2581
    %v2605 = vsel %vm376, %v2603, 0.0
    %v2606 = vsel %vm376, %v2604, 0.0
    %v2607 = vadd.f32 %v2605, %v2606
    %2608 = vadd.xlane.f32.xlu0 %v2607
    %v2609 = vpop.xlane.xlu0 %2608
    %v2610 = vrsqrt.pop %v2609
    %v2611 = vmul.f32 %v2609, %v2610
    %vm2612 = vcmp.eq.f32.partialorder %v2609, inf
    %v2613 = vsel %vm2612, %v2609, %v2611
    %vm2614 = vcmp.eq.f32.partialorder %v2609, 0.0
    %v2615 = vand.u32 %v2609, 2147483648
    %v2616 = vsel %vm2614, %v2615, %v2613
    %v2617 = vmax.f32 %v2616, 1e-12
    %v2618 = vrcp.pop %v2617
    %v2619 = vmul.f32 %v2579, %v2618
    %v2620 = vmul.f32 %v2581, %v2618
    %v2623 = vcombine.low %v2601, %v2602
    %v2625 = vmul.f32 %v448, %v2623
    %v2627 = vcombine.high %v2625, %v2625
    %v2629 = vsel %vm376, %v2625, 0.0
    %v2630 = vsel %vm376, %v2627, 0.0
    %v2631 = vadd.f32 %v2629, %v2630
    %2632 = vadd.xlane.f32.xlu0 %v2631
    %v2633 = vpop.xlane.xlu0 %2632
    %v2634 = vadd.f32 %v2633, 1.0
    %v2635 = vmul.f32 %v2634, 0.5
    %v2638 = vcombine.low %v2619, %v2620
    %v2640 = vmul.f32 %v448, %v2638
    %v2642 = vcombine.high %v2640, %v2640
    %v2644 = vsel %vm376, %v2640, 0.0
    %v2645 = vsel %vm376, %v2642, 0.0
    %v2646 = vadd.f32 %v2644, %v2645
    %2647 = vadd.xlane.f32.xlu0 %v2646
    %v2648 = vpop.xlane.xlu0 %2647
    %v2649 = vadd.f32 %v2648, 1.0
    %v2650 = vmul.f32 %v2649, 0.5
    %v2653 = vcombine.low %v2579, %v2581
    %v2655 = vsub.f32 %v366, %v2653
    %v2656 = vmul.f32 %v2655, %v2655
    %v2658 = vcombine.high %v2656, %v2656
    %v2660 = vsel %vm376, %v2656, 0.0
    %v2661 = vsel %vm376, %v2658, 0.0
    %v2662 = vadd.f32 %v2660, %v2661
    %2663 = vadd.xlane.f32.xlu0 %v2662
    %v2664 = vpop.xlane.xlu0 %2663
    %v2665 = vrsqrt.pop %v2664
    %v2666 = vmul.f32 %v2664, %v2665
    %vm2667 = vcmp.eq.f32.partialorder %v2664, inf
    %v2668 = vsel %vm2667, %v2664, %v2666
    %vm2669 = vcmp.eq.f32.partialorder %v2664, 0.0
    %v2670 = vand.u32 %v2664, 2147483648
    %v2671 = vsel %vm2669, %v2670, %v2668
    %v2672 = vadd.f32 %v388, %v2616
    %v2673 = vadd.f32 %v2672, 1e-08
    %v2674 = vrcp.pop %v2673
    %v2675 = vmul.f32 %v2671, %v2674
    %v2676 = vsub.f32 1.0, %v2675
    %v2677 = vld [vmem:[#allocation13] sm:$0xff]
    %v2678 = vld [vmem:[#allocation13 + $0x8] sm:$0xff]
    %v2679 = vld [vmem:[#allocation13 + $0x10] sm:$0xff]
    %v2680 = vld [vmem:[#allocation13 + $0x18] sm:$0xff]
    %v2681 = vld [vmem:[#allocation13 + $0x20] sm:$0xff]
    %v2682 = vld [vmem:[#allocation13 + $0x28] sm:$0xff]
    %v2683 = vld [vmem:[#allocation13 + $0x30] sm:$0xff]
    %v2684 = vld [vmem:[#allocation13 + $0x38] sm:$0xff]
    %v2685 = vld [vmem:[#allocation13 + $0x40] sm:$0xff]
    %v2686 = vld [vmem:[#allocation13 + $0x48] sm:$0xff]
    %v2687 = vld [vmem:[#allocation13 + $0x50] sm:$0xff]
    %v2688 = vld [vmem:[#allocation13 + $0x58] sm:$0xff]
    %v2689 = vld [vmem:[#allocation13 + $0x60] sm:$0xff]
    %v2690 = vld [vmem:[#allocation13 + $0x68] sm:$0xff]
    %v2691 = vld [vmem:[#allocation13 + $0x70] sm:$0xff]
    %v2692 = vld [vmem:[#allocation13 + $0x78] sm:$0xff]
    %v2693 = vld [vmem:[#allocation13 + $0x80] sm:$0xff]
    %v2694 = vld [vmem:[#allocation13 + $0x88] sm:$0xff]
    %v2695 = vld [vmem:[#allocation13 + $0x90] sm:$0xff]
    %v2696 = vld [vmem:[#allocation13 + $0x98] sm:$0xff]
    %v2697 = vld [vmem:[#allocation13 + $0xa0] sm:$0xff]
    %v2698 = vld [vmem:[#allocation13 + $0xa8] sm:$0xff]
    %v2699 = vld [vmem:[#allocation13 + $0xb0] sm:$0xff]
    %v2700 = vld [vmem:[#allocation13 + $0xb8] sm:$0xff]
    %v2701 = vld [vmem:[#allocation13 + $0xc0] sm:$0xff]
    %v2702 = vld [vmem:[#allocation13 + $0xc8] sm:$0xff]
    %v2703 = vld [vmem:[#allocation13 + $0xd0] sm:$0xff]
    %v2704 = vld [vmem:[#allocation13 + $0xd8] sm:$0xff]
    %v2705 = vld [vmem:[#allocation13 + $0xe0] sm:$0xff]
    %v2706 = vld [vmem:[#allocation13 + $0xe8] sm:$0xff]
    %v2707 = vld [vmem:[#allocation13 + $0xf0] sm:$0xff]
    %v2708 = vld [vmem:[#allocation13 + $0xf8] sm:$0xff]
    %v2709 = vld [vmem:[#allocation13 + $0x100] sm:$0xff]
    %v2710 = vld [vmem:[#allocation13 + $0x108] sm:$0xff]
    %v2711 = vld [vmem:[#allocation13 + $0x110] sm:$0xff]
    %v2712 = vld [vmem:[#allocation13 + $0x118] sm:$0xff]
    %v2713 = vld [vmem:[#allocation13 + $0x120] sm:$0xff]
    %v2714 = vld [vmem:[#allocation13 + $0x128] sm:$0xff]
    %v2715 = vld [vmem:[#allocation13 + $0x130] sm:$0xff]
    %v2716 = vld [vmem:[#allocation13 + $0x138] sm:$0xff]
    %v2717 = vld [vmem:[#allocation13 + $0x140] sm:$0xff]
    %v2718 = vld [vmem:[#allocation13 + $0x148] sm:$0xff]
    %v2719 = vld [vmem:[#allocation13 + $0x150] sm:$0xff]
    %v2720 = vld [vmem:[#allocation13 + $0x158] sm:$0xff]
    %v2721 = vld [vmem:[#allocation13 + $0x160] sm:$0xff]
    %v2722 = vld [vmem:[#allocation13 + $0x168] sm:$0xff]
    %v2723 = vld [vmem:[#allocation13 + $0x170] sm:$0xff]
    %v2724 = vld [vmem:[#allocation13 + $0x178] sm:$0xff]
    %v2725 = vld [vmem:[#allocation13 + $0x180] sm:$0xff]
    %v2726 = vld [vmem:[#allocation13 + $0x188] sm:$0xff]
    %v2727 = vld [vmem:[#allocation13 + $0x190] sm:$0xff]
    %v2728 = vld [vmem:[#allocation13 + $0x198] sm:$0xff]
    %v2729 = vld [vmem:[#allocation13 + $0x1a0] sm:$0xff]
    %v2730 = vld [vmem:[#allocation13 + $0x1a8] sm:$0xff]
    %v2731 = vld [vmem:[#allocation13 + $0x1b0] sm:$0xff]
    %v2732 = vld [vmem:[#allocation13 + $0x1b8] sm:$0xff]
    %v2733 = vld [vmem:[#allocation13 + $0x1c0] sm:$0xff]
    %v2734 = vld [vmem:[#allocation13 + $0x1c8] sm:$0xff]
    %v2735 = vld [vmem:[#allocation13 + $0x1d0] sm:$0xff]
    %v2736 = vld [vmem:[#allocation13 + $0x1d8] sm:$0xff]
    %v2737 = vld [vmem:[#allocation13 + $0x1e0] sm:$0xff]
    %v2738 = vld [vmem:[#allocation13 + $0x1e8] sm:$0xff]
    %v2739 = vld [vmem:[#allocation13 + $0x1f0] sm:$0xff]
    %v2740 = vld [vmem:[#allocation13 + $0x1f8] sm:$0xff]
    %v2741 = vld [vmem:[#allocation14] sm:$0xff]
    %v2742 = vld [vmem:[#allocation14 + $0x8] sm:$0xff]
    %v2743 = vld [vmem:[#allocation14 + $0x10] sm:$0xff]
    %v2744 = vld [vmem:[#allocation14 + $0x18] sm:$0xff]
    %v2745 = vld [vmem:[#allocation14 + $0x20] sm:$0xff]
    %v2746 = vld [vmem:[#allocation14 + $0x28] sm:$0xff]
    %v2747 = vld [vmem:[#allocation14 + $0x30] sm:$0xff]
    %v2748 = vld [vmem:[#allocation14 + $0x38] sm:$0xff]
    %v2749 = vld [vmem:[#allocation14 + $0x40] sm:$0xff]
    %v2750 = vld [vmem:[#allocation14 + $0x48] sm:$0xff]
    %v2751 = vld [vmem:[#allocation14 + $0x50] sm:$0xff]
    %v2752 = vld [vmem:[#allocation14 + $0x58] sm:$0xff]
    %v2753 = vld [vmem:[#allocation14 + $0x60] sm:$0xff]
    %v2754 = vld [vmem:[#allocation14 + $0x68] sm:$0xff]
    %v2755 = vld [vmem:[#allocation14 + $0x70] sm:$0xff]
    %v2756 = vld [vmem:[#allocation14 + $0x78] sm:$0xff]
    %v2757 = vld [vmem:[#allocation14 + $0x80] sm:$0xff]
    %v2758 = vld [vmem:[#allocation14 + $0x88] sm:$0xff]
    %v2759 = vld [vmem:[#allocation14 + $0x90] sm:$0xff]
    %v2760 = vld [vmem:[#allocation14 + $0x98] sm:$0xff]
    %v2761 = vld [vmem:[#allocation14 + $0xa0] sm:$0xff]
    %v2762 = vld [vmem:[#allocation14 + $0xa8] sm:$0xff]
    %v2763 = vld [vmem:[#allocation14 + $0xb0] sm:$0xff]
    %v2764 = vld [vmem:[#allocation14 + $0xb8] sm:$0xff]
    %v2765 = vld [vmem:[#allocation14 + $0xc0] sm:$0xff]
    %v2766 = vld [vmem:[#allocation14 + $0xc8] sm:$0xff]
    %v2767 = vld [vmem:[#allocation14 + $0xd0] sm:$0xff]
    %v2768 = vld [vmem:[#allocation14 + $0xd8] sm:$0xff]
    %v2769 = vld [vmem:[#allocation14 + $0xe0] sm:$0xff]
    %v2770 = vld [vmem:[#allocation14 + $0xe8] sm:$0xff]
    %v2771 = vld [vmem:[#allocation14 + $0xf0] sm:$0xff]
    %v2772 = vld [vmem:[#allocation14 + $0xf8] sm:$0xff]
    %v2773 = vld [vmem:[#allocation14 + $0x100] sm:$0xff]
    %v2774 = vld [vmem:[#allocation14 + $0x108] sm:$0xff]
    %v2775 = vld [vmem:[#allocation14 + $0x110] sm:$0xff]
    %v2776 = vld [vmem:[#allocation14 + $0x118] sm:$0xff]
    %v2777 = vld [vmem:[#allocation14 + $0x120] sm:$0xff]
    %v2778 = vld [vmem:[#allocation14 + $0x128] sm:$0xff]
    %v2779 = vld [vmem:[#allocation14 + $0x130] sm:$0xff]
    %v2780 = vld [vmem:[#allocation14 + $0x138] sm:$0xff]
    %v2781 = vld [vmem:[#allocation14 + $0x140] sm:$0xff]
    %v2782 = vld [vmem:[#allocation14 + $0x148] sm:$0xff]
    %v2783 = vld [vmem:[#allocation14 + $0x150] sm:$0xff]
    %v2784 = vld [vmem:[#allocation14 + $0x158] sm:$0xff]
    %v2785 = vld [vmem:[#allocation14 + $0x160] sm:$0xff]
    %v2786 = vld [vmem:[#allocation14 + $0x168] sm:$0xff]
    %v2787 = vld [vmem:[#allocation14 + $0x170] sm:$0xff]
    %v2788 = vld [vmem:[#allocation14 + $0x178] sm:$0xff]
    %v2789 = vld [vmem:[#allocation14 + $0x180] sm:$0xff]
    %v2790 = vld [vmem:[#allocation14 + $0x188] sm:$0xff]
    %v2791 = vld [vmem:[#allocation14 + $0x190] sm:$0xff]
    %v2792 = vld [vmem:[#allocation14 + $0x198] sm:$0xff]
    %v2793 = vld [vmem:[#allocation14 + $0x1a0] sm:$0xff]
    %v2794 = vld [vmem:[#allocation14 + $0x1a8] sm:$0xff]
    %v2795 = vld [vmem:[#allocation14 + $0x1b0] sm:$0xff]
    %v2796 = vld [vmem:[#allocation14 + $0x1b8] sm:$0xff]
    %v2797 = vld [vmem:[#allocation14 + $0x1c0] sm:$0xff]
    %v2798 = vld [vmem:[#allocation14 + $0x1c8] sm:$0xff]
    %v2799 = vld [vmem:[#allocation14 + $0x1d0] sm:$0xff]
    %v2800 = vld [vmem:[#allocation14 + $0x1d8] sm:$0xff]
    %v2801 = vld [vmem:[#allocation14 + $0x1e0] sm:$0xff]
    %v2802 = vld [vmem:[#allocation14 + $0x1e8] sm:$0xff]
    %v2803 = vld [vmem:[#allocation14 + $0x1f0] sm:$0xff]
    %v2804 = vld [vmem:[#allocation14 + $0x1f8] sm:$0xff]
    %v2869 = vunpack.c.l.b16 %v2741
    %v2870 = vunpack.c.h.b16 %v2741
    %v2871 = vunpack.c.l.b16 %v2742
    %v2872 = vunpack.c.h.b16 %v2742
    %v2873 = vunpack.c.l.b16 %v2743
    %v2874 = vunpack.c.h.b16 %v2743
    %v2875 = vunpack.c.l.b16 %v2744
    %v2876 = vunpack.c.h.b16 %v2744
    %v2877 = vunpack.c.l.b16 %v2745
    %v2878 = vunpack.c.h.b16 %v2745
    %v2879 = vunpack.c.l.b16 %v2746
    %v2880 = vunpack.c.h.b16 %v2746
    %v2881 = vunpack.c.l.b16 %v2747
    %v2882 = vunpack.c.h.b16 %v2747
    %v2883 = vunpack.c.l.b16 %v2748
    %v2884 = vunpack.c.h.b16 %v2748
    %v2885 = vunpack.c.l.b16 %v2749
    %v2886 = vunpack.c.h.b16 %v2749
    %v2887 = vunpack.c.l.b16 %v2750
    %v2888 = vunpack.c.h.b16 %v2750
    %v2889 = vunpack.c.l.b16 %v2751
    %v2890 = vunpack.c.h.b16 %v2751
    %v2891 = vunpack.c.l.b16 %v2752
    %v2892 = vunpack.c.h.b16 %v2752
    %v2893 = vunpack.c.l.b16 %v2753
    %v2894 = vunpack.c.h.b16 %v2753
    %v2895 = vunpack.c.l.b16 %v2754
    %v2896 = vunpack.c.h.b16 %v2754
    %v2897 = vunpack.c.l.b16 %v2755
    %v2898 = vunpack.c.h.b16 %v2755
    %v2899 = vunpack.c.l.b16 %v2756
    %v2900 = vunpack.c.h.b16 %v2756
    %v2901 = vunpack.c.l.b16 %v2757
    %v2902 = vunpack.c.h.b16 %v2757
    %v2903 = vunpack.c.l.b16 %v2758
    %v2904 = vunpack.c.h.b16 %v2758
    %v2905 = vunpack.c.l.b16 %v2759
    %v2906 = vunpack.c.h.b16 %v2759
    %v2907 = vunpack.c.l.b16 %v2760
    %v2908 = vunpack.c.h.b16 %v2760
    %v2909 = vunpack.c.l.b16 %v2761
    %v2910 = vunpack.c.h.b16 %v2761
    %v2911 = vunpack.c.l.b16 %v2762
    %v2912 = vunpack.c.h.b16 %v2762
    %v2913 = vunpack.c.l.b16 %v2763
    %v2914 = vunpack.c.h.b16 %v2763
    %v2915 = vunpack.c.l.b16 %v2764
    %v2916 = vunpack.c.h.b16 %v2764
    %v2917 = vunpack.c.l.b16 %v2765
    %v2918 = vunpack.c.h.b16 %v2765
    %v2919 = vunpack.c.l.b16 %v2766
    %v2920 = vunpack.c.h.b16 %v2766
    %v2921 = vunpack.c.l.b16 %v2767
    %v2922 = vunpack.c.h.b16 %v2767
    %v2923 = vunpack.c.l.b16 %v2768
    %v2924 = vunpack.c.h.b16 %v2768
    %v2925 = vunpack.c.l.b16 %v2769
    %v2926 = vunpack.c.h.b16 %v2769
    %v2927 = vunpack.c.l.b16 %v2770
    %v2928 = vunpack.c.h.b16 %v2770
    %v2929 = vunpack.c.l.b16 %v2771
    %v2930 = vunpack.c.h.b16 %v2771
    %v2931 = vunpack.c.l.b16 %v2772
    %v2932 = vunpack.c.h.b16 %v2772
    %v2933 = vunpack.c.l.b16 %v2773
    %v2934 = vunpack.c.h.b16 %v2773
    %v2935 = vunpack.c.l.b16 %v2774
    %v2936 = vunpack.c.h.b16 %v2774
    %v2937 = vunpack.c.l.b16 %v2775
    %v2938 = vunpack.c.h.b16 %v2775
    %v2939 = vunpack.c.l.b16 %v2776
    %v2940 = vunpack.c.h.b16 %v2776
    %v2941 = vunpack.c.l.b16 %v2777
    %v2942 = vunpack.c.h.b16 %v2777
    %v2943 = vunpack.c.l.b16 %v2778
    %v2944 = vunpack.c.h.b16 %v2778
    %v2945 = vunpack.c.l.b16 %v2779
    %v2946 = vunpack.c.h.b16 %v2779
    %v2947 = vunpack.c.l.b16 %v2780
    %v2948 = vunpack.c.h.b16 %v2780
    %v2949 = vunpack.c.l.b16 %v2781
    %v2950 = vunpack.c.h.b16 %v2781
    %v2951 = vunpack.c.l.b16 %v2782
    %v2952 = vunpack.c.h.b16 %v2782
    %v2953 = vunpack.c.l.b16 %v2783
    %v2954 = vunpack.c.h.b16 %v2783
    %v2955 = vunpack.c.l.b16 %v2784
    %v2956 = vunpack.c.h.b16 %v2784
    %v2957 = vunpack.c.l.b16 %v2785
    %v2958 = vunpack.c.h.b16 %v2785
    %v2959 = vunpack.c.l.b16 %v2786
    %v2960 = vunpack.c.h.b16 %v2786
    %v2961 = vunpack.c.l.b16 %v2787
    %v2962 = vunpack.c.h.b16 %v2787
    %v2963 = vunpack.c.l.b16 %v2788
    %v2964 = vunpack.c.h.b16 %v2788
    %v2965 = vunpack.c.l.b16 %v2789
    %v2966 = vunpack.c.h.b16 %v2789
    %v2967 = vunpack.c.l.b16 %v2790
    %v2968 = vunpack.c.h.b16 %v2790
    %v2969 = vunpack.c.l.b16 %v2791
    %v2970 = vunpack.c.h.b16 %v2791
    %v2971 = vunpack.c.l.b16 %v2792
    %v2972 = vunpack.c.h.b16 %v2792
    %v2973 = vunpack.c.l.b16 %v2793
    %v2974 = vunpack.c.h.b16 %v2793
    %v2975 = vunpack.c.l.b16 %v2794
    %v2976 = vunpack.c.h.b16 %v2794
    %v2977 = vunpack.c.l.b16 %v2795
    %v2978 = vunpack.c.h.b16 %v2795
    %v2979 = vunpack.c.l.b16 %v2796
    %v2980 = vunpack.c.h.b16 %v2796
    %v2981 = vunpack.c.l.b16 %v2797
    %v2982 = vunpack.c.h.b16 %v2797
    %v2983 = vunpack.c.l.b16 %v2798
    %v2984 = vunpack.c.h.b16 %v2798
    %v2985 = vunpack.c.l.b16 %v2799
    %v2986 = vunpack.c.h.b16 %v2799
    %v2987 = vunpack.c.l.b16 %v2800
    %v2988 = vunpack.c.h.b16 %v2800
    %v2989 = vunpack.c.l.b16 %v2801
    %v2990 = vunpack.c.h.b16 %v2801
    %v2991 = vunpack.c.l.b16 %v2802
    %v2992 = vunpack.c.h.b16 %v2802
    %v2993 = vunpack.c.l.b16 %v2803
    %v2994 = vunpack.c.h.b16 %v2803
    %v2995 = vunpack.c.l.b16 %v2804
    %v2996 = vunpack.c.h.b16 %v2804
    %v2997 = vpack.c.b16 %v2873, %v2869
    %v2998 = vpack.c.b16 %v2874, %v2870
    %v2999 = vpack.c.b16 %v2875, %v2871
    %v3000 = vpack.c.b16 %v2876, %v2872
    %v3001 = vpack.c.b16 %v2881, %v2877
    %v3002 = vpack.c.b16 %v2882, %v2878
    %v3003 = vpack.c.b16 %v2883, %v2879
    %v3004 = vpack.c.b16 %v2884, %v2880
    %v3005 = vpack.c.b16 %v2889, %v2885
    %v3006 = vpack.c.b16 %v2890, %v2886
    %v3007 = vpack.c.b16 %v2891, %v2887
    %v3008 = vpack.c.b16 %v2892, %v2888
    %v3009 = vpack.c.b16 %v2897, %v2893
    %v3010 = vpack.c.b16 %v2898, %v2894
    %v3011 = vpack.c.b16 %v2899, %v2895
    %v3012 = vpack.c.b16 %v2900, %v2896
    %v3013 = vpack.c.b16 %v2905, %v2901
    %v3014 = vpack.c.b16 %v2906, %v2902
    %v3015 = vpack.c.b16 %v2907, %v2903
    %v3016 = vpack.c.b16 %v2908, %v2904
    %v3017 = vpack.c.b16 %v2913, %v2909
    %v3018 = vpack.c.b16 %v2914, %v2910
    %v3019 = vpack.c.b16 %v2915, %v2911
    %v3020 = vpack.c.b16 %v2916, %v2912
    %v3021 = vpack.c.b16 %v2921, %v2917
    %v3022 = vpack.c.b16 %v2922, %v2918
    %v3023 = vpack.c.b16 %v2923, %v2919
    %v3024 = vpack.c.b16 %v2924, %v2920
    %v3025 = vpack.c.b16 %v2929, %v2925
    %v3026 = vpack.c.b16 %v2930, %v2926
    %v3027 = vpack.c.b16 %v2931, %v2927
    %v3028 = vpack.c.b16 %v2932, %v2928
    %v3029 = vpack.c.b16 %v2937, %v2933
    %v3030 = vpack.c.b16 %v2938, %v2934
    %v3031 = vpack.c.b16 %v2939, %v2935
    %v3032 = vpack.c.b16 %v2940, %v2936
    %v3033 = vpack.c.b16 %v2945, %v2941
    %v3034 = vpack.c.b16 %v2946, %v2942
    %v3035 = vpack.c.b16 %v2947, %v2943
    %v3036 = vpack.c.b16 %v2948, %v2944
    %v3037 = vpack.c.b16 %v2953, %v2949
    %v3038 = vpack.c.b16 %v2954, %v2950
    %v3039 = vpack.c.b16 %v2955, %v2951
    %v3040 = vpack.c.b16 %v2956, %v2952
    %v3041 = vpack.c.b16 %v2961, %v2957
    %v3042 = vpack.c.b16 %v2962, %v2958
    %v3043 = vpack.c.b16 %v2963, %v2959
    %v3044 = vpack.c.b16 %v2964, %v2960
    %v3045 = vpack.c.b16 %v2969, %v2965
    %v3046 = vpack.c.b16 %v2970, %v2966
    %v3047 = vpack.c.b16 %v2971, %v2967
    %v3048 = vpack.c.b16 %v2972, %v2968
    %v3049 = vpack.c.b16 %v2977, %v2973
    %v3050 = vpack.c.b16 %v2978, %v2974
    %v3051 = vpack.c.b16 %v2979, %v2975
    %v3052 = vpack.c.b16 %v2980, %v2976
    %v3053 = vpack.c.b16 %v2985, %v2981
    %v3054 = vpack.c.b16 %v2986, %v2982
    %v3055 = vpack.c.b16 %v2987, %v2983
    %v3056 = vpack.c.b16 %v2988, %v2984
    %v3057 = vpack.c.b16 %v2993, %v2989
    %v3058 = vpack.c.b16 %v2994, %v2990
    %v3059 = vpack.c.b16 %v2995, %v2991
    %v3060 = vpack.c.b16 %v2996, %v2992
    %3125 = vmatprep.subr.bf16.mxu0 %v2998
    %3126 = vmatpush1.bf16.msra.mxu0 %v2997
    %3127 = vmatprep.subr.bf16.mxu0 %v3002
    %3128 = vmatpush1.bf16.msra.mxu0 %v3001
    %3129 = vmatprep.subr.bf16.mxu0 %v3006
    %3130 = vmatpush1.bf16.msra.mxu0 %v3005
    %3131 = vmatprep.subr.bf16.mxu0 %v3010
    %3132 = vmatpush1.bf16.msra.mxu0 %v3009
    %3133 = vmatprep.subr.bf16.mxu0 %v3014
    %3134 = vmatpush1.bf16.msra.mxu0 %v3013
    %3135 = vmatprep.subr.bf16.mxu0 %v3018
    %3136 = vmatpush1.bf16.msra.mxu0 %v3017
    %3137 = vmatprep.subr.bf16.mxu0 %v3022
    %3138 = vmatpush1.bf16.msra.mxu0 %v3021
    %3139 = vmatprep.subr.bf16.mxu0 %v3026
    %3140 = vmatpush1.bf16.msra.mxu0 %v3025
    %3141 = vmatprep.subr.bf16.mxu0 %v3030
    %3142 = vmatpush1.bf16.msra.mxu0 %v3029
    %3143 = vmatprep.subr.bf16.mxu0 %v3034
    %3144 = vmatpush1.bf16.msra.mxu0 %v3033
    %3145 = vmatprep.subr.bf16.mxu0 %v3038
    %3146 = vmatpush1.bf16.msra.mxu0 %v3037
    %3147 = vmatprep.subr.bf16.mxu0 %v3042
    %3148 = vmatpush1.bf16.msra.mxu0 %v3041
    %3149 = vmatprep.subr.bf16.mxu0 %v3046
    %3150 = vmatpush1.bf16.msra.mxu0 %v3045
    %3151 = vmatprep.subr.bf16.mxu0 %v3050
    %3152 = vmatpush1.bf16.msra.mxu0 %v3049
    %3153 = vmatprep.subr.bf16.mxu0 %v3054
    %3154 = vmatpush1.bf16.msra.mxu0 %v3053
    %3155 = vmatprep.subr.bf16.mxu0 %v3058
    %3156 = vmatpush1.bf16.msra.mxu0 %v3057
    %3157 = vmatprep.mubr.bf16.mxu0 %v915
    %3158 = vmatmul.mubr.bf16.gmra.mrb[0].mxu0 %v914
    %v3159 = vpop.f32.mrb[0].mxu0
    %v3160 = vadd.f32 0.0, %v3159
    %v3161 = vpop.f32.mrb[0].mxu0
    %v3162 = vadd.f32 0.0, %v3161
    %v3163 = vpop.f32.mrb[0].mxu0
    %v3164 = vpop.f32.mrb[0].mxu0
    %3165 = vdwg.mxu0
    %3166 = vmatprep.subr.bf16.mxu0 %v3000
    %3167 = vmatpush1.bf16.msra.mxu0 %v2999
    %3168 = vmatprep.subr.bf16.mxu0 %v3004
    %3169 = vmatpush1.bf16.msra.mxu0 %v3003
    %3170 = vmatprep.subr.bf16.mxu0 %v3008
    %3171 = vmatpush1.bf16.msra.mxu0 %v3007
    %3172 = vmatprep.subr.bf16.mxu0 %v3012
    %3173 = vmatpush1.bf16.msra.mxu0 %v3011
    %3174 = vmatprep.subr.bf16.mxu0 %v3016
    %3175 = vmatpush1.bf16.msra.mxu0 %v3015
    %3176 = vmatprep.subr.bf16.mxu0 %v3020
    %3177 = vmatpush1.bf16.msra.mxu0 %v3019
    %3178 = vmatprep.subr.bf16.mxu0 %v3024
    %3179 = vmatpush1.bf16.msra.mxu0 %v3023
    %3180 = vmatprep.subr.bf16.mxu0 %v3028
    %3181 = vmatpush1.bf16.msra.mxu0 %v3027
    %3182 = vmatprep.subr.bf16.mxu0 %v3032
    %3183 = vmatpush1.bf16.msra.mxu0 %v3031
    %3184 = vmatprep.subr.bf16.mxu0 %v3036
    %3185 = vmatpush1.bf16.msra.mxu0 %v3035
    %3186 = vmatprep.subr.bf16.mxu0 %v3040
    %3187 = vmatpush1.bf16.msra.mxu0 %v3039
    %3188 = vmatprep.subr.bf16.mxu0 %v3044
    %3189 = vmatpush1.bf16.msra.mxu0 %v3043
    %3190 = vmatprep.subr.bf16.mxu0 %v3048
    %3191 = vmatpush1.bf16.msra.mxu0 %v3047
    %3192 = vmatprep.subr.bf16.mxu0 %v3052
    %3193 = vmatpush1.bf16.msra.mxu0 %v3051
    %3194 = vmatprep.subr.bf16.mxu0 %v3056
    %3195 = vmatpush1.bf16.msra.mxu0 %v3055
    %3196 = vmatprep.subr.bf16.mxu0 %v3060
    %3197 = vmatpush1.bf16.msra.mxu0 %v3059
    %3198 = vmatprep.mubr.bf16.mxu0 %v915
    %3199 = vmatmul.mubr.bf16.gmra.mrb[0].mxu0 %v914
    %v3200 = vpop.f32.mrb[0].mxu0
    %v3201 = vadd.f32 0.0, %v3200
    %v3202 = vpop.f32.mrb[0].mxu0
    %v3203 = vadd.f32 0.0, %v3202
    %v3204 = vpop.f32.mrb[0].mxu0
    %v3205 = vpop.f32.mrb[0].mxu0
    %3206 = vdwg.mxu0
    %v3271 = vunpack.c.l.b16 %v2677
    %v3272 = vunpack.c.h.b16 %v2677
    %v3273 = vunpack.c.l.b16 %v2678
    %v3274 = vunpack.c.h.b16 %v2678
    %v3275 = vunpack.c.l.b16 %v2679
    %v3276 = vunpack.c.h.b16 %v2679
    %v3277 = vunpack.c.l.b16 %v2680
    %v3278 = vunpack.c.h.b16 %v2680
    %v3279 = vunpack.c.l.b16 %v2681
    %v3280 = vunpack.c.h.b16 %v2681
    %v3281 = vunpack.c.l.b16 %v2682
    %v3282 = vunpack.c.h.b16 %v2682
    %v3283 = vunpack.c.l.b16 %v2683
    %v3284 = vunpack.c.h.b16 %v2683
    %v3285 = vunpack.c.l.b16 %v2684
    %v3286 = vunpack.c.h.b16 %v2684
    %v3287 = vunpack.c.l.b16 %v2685
    %v3288 = vunpack.c.h.b16 %v2685
    %v3289 = vunpack.c.l.b16 %v2686
    %v3290 = vunpack.c.h.b16 %v2686
    %v3291 = vunpack.c.l.b16 %v2687
    %v3292 = vunpack.c.h.b16 %v2687
    %v3293 = vunpack.c.l.b16 %v2688
    %v3294 = vunpack.c.h.b16 %v2688
    %v3295 = vunpack.c.l.b16 %v2689
    %v3296 = vunpack.c.h.b16 %v2689
    %v3297 = vunpack.c.l.b16 %v2690
    %v3298 = vunpack.c.h.b16 %v2690
    %v3299 = vunpack.c.l.b16 %v2691
    %v3300 = vunpack.c.h.b16 %v2691
    %v3301 = vunpack.c.l.b16 %v2692
    %v3302 = vunpack.c.h.b16 %v2692
    %v3303 = vunpack.c.l.b16 %v2693
    %v3304 = vunpack.c.h.b16 %v2693
    %v3305 = vunpack.c.l.b16 %v2694
    %v3306 = vunpack.c.h.b16 %v2694
    %v3307 = vunpack.c.l.b16 %v2695
    %v3308 = vunpack.c.h.b16 %v2695
    %v3309 = vunpack.c.l.b16 %v2696
    %v3310 = vunpack.c.h.b16 %v2696
    %v3311 = vunpack.c.l.b16 %v2697
    %v3312 = vunpack.c.h.b16 %v2697
    %v3313 = vunpack.c.l.b16 %v2698
    %v3314 = vunpack.c.h.b16 %v2698
    %v3315 = vunpack.c.l.b16 %v2699
    %v3316 = vunpack.c.h.b16 %v2699
    %v3317 = vunpack.c.l.b16 %v2700
    %v3318 = vunpack.c.h.b16 %v2700
    %v3319 = vunpack.c.l.b16 %v2701
    %v3320 = vunpack.c.h.b16 %v2701
    %v3321 = vunpack.c.l.b16 %v2702
    %v3322 = vunpack.c.h.b16 %v2702
    %v3323 = vunpack.c.l.b16 %v2703
    %v3324 = vunpack.c.h.b16 %v2703
    %v3325 = vunpack.c.l.b16 %v2704
    %v3326 = vunpack.c.h.b16 %v2704
    %v3327 = vunpack.c.l.b16 %v2705
    %v3328 = vunpack.c.h.b16 %v2705
    %v3329 = vunpack.c.l.b16 %v2706
    %v3330 = vunpack.c.h.b16 %v2706
    %v3331 = vunpack.c.l.b16 %v2707
    %v3332 = vunpack.c.h.b16 %v2707
    %v3333 = vunpack.c.l.b16 %v2708
    %v3334 = vunpack.c.h.b16 %v2708
    %v3335 = vunpack.c.l.b16 %v2709
    %v3336 = vunpack.c.h.b16 %v2709
    %v3337 = vunpack.c.l.b16 %v2710
    %v3338 = vunpack.c.h.b16 %v2710
    %v3339 = vunpack.c.l.b16 %v2711
    %v3340 = vunpack.c.h.b16 %v2711
    %v3341 = vunpack.c.l.b16 %v2712
    %v3342 = vunpack.c.h.b16 %v2712
    %v3343 = vunpack.c.l.b16 %v2713
    %v3344 = vunpack.c.h.b16 %v2713
    %v3345 = vunpack.c.l.b16 %v2714
    %v3346 = vunpack.c.h.b16 %v2714
    %v3347 = vunpack.c.l.b16 %v2715
    %v3348 = vunpack.c.h.b16 %v2715
    %v3349 = vunpack.c.l.b16 %v2716
    %v3350 = vunpack.c.h.b16 %v2716
    %v3351 = vunpack.c.l.b16 %v2717
    %v3352 = vunpack.c.h.b16 %v2717
    %v3353 = vunpack.c.l.b16 %v2718
    %v3354 = vunpack.c.h.b16 %v2718
    %v3355 = vunpack.c.l.b16 %v2719
    %v3356 = vunpack.c.h.b16 %v2719
    %v3357 = vunpack.c.l.b16 %v2720
    %v3358 = vunpack.c.h.b16 %v2720
    %v3359 = vunpack.c.l.b16 %v2721
    %v3360 = vunpack.c.h.b16 %v2721
    %v3361 = vunpack.c.l.b16 %v2722
    %v3362 = vunpack.c.h.b16 %v2722
    %v3363 = vunpack.c.l.b16 %v2723
    %v3364 = vunpack.c.h.b16 %v2723
    %v3365 = vunpack.c.l.b16 %v2724
    %v3366 = vunpack.c.h.b16 %v2724
    %v3367 = vunpack.c.l.b16 %v2725
    %v3368 = vunpack.c.h.b16 %v2725
    %v3369 = vunpack.c.l.b16 %v2726
    %v3370 = vunpack.c.h.b16 %v2726
    %v3371 = vunpack.c.l.b16 %v2727
    %v3372 = vunpack.c.h.b16 %v2727
    %v3373 = vunpack.c.l.b16 %v2728
    %v3374 = vunpack.c.h.b16 %v2728
    %v3375 = vunpack.c.l.b16 %v2729
    %v3376 = vunpack.c.h.b16 %v2729
    %v3377 = vunpack.c.l.b16 %v2730
    %v3378 = vunpack.c.h.b16 %v2730
    %v3379 = vunpack.c.l.b16 %v2731
    %v3380 = vunpack.c.h.b16 %v2731
    %v3381 = vunpack.c.l.b16 %v2732
    %v3382 = vunpack.c.h.b16 %v2732
    %v3383 = vunpack.c.l.b16 %v2733
    %v3384 = vunpack.c.h.b16 %v2733
    %v3385 = vunpack.c.l.b16 %v2734
    %v3386 = vunpack.c.h.b16 %v2734
    %v3387 = vunpack.c.l.b16 %v2735
    %v3388 = vunpack.c.h.b16 %v2735
    %v3389 = vunpack.c.l.b16 %v2736
    %v3390 = vunpack.c.h.b16 %v2736
    %v3391 = vunpack.c.l.b16 %v2737
    %v3392 = vunpack.c.h.b16 %v2737
    %v3393 = vunpack.c.l.b16 %v2738
    %v3394 = vunpack.c.h.b16 %v2738
    %v3395 = vunpack.c.l.b16 %v2739
    %v3396 = vunpack.c.h.b16 %v2739
    %v3397 = vunpack.c.l.b16 %v2740
    %v3398 = vunpack.c.h.b16 %v2740
    %v3399 = vpack.c.b16 %v3275, %v3271
    %v3400 = vpack.c.b16 %v3276, %v3272
    %v3401 = vpack.c.b16 %v3277, %v3273
    %v3402 = vpack.c.b16 %v3278, %v3274
    %v3403 = vpack.c.b16 %v3283, %v3279
    %v3404 = vpack.c.b16 %v3284, %v3280
    %v3405 = vpack.c.b16 %v3285, %v3281
    %v3406 = vpack.c.b16 %v3286, %v3282
    %v3407 = vpack.c.b16 %v3291, %v3287
    %v3408 = vpack.c.b16 %v3292, %v3288
    %v3409 = vpack.c.b16 %v3293, %v3289
    %v3410 = vpack.c.b16 %v3294, %v3290
    %v3411 = vpack.c.b16 %v3299, %v3295
    %v3412 = vpack.c.b16 %v3300, %v3296
    %v3413 = vpack.c.b16 %v3301, %v3297
    %v3414 = vpack.c.b16 %v3302, %v3298
    %v3415 = vpack.c.b16 %v3307, %v3303
    %v3416 = vpack.c.b16 %v3308, %v3304
    %v3417 = vpack.c.b16 %v3309, %v3305
    %v3418 = vpack.c.b16 %v3310, %v3306
    %v3419 = vpack.c.b16 %v3315, %v3311
    %v3420 = vpack.c.b16 %v3316, %v3312
    %v3421 = vpack.c.b16 %v3317, %v3313
    %v3422 = vpack.c.b16 %v3318, %v3314
    %v3423 = vpack.c.b16 %v3323, %v3319
    %v3424 = vpack.c.b16 %v3324, %v3320
    %v3425 = vpack.c.b16 %v3325, %v3321
    %v3426 = vpack.c.b16 %v3326, %v3322
    %v3427 = vpack.c.b16 %v3331, %v3327
    %v3428 = vpack.c.b16 %v3332, %v3328
    %v3429 = vpack.c.b16 %v3333, %v3329
    %v3430 = vpack.c.b16 %v3334, %v3330
    %v3431 = vpack.c.b16 %v3339, %v3335
    %v3432 = vpack.c.b16 %v3340, %v3336
    %v3433 = vpack.c.b16 %v3341, %v3337
    %v3434 = vpack.c.b16 %v3342, %v3338
    %v3435 = vpack.c.b16 %v3347, %v3343
    %v3436 = vpack.c.b16 %v3348, %v3344
    %v3437 = vpack.c.b16 %v3349, %v3345
    %v3438 = vpack.c.b16 %v3350, %v3346
    %v3439 = vpack.c.b16 %v3355, %v3351
    %v3440 = vpack.c.b16 %v3356, %v3352
    %v3441 = vpack.c.b16 %v3357, %v3353
    %v3442 = vpack.c.b16 %v3358, %v3354
    %v3443 = vpack.c.b16 %v3363, %v3359
    %v3444 = vpack.c.b16 %v3364, %v3360
    %v3445 = vpack.c.b16 %v3365, %v3361
    %v3446 = vpack.c.b16 %v3366, %v3362
    %v3447 = vpack.c.b16 %v3371, %v3367
    %v3448 = vpack.c.b16 %v3372, %v3368
    %v3449 = vpack.c.b16 %v3373, %v3369
    %v3450 = vpack.c.b16 %v3374, %v3370
    %v3451 = vpack.c.b16 %v3379, %v3375
    %v3452 = vpack.c.b16 %v3380, %v3376
    %v3453 = vpack.c.b16 %v3381, %v3377
    %v3454 = vpack.c.b16 %v3382, %v3378
    %v3455 = vpack.c.b16 %v3387, %v3383
    %v3456 = vpack.c.b16 %v3388, %v3384
    %v3457 = vpack.c.b16 %v3389, %v3385
    %v3458 = vpack.c.b16 %v3390, %v3386
    %v3459 = vpack.c.b16 %v3395, %v3391
    %v3460 = vpack.c.b16 %v3396, %v3392
    %v3461 = vpack.c.b16 %v3397, %v3393
    %v3462 = vpack.c.b16 %v3398, %v3394
    %3527 = vmatprep.subr.bf16.mxu0 %v3400
    %3528 = vmatpush1.bf16.msra.mxu0 %v3399
    %3529 = vmatprep.subr.bf16.mxu0 %v3404
    %3530 = vmatpush1.bf16.msra.mxu0 %v3403
    %3531 = vmatprep.subr.bf16.mxu0 %v3408
    %3532 = vmatpush1.bf16.msra.mxu0 %v3407
    %3533 = vmatprep.subr.bf16.mxu0 %v3412
    %3534 = vmatpush1.bf16.msra.mxu0 %v3411
    %3535 = vmatprep.subr.bf16.mxu0 %v3416
    %3536 = vmatpush1.bf16.msra.mxu0 %v3415
    %3537 = vmatprep.subr.bf16.mxu0 %v3420
    %3538 = vmatpush1.bf16.msra.mxu0 %v3419
    %3539 = vmatprep.subr.bf16.mxu0 %v3424
    %3540 = vmatpush1.bf16.msra.mxu0 %v3423
    %3541 = vmatprep.subr.bf16.mxu0 %v3428
    %3542 = vmatpush1.bf16.msra.mxu0 %v3427
    %3543 = vmatprep.subr.bf16.mxu0 %v3432
    %3544 = vmatpush1.bf16.msra.mxu0 %v3431
    %3545 = vmatprep.subr.bf16.mxu0 %v3436
    %3546 = vmatpush1.bf16.msra.mxu0 %v3435
    %3547 = vmatprep.subr.bf16.mxu0 %v3440
    %3548 = vmatpush1.bf16.msra.mxu0 %v3439
    %3549 = vmatprep.subr.bf16.mxu0 %v3444
    %3550 = vmatpush1.bf16.msra.mxu0 %v3443
    %3551 = vmatprep.subr.bf16.mxu0 %v3448
    %3552 = vmatpush1.bf16.msra.mxu0 %v3447
    %3553 = vmatprep.subr.bf16.mxu0 %v3452
    %3554 = vmatpush1.bf16.msra.mxu0 %v3451
    %3555 = vmatprep.subr.bf16.mxu0 %v3456
    %3556 = vmatpush1.bf16.msra.mxu0 %v3455
    %3557 = vmatprep.subr.bf16.mxu0 %v3460
    %3558 = vmatpush1.bf16.msra.mxu0 %v3459
    %3559 = vmatprep.mubr.bf16.mxu0 %v489
    %3560 = vmatmul.mubr.bf16.gmra.mrb[0].mxu0 %v488
    %v3561 = vpop.f32.mrb[0].mxu0
    %v3562 = vadd.f32 %v3160, %v3561
    %v3563 = vpop.f32.mrb[0].mxu0
    %v3564 = vadd.f32 %v3162, %v3563
    %v3565 = vpop.f32.mrb[0].mxu0
    %v3566 = vpop.f32.mrb[0].mxu0
    %3567 = vdwg.mxu0
    %3568 = vmatprep.subr.bf16.mxu0 %v3402
    %3569 = vmatpush1.bf16.msra.mxu0 %v3401
    %3570 = vmatprep.subr.bf16.mxu0 %v3406
    %3571 = vmatpush1.bf16.msra.mxu0 %v3405
    %3572 = vmatprep.subr.bf16.mxu0 %v3410
    %3573 = vmatpush1.bf16.msra.mxu0 %v3409
    %3574 = vmatprep.subr.bf16.mxu0 %v3414
    %3575 = vmatpush1.bf16.msra.mxu0 %v3413
    %3576 = vmatprep.subr.bf16.mxu0 %v3418
    %3577 = vmatpush1.bf16.msra.mxu0 %v3417
    %3578 = vmatprep.subr.bf16.mxu0 %v3422
    %3579 = vmatpush1.bf16.msra.mxu0 %v3421
    %3580 = vmatprep.subr.bf16.mxu0 %v3426
    %3581 = vmatpush1.bf16.msra.mxu0 %v3425
    %3582 = vmatprep.subr.bf16.mxu0 %v3430
    %3583 = vmatpush1.bf16.msra.mxu0 %v3429
    %3584 = vmatprep.subr.bf16.mxu0 %v3434
    %3585 = vmatpush1.bf16.msra.mxu0 %v3433
    %3586 = vmatprep.subr.bf16.mxu0 %v3438
    %3587 = vmatpush1.bf16.msra.mxu0 %v3437
    %3588 = vmatprep.subr.bf16.mxu0 %v3442
    %3589 = vmatpush1.bf16.msra.mxu0 %v3441
    %3590 = vmatprep.subr.bf16.mxu0 %v3446
    %3591 = vmatpush1.bf16.msra.mxu0 %v3445
    %3592 = vmatprep.subr.bf16.mxu0 %v3450
    %3593 = vmatpush1.bf16.msra.mxu0 %v3449
    %3594 = vmatprep.subr.bf16.mxu0 %v3454
    %3595 = vmatpush1.bf16.msra.mxu0 %v3453
    %3596 = vmatprep.subr.bf16.mxu0 %v3458
    %3597 = vmatpush1.bf16.msra.mxu0 %v3457
    %3598 = vmatprep.subr.bf16.mxu0 %v3462
    %3599 = vmatpush1.bf16.msra.mxu0 %v3461
    %3600 = vmatprep.mubr.bf16.mxu0 %v489
    %3601 = vmatmul.mubr.bf16.gmra.mrb[0].mxu0 %v488
    %v3602 = vpop.f32.mrb[0].mxu0
    %v3603 = vadd.f32 %v3201, %v3602
    %v3604 = vpop.f32.mrb[0].mxu0
    %v3605 = vadd.f32 %v3203, %v3604
    %v3606 = vpop.f32.mrb[0].mxu0
    %v3607 = vpop.f32.mrb[0].mxu0
    %3608 = vdwg.mxu0
    %v3609 = vld [vmem:[%s61] sm:$0xf]
    %v3611 = vlaneseq
    %v3612 = vshrl.u32 %v3611, 7
    %v3613 = vsub.s32 0, %v3612
    %v3614 = vrot.slane %v3609, %v3613
    %v3615 = vlaneseq
    %v3616 = vshrl.u32 %v3615, 7
    %v3617 = vsub.s32 1, %v3616
    %v3618 = vrot.slane %v3609, %v3617
    %v3619 = vlaneseq
    %v3620 = vshrl.u32 %v3619, 7
    %v3621 = vsub.s32 2, %v3620
    %v3622 = vrot.slane %v3609, %v3621
    %v3623 = vlaneseq
    %v3624 = vshrl.u32 %v3623, 7
    %v3625 = vsub.s32 3, %v3624
    %v3626 = vrot.slane %v3609, %v3625
    %v3631 = vadd.f32 %v3562, %v3614
    %v3632 = vadd.f32 %v3564, %v3618
    %v3633 = vadd.f32 %v3603, %v3622
    %v3634 = vadd.f32 %v3605, %v3626
    %v3635 = vmax.f32 %v3631, 0.0
    %v3636 = vmax.f32 %v3632, 0.0
    %v3637 = vmax.f32 %v3633, 0.0
    %v3638 = vmax.f32 %v3634, 0.0
    %v3639 = vpack.c.bf16 %v3635, %v3635
    %v3640 = vpack.c.bf16 %v3636, %v3636
    %v3641 = vpack.c.bf16 %v3637, %v3637
    %v3642 = vpack.c.bf16 %v3638, %v3638
    %v3643 = vld [vmem:[#allocation16] sm:$0xf]
    %v3644 = vld [vmem:[#allocation16 + $0x4] sm:$0xf]
    %v3645 = vld [vmem:[#allocation16 + $0x8] sm:$0xf]
    %v3646 = vld [vmem:[#allocation16 + $0xc] sm:$0xf]
    %v3647 = vld [vmem:[#allocation16 + $0x10] sm:$0xf]
    %v3648 = vld [vmem:[#allocation16 + $0x14] sm:$0xf]
    %v3649 = vld [vmem:[#allocation16 + $0x18] sm:$0xf]
    %v3650 = vld [vmem:[#allocation16 + $0x1c] sm:$0xf]
    %v3651 = vld [vmem:[#allocation16 + $0x20] sm:$0xf]
    %v3652 = vld [vmem:[#allocation16 + $0x24] sm:$0xf]
    %v3653 = vld [vmem:[#allocation16 + $0x28] sm:$0xf]
    %v3654 = vld [vmem:[#allocation16 + $0x2c] sm:$0xf]
    %v3655 = vld [vmem:[#allocation16 + $0x30] sm:$0xf]
    %v3656 = vld [vmem:[#allocation16 + $0x34] sm:$0xf]
    %v3657 = vld [vmem:[#allocation16 + $0x38] sm:$0xf]
    %v3658 = vld [vmem:[#allocation16 + $0x3c] sm:$0xf]
    %v3659 = vld [vmem:[#allocation16 + $0x40] sm:$0xf]
    %v3660 = vld [vmem:[#allocation16 + $0x44] sm:$0xf]
    %v3661 = vld [vmem:[#allocation16 + $0x48] sm:$0xf]
    %v3662 = vld [vmem:[#allocation16 + $0x4c] sm:$0xf]
    %v3663 = vld [vmem:[#allocation16 + $0x50] sm:$0xf]
    %v3664 = vld [vmem:[#allocation16 + $0x54] sm:$0xf]
    %v3665 = vld [vmem:[#allocation16 + $0x58] sm:$0xf]
    %v3666 = vld [vmem:[#allocation16 + $0x5c] sm:$0xf]
    %v3667 = vld [vmem:[#allocation16 + $0x60] sm:$0xf]
    %v3668 = vld [vmem:[#allocation16 + $0x64] sm:$0xf]
    %v3669 = vld [vmem:[#allocation16 + $0x68] sm:$0xf]
    %v3670 = vld [vmem:[#allocation16 + $0x6c] sm:$0xf]
    %v3671 = vld [vmem:[#allocation16 + $0x70] sm:$0xf]
    %v3672 = vld [vmem:[#allocation16 + $0x74] sm:$0xf]
    %v3673 = vld [vmem:[#allocation16 + $0x78] sm:$0xf]
    %v3674 = vld [vmem:[#allocation16 + $0x7c] sm:$0xf]
    %v3675 = vld [vmem:[#allocation16 + $0x80] sm:$0xf]
    %v3676 = vld [vmem:[#allocation16 + $0x84] sm:$0xf]
    %v3677 = vld [vmem:[#allocation16 + $0x88] sm:$0xf]
    %v3678 = vld [vmem:[#allocation16 + $0x8c] sm:$0xf]
    %v3679 = vld [vmem:[#allocation16 + $0x90] sm:$0xf]
    %v3680 = vld [vmem:[#allocation16 + $0x94] sm:$0xf]
    %v3681 = vld [vmem:[#allocation16 + $0x98] sm:$0xf]
    %v3682 = vld [vmem:[#allocation16 + $0x9c] sm:$0xf]
    %v3683 = vld [vmem:[#allocation16 + $0xa0] sm:$0xf]
    %v3684 = vld [vmem:[#allocation16 + $0xa4] sm:$0xf]
    %v3685 = vld [vmem:[#allocation16 + $0xa8] sm:$0xf]
    %v3686 = vld [vmem:[#allocation16 + $0xac] sm:$0xf]
    %v3687 = vld [vmem:[#allocation16 + $0xb0] sm:$0xf]
    %v3688 = vld [vmem:[#allocation16 + $0xb4] sm:$0xf]
    %v3689 = vld [vmem:[#allocation16 + $0xb8] sm:$0xf]
    %v3690 = vld [vmem:[#allocation16 + $0xbc] sm:$0xf]
    %v3691 = vld [vmem:[#allocation16 + $0xc0] sm:$0xf]
    %v3692 = vld [vmem:[#allocation16 + $0xc4] sm:$0xf]
    %v3693 = vld [vmem:[#allocation16 + $0xc8] sm:$0xf]
    %v3694 = vld [vmem:[#allocation16 + $0xcc] sm:$0xf]
    %v3695 = vld [vmem:[#allocation16 + $0xd0] sm:$0xf]
    %v3696 = vld [vmem:[#allocation16 + $0xd4] sm:$0xf]
    %v3697 = vld [vmem:[#allocation16 + $0xd8] sm:$0xf]
    %v3698 = vld [vmem:[#allocation16 + $0xdc] sm:$0xf]
    %v3699 = vld [vmem:[#allocation16 + $0xe0] sm:$0xf]
    %v3700 = vld [vmem:[#allocation16 + $0xe4] sm:$0xf]
    %v3701 = vld [vmem:[#allocation16 + $0xe8] sm:$0xf]
    %v3702 = vld [vmem:[#allocation16 + $0xec] sm:$0xf]
    %v3703 = vld [vmem:[#allocation16 + $0xf0] sm:$0xf]
    %v3704 = vld [vmem:[#allocation16 + $0xf4] sm:$0xf]
    %v3705 = vld [vmem:[#allocation16 + $0xf8] sm:$0xf]
    %v3706 = vld [vmem:[#allocation16 + $0xfc] sm:$0xf]
    %v3707 = vld [vmem:[%s65] sm:$0x1]
    %v3709 = vlaneseq
    %v3710 = vshrl.u32 %v3709, 7
    %v3711 = vsub.s32 0, %v3710
    %v3712 = vrot.slane %v3707, %v3711
    %v3778 = vunpack.c.l.b16 %v3643
    %v3779 = vunpack.c.l.b16 %v3644
    %v3780 = vunpack.c.l.b16 %v3645
    %v3781 = vunpack.c.l.b16 %v3646
    %v3782 = vunpack.c.l.b16 %v3647
    %v3783 = vunpack.c.l.b16 %v3648
    %v3784 = vunpack.c.l.b16 %v3649
    %v3785 = vunpack.c.l.b16 %v3650
    %v3786 = vunpack.c.l.b16 %v3651
    %v3787 = vunpack.c.l.b16 %v3652
    %v3788 = vunpack.c.l.b16 %v3653
    %v3789 = vunpack.c.l.b16 %v3654
    %v3790 = vunpack.c.l.b16 %v3655
    %v3791 = vunpack.c.l.b16 %v3656
    %v3792 = vunpack.c.l.b16 %v3657
    %v3793 = vunpack.c.l.b16 %v3658
    %v3794 = vunpack.c.l.b16 %v3659
    %v3795 = vunpack.c.l.b16 %v3660
    %v3796 = vunpack.c.l.b16 %v3661
    %v3797 = vunpack.c.l.b16 %v3662
    %v3798 = vunpack.c.l.b16 %v3663
    %v3799 = vunpack.c.l.b16 %v3664
    %v3800 = vunpack.c.l.b16 %v3665
    %v3801 = vunpack.c.l.b16 %v3666
    %v3802 = vunpack.c.l.b16 %v3667
    %v3803 = vunpack.c.l.b16 %v3668
    %v3804 = vunpack.c.l.b16 %v3669
    %v3805 = vunpack.c.l.b16 %v3670
    %v3806 = vunpack.c.l.b16 %v3671
    %v3807 = vunpack.c.l.b16 %v3672
    %v3808 = vunpack.c.l.b16 %v3673
    %v3809 = vunpack.c.l.b16 %v3674
    %v3810 = vunpack.c.l.b16 %v3675
    %v3811 = vunpack.c.l.b16 %v3676
    %v3812 = vunpack.c.l.b16 %v3677
    %v3813 = vunpack.c.l.b16 %v3678
    %v3814 = vunpack.c.l.b16 %v3679
    %v3815 = vunpack.c.l.b16 %v3680
    %v3816 = vunpack.c.l.b16 %v3681
    %v3817 = vunpack.c.l.b16 %v3682
    %v3818 = vunpack.c.l.b16 %v3683
    %v3819 = vunpack.c.l.b16 %v3684
    %v3820 = vunpack.c.l.b16 %v3685
    %v3821 = vunpack.c.l.b16 %v3686
    %v3822 = vunpack.c.l.b16 %v3687
    %v3823 = vunpack.c.l.b16 %v3688
    %v3824 = vunpack.c.l.b16 %v3689
    %v3825 = vunpack.c.l.b16 %v3690
    %v3826 = vunpack.c.l.b16 %v3691
    %v3827 = vunpack.c.l.b16 %v3692
    %v3828 = vunpack.c.l.b16 %v3693
    %v3829 = vunpack.c.l.b16 %v3694
    %v3830 = vunpack.c.l.b16 %v3695
    %v3831 = vunpack.c.l.b16 %v3696
    %v3832 = vunpack.c.l.b16 %v3697
    %v3833 = vunpack.c.l.b16 %v3698
    %v3834 = vunpack.c.l.b16 %v3699
    %v3835 = vunpack.c.l.b16 %v3700
    %v3836 = vunpack.c.l.b16 %v3701
    %v3837 = vunpack.c.l.b16 %v3702
    %v3838 = vunpack.c.l.b16 %v3703
    %v3839 = vunpack.c.l.b16 %v3704
    %v3840 = vunpack.c.l.b16 %v3705
    %v3841 = vunpack.c.l.b16 %v3706
    %v3842 = vpack.c.b16 %v3779, %v3778
    %v3843 = vpack.c.b16 %v3781, %v3780
    %v3844 = vpack.c.b16 %v3783, %v3782
    %v3845 = vpack.c.b16 %v3785, %v3784
    %v3846 = vpack.c.b16 %v3787, %v3786
    %v3847 = vpack.c.b16 %v3789, %v3788
    %v3848 = vpack.c.b16 %v3791, %v3790
    %v3849 = vpack.c.b16 %v3793, %v3792
    %v3850 = vpack.c.b16 %v3795, %v3794
    %v3851 = vpack.c.b16 %v3797, %v3796
    %v3852 = vpack.c.b16 %v3799, %v3798
    %v3853 = vpack.c.b16 %v3801, %v3800
    %v3854 = vpack.c.b16 %v3803, %v3802
    %v3855 = vpack.c.b16 %v3805, %v3804
    %v3856 = vpack.c.b16 %v3807, %v3806
    %v3857 = vpack.c.b16 %v3809, %v3808
    %v3858 = vpack.c.b16 %v3811, %v3810
    %v3859 = vpack.c.b16 %v3813, %v3812
    %v3860 = vpack.c.b16 %v3815, %v3814
    %v3861 = vpack.c.b16 %v3817, %v3816
    %v3862 = vpack.c.b16 %v3819, %v3818
    %v3863 = vpack.c.b16 %v3821, %v3820
    %v3864 = vpack.c.b16 %v3823, %v3822
    %v3865 = vpack.c.b16 %v3825, %v3824
    %v3866 = vpack.c.b16 %v3827, %v3826
    %v3867 = vpack.c.b16 %v3829, %v3828
    %v3868 = vpack.c.b16 %v3831, %v3830
    %v3869 = vpack.c.b16 %v3833, %v3832
    %v3870 = vpack.c.b16 %v3835, %v3834
    %v3871 = vpack.c.b16 %v3837, %v3836
    %v3872 = vpack.c.b16 %v3839, %v3838
    %v3873 = vpack.c.b16 %v3841, %v3840
    %3906 = vmatprep.subr.bf16.mxu0 0
    %3907 = vmatpush1.bf16.msra.mxu0 %v3842
    %3908 = vmatprep.subr.bf16.mxu0 0
    %3909 = vmatpush1.bf16.msra.mxu0 %v3843
    %3910 = vmatprep.subr.bf16.mxu0 0
    %3911 = vmatpush1.bf16.msra.mxu0 %v3844
    %3912 = vmatprep.subr.bf16.mxu0 0
    %3913 = vmatpush1.bf16.msra.mxu0 %v3845
    %3914 = vmatprep.subr.bf16.mxu0 0
    %3915 = vmatpush1.bf16.msra.mxu0 %v3846
    %3916 = vmatprep.subr.bf16.mxu0 0
    %3917 = vmatpush1.bf16.msra.mxu0 %v3847
    %3918 = vmatprep.subr.bf16.mxu0 0
    %3919 = vmatpush1.bf16.msra.mxu0 %v3848
    %3920 = vmatprep.subr.bf16.mxu0 0
    %3921 = vmatpush1.bf16.msra.mxu0 %v3849
    %3922 = vmatprep.subr.bf16.mxu0 0
    %3923 = vmatpush1.bf16.msra.mxu0 %v3850
    %3924 = vmatprep.subr.bf16.mxu0 0
    %3925 = vmatpush1.bf16.msra.mxu0 %v3851
    %3926 = vmatprep.subr.bf16.mxu0 0
    %3927 = vmatpush1.bf16.msra.mxu0 %v3852
    %3928 = vmatprep.subr.bf16.mxu0 0
    %3929 = vmatpush1.bf16.msra.mxu0 %v3853
    %3930 = vmatprep.subr.bf16.mxu0 0
    %3931 = vmatpush1.bf16.msra.mxu0 %v3854
    %3932 = vmatprep.subr.bf16.mxu0 0
    %3933 = vmatpush1.bf16.msra.mxu0 %v3855
    %3934 = vmatprep.subr.bf16.mxu0 0
    %3935 = vmatpush1.bf16.msra.mxu0 %v3856
    %3936 = vmatprep.subr.bf16.mxu0 0
    %3937 = vmatpush1.bf16.msra.mxu0 %v3857
    %3938 = vmatprep.mubr.bf16.mxu0 %v3640
    %3939 = vmatmul.mubr.bf16.gmra.mrb[0].mxu0 %v3639
    %v3940 = vpop.f32.mrb[0].mxu0
    %v3941 = vadd.f32 %v3712, %v3940
    %v3942 = vpop.f32.mrb[0].mxu0
    %v3943 = vpop.f32.mrb[0].mxu0
    %v3944 = vpop.f32.mrb[0].mxu0
    %3945 = vdwg.mxu0
    %3946 = vmatprep.subr.bf16.mxu0 0
    %3947 = vmatpush1.bf16.msra.mxu0 %v3858
    %3948 = vmatprep.subr.bf16.mxu0 0
    %3949 = vmatpush1.bf16.msra.mxu0 %v3859
    %3950 = vmatprep.subr.bf16.mxu0 0
    %3951 = vmatpush1.bf16.msra.mxu0 %v3860
    %3952 = vmatprep.subr.bf16.mxu0 0
    %3953 = vmatpush1.bf16.msra.mxu0 %v3861
    %3954 = vmatprep.subr.bf16.mxu0 0
    %3955 = vmatpush1.bf16.msra.mxu0 %v3862
    %3956 = vmatprep.subr.bf16.mxu0 0
    %3957 = vmatpush1.bf16.msra.mxu0 %v3863
    %3958 = vmatprep.subr.bf16.mxu0 0
    %3959 = vmatpush1.bf16.msra.mxu0 %v3864
    %3960 = vmatprep.subr.bf16.mxu0 0
    %3961 = vmatpush1.bf16.msra.mxu0 %v3865
    %3962 = vmatprep.subr.bf16.mxu0 0
    %3963 = vmatpush1.bf16.msra.mxu0 %v3866
    %3964 = vmatprep.subr.bf16.mxu0 0
    %3965 = vmatpush1.bf16.msra.mxu0 %v3867
    %3966 = vmatprep.subr.bf16.mxu0 0
    %3967 = vmatpush1.bf16.msra.mxu0 %v3868
    %3968 = vmatprep.subr.bf16.mxu0 0
    %3969 = vmatpush1.bf16.msra.mxu0 %v3869
    %3970 = vmatprep.subr.bf16.mxu0 0
    %3971 = vmatpush1.bf16.msra.mxu0 %v3870
    %3972 = vmatprep.subr.bf16.mxu0 0
    %3973 = vmatpush1.bf16.msra.mxu0 %v3871
    %3974 = vmatprep.subr.bf16.mxu0 0
    %3975 = vmatpush1.bf16.msra.mxu0 %v3872
    %3976 = vmatprep.subr.bf16.mxu0 0
    %3977 = vmatpush1.bf16.msra.mxu0 %v3873
    %3978 = vmatprep.mubr.bf16.mxu0 %v3642
    %3979 = vmatmul.mubr.bf16.gmra.mrb[0].mxu0 %v3641
    %v3980 = vpop.f32.mrb[0].mxu0
    %v3981 = vadd.f32 %v3941, %v3980
    %v3982 = vpop.f32.mrb[0].mxu0
    %v3983 = vpop.f32.mrb[0].mxu0
    %v3984 = vpop.f32.mrb[0].mxu0
    %3985 = vdwg.mxu0
    %v3986 = vmax.f32 %v3981, 0.0
    %v3987 = vld [vmem:[%s67] sm:$0x1]
    %v3989 = vlaneseq
    %v3990 = vshrl.u32 %v3989, 7
    %v3991 = vsub.s32 0, %v3990
    %v3992 = vrot.slane %v3987, %v3991
    %v3994 = vmul.f32 %v3986, %v3992
    %v3995 = vsel %vm376, %v3994, 0.0
    %3996 = vadd.xlane.f32.xlu0 %v3995
    %v3997 = vpop.xlane.xlu0 %3996
    %v3998 = vld [vmem:[#allocation6] sm:$0x1]
    %v4000 = vlaneseq
    %v4001 = vshrl.u32 %v4000, 7
    %v4002 = vsub.s32 0, %v4001
    %v4003 = vrot.slane %v3998, %v4002
    %v4005 = vadd.f32 %v3997, %v4003
    %v4006 = vxor.u32 %v4005, 2147483648
    %v4007 = vmul.f32 %v4006, 1.442695
    %v4008 = vpow.pop %v4007
    %v4009 = vadd.f32 %v4008, 1.0
    %v4010 = vrcp.pop %v4009
    %v4011 = vmul.f32 1.0, %v4010
    %v4012 = vadd.f32 %v2650, %v2676
    %v4013 = vadd.f32 %v4012, %v4011
    %v4014 = vrcp.pop 3.0
    %v4015 = vmul.f32 %v4013, %v4014
    %vm4016 = vcmp.gt.f32.partialorder %v370, 0.5
    %v4017 = vsel %vm4016, 1, 0
    %4018 = vset.pattern.permute.xlu0 0
    %4019 = vperm.xlu0 %4018, %v4017
    %v4020 = vpop.permute.xlu0 %4019
    %vm4021 = vcmp.eq.s32.totalorder %v4020, 1
    %v4023 = vcombine.high %v368, %v368
    %v4025 = vsel %vm4021, %v368, %v366
    %v4026 = vsel %vm4021, %v4023, %v486
    %vm4027 = vcmp.gt.f32.partialorder %v371, 0.5
    %v4028 = vsel %vm4027, 1, 0
    %4029 = vset.pattern.permute.xlu0 0
    %4030 = vperm.xlu0 %4029, %v4028
    %v4031 = vpop.permute.xlu0 %4030
    %vm4032 = vcmp.eq.s32.totalorder %v4031, 1
    %v4034 = vcombine.high %v369, %v369
    %v4036 = vsel %vm4032, %v369, %v367
    %v4037 = vsel %vm4032, %v4034, %v912
    %v4038 = vand.u32 2147483647, %v4025
    %v4039 = vand.u32 2147483647, %v4026
    %v4040 = vmul.f32 %v4025, %v4025
    %v4041 = vmul.f32 %v4026, %v4026
    %v4042 = vsel %vm376, %v4040, 0.0
    %v4043 = vsel %vm376, %v4041, 0.0
    %v4044 = vadd.f32 %v4042, %v4043
    %4045 = vadd.xlane.f32.xlu0 %v4044
    %v4046 = vpop.xlane.xlu0 %4045
    %v4047 = vrsqrt.pop %v4046
    %v4048 = vmul.f32 %v4046, %v4047
    %vm4049 = vcmp.eq.f32.partialorder %v4046, inf
    %v4050 = vsel %vm4049, %v4046, %v4048
    %vm4051 = vcmp.eq.f32.partialorder %v4046, 0.0
    %v4052 = vand.u32 %v4046, 2147483648
    %v4053 = vsel %vm4051, %v4052, %v4050
    %v4054 = vsub.f32 %v4053, 16.0
    %v4055 = vand.u32 2147483647, %v4054
    %v4056 = vrcp.pop 16.0
    %v4057 = vmul.f32 %v4055, %v4056
    %v4058 = vmax.f32 %v4057, 0.0
    %v4059 = vmin.f32 %v4058, 10.0
    %v4060 = vsub.f32 0.0, %v4059
    %v4061 = vmul.f32 %v4060, 1.442695
    %v4062 = vpow.pop %v4061
    %v4063 = vmax.f32 %v4062, 1e-06
    %v4064 = vmin.f32 %v4063, 1.0
    %v4065 = vadd.f32 %v4038, 1e-08
    %v4066 = vadd.f32 %v4039, 1e-08
    %v4067 = vsel %vm376, %v4065, -inf
    %v4068 = vsel %vm376, %v4066, -inf
    %v4069 = vmax.f32 %v4067, %v4068
    %4070 = vmax.xlane.f32.xlu0 %v4069
    %v4071 = vpop.xlane.xlu0 %4070
    %v4072 = vsub.f32 %v4065, %v4071
    %v4073 = vsub.f32 %v4066, %v4071
    %v4074 = vmul.f32 %v4072, 1.442695
    %v4075 = vpow.pop %v4074
    %v4076 = vmul.f32 %v4073, 1.442695
    %v4077 = vpow.pop %v4076
    %v4078 = vsel %vm376, %v4075, 0.0
    %v4079 = vsel %vm376, %v4077, 0.0
    %v4080 = vadd.f32 %v4078, %v4079
    %4081 = vadd.xlane.f32.xlu0 %v4080
    %v4082 = vpop.xlane.xlu0 %4081
    %v4083 = vrcp.pop %v4082
    %v4084 = vmul.f32 %v4075, %v4083
    %v4085 = vmul.f32 %v4077, %v4083
    %v4086 = vadd.f32 %v4084, 1e-08
    %v4087 = vadd.f32 %v4085, 1e-08
    %v4088 = vlog2.pop %v4086
    %v4089 = vmul.f32 %v4088, 0.6931472
    %v4090 = vlog2.pop %v4087
    %v4091 = vmul.f32 %v4090, 0.6931472
    %v4092 = vmul.f32 %v4084, %v4089
    %v4093 = vmul.f32 %v4085, %v4091
    %v4094 = vsel %vm376, %v4092, 0.0
    %v4095 = vsel %vm376, %v4093, 0.0
    %v4096 = vadd.f32 %v4094, %v4095
    %4097 = vadd.xlane.f32.xlu0 %v4096
    %v4098 = vpop.xlane.xlu0 %4097
    %v4099 = vsub.f32 0.0, %v4098
    %v4100 = vrcp.pop 5.5451775
    %v4101 = vmul.f32 %v4099, %v4100
    %v4102 = vmax.f32 %v4101, 1e-06
    %v4103 = vmin.f32 %v4102, 1.0
    %vm4104 = vcmp.lt.f32.partialorder %v4038, 0.01
    %vm4105 = vcmp.lt.f32.partialorder %v4039, 0.01
    %v4106 = vsel %vm4104, 1, 0
    %v4107 = vsel %vm4105, 1, 0
    %v4108 = vcvt.s32.f32 %v4106
    %v4109 = vcvt.s32.f32 %v4107
    %v4110 = vsel %vm376, %v4108, 0.0
    %v4111 = vsel %vm376, %v4109, 0.0
    %v4112 = vadd.f32 %v4110, %v4111
    %4113 = vadd.xlane.f32.xlu0 %v4112
    %v4114 = vpop.xlane.xlu0 %4113
    %v4115 = vmul.f32 %v4114, %v2025
    %v4116 = vsub.f32 %v4115, 0.1
    %v4117 = vand.u32 2147483647, %v4116
    %v4118 = vsub.f32 0.0, %v4117
    %v4119 = vrcp.pop 0.10000001
    %v4120 = vmul.f32 %v4118, %v4119
    %v4121 = vmul.f32 %v4120, 1.442695
    %v4122 = vpow.pop %v4121
    %v4123 = vmax.f32 %v4122, 1e-06
    %v4124 = vmin.f32 %v4123, 1.0
    %v4125 = vsel %vm376, %v4025, 0.0
    %v4126 = vsel %vm376, %v4026, 0.0
    %v4127 = vadd.f32 %v4125, %v4126
    %4128 = vadd.xlane.f32.xlu0 %v4127
    %v4129 = vpop.xlane.xlu0 %4128
    %v4130 = vmul.f32 %v4129, %v2025
    %v4131 = vsub.f32 %v4025, %v4130
    %v4132 = vsub.f32 %v4026, %v4130
    %v4133 = vmul.f32 %v4131, %v4131
    %v4134 = vmul.f32 %v4132, %v4132
    %v4135 = vsel %vm376, %v4133, 0.0
    %v4136 = vsel %vm376, %v4134, 0.0
    %v4137 = vadd.f32 %v4135, %v4136
    %4138 = vadd.xlane.f32.xlu0 %v4137
    %v4139 = vpop.xlane.xlu0 %4138
    %v4140 = vmul.f32 %v4139, %v2046
    %v4141 = vsub.f32 %v4140, 0.1
    %v4142 = vxor.u32 %v4141, 2147483648
    %v4143 = vmul.f32 %v4142, 1.442695
    %v4144 = vpow.pop %v4143
    %v4145 = vadd.f32 %v4144, 1.0
    %v4146 = vrcp.pop %v4145
    %v4147 = vmul.f32 1.0, %v4146
    %v4148 = vmax.f32 %v4147, 1e-06
    %v4149 = vmin.f32 %v4148, 1.0
    %v4150 = vsel %vm376, %v4038, -inf
    %v4151 = vsel %vm376, %v4039, -inf
    %v4152 = vmax.f32 %v4150, %v4151
    %4153 = vmax.xlane.f32.xlu0 %v4152
    %v4154 = vpop.xlane.xlu0 %4153
    %v4155 = vsel %vm376, %v4038, 0.0
    %v4156 = vsel %vm376, %v4039, 0.0
    %v4157 = vadd.f32 %v4155, %v4156
    %4158 = vadd.xlane.f32.xlu0 %v4157
    %v4159 = vpop.xlane.xlu0 %4158
    %v4160 = vmul.f32 %v4159, %v2025
    %v4161 = vadd.f32 %v4160, 1e-08
    %v4162 = vrcp.pop %v4161
    %v4163 = vmul.f32 %v4154, %v4162
    %v4164 = vsub.f32 5.0, %v4163
    %v4165 = vxor.u32 %v4164, 2147483648
    %v4166 = vmul.f32 %v4165, 1.442695
    %v4167 = vpow.pop %v4166
    %v4168 = vadd.f32 %v4167, 1.0
    %v4169 = vrcp.pop %v4168
    %v4170 = vmul.f32 1.0, %v4169
    %v4171 = vmax.f32 %v4170, 1e-06
    %v4172 = vmin.f32 %v4171, 1.0
    %v4173 = vand.u32 2147483647, %v4036
    %v4174 = vand.u32 2147483647, %v4037
    %v4175 = vmul.f32 %v4036, %v4036
    %v4176 = vmul.f32 %v4037, %v4037
    %v4177 = vsel %vm376, %v4175, 0.0
    %v4178 = vsel %vm376, %v4176, 0.0
    %v4179 = vadd.f32 %v4177, %v4178
    %4180 = vadd.xlane.f32.xlu0 %v4179
    %v4181 = vpop.xlane.xlu0 %4180
    %v4182 = vrsqrt.pop %v4181
    %v4183 = vmul.f32 %v4181, %v4182
    %vm4184 = vcmp.eq.f32.partialorder %v4181, inf
    %v4185 = vsel %vm4184, %v4181, %v4183
    %vm4186 = vcmp.eq.f32.partialorder %v4181, 0.0
    %v4187 = vand.u32 %v4181, 2147483648
    %v4188 = vsel %vm4186, %v4187, %v4185
    %v4189 = vsub.f32 %v4188, 16.0
    %v4190 = vand.u32 2147483647, %v4189
    %v4191 = vmul.f32 %v4190, %v4056
    %v4192 = vmax.f32 %v4191, 0.0
    %v4193 = vmin.f32 %v4192, 10.0
    %v4194 = vsub.f32 0.0, %v4193
    %v4195 = vmul.f32 %v4194, 1.442695
    %v4196 = vpow.pop %v4195
    %v4197 = vmax.f32 %v4196, 1e-06
    %v4198 = vmin.f32 %v4197, 1.0
    %v4199 = vadd.f32 %v4173, 1e-08
    %v4200 = vadd.f32 %v4174, 1e-08
    %v4201 = vsel %vm376, %v4199, -inf
    %v4202 = vsel %vm376, %v4200, -inf
    %v4203 = vmax.f32 %v4201, %v4202
    %4204 = vmax.xlane.f32.xlu0 %v4203
    %v4205 = vpop.xlane.xlu0 %4204
    %v4206 = vsub.f32 %v4199, %v4205
    %v4207 = vsub.f32 %v4200, %v4205
    %v4208 = vmul.f32 %v4206, 1.442695
    %v4209 = vpow.pop %v4208
    %v4210 = vmul.f32 %v4207, 1.442695
    %v4211 = vpow.pop %v4210
    %v4212 = vsel %vm376, %v4209, 0.0
    %v4213 = vsel %vm376, %v4211, 0.0
    %v4214 = vadd.f32 %v4212, %v4213
    %4215 = vadd.xlane.f32.xlu0 %v4214
    %v4216 = vpop.xlane.xlu0 %4215
    %v4217 = vrcp.pop %v4216
    %v4218 = vmul.f32 %v4209, %v4217
    %v4219 = vmul.f32 %v4211, %v4217
    %v4220 = vadd.f32 %v4218, 1e-08
    %v4221 = vadd.f32 %v4219, 1e-08
    %v4222 = vlog2.pop %v4220
    %v4223 = vmul.f32 %v4222, 0.6931472
    %v4224 = vlog2.pop %v4221
    %v4225 = vmul.f32 %v4224, 0.6931472
    %v4226 = vmul.f32 %v4218, %v4223
    %v4227 = vmul.f32 %v4219, %v4225
    %v4228 = vsel %vm376, %v4226, 0.0
    %v4229 = vsel %vm376, %v4227, 0.0
    %v4230 = vadd.f32 %v4228, %v4229
    %4231 = vadd.xlane.f32.xlu0 %v4230
    %v4232 = vpop.xlane.xlu0 %4231
    %v4233 = vsub.f32 0.0, %v4232
    %v4234 = vmul.f32 %v4233, %v4100
    %v4235 = vmax.f32 %v4234, 1e-06
    %v4236 = vmin.f32 %v4235, 1.0
    %vm4237 = vcmp.lt.f32.partialorder %v4173, 0.01
    %vm4238 = vcmp.lt.f32.partialorder %v4174, 0.01
    %v4239 = vsel %vm4237, 1, 0
    %v4240 = vsel %vm4238, 1, 0
    %v4241 = vcvt.s32.f32 %v4239
    %v4242 = vcvt.s32.f32 %v4240
    %v4243 = vsel %vm376, %v4241, 0.0
    %v4244 = vsel %vm376, %v4242, 0.0
    %v4245 = vadd.f32 %v4243, %v4244
    %4246 = vadd.xlane.f32.xlu0 %v4245
    %v4247 = vpop.xlane.xlu0 %4246
    %v4248 = vmul.f32 %v4247, %v2025
    %v4249 = vsub.f32 %v4248, 0.1
    %v4250 = vand.u32 2147483647, %v4249
    %v4251 = vsub.f32 0.0, %v4250
    %v4252 = vmul.f32 %v4251, %v4119
    %v4253 = vmul.f32 %v4252, 1.442695
    %v4254 = vpow.pop %v4253
    %v4255 = vmax.f32 %v4254, 1e-06
    %v4256 = vmin.f32 %v4255, 1.0
    %v4257 = vsel %vm376, %v4036, 0.0
    %v4258 = vsel %vm376, %v4037, 0.0
    %v4259 = vadd.f32 %v4257, %v4258
    %4260 = vadd.xlane.f32.xlu0 %v4259
    %v4261 = vpop.xlane.xlu0 %4260
    %v4262 = vmul.f32 %v4261, %v2025
    %v4263 = vsub.f32 %v4036, %v4262
    %v4264 = vsub.f32 %v4037, %v4262
    %v4265 = vmul.f32 %v4263, %v4263
    %v4266 = vmul.f32 %v4264, %v4264
    %v4267 = vsel %vm376, %v4265, 0.0
    %v4268 = vsel %vm376, %v4266, 0.0
    %v4269 = vadd.f32 %v4267, %v4268
    %4270 = vadd.xlane.f32.xlu0 %v4269
    %v4271 = vpop.xlane.xlu0 %4270
    %v4272 = vmul.f32 %v4271, %v2046
    %v4273 = vsub.f32 %v4272, 0.1
    %v4274 = vxor.u32 %v4273, 2147483648
    %v4275 = vmul.f32 %v4274, 1.442695
    %v4276 = vpow.pop %v4275
    %v4277 = vadd.f32 %v4276, 1.0
    %v4278 = vrcp.pop %v4277
    %v4279 = vmul.f32 1.0, %v4278
    %v4280 = vmax.f32 %v4279, 1e-06
    %v4281 = vmin.f32 %v4280, 1.0
    %v4282 = vsel %vm376, %v4173, -inf
    %v4283 = vsel %vm376, %v4174, -inf
    %v4284 = vmax.f32 %v4282, %v4283
    %4285 = vmax.xlane.f32.xlu0 %v4284
    %v4286 = vpop.xlane.xlu0 %4285
    %v4287 = vsel %vm376, %v4173, 0.0
    %v4288 = vsel %vm376, %v4174, 0.0
    %v4289 = vadd.f32 %v4287, %v4288
    %4290 = vadd.xlane.f32.xlu0 %v4289
    %v4291 = vpop.xlane.xlu0 %4290
    %v4292 = vmul.f32 %v4291, %v2025
    %v4293 = vadd.f32 %v4292, 1e-08
    %v4294 = vrcp.pop %v4293
    %v4295 = vmul.f32 %v4286, %v4294
    %v4296 = vsub.f32 5.0, %v4295
    %v4297 = vxor.u32 %v4296, 2147483648
    %v4298 = vmul.f32 %v4297, 1.442695
    %v4299 = vpow.pop %v4298
    %v4300 = vadd.f32 %v4299, 1.0
    %v4301 = vrcp.pop %v4300
    %v4302 = vmul.f32 1.0, %v4301
    %v4303 = vmax.f32 %v4302, 1e-06
    %v4304 = vmin.f32 %v4303, 1.0
    %v4305 = vmul.f32 %v448, %v472
    %v4307 = vcombine.high %v4305, %v4305
    %v4309 = vsel %vm376, %v4305, 0.0
    %v4310 = vsel %vm376, %v4307, 0.0
    %v4311 = vadd.f32 %v4309, %v4310
    %4312 = vadd.xlane.f32.xlu0 %v4311
    %v4313 = vpop.xlane.xlu0 %4312
    %v4314 = vadd.f32 %v4313, 1.0
    %v4315 = vmul.f32 %v4314, 0.5
    %v4316 = vsub.f32 %v366, %v368
    %v4317 = vmul.f32 %v4316, %v4316
    %v4319 = vcombine.high %v4317, %v4317
    %v4321 = vsel %vm376, %v4317, 0.0
    %v4322 = vsel %vm376, %v4319, 0.0
    %v4323 = vadd.f32 %v4321, %v4322
    %4324 = vadd.xlane.f32.xlu0 %v4323
    %v4325 = vpop.xlane.xlu0 %4324
    %v4326 = vrsqrt.pop %v4325
    %v4327 = vmul.f32 %v4325, %v4326
    %vm4328 = vcmp.eq.f32.partialorder %v4325, inf
    %v4329 = vsel %vm4328, %v4325, %v4327
    %vm4330 = vcmp.eq.f32.partialorder %v4325, 0.0
    %v4331 = vand.u32 %v4325, 2147483648
    %v4332 = vsel %vm4330, %v4331, %v4329
    %v4333 = vadd.f32 %v388, %v420
    %v4334 = vadd.f32 %v4333, 1e-08
    %v4335 = vrcp.pop %v4334
    %v4336 = vmul.f32 %v4332, %v4335
    %v4337 = vsub.f32 1.0, %v4336
    %v4338 = vld [vmem:[#allocation17] sm:$0xff]
    %v4339 = vld [vmem:[#allocation17 + $0x8] sm:$0xff]
    %v4340 = vld [vmem:[#allocation17 + $0x10] sm:$0xff]
    %v4341 = vld [vmem:[#allocation17 + $0x18] sm:$0xff]
    %v4342 = vld [vmem:[#allocation17 + $0x20] sm:$0xff]
    %v4343 = vld [vmem:[#allocation17 + $0x28] sm:$0xff]
    %v4344 = vld [vmem:[#allocation17 + $0x30] sm:$0xff]
    %v4345 = vld [vmem:[#allocation17 + $0x38] sm:$0xff]
    %v4346 = vld [vmem:[#allocation17 + $0x40] sm:$0xff]
    %v4347 = vld [vmem:[#allocation17 + $0x48] sm:$0xff]
    %v4348 = vld [vmem:[#allocation17 + $0x50] sm:$0xff]
    %v4349 = vld [vmem:[#allocation17 + $0x58] sm:$0xff]
    %v4350 = vld [vmem:[#allocation17 + $0x60] sm:$0xff]
    %v4351 = vld [vmem:[#allocation17 + $0x68] sm:$0xff]
    %v4352 = vld [vmem:[#allocation17 + $0x70] sm:$0xff]
    %v4353 = vld [vmem:[#allocation17 + $0x78] sm:$0xff]
    %v4354 = vld [vmem:[#allocation17 + $0x80] sm:$0xff]
    %v4355 = vld [vmem:[#allocation17 + $0x88] sm:$0xff]
    %v4356 = vld [vmem:[#allocation17 + $0x90] sm:$0xff]
    %v4357 = vld [vmem:[#allocation17 + $0x98] sm:$0xff]
    %v4358 = vld [vmem:[#allocation17 + $0xa0] sm:$0xff]
    %v4359 = vld [vmem:[#allocation17 + $0xa8] sm:$0xff]
    %v4360 = vld [vmem:[#allocation17 + $0xb0] sm:$0xff]
    %v4361 = vld [vmem:[#allocation17 + $0xb8] sm:$0xff]
    %v4362 = vld [vmem:[#allocation17 + $0xc0] sm:$0xff]
    %v4363 = vld [vmem:[#allocation17 + $0xc8] sm:$0xff]
    %v4364 = vld [vmem:[#allocation17 + $0xd0] sm:$0xff]
    %v4365 = vld [vmem:[#allocation17 + $0xd8] sm:$0xff]
    %v4366 = vld [vmem:[#allocation17 + $0xe0] sm:$0xff]
    %v4367 = vld [vmem:[#allocation17 + $0xe8] sm:$0xff]
    %v4368 = vld [vmem:[#allocation17 + $0xf0] sm:$0xff]
    %v4369 = vld [vmem:[#allocation17 + $0xf8] sm:$0xff]
    %v4370 = vld [vmem:[#allocation17 + $0x100] sm:$0xff]
    %v4371 = vld [vmem:[#allocation17 + $0x108] sm:$0xff]
    %v4372 = vld [vmem:[#allocation17 + $0x110] sm:$0xff]
    %v4373 = vld [vmem:[#allocation17 + $0x118] sm:$0xff]
    %v4374 = vld [vmem:[#allocation17 + $0x120] sm:$0xff]
    %v4375 = vld [vmem:[#allocation17 + $0x128] sm:$0xff]
    %v4376 = vld [vmem:[#allocation17 + $0x130] sm:$0xff]
    %v4377 = vld [vmem:[#allocation17 + $0x138] sm:$0xff]
    %v4378 = vld [vmem:[#allocation17 + $0x140] sm:$0xff]
    %v4379 = vld [vmem:[#allocation17 + $0x148] sm:$0xff]
    %v4380 = vld [vmem:[#allocation17 + $0x150] sm:$0xff]
    %v4381 = vld [vmem:[#allocation17 + $0x158] sm:$0xff]
    %v4382 = vld [vmem:[#allocation17 + $0x160] sm:$0xff]
    %v4383 = vld [vmem:[#allocation17 + $0x168] sm:$0xff]
    %v4384 = vld [vmem:[#allocation17 + $0x170] sm:$0xff]
    %v4385 = vld [vmem:[#allocation17 + $0x178] sm:$0xff]
    %v4386 = vld [vmem:[#allocation17 + $0x180] sm:$0xff]
    %v4387 = vld [vmem:[#allocation17 + $0x188] sm:$0xff]
    %v4388 = vld [vmem:[#allocation17 + $0x190] sm:$0xff]
    %v4389 = vld [vmem:[#allocation17 + $0x198] sm:$0xff]
    %v4390 = vld [vmem:[#allocation17 + $0x1a0] sm:$0xff]
    %v4391 = vld [vmem:[#allocation17 + $0x1a8] sm:$0xff]
    %v4392 = vld [vmem:[#allocation17 + $0x1b0] sm:$0xff]
    %v4393 = vld [vmem:[#allocation17 + $0x1b8] sm:$0xff]
    %v4394 = vld [vmem:[#allocation17 + $0x1c0] sm:$0xff]
    %v4395 = vld [vmem:[#allocation17 + $0x1c8] sm:$0xff]
    %v4396 = vld [vmem:[#allocation17 + $0x1d0] sm:$0xff]
    %v4397 = vld [vmem:[#allocation17 + $0x1d8] sm:$0xff]
    %v4398 = vld [vmem:[#allocation17 + $0x1e0] sm:$0xff]
    %v4399 = vld [vmem:[#allocation17 + $0x1e8] sm:$0xff]
    %v4400 = vld [vmem:[#allocation17 + $0x1f0] sm:$0xff]
    %v4401 = vld [vmem:[#allocation17 + $0x1f8] sm:$0xff]
    %v4402 = vpack.c.bf16 %v368, %v368
    %v4403 = vpack.c.bf16 %v4023, %v4023
    %v4404 = vld [vmem:[#allocation19] sm:$0xff]
    %v4405 = vld [vmem:[#allocation19 + $0x8] sm:$0xff]
    %v4406 = vld [vmem:[#allocation19 + $0x10] sm:$0xff]
    %v4407 = vld [vmem:[#allocation19 + $0x18] sm:$0xff]
    %v4408 = vld [vmem:[#allocation19 + $0x20] sm:$0xff]
    %v4409 = vld [vmem:[#allocation19 + $0x28] sm:$0xff]
    %v4410 = vld [vmem:[#allocation19 + $0x30] sm:$0xff]
    %v4411 = vld [vmem:[#allocation19 + $0x38] sm:$0xff]
    %v4412 = vld [vmem:[#allocation19 + $0x40] sm:$0xff]
    %v4413 = vld [vmem:[#allocation19 + $0x48] sm:$0xff]
    %v4414 = vld [vmem:[#allocation19 + $0x50] sm:$0xff]
    %v4415 = vld [vmem:[#allocation19 + $0x58] sm:$0xff]
    %v4416 = vld [vmem:[#allocation19 + $0x60] sm:$0xff]
    %v4417 = vld [vmem:[#allocation19 + $0x68] sm:$0xff]
    %v4418 = vld [vmem:[#allocation19 + $0x70] sm:$0xff]
    %v4419 = vld [vmem:[#allocation19 + $0x78] sm:$0xff]
    %v4420 = vld [vmem:[#allocation19 + $0x80] sm:$0xff]
    %v4421 = vld [vmem:[#allocation19 + $0x88] sm:$0xff]
    %v4422 = vld [vmem:[#allocation19 + $0x90] sm:$0xff]
    %v4423 = vld [vmem:[#allocation19 + $0x98] sm:$0xff]
    %v4424 = vld [vmem:[#allocation19 + $0xa0] sm:$0xff]
    %v4425 = vld [vmem:[#allocation19 + $0xa8] sm:$0xff]
    %v4426 = vld [vmem:[#allocation19 + $0xb0] sm:$0xff]
    %v4427 = vld [vmem:[#allocation19 + $0xb8] sm:$0xff]
    %v4428 = vld [vmem:[#allocation19 + $0xc0] sm:$0xff]
    %v4429 = vld [vmem:[#allocation19 + $0xc8] sm:$0xff]
    %v4430 = vld [vmem:[#allocation19 + $0xd0] sm:$0xff]
    %v4431 = vld [vmem:[#allocation19 + $0xd8] sm:$0xff]
    %v4432 = vld [vmem:[#allocation19 + $0xe0] sm:$0xff]
    %v4433 = vld [vmem:[#allocation19 + $0xe8] sm:$0xff]
    %v4434 = vld [vmem:[#allocation19 + $0xf0] sm:$0xff]
    %v4435 = vld [vmem:[#allocation19 + $0xf8] sm:$0xff]
    %v4436 = vld [vmem:[#allocation19 + $0x100] sm:$0xff]
    %v4437 = vld [vmem:[#allocation19 + $0x108] sm:$0xff]
    %v4438 = vld [vmem:[#allocation19 + $0x110] sm:$0xff]
    %v4439 = vld [vmem:[#allocation19 + $0x118] sm:$0xff]
    %v4440 = vld [vmem:[#allocation19 + $0x120] sm:$0xff]
    %v4441 = vld [vmem:[#allocation19 + $0x128] sm:$0xff]
    %v4442 = vld [vmem:[#allocation19 + $0x130] sm:$0xff]
    %v4443 = vld [vmem:[#allocation19 + $0x138] sm:$0xff]
    %v4444 = vld [vmem:[#allocation19 + $0x140] sm:$0xff]
    %v4445 = vld [vmem:[#allocation19 + $0x148] sm:$0xff]
    %v4446 = vld [vmem:[#allocation19 + $0x150] sm:$0xff]
    %v4447 = vld [vmem:[#allocation19 + $0x158] sm:$0xff]
    %v4448 = vld [vmem:[#allocation19 + $0x160] sm:$0xff]
    %v4449 = vld [vmem:[#allocation19 + $0x168] sm:$0xff]
    %v4450 = vld [vmem:[#allocation19 + $0x170] sm:$0xff]
    %v4451 = vld [vmem:[#allocation19 + $0x178] sm:$0xff]
    %v4452 = vld [vmem:[#allocation19 + $0x180] sm:$0xff]
    %v4453 = vld [vmem:[#allocation19 + $0x188] sm:$0xff]
    %v4454 = vld [vmem:[#allocation19 + $0x190] sm:$0xff]
    %v4455 = vld [vmem:[#allocation19 + $0x198] sm:$0xff]
    %v4456 = vld [vmem:[#allocation19 + $0x1a0] sm:$0xff]
    %v4457 = vld [vmem:[#allocation19 + $0x1a8] sm:$0xff]
    %v4458 = vld [vmem:[#allocation19 + $0x1b0] sm:$0xff]
    %v4459 = vld [vmem:[#allocation19 + $0x1b8] sm:$0xff]
    %v4460 = vld [vmem:[#allocation19 + $0x1c0] sm:$0xff]
    %v4461 = vld [vmem:[#allocation19 + $0x1c8] sm:$0xff]
    %v4462 = vld [vmem:[#allocation19 + $0x1d0] sm:$0xff]
    %v4463 = vld [vmem:[#allocation19 + $0x1d8] sm:$0xff]
    %v4464 = vld [vmem:[#allocation19 + $0x1e0] sm:$0xff]
    %v4465 = vld [vmem:[#allocation19 + $0x1e8] sm:$0xff]
    %v4466 = vld [vmem:[#allocation19 + $0x1f0] sm:$0xff]
    %v4467 = vld [vmem:[#allocation19 + $0x1f8] sm:$0xff]
    %v4532 = vunpack.c.l.b16 %v4404
    %v4533 = vunpack.c.h.b16 %v4404
    %v4534 = vunpack.c.l.b16 %v4405
    %v4535 = vunpack.c.h.b16 %v4405
    %v4536 = vunpack.c.l.b16 %v4406
    %v4537 = vunpack.c.h.b16 %v4406
    %v4538 = vunpack.c.l.b16 %v4407
    %v4539 = vunpack.c.h.b16 %v4407
    %v4540 = vunpack.c.l.b16 %v4408
    %v4541 = vunpack.c.h.b16 %v4408
    %v4542 = vunpack.c.l.b16 %v4409
    %v4543 = vunpack.c.h.b16 %v4409
    %v4544 = vunpack.c.l.b16 %v4410
    %v4545 = vunpack.c.h.b16 %v4410
    %v4546 = vunpack.c.l.b16 %v4411
    %v4547 = vunpack.c.h.b16 %v4411
    %v4548 = vunpack.c.l.b16 %v4412
    %v4549 = vunpack.c.h.b16 %v4412
    %v4550 = vunpack.c.l.b16 %v4413
    %v4551 = vunpack.c.h.b16 %v4413
    %v4552 = vunpack.c.l.b16 %v4414
    %v4553 = vunpack.c.h.b16 %v4414
    %v4554 = vunpack.c.l.b16 %v4415
    %v4555 = vunpack.c.h.b16 %v4415
    %v4556 = vunpack.c.l.b16 %v4416
    %v4557 = vunpack.c.h.b16 %v4416
    %v4558 = vunpack.c.l.b16 %v4417
    %v4559 = vunpack.c.h.b16 %v4417
    %v4560 = vunpack.c.l.b16 %v4418
    %v4561 = vunpack.c.h.b16 %v4418
    %v4562 = vunpack.c.l.b16 %v4419
    %v4563 = vunpack.c.h.b16 %v4419
    %v4564 = vunpack.c.l.b16 %v4420
    %v4565 = vunpack.c.h.b16 %v4420
    %v4566 = vunpack.c.l.b16 %v4421
    %v4567 = vunpack.c.h.b16 %v4421
    %v4568 = vunpack.c.l.b16 %v4422
    %v4569 = vunpack.c.h.b16 %v4422
    %v4570 = vunpack.c.l.b16 %v4423
    %v4571 = vunpack.c.h.b16 %v4423
    %v4572 = vunpack.c.l.b16 %v4424
    %v4573 = vunpack.c.h.b16 %v4424
    %v4574 = vunpack.c.l.b16 %v4425
    %v4575 = vunpack.c.h.b16 %v4425
    %v4576 = vunpack.c.l.b16 %v4426
    %v4577 = vunpack.c.h.b16 %v4426
    %v4578 = vunpack.c.l.b16 %v4427
    %v4579 = vunpack.c.h.b16 %v4427
    %v4580 = vunpack.c.l.b16 %v4428
    %v4581 = vunpack.c.h.b16 %v4428
    %v4582 = vunpack.c.l.b16 %v4429
    %v4583 = vunpack.c.h.b16 %v4429
    %v4584 = vunpack.c.l.b16 %v4430
    %v4585 = vunpack.c.h.b16 %v4430
    %v4586 = vunpack.c.l.b16 %v4431
    %v4587 = vunpack.c.h.b16 %v4431
    %v4588 = vunpack.c.l.b16 %v4432
    %v4589 = vunpack.c.h.b16 %v4432
    %v4590 = vunpack.c.l.b16 %v4433
    %v4591 = vunpack.c.h.b16 %v4433
    %v4592 = vunpack.c.l.b16 %v4434
    %v4593 = vunpack.c.h.b16 %v4434
    %v4594 = vunpack.c.l.b16 %v4435
    %v4595 = vunpack.c.h.b16 %v4435
    %v4596 = vunpack.c.l.b16 %v4436
    %v4597 = vunpack.c.h.b16 %v4436
    %v4598 = vunpack.c.l.b16 %v4437
    %v4599 = vunpack.c.h.b16 %v4437
    %v4600 = vunpack.c.l.b16 %v4438
    %v4601 = vunpack.c.h.b16 %v4438
    %v4602 = vunpack.c.l.b16 %v4439
    %v4603 = vunpack.c.h.b16 %v4439
    %v4604 = vunpack.c.l.b16 %v4440
    %v4605 = vunpack.c.h.b16 %v4440
    %v4606 = vunpack.c.l.b16 %v4441
    %v4607 = vunpack.c.h.b16 %v4441
    %v4608 = vunpack.c.l.b16 %v4442
    %v4609 = vunpack.c.h.b16 %v4442
    %v4610 = vunpack.c.l.b16 %v4443
    %v4611 = vunpack.c.h.b16 %v4443
    %v4612 = vunpack.c.l.b16 %v4444
    %v4613 = vunpack.c.h.b16 %v4444
    %v4614 = vunpack.c.l.b16 %v4445
    %v4615 = vunpack.c.h.b16 %v4445
    %v4616 = vunpack.c.l.b16 %v4446
    %v4617 = vunpack.c.h.b16 %v4446
    %v4618 = vunpack.c.l.b16 %v4447
    %v4619 = vunpack.c.h.b16 %v4447
    %v4620 = vunpack.c.l.b16 %v4448
    %v4621 = vunpack.c.h.b16 %v4448
    %v4622 = vunpack.c.l.b16 %v4449
    %v4623 = vunpack.c.h.b16 %v4449
    %v4624 = vunpack.c.l.b16 %v4450
    %v4625 = vunpack.c.h.b16 %v4450
    %v4626 = vunpack.c.l.b16 %v4451
    %v4627 = vunpack.c.h.b16 %v4451
    %v4628 = vunpack.c.l.b16 %v4452
    %v4629 = vunpack.c.h.b16 %v4452
    %v4630 = vunpack.c.l.b16 %v4453
    %v4631 = vunpack.c.h.b16 %v4453
    %v4632 = vunpack.c.l.b16 %v4454
    %v4633 = vunpack.c.h.b16 %v4454
    %v4634 = vunpack.c.l.b16 %v4455
    %v4635 = vunpack.c.h.b16 %v4455
    %v4636 = vunpack.c.l.b16 %v4456
    %v4637 = vunpack.c.h.b16 %v4456
    %v4638 = vunpack.c.l.b16 %v4457
    %v4639 = vunpack.c.h.b16 %v4457
    %v4640 = vunpack.c.l.b16 %v4458
    %v4641 = vunpack.c.h.b16 %v4458
    %v4642 = vunpack.c.l.b16 %v4459
    %v4643 = vunpack.c.h.b16 %v4459
    %v4644 = vunpack.c.l.b16 %v4460
    %v4645 = vunpack.c.h.b16 %v4460
    %v4646 = vunpack.c.l.b16 %v4461
    %v4647 = vunpack.c.h.b16 %v4461
    %v4648 = vunpack.c.l.b16 %v4462
    %v4649 = vunpack.c.h.b16 %v4462
    %v4650 = vunpack.c.l.b16 %v4463
    %v4651 = vunpack.c.h.b16 %v4463
    %v4652 = vunpack.c.l.b16 %v4464
    %v4653 = vunpack.c.h.b16 %v4464
    %v4654 = vunpack.c.l.b16 %v4465
    %v4655 = vunpack.c.h.b16 %v4465
    %v4656 = vunpack.c.l.b16 %v4466
    %v4657 = vunpack.c.h.b16 %v4466
    %v4658 = vunpack.c.l.b16 %v4467
    %v4659 = vunpack.c.h.b16 %v4467
    %v4660 = vpack.c.b16 %v4536, %v4532
    %v4661 = vpack.c.b16 %v4537, %v4533
    %v4662 = vpack.c.b16 %v4538, %v4534
    %v4663 = vpack.c.b16 %v4539, %v4535
    %v4664 = vpack.c.b16 %v4544, %v4540
    %v4665 = vpack.c.b16 %v4545, %v4541
    %v4666 = vpack.c.b16 %v4546, %v4542
    %v4667 = vpack.c.b16 %v4547, %v4543
    %v4668 = vpack.c.b16 %v4552, %v4548
    %v4669 = vpack.c.b16 %v4553, %v4549
    %v4670 = vpack.c.b16 %v4554, %v4550
    %v4671 = vpack.c.b16 %v4555, %v4551
    %v4672 = vpack.c.b16 %v4560, %v4556
    %v4673 = vpack.c.b16 %v4561, %v4557
    %v4674 = vpack.c.b16 %v4562, %v4558
    %v4675 = vpack.c.b16 %v4563, %v4559
    %v4676 = vpack.c.b16 %v4568, %v4564
    %v4677 = vpack.c.b16 %v4569, %v4565
    %v4678 = vpack.c.b16 %v4570, %v4566
    %v4679 = vpack.c.b16 %v4571, %v4567
    %v4680 = vpack.c.b16 %v4576, %v4572
    %v4681 = vpack.c.b16 %v4577, %v4573
    %v4682 = vpack.c.b16 %v4578, %v4574
    %v4683 = vpack.c.b16 %v4579, %v4575
    %v4684 = vpack.c.b16 %v4584, %v4580
    %v4685 = vpack.c.b16 %v4585, %v4581
    %v4686 = vpack.c.b16 %v4586, %v4582
    %v4687 = vpack.c.b16 %v4587, %v4583
    %v4688 = vpack.c.b16 %v4592, %v4588
    %v4689 = vpack.c.b16 %v4593, %v4589
    %v4690 = vpack.c.b16 %v4594, %v4590
    %v4691 = vpack.c.b16 %v4595, %v4591
    %v4692 = vpack.c.b16 %v4600, %v4596
    %v4693 = vpack.c.b16 %v4601, %v4597
    %v4694 = vpack.c.b16 %v4602, %v4598
    %v4695 = vpack.c.b16 %v4603, %v4599
    %v4696 = vpack.c.b16 %v4608, %v4604
    %v4697 = vpack.c.b16 %v4609, %v4605
    %v4698 = vpack.c.b16 %v4610, %v4606
    %v4699 = vpack.c.b16 %v4611, %v4607
    %v4700 = vpack.c.b16 %v4616, %v4612
    %v4701 = vpack.c.b16 %v4617, %v4613
    %v4702 = vpack.c.b16 %v4618, %v4614
    %v4703 = vpack.c.b16 %v4619, %v4615
    %v4704 = vpack.c.b16 %v4624, %v4620
    %v4705 = vpack.c.b16 %v4625, %v4621
    %v4706 = vpack.c.b16 %v4626, %v4622
    %v4707 = vpack.c.b16 %v4627, %v4623
    %v4708 = vpack.c.b16 %v4632, %v4628
    %v4709 = vpack.c.b16 %v4633, %v4629
    %v4710 = vpack.c.b16 %v4634, %v4630
    %v4711 = vpack.c.b16 %v4635, %v4631
    %v4712 = vpack.c.b16 %v4640, %v4636
    %v4713 = vpack.c.b16 %v4641, %v4637
    %v4714 = vpack.c.b16 %v4642, %v4638
    %v4715 = vpack.c.b16 %v4643, %v4639
    %v4716 = vpack.c.b16 %v4648, %v4644
    %v4717 = vpack.c.b16 %v4649, %v4645
    %v4718 = vpack.c.b16 %v4650, %v4646
    %v4719 = vpack.c.b16 %v4651, %v4647
    %v4720 = vpack.c.b16 %v4656, %v4652
    %v4721 = vpack.c.b16 %v4657, %v4653
    %v4722 = vpack.c.b16 %v4658, %v4654
    %v4723 = vpack.c.b16 %v4659, %v4655
    %4788 = vmatprep.subr.bf16.mxu0 %v4661
    %4789 = vmatpush1.bf16.msra.mxu0 %v4660
    %4790 = vmatprep.subr.bf16.mxu0 %v4665
    %4791 = vmatpush1.bf16.msra.mxu0 %v4664
    %4792 = vmatprep.subr.bf16.mxu0 %v4669
    %4793 = vmatpush1.bf16.msra.mxu0 %v4668
    %4794 = vmatprep.subr.bf16.mxu0 %v4673
    %4795 = vmatpush1.bf16.msra.mxu0 %v4672
    %4796 = vmatprep.subr.bf16.mxu0 %v4677
    %4797 = vmatpush1.bf16.msra.mxu0 %v4676
    %4798 = vmatprep.subr.bf16.mxu0 %v4681
    %4799 = vmatpush1.bf16.msra.mxu0 %v4680
    %4800 = vmatprep.subr.bf16.mxu0 %v4685
    %4801 = vmatpush1.bf16.msra.mxu0 %v4684
    %4802 = vmatprep.subr.bf16.mxu0 %v4689
    %4803 = vmatpush1.bf16.msra.mxu0 %v4688
    %4804 = vmatprep.subr.bf16.mxu0 %v4693
    %4805 = vmatpush1.bf16.msra.mxu0 %v4692
    %4806 = vmatprep.subr.bf16.mxu0 %v4697
    %4807 = vmatpush1.bf16.msra.mxu0 %v4696
    %4808 = vmatprep.subr.bf16.mxu0 %v4701
    %4809 = vmatpush1.bf16.msra.mxu0 %v4700
    %4810 = vmatprep.subr.bf16.mxu0 %v4705
    %4811 = vmatpush1.bf16.msra.mxu0 %v4704
    %4812 = vmatprep.subr.bf16.mxu0 %v4709
    %4813 = vmatpush1.bf16.msra.mxu0 %v4708
    %4814 = vmatprep.subr.bf16.mxu0 %v4713
    %4815 = vmatpush1.bf16.msra.mxu0 %v4712
    %4816 = vmatprep.subr.bf16.mxu0 %v4717
    %4817 = vmatpush1.bf16.msra.mxu0 %v4716
    %4818 = vmatprep.subr.bf16.mxu0 %v4721
    %4819 = vmatpush1.bf16.msra.mxu0 %v4720
    %4820 = vmatprep.mubr.bf16.mxu0 %v4403
    %4821 = vmatmul.mubr.bf16.gmra.mrb[0].mxu0 %v4402
    %v4822 = vpop.f32.mrb[0].mxu0
    %v4823 = vadd.f32 0.0, %v4822
    %v4824 = vpop.f32.mrb[0].mxu0
    %v4825 = vadd.f32 0.0, %v4824
    %v4826 = vpop.f32.mrb[0].mxu0
    %v4827 = vpop.f32.mrb[0].mxu0
    %4828 = vdwg.mxu0
    %4829 = vmatprep.subr.bf16.mxu0 %v4663
    %4830 = vmatpush1.bf16.msra.mxu0 %v4662
    %4831 = vmatprep.subr.bf16.mxu0 %v4667
    %4832 = vmatpush1.bf16.msra.mxu0 %v4666
    %4833 = vmatprep.subr.bf16.mxu0 %v4671
    %4834 = vmatpush1.bf16.msra.mxu0 %v4670
    %4835 = vmatprep.subr.bf16.mxu0 %v4675
    %4836 = vmatpush1.bf16.msra.mxu0 %v4674
    %4837 = vmatprep.subr.bf16.mxu0 %v4679
    %4838 = vmatpush1.bf16.msra.mxu0 %v4678
    %4839 = vmatprep.subr.bf16.mxu0 %v4683
    %4840 = vmatpush1.bf16.msra.mxu0 %v4682
    %4841 = vmatprep.subr.bf16.mxu0 %v4687
    %4842 = vmatpush1.bf16.msra.mxu0 %v4686
    %4843 = vmatprep.subr.bf16.mxu0 %v4691
    %4844 = vmatpush1.bf16.msra.mxu0 %v4690
    %4845 = vmatprep.subr.bf16.mxu0 %v4695
    %4846 = vmatpush1.bf16.msra.mxu0 %v4694
    %4847 = vmatprep.subr.bf16.mxu0 %v4699
    %4848 = vmatpush1.bf16.msra.mxu0 %v4698
    %4849 = vmatprep.subr.bf16.mxu0 %v4703
    %4850 = vmatpush1.bf16.msra.mxu0 %v4702
    %4851 = vmatprep.subr.bf16.mxu0 %v4707
    %4852 = vmatpush1.bf16.msra.mxu0 %v4706
    %4853 = vmatprep.subr.bf16.mxu0 %v4711
    %4854 = vmatpush1.bf16.msra.mxu0 %v4710
    %4855 = vmatprep.subr.bf16.mxu0 %v4715
    %4856 = vmatpush1.bf16.msra.mxu0 %v4714
    %4857 = vmatprep.subr.bf16.mxu0 %v4719
    %4858 = vmatpush1.bf16.msra.mxu0 %v4718
    %4859 = vmatprep.subr.bf16.mxu0 %v4723
    %4860 = vmatpush1.bf16.msra.mxu0 %v4722
    %4861 = vmatprep.mubr.bf16.mxu0 %v4403
    %4862 = vmatmul.mubr.bf16.gmra.mrb[0].mxu0 %v4402
    %v4863 = vpop.f32.mrb[0].mxu0
    %v4864 = vadd.f32 0.0, %v4863
    %v4865 = vpop.f32.mrb[0].mxu0
    %v4866 = vadd.f32 0.0, %v4865
    %v4867 = vpop.f32.mrb[0].mxu0
    %v4868 = vpop.f32.mrb[0].mxu0
    %4869 = vdwg.mxu0
    %v4934 = vunpack.c.l.b16 %v4338
    %v4935 = vunpack.c.h.b16 %v4338
    %v4936 = vunpack.c.l.b16 %v4339
    %v4937 = vunpack.c.h.b16 %v4339
    %v4938 = vunpack.c.l.b16 %v4340
    %v4939 = vunpack.c.h.b16 %v4340
    %v4940 = vunpack.c.l.b16 %v4341
    %v4941 = vunpack.c.h.b16 %v4341
    %v4942 = vunpack.c.l.b16 %v4342
    %v4943 = vunpack.c.h.b16 %v4342
    %v4944 = vunpack.c.l.b16 %v4343
    %v4945 = vunpack.c.h.b16 %v4343
    %v4946 = vunpack.c.l.b16 %v4344
    %v4947 = vunpack.c.h.b16 %v4344
    %v4948 = vunpack.c.l.b16 %v4345
    %v4949 = vunpack.c.h.b16 %v4345
    %v4950 = vunpack.c.l.b16 %v4346
    %v4951 = vunpack.c.h.b16 %v4346
    %v4952 = vunpack.c.l.b16 %v4347
    %v4953 = vunpack.c.h.b16 %v4347
    %v4954 = vunpack.c.l.b16 %v4348
    %v4955 = vunpack.c.h.b16 %v4348
    %v4956 = vunpack.c.l.b16 %v4349
    %v4957 = vunpack.c.h.b16 %v4349
    %v4958 = vunpack.c.l.b16 %v4350
    %v4959 = vunpack.c.h.b16 %v4350
    %v4960 = vunpack.c.l.b16 %v4351
    %v4961 = vunpack.c.h.b16 %v4351
    %v4962 = vunpack.c.l.b16 %v4352
    %v4963 = vunpack.c.h.b16 %v4352
    %v4964 = vunpack.c.l.b16 %v4353
    %v4965 = vunpack.c.h.b16 %v4353
    %v4966 = vunpack.c.l.b16 %v4354
    %v4967 = vunpack.c.h.b16 %v4354
    %v4968 = vunpack.c.l.b16 %v4355
    %v4969 = vunpack.c.h.b16 %v4355
    %v4970 = vunpack.c.l.b16 %v4356
    %v4971 = vunpack.c.h.b16 %v4356
    %v4972 = vunpack.c.l.b16 %v4357
    %v4973 = vunpack.c.h.b16 %v4357
    %v4974 = vunpack.c.l.b16 %v4358
    %v4975 = vunpack.c.h.b16 %v4358
    %v4976 = vunpack.c.l.b16 %v4359
    %v4977 = vunpack.c.h.b16 %v4359
    %v4978 = vunpack.c.l.b16 %v4360
    %v4979 = vunpack.c.h.b16 %v4360
    %v4980 = vunpack.c.l.b16 %v4361
    %v4981 = vunpack.c.h.b16 %v4361
    %v4982 = vunpack.c.l.b16 %v4362
    %v4983 = vunpack.c.h.b16 %v4362
    %v4984 = vunpack.c.l.b16 %v4363
    %v4985 = vunpack.c.h.b16 %v4363
    %v4986 = vunpack.c.l.b16 %v4364
    %v4987 = vunpack.c.h.b16 %v4364
    %v4988 = vunpack.c.l.b16 %v4365
    %v4989 = vunpack.c.h.b16 %v4365
    %v4990 = vunpack.c.l.b16 %v4366
    %v4991 = vunpack.c.h.b16 %v4366
    %v4992 = vunpack.c.l.b16 %v4367
    %v4993 = vunpack.c.h.b16 %v4367
    %v4994 = vunpack.c.l.b16 %v4368
    %v4995 = vunpack.c.h.b16 %v4368
    %v4996 = vunpack.c.l.b16 %v4369
    %v4997 = vunpack.c.h.b16 %v4369
    %v4998 = vunpack.c.l.b16 %v4370
    %v4999 = vunpack.c.h.b16 %v4370
    %v5000 = vunpack.c.l.b16 %v4371
    %v5001 = vunpack.c.h.b16 %v4371
    %v5002 = vunpack.c.l.b16 %v4372
    %v5003 = vunpack.c.h.b16 %v4372
    %v5004 = vunpack.c.l.b16 %v4373
    %v5005 = vunpack.c.h.b16 %v4373
    %v5006 = vunpack.c.l.b16 %v4374
    %v5007 = vunpack.c.h.b16 %v4374
    %v5008 = vunpack.c.l.b16 %v4375
    %v5009 = vunpack.c.h.b16 %v4375
    %v5010 = vunpack.c.l.b16 %v4376
    %v5011 = vunpack.c.h.b16 %v4376
    %v5012 = vunpack.c.l.b16 %v4377
    %v5013 = vunpack.c.h.b16 %v4377
    %v5014 = vunpack.c.l.b16 %v4378
    %v5015 = vunpack.c.h.b16 %v4378
    %v5016 = vunpack.c.l.b16 %v4379
    %v5017 = vunpack.c.h.b16 %v4379
    %v5018 = vunpack.c.l.b16 %v4380
    %v5019 = vunpack.c.h.b16 %v4380
    %v5020 = vunpack.c.l.b16 %v4381
    %v5021 = vunpack.c.h.b16 %v4381
    %v5022 = vunpack.c.l.b16 %v4382
    %v5023 = vunpack.c.h.b16 %v4382
    %v5024 = vunpack.c.l.b16 %v4383
    %v5025 = vunpack.c.h.b16 %v4383
    %v5026 = vunpack.c.l.b16 %v4384
    %v5027 = vunpack.c.h.b16 %v4384
    %v5028 = vunpack.c.l.b16 %v4385
    %v5029 = vunpack.c.h.b16 %v4385
    %v5030 = vunpack.c.l.b16 %v4386
    %v5031 = vunpack.c.h.b16 %v4386
    %v5032 = vunpack.c.l.b16 %v4387
    %v5033 = vunpack.c.h.b16 %v4387
    %v5034 = vunpack.c.l.b16 %v4388
    %v5035 = vunpack.c.h.b16 %v4388
    %v5036 = vunpack.c.l.b16 %v4389
    %v5037 = vunpack.c.h.b16 %v4389
    %v5038 = vunpack.c.l.b16 %v4390
    %v5039 = vunpack.c.h.b16 %v4390
    %v5040 = vunpack.c.l.b16 %v4391
    %v5041 = vunpack.c.h.b16 %v4391
    %v5042 = vunpack.c.l.b16 %v4392
    %v5043 = vunpack.c.h.b16 %v4392
    %v5044 = vunpack.c.l.b16 %v4393
    %v5045 = vunpack.c.h.b16 %v4393
    %v5046 = vunpack.c.l.b16 %v4394
    %v5047 = vunpack.c.h.b16 %v4394
    %v5048 = vunpack.c.l.b16 %v4395
    %v5049 = vunpack.c.h.b16 %v4395
    %v5050 = vunpack.c.l.b16 %v4396
    %v5051 = vunpack.c.h.b16 %v4396
    %v5052 = vunpack.c.l.b16 %v4397
    %v5053 = vunpack.c.h.b16 %v4397
    %v5054 = vunpack.c.l.b16 %v4398
    %v5055 = vunpack.c.h.b16 %v4398
    %v5056 = vunpack.c.l.b16 %v4399
    %v5057 = vunpack.c.h.b16 %v4399
    %v5058 = vunpack.c.l.b16 %v4400
    %v5059 = vunpack.c.h.b16 %v4400
    %v5060 = vunpack.c.l.b16 %v4401
    %v5061 = vunpack.c.h.b16 %v4401
    %v5062 = vpack.c.b16 %v4938, %v4934
    %v5063 = vpack.c.b16 %v4939, %v4935
    %v5064 = vpack.c.b16 %v4940, %v4936
    %v5065 = vpack.c.b16 %v4941, %v4937
    %v5066 = vpack.c.b16 %v4946, %v4942
    %v5067 = vpack.c.b16 %v4947, %v4943
    %v5068 = vpack.c.b16 %v4948, %v4944
    %v5069 = vpack.c.b16 %v4949, %v4945
    %v5070 = vpack.c.b16 %v4954, %v4950
    %v5071 = vpack.c.b16 %v4955, %v4951
    %v5072 = vpack.c.b16 %v4956, %v4952
    %v5073 = vpack.c.b16 %v4957, %v4953
    %v5074 = vpack.c.b16 %v4962, %v4958
    %v5075 = vpack.c.b16 %v4963, %v4959
    %v5076 = vpack.c.b16 %v4964, %v4960
    %v5077 = vpack.c.b16 %v4965, %v4961
    %v5078 = vpack.c.b16 %v4970, %v4966
    %v5079 = vpack.c.b16 %v4971, %v4967
    %v5080 = vpack.c.b16 %v4972, %v4968
    %v5081 = vpack.c.b16 %v4973, %v4969
    %v5082 = vpack.c.b16 %v4978, %v4974
    %v5083 = vpack.c.b16 %v4979, %v4975
    %v5084 = vpack.c.b16 %v4980, %v4976
    %v5085 = vpack.c.b16 %v4981, %v4977
    %v5086 = vpack.c.b16 %v4986, %v4982
    %v5087 = vpack.c.b16 %v4987, %v4983
    %v5088 = vpack.c.b16 %v4988, %v4984
    %v5089 = vpack.c.b16 %v4989, %v4985
    %v5090 = vpack.c.b16 %v4994, %v4990
    %v5091 = vpack.c.b16 %v4995, %v4991
    %v5092 = vpack.c.b16 %v4996, %v4992
    %v5093 = vpack.c.b16 %v4997, %v4993
    %v5094 = vpack.c.b16 %v5002, %v4998
    %v5095 = vpack.c.b16 %v5003, %v4999
    %v5096 = vpack.c.b16 %v5004, %v5000
    %v5097 = vpack.c.b16 %v5005, %v5001
    %v5098 = vpack.c.b16 %v5010, %v5006
    %v5099 = vpack.c.b16 %v5011, %v5007
    %v5100 = vpack.c.b16 %v5012, %v5008
    %v5101 = vpack.c.b16 %v5013, %v5009
    %v5102 = vpack.c.b16 %v5018, %v5014
    %v5103 = vpack.c.b16 %v5019, %v5015
    %v5104 = vpack.c.b16 %v5020, %v5016
    %v5105 = vpack.c.b16 %v5021, %v5017
    %v5106 = vpack.c.b16 %v5026, %v5022
    %v5107 = vpack.c.b16 %v5027, %v5023
    %v5108 = vpack.c.b16 %v5028, %v5024
    %v5109 = vpack.c.b16 %v5029, %v5025
    %v5110 = vpack.c.b16 %v5034, %v5030
    %v5111 = vpack.c.b16 %v5035, %v5031
    %v5112 = vpack.c.b16 %v5036, %v5032
    %v5113 = vpack.c.b16 %v5037, %v5033
    %v5114 = vpack.c.b16 %v5042, %v5038
    %v5115 = vpack.c.b16 %v5043, %v5039
    %v5116 = vpack.c.b16 %v5044, %v5040
    %v5117 = vpack.c.b16 %v5045, %v5041
    %v5118 = vpack.c.b16 %v5050, %v5046
    %v5119 = vpack.c.b16 %v5051, %v5047
    %v5120 = vpack.c.b16 %v5052, %v5048
    %v5121 = vpack.c.b16 %v5053, %v5049
    %v5122 = vpack.c.b16 %v5058, %v5054
    %v5123 = vpack.c.b16 %v5059, %v5055
    %v5124 = vpack.c.b16 %v5060, %v5056
    %v5125 = vpack.c.b16 %v5061, %v5057
    %5190 = vmatprep.subr.bf16.mxu0 %v5063
    %5191 = vmatpush1.bf16.msra.mxu0 %v5062
    %5192 = vmatprep.subr.bf16.mxu0 %v5067
    %5193 = vmatpush1.bf16.msra.mxu0 %v5066
    %5194 = vmatprep.subr.bf16.mxu0 %v5071
    %5195 = vmatpush1.bf16.msra.mxu0 %v5070
    %5196 = vmatprep.subr.bf16.mxu0 %v5075
    %5197 = vmatpush1.bf16.msra.mxu0 %v5074
    %5198 = vmatprep.subr.bf16.mxu0 %v5079
    %5199 = vmatpush1.bf16.msra.mxu0 %v5078
    %5200 = vmatprep.subr.bf16.mxu0 %v5083
    %5201 = vmatpush1.bf16.msra.mxu0 %v5082
    %5202 = vmatprep.subr.bf16.mxu0 %v5087
    %5203 = vmatpush1.bf16.msra.mxu0 %v5086
    %5204 = vmatprep.subr.bf16.mxu0 %v5091
    %5205 = vmatpush1.bf16.msra.mxu0 %v5090
    %5206 = vmatprep.subr.bf16.mxu0 %v5095
    %5207 = vmatpush1.bf16.msra.mxu0 %v5094
    %5208 = vmatprep.subr.bf16.mxu0 %v5099
    %5209 = vmatpush1.bf16.msra.mxu0 %v5098
    %5210 = vmatprep.subr.bf16.mxu0 %v5103
    %5211 = vmatpush1.bf16.msra.mxu0 %v5102
    %5212 = vmatprep.subr.bf16.mxu0 %v5107
    %5213 = vmatpush1.bf16.msra.mxu0 %v5106
    %5214 = vmatprep.subr.bf16.mxu0 %v5111
    %5215 = vmatpush1.bf16.msra.mxu0 %v5110
    %5216 = vmatprep.subr.bf16.mxu0 %v5115
    %5217 = vmatpush1.bf16.msra.mxu0 %v5114
    %5218 = vmatprep.subr.bf16.mxu0 %v5119
    %5219 = vmatpush1.bf16.msra.mxu0 %v5118
    %5220 = vmatprep.subr.bf16.mxu0 %v5123
    %5221 = vmatpush1.bf16.msra.mxu0 %v5122
    %5222 = vmatprep.mubr.bf16.mxu0 %v489
    %5223 = vmatmul.mubr.bf16.gmra.mrb[0].mxu0 %v488
    %v5224 = vpop.f32.mrb[0].mxu0
    %v5225 = vadd.f32 %v4823, %v5224
    %v5226 = vpop.f32.mrb[0].mxu0
    %v5227 = vadd.f32 %v4825, %v5226
    %v5228 = vpop.f32.mrb[0].mxu0
    %v5229 = vpop.f32.mrb[0].mxu0
    %5230 = vdwg.mxu0
    %5231 = vmatprep.subr.bf16.mxu0 %v5065
    %5232 = vmatpush1.bf16.msra.mxu0 %v5064
    %5233 = vmatprep.subr.bf16.mxu0 %v5069
    %5234 = vmatpush1.bf16.msra.mxu0 %v5068
    %5235 = vmatprep.subr.bf16.mxu0 %v5073
    %5236 = vmatpush1.bf16.msra.mxu0 %v5072
    %5237 = vmatprep.subr.bf16.mxu0 %v5077
    %5238 = vmatpush1.bf16.msra.mxu0 %v5076
    %5239 = vmatprep.subr.bf16.mxu0 %v5081
    %5240 = vmatpush1.bf16.msra.mxu0 %v5080
    %5241 = vmatprep.subr.bf16.mxu0 %v5085
    %5242 = vmatpush1.bf16.msra.mxu0 %v5084
    %5243 = vmatprep.subr.bf16.mxu0 %v5089
    %5244 = vmatpush1.bf16.msra.mxu0 %v5088
    %5245 = vmatprep.subr.bf16.mxu0 %v5093
    %5246 = vmatpush1.bf16.msra.mxu0 %v5092
    %5247 = vmatprep.subr.bf16.mxu0 %v5097
    %5248 = vmatpush1.bf16.msra.mxu0 %v5096
    %5249 = vmatprep.subr.bf16.mxu0 %v5101
    %5250 = vmatpush1.bf16.msra.mxu0 %v5100
    %5251 = vmatprep.subr.bf16.mxu0 %v5105
    %5252 = vmatpush1.bf16.msra.mxu0 %v5104
    %5253 = vmatprep.subr.bf16.mxu0 %v5109
    %5254 = vmatpush1.bf16.msra.mxu0 %v5108
    %5255 = vmatprep.subr.bf16.mxu0 %v5113
    %5256 = vmatpush1.bf16.msra.mxu0 %v5112
    %5257 = vmatprep.subr.bf16.mxu0 %v5117
    %5258 = vmatpush1.bf16.msra.mxu0 %v5116
    %5259 = vmatprep.subr.bf16.mxu0 %v5121
    %5260 = vmatpush1.bf16.msra.mxu0 %v5120
    %5261 = vmatprep.subr.bf16.mxu0 %v5125
    %5262 = vmatpush1.bf16.msra.mxu0 %v5124
    %5263 = vmatprep.mubr.bf16.mxu0 %v489
    %5264 = vmatmul.mubr.bf16.gmra.mrb[0].mxu0 %v488
    %v5265 = vpop.f32.mrb[0].mxu0
    %v5266 = vadd.f32 %v4864, %v5265
    %v5267 = vpop.f32.mrb[0].mxu0
    %v5268 = vadd.f32 %v4866, %v5267
    %v5269 = vpop.f32.mrb[0].mxu0
    %v5270 = vpop.f32.mrb[0].mxu0
    %5271 = vdwg.mxu0
    %v5272 = vld [vmem:[%s75] sm:$0xf]
    %v5274 = vlaneseq
    %v5275 = vshrl.u32 %v5274, 7
    %v5276 = vsub.s32 0, %v5275
    %v5277 = vrot.slane %v5272, %v5276
    %v5278 = vlaneseq
    %v5279 = vshrl.u32 %v5278, 7
    %v5280 = vsub.s32 1, %v5279
    %v5281 = vrot.slane %v5272, %v5280
    %v5282 = vlaneseq
    %v5283 = vshrl.u32 %v5282, 7
    %v5284 = vsub.s32 2, %v5283
    %v5285 = vrot.slane %v5272, %v5284
    %v5286 = vlaneseq
    %v5287 = vshrl.u32 %v5286, 7
    %v5288 = vsub.s32 3, %v5287
    %v5289 = vrot.slane %v5272, %v5288
    %v5294 = vadd.f32 %v5225, %v5277
    %v5295 = vadd.f32 %v5227, %v5281
    %v5296 = vadd.f32 %v5266, %v5285
    %v5297 = vadd.f32 %v5268, %v5289
    %v5298 = vmax.f32 %v5294, 0.0
    %v5299 = vmax.f32 %v5295, 0.0
    %v5300 = vmax.f32 %v5296, 0.0
    %v5301 = vmax.f32 %v5297, 0.0
    %v5302 = vpack.c.bf16 %v5298, %v5298
    %v5303 = vpack.c.bf16 %v5299, %v5299
    %v5304 = vpack.c.bf16 %v5300, %v5300
    %v5305 = vpack.c.bf16 %v5301, %v5301
    %v5306 = vld [vmem:[#allocation20] sm:$0xf]
    %v5307 = vld [vmem:[#allocation20 + $0x4] sm:$0xf]
    %v5308 = vld [vmem:[#allocation20 + $0x8] sm:$0xf]
    %v5309 = vld [vmem:[#allocation20 + $0xc] sm:$0xf]
    %v5310 = vld [vmem:[#allocation20 + $0x10] sm:$0xf]
    %v5311 = vld [vmem:[#allocation20 + $0x14] sm:$0xf]
    %v5312 = vld [vmem:[#allocation20 + $0x18] sm:$0xf]
    %v5313 = vld [vmem:[#allocation20 + $0x1c] sm:$0xf]
    %v5314 = vld [vmem:[#allocation20 + $0x20] sm:$0xf]
    %v5315 = vld [vmem:[#allocation20 + $0x24] sm:$0xf]
    %v5316 = vld [vmem:[#allocation20 + $0x28] sm:$0xf]
    %v5317 = vld [vmem:[#allocation20 + $0x2c] sm:$0xf]
    %v5318 = vld [vmem:[#allocation20 + $0x30] sm:$0xf]
    %v5319 = vld [vmem:[#allocation20 + $0x34] sm:$0xf]
    %v5320 = vld [vmem:[#allocation20 + $0x38] sm:$0xf]
    %v5321 = vld [vmem:[#allocation20 + $0x3c] sm:$0xf]
    %v5322 = vld [vmem:[#allocation20 + $0x40] sm:$0xf]
    %v5323 = vld [vmem:[#allocation20 + $0x44] sm:$0xf]
    %v5324 = vld [vmem:[#allocation20 + $0x48] sm:$0xf]
    %v5325 = vld [vmem:[#allocation20 + $0x4c] sm:$0xf]
    %v5326 = vld [vmem:[#allocation20 + $0x50] sm:$0xf]
    %v5327 = vld [vmem:[#allocation20 + $0x54] sm:$0xf]
    %v5328 = vld [vmem:[#allocation20 + $0x58] sm:$0xf]
    %v5329 = vld [vmem:[#allocation20 + $0x5c] sm:$0xf]
    %v5330 = vld [vmem:[#allocation20 + $0x60] sm:$0xf]
    %v5331 = vld [vmem:[#allocation20 + $0x64] sm:$0xf]
    %v5332 = vld [vmem:[#allocation20 + $0x68] sm:$0xf]
    %v5333 = vld [vmem:[#allocation20 + $0x6c] sm:$0xf]
    %v5334 = vld [vmem:[#allocation20 + $0x70] sm:$0xf]
    %v5335 = vld [vmem:[#allocation20 + $0x74] sm:$0xf]
    %v5336 = vld [vmem:[#allocation20 + $0x78] sm:$0xf]
    %v5337 = vld [vmem:[#allocation20 + $0x7c] sm:$0xf]
    %v5338 = vld [vmem:[#allocation20 + $0x80] sm:$0xf]
    %v5339 = vld [vmem:[#allocation20 + $0x84] sm:$0xf]
    %v5340 = vld [vmem:[#allocation20 + $0x88] sm:$0xf]
    %v5341 = vld [vmem:[#allocation20 + $0x8c] sm:$0xf]
    %v5342 = vld [vmem:[#allocation20 + $0x90] sm:$0xf]
    %v5343 = vld [vmem:[#allocation20 + $0x94] sm:$0xf]
    %v5344 = vld [vmem:[#allocation20 + $0x98] sm:$0xf]
    %v5345 = vld [vmem:[#allocation20 + $0x9c] sm:$0xf]
    %v5346 = vld [vmem:[#allocation20 + $0xa0] sm:$0xf]
    %v5347 = vld [vmem:[#allocation20 + $0xa4] sm:$0xf]
    %v5348 = vld [vmem:[#allocation20 + $0xa8] sm:$0xf]
    %v5349 = vld [vmem:[#allocation20 + $0xac] sm:$0xf]
    %v5350 = vld [vmem:[#allocation20 + $0xb0] sm:$0xf]
    %v5351 = vld [vmem:[#allocation20 + $0xb4] sm:$0xf]
    %v5352 = vld [vmem:[#allocation20 + $0xb8] sm:$0xf]
    %v5353 = vld [vmem:[#allocation20 + $0xbc] sm:$0xf]
    %v5354 = vld [vmem:[#allocation20 + $0xc0] sm:$0xf]
    %v5355 = vld [vmem:[#allocation20 + $0xc4] sm:$0xf]
    %v5356 = vld [vmem:[#allocation20 + $0xc8] sm:$0xf]
    %v5357 = vld [vmem:[#allocation20 + $0xcc] sm:$0xf]
    %v5358 = vld [vmem:[#allocation20 + $0xd0] sm:$0xf]
    %v5359 = vld [vmem:[#allocation20 + $0xd4] sm:$0xf]
    %v5360 = vld [vmem:[#allocation20 + $0xd8] sm:$0xf]
    %v5361 = vld [vmem:[#allocation20 + $0xdc] sm:$0xf]
    %v5362 = vld [vmem:[#allocation20 + $0xe0] sm:$0xf]
    %v5363 = vld [vmem:[#allocation20 + $0xe4] sm:$0xf]
    %v5364 = vld [vmem:[#allocation20 + $0xe8] sm:$0xf]
    %v5365 = vld [vmem:[#allocation20 + $0xec] sm:$0xf]
    %v5366 = vld [vmem:[#allocation20 + $0xf0] sm:$0xf]
    %v5367 = vld [vmem:[#allocation20 + $0xf4] sm:$0xf]
    %v5368 = vld [vmem:[#allocation20 + $0xf8] sm:$0xf]
    %v5369 = vld [vmem:[#allocation20 + $0xfc] sm:$0xf]
    %v5370 = vld [vmem:[%s79] sm:$0x1]
    %v5372 = vlaneseq
    %v5373 = vshrl.u32 %v5372, 7
    %v5374 = vsub.s32 0, %v5373
    %v5375 = vrot.slane %v5370, %v5374
    %v5441 = vunpack.c.l.b16 %v5306
    %v5442 = vunpack.c.l.b16 %v5307
    %v5443 = vunpack.c.l.b16 %v5308
    %v5444 = vunpack.c.l.b16 %v5309
    %v5445 = vunpack.c.l.b16 %v5310
    %v5446 = vunpack.c.l.b16 %v5311
    %v5447 = vunpack.c.l.b16 %v5312
    %v5448 = vunpack.c.l.b16 %v5313
    %v5449 = vunpack.c.l.b16 %v5314
    %v5450 = vunpack.c.l.b16 %v5315
    %v5451 = vunpack.c.l.b16 %v5316
    %v5452 = vunpack.c.l.b16 %v5317
    %v5453 = vunpack.c.l.b16 %v5318
    %v5454 = vunpack.c.l.b16 %v5319
    %v5455 = vunpack.c.l.b16 %v5320
    %v5456 = vunpack.c.l.b16 %v5321
    %v5457 = vunpack.c.l.b16 %v5322
    %v5458 = vunpack.c.l.b16 %v5323
    %v5459 = vunpack.c.l.b16 %v5324
    %v5460 = vunpack.c.l.b16 %v5325
    %v5461 = vunpack.c.l.b16 %v5326
    %v5462 = vunpack.c.l.b16 %v5327
    %v5463 = vunpack.c.l.b16 %v5328
    %v5464 = vunpack.c.l.b16 %v5329
    %v5465 = vunpack.c.l.b16 %v5330
    %v5466 = vunpack.c.l.b16 %v5331
    %v5467 = vunpack.c.l.b16 %v5332
    %v5468 = vunpack.c.l.b16 %v5333
    %v5469 = vunpack.c.l.b16 %v5334
    %v5470 = vunpack.c.l.b16 %v5335
    %v5471 = vunpack.c.l.b16 %v5336
    %v5472 = vunpack.c.l.b16 %v5337
    %v5473 = vunpack.c.l.b16 %v5338
    %v5474 = vunpack.c.l.b16 %v5339
    %v5475 = vunpack.c.l.b16 %v5340
    %v5476 = vunpack.c.l.b16 %v5341
    %v5477 = vunpack.c.l.b16 %v5342
    %v5478 = vunpack.c.l.b16 %v5343
    %v5479 = vunpack.c.l.b16 %v5344
    %v5480 = vunpack.c.l.b16 %v5345
    %v5481 = vunpack.c.l.b16 %v5346
    %v5482 = vunpack.c.l.b16 %v5347
    %v5483 = vunpack.c.l.b16 %v5348
    %v5484 = vunpack.c.l.b16 %v5349
    %v5485 = vunpack.c.l.b16 %v5350
    %v5486 = vunpack.c.l.b16 %v5351
    %v5487 = vunpack.c.l.b16 %v5352
    %v5488 = vunpack.c.l.b16 %v5353
    %v5489 = vunpack.c.l.b16 %v5354
    %v5490 = vunpack.c.l.b16 %v5355
    %v5491 = vunpack.c.l.b16 %v5356
    %v5492 = vunpack.c.l.b16 %v5357
    %v5493 = vunpack.c.l.b16 %v5358
    %v5494 = vunpack.c.l.b16 %v5359
    %v5495 = vunpack.c.l.b16 %v5360
    %v5496 = vunpack.c.l.b16 %v5361
    %v5497 = vunpack.c.l.b16 %v5362
    %v5498 = vunpack.c.l.b16 %v5363
    %v5499 = vunpack.c.l.b16 %v5364
    %v5500 = vunpack.c.l.b16 %v5365
    %v5501 = vunpack.c.l.b16 %v5366
    %v5502 = vunpack.c.l.b16 %v5367
    %v5503 = vunpack.c.l.b16 %v5368
    %v5504 = vunpack.c.l.b16 %v5369
    %v5505 = vpack.c.b16 %v5442, %v5441
    %v5506 = vpack.c.b16 %v5444, %v5443
    %v5507 = vpack.c.b16 %v5446, %v5445
    %v5508 = vpack.c.b16 %v5448, %v5447
    %v5509 = vpack.c.b16 %v5450, %v5449
    %v5510 = vpack.c.b16 %v5452, %v5451
    %v5511 = vpack.c.b16 %v5454, %v5453
    %v5512 = vpack.c.b16 %v5456, %v5455
    %v5513 = vpack.c.b16 %v5458, %v5457
    %v5514 = vpack.c.b16 %v5460, %v5459
    %v5515 = vpack.c.b16 %v5462, %v5461
    %v5516 = vpack.c.b16 %v5464, %v5463
    %v5517 = vpack.c.b16 %v5466, %v5465
    %v5518 = vpack.c.b16 %v5468, %v5467
    %v5519 = vpack.c.b16 %v5470, %v5469
    %v5520 = vpack.c.b16 %v5472, %v5471
    %v5521 = vpack.c.b16 %v5474, %v5473
    %v5522 = vpack.c.b16 %v5476, %v5475
    %v5523 = vpack.c.b16 %v5478, %v5477
    %v5524 = vpack.c.b16 %v5480, %v5479
    %v5525 = vpack.c.b16 %v5482, %v5481
    %v5526 = vpack.c.b16 %v5484, %v5483
    %v5527 = vpack.c.b16 %v5486, %v5485
    %v5528 = vpack.c.b16 %v5488, %v5487
    %v5529 = vpack.c.b16 %v5490, %v5489
    %v5530 = vpack.c.b16 %v5492, %v5491
    %v5531 = vpack.c.b16 %v5494, %v5493
    %v5532 = vpack.c.b16 %v5496, %v5495
    %v5533 = vpack.c.b16 %v5498, %v5497
    %v5534 = vpack.c.b16 %v5500, %v5499
    %v5535 = vpack.c.b16 %v5502, %v5501
    %v5536 = vpack.c.b16 %v5504, %v5503
    %5569 = vmatprep.subr.bf16.mxu0 0
    %5570 = vmatpush1.bf16.msra.mxu0 %v5505
    %5571 = vmatprep.subr.bf16.mxu0 0
    %5572 = vmatpush1.bf16.msra.mxu0 %v5506
    %5573 = vmatprep.subr.bf16.mxu0 0
    %5574 = vmatpush1.bf16.msra.mxu0 %v5507
    %5575 = vmatprep.subr.bf16.mxu0 0
    %5576 = vmatpush1.bf16.msra.mxu0 %v5508
    %5577 = vmatprep.subr.bf16.mxu0 0
    %5578 = vmatpush1.bf16.msra.mxu0 %v5509
    %5579 = vmatprep.subr.bf16.mxu0 0
    %5580 = vmatpush1.bf16.msra.mxu0 %v5510
    %5581 = vmatprep.subr.bf16.mxu0 0
    %5582 = vmatpush1.bf16.msra.mxu0 %v5511
    %5583 = vmatprep.subr.bf16.mxu0 0
    %5584 = vmatpush1.bf16.msra.mxu0 %v5512
    %5585 = vmatprep.subr.bf16.mxu0 0
    %5586 = vmatpush1.bf16.msra.mxu0 %v5513
    %5587 = vmatprep.subr.bf16.mxu0 0
    %5588 = vmatpush1.bf16.msra.mxu0 %v5514
    %5589 = vmatprep.subr.bf16.mxu0 0
    %5590 = vmatpush1.bf16.msra.mxu0 %v5515
    %5591 = vmatprep.subr.bf16.mxu0 0
    %5592 = vmatpush1.bf16.msra.mxu0 %v5516
    %5593 = vmatprep.subr.bf16.mxu0 0
    %5594 = vmatpush1.bf16.msra.mxu0 %v5517
    %5595 = vmatprep.subr.bf16.mxu0 0
    %5596 = vmatpush1.bf16.msra.mxu0 %v5518
    %5597 = vmatprep.subr.bf16.mxu0 0
    %5598 = vmatpush1.bf16.msra.mxu0 %v5519
    %5599 = vmatprep.subr.bf16.mxu0 0
    %5600 = vmatpush1.bf16.msra.mxu0 %v5520
    %5601 = vmatprep.mubr.bf16.mxu0 %v5303
    %5602 = vmatmul.mubr.bf16.gmra.mrb[0].mxu0 %v5302
    %v5603 = vpop.f32.mrb[0].mxu0
    %v5604 = vadd.f32 %v5375, %v5603
    %v5605 = vpop.f32.mrb[0].mxu0
    %v5606 = vpop.f32.mrb[0].mxu0
    %v5607 = vpop.f32.mrb[0].mxu0
    %5608 = vdwg.mxu0
    %5609 = vmatprep.subr.bf16.mxu0 0
    %5610 = vmatpush1.bf16.msra.mxu0 %v5521
    %5611 = vmatprep.subr.bf16.mxu0 0
    %5612 = vmatpush1.bf16.msra.mxu0 %v5522
    %5613 = vmatprep.subr.bf16.mxu0 0
    %5614 = vmatpush1.bf16.msra.mxu0 %v5523
    %5615 = vmatprep.subr.bf16.mxu0 0
    %5616 = vmatpush1.bf16.msra.mxu0 %v5524
    %5617 = vmatprep.subr.bf16.mxu0 0
    %5618 = vmatpush1.bf16.msra.mxu0 %v5525
    %5619 = vmatprep.subr.bf16.mxu0 0
    %5620 = vmatpush1.bf16.msra.mxu0 %v5526
    %5621 = vmatprep.subr.bf16.mxu0 0
    %5622 = vmatpush1.bf16.msra.mxu0 %v5527
    %5623 = vmatprep.subr.bf16.mxu0 0
    %5624 = vmatpush1.bf16.msra.mxu0 %v5528
    %5625 = vmatprep.subr.bf16.mxu0 0
    %5626 = vmatpush1.bf16.msra.mxu0 %v5529
    %5627 = vmatprep.subr.bf16.mxu0 0
    %5628 = vmatpush1.bf16.msra.mxu0 %v5530
    %5629 = vmatprep.subr.bf16.mxu0 0
    %5630 = vmatpush1.bf16.msra.mxu0 %v5531
    %5631 = vmatprep.subr.bf16.mxu0 0
    %5632 = vmatpush1.bf16.msra.mxu0 %v5532
    %5633 = vmatprep.subr.bf16.mxu0 0
    %5634 = vmatpush1.bf16.msra.mxu0 %v5533
    %5635 = vmatprep.subr.bf16.mxu0 0
    %5636 = vmatpush1.bf16.msra.mxu0 %v5534
    %5637 = vmatprep.subr.bf16.mxu0 0
    %5638 = vmatpush1.bf16.msra.mxu0 %v5535
    %5639 = vmatprep.subr.bf16.mxu0 0
    %5640 = vmatpush1.bf16.msra.mxu0 %v5536
    %5641 = vmatprep.mubr.bf16.mxu0 %v5305
    %5642 = vmatmul.mubr.bf16.gmra.mrb[0].mxu0 %v5304
    %v5643 = vpop.f32.mrb[0].mxu0
    %v5644 = vadd.f32 %v5604, %v5643
    %v5645 = vpop.f32.mrb[0].mxu0
    %v5646 = vpop.f32.mrb[0].mxu0
    %v5647 = vpop.f32.mrb[0].mxu0
    %5648 = vdwg.mxu0
    %v5649 = vmax.f32 %v5644, 0.0
    %v5650 = vld [vmem:[%s81] sm:$0x1]
    %v5652 = vlaneseq
    %v5653 = vshrl.u32 %v5652, 7
    %v5654 = vsub.s32 0, %v5653
    %v5655 = vrot.slane %v5650, %v5654
    %v5657 = vmul.f32 %v5649, %v5655
    %v5658 = vsel %vm376, %v5657, 0.0
    %5659 = vadd.xlane.f32.xlu0 %v5658
    %v5660 = vpop.xlane.xlu0 %5659
    %v5661 = vld [vmem:[#allocation7] sm:$0x1]
    %v5663 = vlaneseq
    %v5664 = vshrl.u32 %v5663, 7
    %v5665 = vsub.s32 0, %v5664
    %v5666 = vrot.slane %v5661, %v5665
    %v5668 = vadd.f32 %v5660, %v5666
    %v5669 = vxor.u32 %v5668, 2147483648
    %v5670 = vmul.f32 %v5669, 1.442695
    %v5671 = vpow.pop %v5670
    %v5672 = vadd.f32 %v5671, 1.0
    %v5673 = vrcp.pop %v5672
    %v5674 = vmul.f32 1.0, %v5673
    %v5675 = vmul.f32 %v4315, 0.4
    %v5676 = vmul.f32 %v4337, 0.3
    %v5677 = vadd.f32 %v5675, %v5676
    %v5678 = vmul.f32 %v5674, 0.3
    %v5679 = vadd.f32 %v5677, %v5678
    %v5680 = vmax.f32 %v5679, 0.1
    %v5681 = vmin.f32 %v5680, 0.95
    %v5682 = vsel %vm4016, %v5681, 0.95
    %v5683 = vmul.f32 %v460, %v484
    %v5685 = vcombine.high %v5683, %v5683
    %v5687 = vsel %vm376, %v5683, 0.0
    %v5688 = vsel %vm376, %v5685, 0.0
    %v5689 = vadd.f32 %v5687, %v5688
    %5690 = vadd.xlane.f32.xlu0 %v5689
    %v5691 = vpop.xlane.xlu0 %5690
    %v5692 = vadd.f32 %v5691, 1.0
    %v5693 = vmul.f32 %v5692, 0.5
    %v5694 = vsub.f32 %v367, %v369
    %v5695 = vmul.f32 %v5694, %v5694
    %v5697 = vcombine.high %v5695, %v5695
    %v5699 = vsel %vm376, %v5695, 0.0
    %v5700 = vsel %vm376, %v5697, 0.0
    %v5701 = vadd.f32 %v5699, %v5700
    %5702 = vadd.xlane.f32.xlu0 %v5701
    %v5703 = vpop.xlane.xlu0 %5702
    %v5704 = vrsqrt.pop %v5703
    %v5705 = vmul.f32 %v5703, %v5704
    %vm5706 = vcmp.eq.f32.partialorder %v5703, inf
    %v5707 = vsel %vm5706, %v5703, %v5705
    %vm5708 = vcmp.eq.f32.partialorder %v5703, 0.0
    %v5709 = vand.u32 %v5703, 2147483648
    %v5710 = vsel %vm5708, %v5709, %v5707
    %v5711 = vadd.f32 %v404, %v436
    %v5712 = vadd.f32 %v5711, 1e-08
    %v5713 = vrcp.pop %v5712
    %v5714 = vmul.f32 %v5710, %v5713
    %v5715 = vsub.f32 1.0, %v5714
    %v5716 = vld [vmem:[#allocation22] sm:$0xff]
    %v5717 = vld [vmem:[#allocation22 + $0x8] sm:$0xff]
    %v5718 = vld [vmem:[#allocation22 + $0x10] sm:$0xff]
    %v5719 = vld [vmem:[#allocation22 + $0x18] sm:$0xff]
    %v5720 = vld [vmem:[#allocation22 + $0x20] sm:$0xff]
    %v5721 = vld [vmem:[#allocation22 + $0x28] sm:$0xff]
    %v5722 = vld [vmem:[#allocation22 + $0x30] sm:$0xff]
    %v5723 = vld [vmem:[#allocation22 + $0x38] sm:$0xff]
    %v5724 = vld [vmem:[#allocation22 + $0x40] sm:$0xff]
    %v5725 = vld [vmem:[#allocation22 + $0x48] sm:$0xff]
    %v5726 = vld [vmem:[#allocation22 + $0x50] sm:$0xff]
    %v5727 = vld [vmem:[#allocation22 + $0x58] sm:$0xff]
    %v5728 = vld [vmem:[#allocation22 + $0x60] sm:$0xff]
    %v5729 = vld [vmem:[#allocation22 + $0x68] sm:$0xff]
    %v5730 = vld [vmem:[#allocation22 + $0x70] sm:$0xff]
    %v5731 = vld [vmem:[#allocation22 + $0x78] sm:$0xff]
    %v5732 = vld [vmem:[#allocation22 + $0x80] sm:$0xff]
    %v5733 = vld [vmem:[#allocation22 + $0x88] sm:$0xff]
    %v5734 = vld [vmem:[#allocation22 + $0x90] sm:$0xff]
    %v5735 = vld [vmem:[#allocation22 + $0x98] sm:$0xff]
    %v5736 = vld [vmem:[#allocation22 + $0xa0] sm:$0xff]
    %v5737 = vld [vmem:[#allocation22 + $0xa8] sm:$0xff]
    %v5738 = vld [vmem:[#allocation22 + $0xb0] sm:$0xff]
    %v5739 = vld [vmem:[#allocation22 + $0xb8] sm:$0xff]
    %v5740 = vld [vmem:[#allocation22 + $0xc0] sm:$0xff]
    %v5741 = vld [vmem:[#allocation22 + $0xc8] sm:$0xff]
    %v5742 = vld [vmem:[#allocation22 + $0xd0] sm:$0xff]
    %v5743 = vld [vmem:[#allocation22 + $0xd8] sm:$0xff]
    %v5744 = vld [vmem:[#allocation22 + $0xe0] sm:$0xff]
    %v5745 = vld [vmem:[#allocation22 + $0xe8] sm:$0xff]
    %v5746 = vld [vmem:[#allocation22 + $0xf0] sm:$0xff]
    %v5747 = vld [vmem:[#allocation22 + $0xf8] sm:$0xff]
    %v5748 = vld [vmem:[#allocation22 + $0x100] sm:$0xff]
    %v5749 = vld [vmem:[#allocation22 + $0x108] sm:$0xff]
    %v5750 = vld [vmem:[#allocation22 + $0x110] sm:$0xff]
    %v5751 = vld [vmem:[#allocation22 + $0x118] sm:$0xff]
    %v5752 = vld [vmem:[#allocation22 + $0x120] sm:$0xff]
    %v5753 = vld [vmem:[#allocation22 + $0x128] sm:$0xff]
    %v5754 = vld [vmem:[#allocation22 + $0x130] sm:$0xff]
    %v5755 = vld [vmem:[#allocation22 + $0x138] sm:$0xff]
    %v5756 = vld [vmem:[#allocation22 + $0x140] sm:$0xff]
    %v5757 = vld [vmem:[#allocation22 + $0x148] sm:$0xff]
    %v5758 = vld [vmem:[#allocation22 + $0x150] sm:$0xff]
    %v5759 = vld [vmem:[#allocation22 + $0x158] sm:$0xff]
    %v5760 = vld [vmem:[#allocation22 + $0x160] sm:$0xff]
    %v5761 = vld [vmem:[#allocation22 + $0x168] sm:$0xff]
    %v5762 = vld [vmem:[#allocation22 + $0x170] sm:$0xff]
    %v5763 = vld [vmem:[#allocation22 + $0x178] sm:$0xff]
    %v5764 = vld [vmem:[#allocation22 + $0x180] sm:$0xff]
    %v5765 = vld [vmem:[#allocation22 + $0x188] sm:$0xff]
    %v5766 = vld [vmem:[#allocation22 + $0x190] sm:$0xff]
    %v5767 = vld [vmem:[#allocation22 + $0x198] sm:$0xff]
    %v5768 = vld [vmem:[#allocation22 + $0x1a0] sm:$0xff]
    %v5769 = vld [vmem:[#allocation22 + $0x1a8] sm:$0xff]
    %v5770 = vld [vmem:[#allocation22 + $0x1b0] sm:$0xff]
    %v5771 = vld [vmem:[#allocation22 + $0x1b8] sm:$0xff]
    %v5772 = vld [vmem:[#allocation22 + $0x1c0] sm:$0xff]
    %v5773 = vld [vmem:[#allocation22 + $0x1c8] sm:$0xff]
    %v5774 = vld [vmem:[#allocation22 + $0x1d0] sm:$0xff]
    %v5775 = vld [vmem:[#allocation22 + $0x1d8] sm:$0xff]
    %v5776 = vld [vmem:[#allocation22 + $0x1e0] sm:$0xff]
    %v5777 = vld [vmem:[#allocation22 + $0x1e8] sm:$0xff]
    %v5778 = vld [vmem:[#allocation22 + $0x1f0] sm:$0xff]
    %v5779 = vld [vmem:[#allocation22 + $0x1f8] sm:$0xff]
    %v5780 = vpack.c.bf16 %v369, %v369
    %v5781 = vpack.c.bf16 %v4034, %v4034
    %v5782 = vld [vmem:[#allocation23] sm:$0xff]
    %v5783 = vld [vmem:[#allocation23 + $0x8] sm:$0xff]
    %v5784 = vld [vmem:[#allocation23 + $0x10] sm:$0xff]
    %v5785 = vld [vmem:[#allocation23 + $0x18] sm:$0xff]
    %v5786 = vld [vmem:[#allocation23 + $0x20] sm:$0xff]
    %v5787 = vld [vmem:[#allocation23 + $0x28] sm:$0xff]
    %v5788 = vld [vmem:[#allocation23 + $0x30] sm:$0xff]
    %v5789 = vld [vmem:[#allocation23 + $0x38] sm:$0xff]
    %v5790 = vld [vmem:[#allocation23 + $0x40] sm:$0xff]
    %v5791 = vld [vmem:[#allocation23 + $0x48] sm:$0xff]
    %v5792 = vld [vmem:[#allocation23 + $0x50] sm:$0xff]
    %v5793 = vld [vmem:[#allocation23 + $0x58] sm:$0xff]
    %v5794 = vld [vmem:[#allocation23 + $0x60] sm:$0xff]
    %v5795 = vld [vmem:[#allocation23 + $0x68] sm:$0xff]
    %v5796 = vld [vmem:[#allocation23 + $0x70] sm:$0xff]
    %v5797 = vld [vmem:[#allocation23 + $0x78] sm:$0xff]
    %v5798 = vld [vmem:[#allocation23 + $0x80] sm:$0xff]
    %v5799 = vld [vmem:[#allocation23 + $0x88] sm:$0xff]
    %v5800 = vld [vmem:[#allocation23 + $0x90] sm:$0xff]
    %v5801 = vld [vmem:[#allocation23 + $0x98] sm:$0xff]
    %v5802 = vld [vmem:[#allocation23 + $0xa0] sm:$0xff]
    %v5803 = vld [vmem:[#allocation23 + $0xa8] sm:$0xff]
    %v5804 = vld [vmem:[#allocation23 + $0xb0] sm:$0xff]
    %v5805 = vld [vmem:[#allocation23 + $0xb8] sm:$0xff]
    %v5806 = vld [vmem:[#allocation23 + $0xc0] sm:$0xff]
    %v5807 = vld [vmem:[#allocation23 + $0xc8] sm:$0xff]
    %v5808 = vld [vmem:[#allocation23 + $0xd0] sm:$0xff]
    %v5809 = vld [vmem:[#allocation23 + $0xd8] sm:$0xff]
    %v5810 = vld [vmem:[#allocation23 + $0xe0] sm:$0xff]
    %v5811 = vld [vmem:[#allocation23 + $0xe8] sm:$0xff]
    %v5812 = vld [vmem:[#allocation23 + $0xf0] sm:$0xff]
    %v5813 = vld [vmem:[#allocation23 + $0xf8] sm:$0xff]
    %v5814 = vld [vmem:[#allocation23 + $0x100] sm:$0xff]
    %v5815 = vld [vmem:[#allocation23 + $0x108] sm:$0xff]
    %v5816 = vld [vmem:[#allocation23 + $0x110] sm:$0xff]
    %v5817 = vld [vmem:[#allocation23 + $0x118] sm:$0xff]
    %v5818 = vld [vmem:[#allocation23 + $0x120] sm:$0xff]
    %v5819 = vld [vmem:[#allocation23 + $0x128] sm:$0xff]
    %v5820 = vld [vmem:[#allocation23 + $0x130] sm:$0xff]
    %v5821 = vld [vmem:[#allocation23 + $0x138] sm:$0xff]
    %v5822 = vld [vmem:[#allocation23 + $0x140] sm:$0xff]
    %v5823 = vld [vmem:[#allocation23 + $0x148] sm:$0xff]
    %v5824 = vld [vmem:[#allocation23 + $0x150] sm:$0xff]
    %v5825 = vld [vmem:[#allocation23 + $0x158] sm:$0xff]
    %v5826 = vld [vmem:[#allocation23 + $0x160] sm:$0xff]
    %v5827 = vld [vmem:[#allocation23 + $0x168] sm:$0xff]
    %v5828 = vld [vmem:[#allocation23 + $0x170] sm:$0xff]
    %v5829 = vld [vmem:[#allocation23 + $0x178] sm:$0xff]
    %v5830 = vld [vmem:[#allocation23 + $0x180] sm:$0xff]
    %v5831 = vld [vmem:[#allocation23 + $0x188] sm:$0xff]
    %v5832 = vld [vmem:[#allocation23 + $0x190] sm:$0xff]
    %v5833 = vld [vmem:[#allocation23 + $0x198] sm:$0xff]
    %v5834 = vld [vmem:[#allocation23 + $0x1a0] sm:$0xff]
    %v5835 = vld [vmem:[#allocation23 + $0x1a8] sm:$0xff]
    %v5836 = vld [vmem:[#allocation23 + $0x1b0] sm:$0xff]
    %v5837 = vld [vmem:[#allocation23 + $0x1b8] sm:$0xff]
    %v5838 = vld [vmem:[#allocation23 + $0x1c0] sm:$0xff]
    %v5839 = vld [vmem:[#allocation23 + $0x1c8] sm:$0xff]
    %v5840 = vld [vmem:[#allocation23 + $0x1d0] sm:$0xff]
    %v5841 = vld [vmem:[#allocation23 + $0x1d8] sm:$0xff]
    %v5842 = vld [vmem:[#allocation23 + $0x1e0] sm:$0xff]
    %v5843 = vld [vmem:[#allocation23 + $0x1e8] sm:$0xff]
    %v5844 = vld [vmem:[#allocation23 + $0x1f0] sm:$0xff]
    %v5845 = vld [vmem:[#allocation23 + $0x1f8] sm:$0xff]
    %v5910 = vunpack.c.l.b16 %v5782
    %v5911 = vunpack.c.h.b16 %v5782
    %v5912 = vunpack.c.l.b16 %v5783
    %v5913 = vunpack.c.h.b16 %v5783
    %v5914 = vunpack.c.l.b16 %v5784
    %v5915 = vunpack.c.h.b16 %v5784
    %v5916 = vunpack.c.l.b16 %v5785
    %v5917 = vunpack.c.h.b16 %v5785
    %v5918 = vunpack.c.l.b16 %v5786
    %v5919 = vunpack.c.h.b16 %v5786
    %v5920 = vunpack.c.l.b16 %v5787
    %v5921 = vunpack.c.h.b16 %v5787
    %v5922 = vunpack.c.l.b16 %v5788
    %v5923 = vunpack.c.h.b16 %v5788
    %v5924 = vunpack.c.l.b16 %v5789
    %v5925 = vunpack.c.h.b16 %v5789
    %v5926 = vunpack.c.l.b16 %v5790
    %v5927 = vunpack.c.h.b16 %v5790
    %v5928 = vunpack.c.l.b16 %v5791
    %v5929 = vunpack.c.h.b16 %v5791
    %v5930 = vunpack.c.l.b16 %v5792
    %v5931 = vunpack.c.h.b16 %v5792
    %v5932 = vunpack.c.l.b16 %v5793
    %v5933 = vunpack.c.h.b16 %v5793
    %v5934 = vunpack.c.l.b16 %v5794
    %v5935 = vunpack.c.h.b16 %v5794
    %v5936 = vunpack.c.l.b16 %v5795
    %v5937 = vunpack.c.h.b16 %v5795
    %v5938 = vunpack.c.l.b16 %v5796
    %v5939 = vunpack.c.h.b16 %v5796
    %v5940 = vunpack.c.l.b16 %v5797
    %v5941 = vunpack.c.h.b16 %v5797
    %v5942 = vunpack.c.l.b16 %v5798
    %v5943 = vunpack.c.h.b16 %v5798
    %v5944 = vunpack.c.l.b16 %v5799
    %v5945 = vunpack.c.h.b16 %v5799
    %v5946 = vunpack.c.l.b16 %v5800
    %v5947 = vunpack.c.h.b16 %v5800
    %v5948 = vunpack.c.l.b16 %v5801
    %v5949 = vunpack.c.h.b16 %v5801
    %v5950 = vunpack.c.l.b16 %v5802
    %v5951 = vunpack.c.h.b16 %v5802
    %v5952 = vunpack.c.l.b16 %v5803
    %v5953 = vunpack.c.h.b16 %v5803
    %v5954 = vunpack.c.l.b16 %v5804
    %v5955 = vunpack.c.h.b16 %v5804
    %v5956 = vunpack.c.l.b16 %v5805
    %v5957 = vunpack.c.h.b16 %v5805
    %v5958 = vunpack.c.l.b16 %v5806
    %v5959 = vunpack.c.h.b16 %v5806
    %v5960 = vunpack.c.l.b16 %v5807
    %v5961 = vunpack.c.h.b16 %v5807
    %v5962 = vunpack.c.l.b16 %v5808
    %v5963 = vunpack.c.h.b16 %v5808
    %v5964 = vunpack.c.l.b16 %v5809
    %v5965 = vunpack.c.h.b16 %v5809
    %v5966 = vunpack.c.l.b16 %v5810
    %v5967 = vunpack.c.h.b16 %v5810
    %v5968 = vunpack.c.l.b16 %v5811
    %v5969 = vunpack.c.h.b16 %v5811
    %v5970 = vunpack.c.l.b16 %v5812
    %v5971 = vunpack.c.h.b16 %v5812
    %v5972 = vunpack.c.l.b16 %v5813
    %v5973 = vunpack.c.h.b16 %v5813
    %v5974 = vunpack.c.l.b16 %v5814
    %v5975 = vunpack.c.h.b16 %v5814
    %v5976 = vunpack.c.l.b16 %v5815
    %v5977 = vunpack.c.h.b16 %v5815
    %v5978 = vunpack.c.l.b16 %v5816
    %v5979 = vunpack.c.h.b16 %v5816
    %v5980 = vunpack.c.l.b16 %v5817
    %v5981 = vunpack.c.h.b16 %v5817
    %v5982 = vunpack.c.l.b16 %v5818
    %v5983 = vunpack.c.h.b16 %v5818
    %v5984 = vunpack.c.l.b16 %v5819
    %v5985 = vunpack.c.h.b16 %v5819
    %v5986 = vunpack.c.l.b16 %v5820
    %v5987 = vunpack.c.h.b16 %v5820
    %v5988 = vunpack.c.l.b16 %v5821
    %v5989 = vunpack.c.h.b16 %v5821
    %v5990 = vunpack.c.l.b16 %v5822
    %v5991 = vunpack.c.h.b16 %v5822
    %v5992 = vunpack.c.l.b16 %v5823
    %v5993 = vunpack.c.h.b16 %v5823
    %v5994 = vunpack.c.l.b16 %v5824
    %v5995 = vunpack.c.h.b16 %v5824
    %v5996 = vunpack.c.l.b16 %v5825
    %v5997 = vunpack.c.h.b16 %v5825
    %v5998 = vunpack.c.l.b16 %v5826
    %v5999 = vunpack.c.h.b16 %v5826
    %v6000 = vunpack.c.l.b16 %v5827
    %v6001 = vunpack.c.h.b16 %v5827
    %v6002 = vunpack.c.l.b16 %v5828
    %v6003 = vunpack.c.h.b16 %v5828
    %v6004 = vunpack.c.l.b16 %v5829
    %v6005 = vunpack.c.h.b16 %v5829
    %v6006 = vunpack.c.l.b16 %v5830
    %v6007 = vunpack.c.h.b16 %v5830
    %v6008 = vunpack.c.l.b16 %v5831
    %v6009 = vunpack.c.h.b16 %v5831
    %v6010 = vunpack.c.l.b16 %v5832
    %v6011 = vunpack.c.h.b16 %v5832
    %v6012 = vunpack.c.l.b16 %v5833
    %v6013 = vunpack.c.h.b16 %v5833
    %v6014 = vunpack.c.l.b16 %v5834
    %v6015 = vunpack.c.h.b16 %v5834
    %v6016 = vunpack.c.l.b16 %v5835
    %v6017 = vunpack.c.h.b16 %v5835
    %v6018 = vunpack.c.l.b16 %v5836
    %v6019 = vunpack.c.h.b16 %v5836
    %v6020 = vunpack.c.l.b16 %v5837
    %v6021 = vunpack.c.h.b16 %v5837
    %v6022 = vunpack.c.l.b16 %v5838
    %v6023 = vunpack.c.h.b16 %v5838
    %v6024 = vunpack.c.l.b16 %v5839
    %v6025 = vunpack.c.h.b16 %v5839
    %v6026 = vunpack.c.l.b16 %v5840
    %v6027 = vunpack.c.h.b16 %v5840
    %v6028 = vunpack.c.l.b16 %v5841
    %v6029 = vunpack.c.h.b16 %v5841
    %v6030 = vunpack.c.l.b16 %v5842
    %v6031 = vunpack.c.h.b16 %v5842
    %v6032 = vunpack.c.l.b16 %v5843
    %v6033 = vunpack.c.h.b16 %v5843
    %v6034 = vunpack.c.l.b16 %v5844
    %v6035 = vunpack.c.h.b16 %v5844
    %v6036 = vunpack.c.l.b16 %v5845
    %v6037 = vunpack.c.h.b16 %v5845
    %v6038 = vpack.c.b16 %v5914, %v5910
    %v6039 = vpack.c.b16 %v5915, %v5911
    %v6040 = vpack.c.b16 %v5916, %v5912
    %v6041 = vpack.c.b16 %v5917, %v5913
    %v6042 = vpack.c.b16 %v5922, %v5918
    %v6043 = vpack.c.b16 %v5923, %v5919
    %v6044 = vpack.c.b16 %v5924, %v5920
    %v6045 = vpack.c.b16 %v5925, %v5921
    %v6046 = vpack.c.b16 %v5930, %v5926
    %v6047 = vpack.c.b16 %v5931, %v5927
    %v6048 = vpack.c.b16 %v5932, %v5928
    %v6049 = vpack.c.b16 %v5933, %v5929
    %v6050 = vpack.c.b16 %v5938, %v5934
    %v6051 = vpack.c.b16 %v5939, %v5935
    %v6052 = vpack.c.b16 %v5940, %v5936
    %v6053 = vpack.c.b16 %v5941, %v5937
    %v6054 = vpack.c.b16 %v5946, %v5942
    %v6055 = vpack.c.b16 %v5947, %v5943
    %v6056 = vpack.c.b16 %v5948, %v5944
    %v6057 = vpack.c.b16 %v5949, %v5945
    %v6058 = vpack.c.b16 %v5954, %v5950
    %v6059 = vpack.c.b16 %v5955, %v5951
    %v6060 = vpack.c.b16 %v5956, %v5952
    %v6061 = vpack.c.b16 %v5957, %v5953
    %v6062 = vpack.c.b16 %v5962, %v5958
    %v6063 = vpack.c.b16 %v5963, %v5959
    %v6064 = vpack.c.b16 %v5964, %v5960
    %v6065 = vpack.c.b16 %v5965, %v5961
    %v6066 = vpack.c.b16 %v5970, %v5966
    %v6067 = vpack.c.b16 %v5971, %v5967
    %v6068 = vpack.c.b16 %v5972, %v5968
    %v6069 = vpack.c.b16 %v5973, %v5969
    %v6070 = vpack.c.b16 %v5978, %v5974
    %v6071 = vpack.c.b16 %v5979, %v5975
    %v6072 = vpack.c.b16 %v5980, %v5976
    %v6073 = vpack.c.b16 %v5981, %v5977
    %v6074 = vpack.c.b16 %v5986, %v5982
    %v6075 = vpack.c.b16 %v5987, %v5983
    %v6076 = vpack.c.b16 %v5988, %v5984
    %v6077 = vpack.c.b16 %v5989, %v5985
    %v6078 = vpack.c.b16 %v5994, %v5990
    %v6079 = vpack.c.b16 %v5995, %v5991
    %v6080 = vpack.c.b16 %v5996, %v5992
    %v6081 = vpack.c.b16 %v5997, %v5993
    %v6082 = vpack.c.b16 %v6002, %v5998
    %v6083 = vpack.c.b16 %v6003, %v5999
    %v6084 = vpack.c.b16 %v6004, %v6000
    %v6085 = vpack.c.b16 %v6005, %v6001
    %v6086 = vpack.c.b16 %v6010, %v6006
    %v6087 = vpack.c.b16 %v6011, %v6007
    %v6088 = vpack.c.b16 %v6012, %v6008
    %v6089 = vpack.c.b16 %v6013, %v6009
    %v6090 = vpack.c.b16 %v6018, %v6014
    %v6091 = vpack.c.b16 %v6019, %v6015
    %v6092 = vpack.c.b16 %v6020, %v6016
    %v6093 = vpack.c.b16 %v6021, %v6017
    %v6094 = vpack.c.b16 %v6026, %v6022
    %v6095 = vpack.c.b16 %v6027, %v6023
    %v6096 = vpack.c.b16 %v6028, %v6024
    %v6097 = vpack.c.b16 %v6029, %v6025
    %v6098 = vpack.c.b16 %v6034, %v6030
    %v6099 = vpack.c.b16 %v6035, %v6031
    %v6100 = vpack.c.b16 %v6036, %v6032
    %v6101 = vpack.c.b16 %v6037, %v6033
    %6166 = vmatprep.subr.bf16.mxu0 %v6039
    %6167 = vmatpush1.bf16.msra.mxu0 %v6038
    %6168 = vmatprep.subr.bf16.mxu0 %v6043
    %6169 = vmatpush1.bf16.msra.mxu0 %v6042
    %6170 = vmatprep.subr.bf16.mxu0 %v6047
    %6171 = vmatpush1.bf16.msra.mxu0 %v6046
    %6172 = vmatprep.subr.bf16.mxu0 %v6051
    %6173 = vmatpush1.bf16.msra.mxu0 %v6050
    %6174 = vmatprep.subr.bf16.mxu0 %v6055
    %6175 = vmatpush1.bf16.msra.mxu0 %v6054
    %6176 = vmatprep.subr.bf16.mxu0 %v6059
    %6177 = vmatpush1.bf16.msra.mxu0 %v6058
    %6178 = vmatprep.subr.bf16.mxu0 %v6063
    %6179 = vmatpush1.bf16.msra.mxu0 %v6062
    %6180 = vmatprep.subr.bf16.mxu0 %v6067
    %6181 = vmatpush1.bf16.msra.mxu0 %v6066
    %6182 = vmatprep.subr.bf16.mxu0 %v6071
    %6183 = vmatpush1.bf16.msra.mxu0 %v6070
    %6184 = vmatprep.subr.bf16.mxu0 %v6075
    %6185 = vmatpush1.bf16.msra.mxu0 %v6074
    %6186 = vmatprep.subr.bf16.mxu0 %v6079
    %6187 = vmatpush1.bf16.msra.mxu0 %v6078
    %6188 = vmatprep.subr.bf16.mxu0 %v6083
    %6189 = vmatpush1.bf16.msra.mxu0 %v6082
    %6190 = vmatprep.subr.bf16.mxu0 %v6087
    %6191 = vmatpush1.bf16.msra.mxu0 %v6086
    %6192 = vmatprep.subr.bf16.mxu0 %v6091
    %6193 = vmatpush1.bf16.msra.mxu0 %v6090
    %6194 = vmatprep.subr.bf16.mxu0 %v6095
    %6195 = vmatpush1.bf16.msra.mxu0 %v6094
    %6196 = vmatprep.subr.bf16.mxu0 %v6099
    %6197 = vmatpush1.bf16.msra.mxu0 %v6098
    %6198 = vmatprep.mubr.bf16.mxu0 %v5781
    %6199 = vmatmul.mubr.bf16.gmra.mrb[0].mxu0 %v5780
    %v6200 = vpop.f32.mrb[0].mxu0
    %v6201 = vadd.f32 0.0, %v6200
    %v6202 = vpop.f32.mrb[0].mxu0
    %v6203 = vadd.f32 0.0, %v6202
    %v6204 = vpop.f32.mrb[0].mxu0
    %v6205 = vpop.f32.mrb[0].mxu0
    %6206 = vdwg.mxu0
    %6207 = vmatprep.subr.bf16.mxu0 %v6041
    %6208 = vmatpush1.bf16.msra.mxu0 %v6040
    %6209 = vmatprep.subr.bf16.mxu0 %v6045
    %6210 = vmatpush1.bf16.msra.mxu0 %v6044
    %6211 = vmatprep.subr.bf16.mxu0 %v6049
    %6212 = vmatpush1.bf16.msra.mxu0 %v6048
    %6213 = vmatprep.subr.bf16.mxu0 %v6053
    %6214 = vmatpush1.bf16.msra.mxu0 %v6052
    %6215 = vmatprep.subr.bf16.mxu0 %v6057
    %6216 = vmatpush1.bf16.msra.mxu0 %v6056
    %6217 = vmatprep.subr.bf16.mxu0 %v6061
    %6218 = vmatpush1.bf16.msra.mxu0 %v6060
    %6219 = vmatprep.subr.bf16.mxu0 %v6065
    %6220 = vmatpush1.bf16.msra.mxu0 %v6064
    %6221 = vmatprep.subr.bf16.mxu0 %v6069
    %6222 = vmatpush1.bf16.msra.mxu0 %v6068
    %6223 = vmatprep.subr.bf16.mxu0 %v6073
    %6224 = vmatpush1.bf16.msra.mxu0 %v6072
    %6225 = vmatprep.subr.bf16.mxu0 %v6077
    %6226 = vmatpush1.bf16.msra.mxu0 %v6076
    %6227 = vmatprep.subr.bf16.mxu0 %v6081
    %6228 = vmatpush1.bf16.msra.mxu0 %v6080
    %6229 = vmatprep.subr.bf16.mxu0 %v6085
    %6230 = vmatpush1.bf16.msra.mxu0 %v6084
    %6231 = vmatprep.subr.bf16.mxu0 %v6089
    %6232 = vmatpush1.bf16.msra.mxu0 %v6088
    %6233 = vmatprep.subr.bf16.mxu0 %v6093
    %6234 = vmatpush1.bf16.msra.mxu0 %v6092
    %6235 = vmatprep.subr.bf16.mxu0 %v6097
    %6236 = vmatpush1.bf16.msra.mxu0 %v6096
    %6237 = vmatprep.subr.bf16.mxu0 %v6101
    %6238 = vmatpush1.bf16.msra.mxu0 %v6100
    %6239 = vmatprep.mubr.bf16.mxu0 %v5781
    %6240 = vmatmul.mubr.bf16.gmra.mrb[0].mxu0 %v5780
    %v6241 = vpop.f32.mrb[0].mxu0
    %v6242 = vadd.f32 0.0, %v6241
    %v6243 = vpop.f32.mrb[0].mxu0
    %v6244 = vadd.f32 0.0, %v6243
    %v6245 = vpop.f32.mrb[0].mxu0
    %v6246 = vpop.f32.mrb[0].mxu0
    %6247 = vdwg.mxu0
    %v6312 = vunpack.c.l.b16 %v5716
    %v6313 = vunpack.c.h.b16 %v5716
    %v6314 = vunpack.c.l.b16 %v5717
    %v6315 = vunpack.c.h.b16 %v5717
    %v6316 = vunpack.c.l.b16 %v5718
    %v6317 = vunpack.c.h.b16 %v5718
    %v6318 = vunpack.c.l.b16 %v5719
    %v6319 = vunpack.c.h.b16 %v5719
    %v6320 = vunpack.c.l.b16 %v5720
    %v6321 = vunpack.c.h.b16 %v5720
    %v6322 = vunpack.c.l.b16 %v5721
    %v6323 = vunpack.c.h.b16 %v5721
    %v6324 = vunpack.c.l.b16 %v5722
    %v6325 = vunpack.c.h.b16 %v5722
    %v6326 = vunpack.c.l.b16 %v5723
    %v6327 = vunpack.c.h.b16 %v5723
    %v6328 = vunpack.c.l.b16 %v5724
    %v6329 = vunpack.c.h.b16 %v5724
    %v6330 = vunpack.c.l.b16 %v5725
    %v6331 = vunpack.c.h.b16 %v5725
    %v6332 = vunpack.c.l.b16 %v5726
    %v6333 = vunpack.c.h.b16 %v5726
    %v6334 = vunpack.c.l.b16 %v5727
    %v6335 = vunpack.c.h.b16 %v5727
    %v6336 = vunpack.c.l.b16 %v5728
    %v6337 = vunpack.c.h.b16 %v5728
    %v6338 = vunpack.c.l.b16 %v5729
    %v6339 = vunpack.c.h.b16 %v5729
    %v6340 = vunpack.c.l.b16 %v5730
    %v6341 = vunpack.c.h.b16 %v5730
    %v6342 = vunpack.c.l.b16 %v5731
    %v6343 = vunpack.c.h.b16 %v5731
    %v6344 = vunpack.c.l.b16 %v5732
    %v6345 = vunpack.c.h.b16 %v5732
    %v6346 = vunpack.c.l.b16 %v5733
    %v6347 = vunpack.c.h.b16 %v5733
    %v6348 = vunpack.c.l.b16 %v5734
    %v6349 = vunpack.c.h.b16 %v5734
    %v6350 = vunpack.c.l.b16 %v5735
    %v6351 = vunpack.c.h.b16 %v5735
    %v6352 = vunpack.c.l.b16 %v5736
    %v6353 = vunpack.c.h.b16 %v5736
    %v6354 = vunpack.c.l.b16 %v5737
    %v6355 = vunpack.c.h.b16 %v5737
    %v6356 = vunpack.c.l.b16 %v5738
    %v6357 = vunpack.c.h.b16 %v5738
    %v6358 = vunpack.c.l.b16 %v5739
    %v6359 = vunpack.c.h.b16 %v5739
    %v6360 = vunpack.c.l.b16 %v5740
    %v6361 = vunpack.c.h.b16 %v5740
    %v6362 = vunpack.c.l.b16 %v5741
    %v6363 = vunpack.c.h.b16 %v5741
    %v6364 = vunpack.c.l.b16 %v5742
    %v6365 = vunpack.c.h.b16 %v5742
    %v6366 = vunpack.c.l.b16 %v5743
    %v6367 = vunpack.c.h.b16 %v5743
    %v6368 = vunpack.c.l.b16 %v5744
    %v6369 = vunpack.c.h.b16 %v5744
    %v6370 = vunpack.c.l.b16 %v5745
    %v6371 = vunpack.c.h.b16 %v5745
    %v6372 = vunpack.c.l.b16 %v5746
    %v6373 = vunpack.c.h.b16 %v5746
    %v6374 = vunpack.c.l.b16 %v5747
    %v6375 = vunpack.c.h.b16 %v5747
    %v6376 = vunpack.c.l.b16 %v5748
    %v6377 = vunpack.c.h.b16 %v5748
    %v6378 = vunpack.c.l.b16 %v5749
    %v6379 = vunpack.c.h.b16 %v5749
    %v6380 = vunpack.c.l.b16 %v5750
    %v6381 = vunpack.c.h.b16 %v5750
    %v6382 = vunpack.c.l.b16 %v5751
    %v6383 = vunpack.c.h.b16 %v5751
    %v6384 = vunpack.c.l.b16 %v5752
    %v6385 = vunpack.c.h.b16 %v5752
    %v6386 = vunpack.c.l.b16 %v5753
    %v6387 = vunpack.c.h.b16 %v5753
    %v6388 = vunpack.c.l.b16 %v5754
    %v6389 = vunpack.c.h.b16 %v5754
    %v6390 = vunpack.c.l.b16 %v5755
    %v6391 = vunpack.c.h.b16 %v5755
    %v6392 = vunpack.c.l.b16 %v5756
    %v6393 = vunpack.c.h.b16 %v5756
    %v6394 = vunpack.c.l.b16 %v5757
    %v6395 = vunpack.c.h.b16 %v5757
    %v6396 = vunpack.c.l.b16 %v5758
    %v6397 = vunpack.c.h.b16 %v5758
    %v6398 = vunpack.c.l.b16 %v5759
    %v6399 = vunpack.c.h.b16 %v5759
    %v6400 = vunpack.c.l.b16 %v5760
    %v6401 = vunpack.c.h.b16 %v5760
    %v6402 = vunpack.c.l.b16 %v5761
    %v6403 = vunpack.c.h.b16 %v5761
    %v6404 = vunpack.c.l.b16 %v5762
    %v6405 = vunpack.c.h.b16 %v5762
    %v6406 = vunpack.c.l.b16 %v5763
    %v6407 = vunpack.c.h.b16 %v5763
    %v6408 = vunpack.c.l.b16 %v5764
    %v6409 = vunpack.c.h.b16 %v5764
    %v6410 = vunpack.c.l.b16 %v5765
    %v6411 = vunpack.c.h.b16 %v5765
    %v6412 = vunpack.c.l.b16 %v5766
    %v6413 = vunpack.c.h.b16 %v5766
    %v6414 = vunpack.c.l.b16 %v5767
    %v6415 = vunpack.c.h.b16 %v5767
    %v6416 = vunpack.c.l.b16 %v5768
    %v6417 = vunpack.c.h.b16 %v5768
    %v6418 = vunpack.c.l.b16 %v5769
    %v6419 = vunpack.c.h.b16 %v5769
    %v6420 = vunpack.c.l.b16 %v5770
    %v6421 = vunpack.c.h.b16 %v5770
    %v6422 = vunpack.c.l.b16 %v5771
    %v6423 = vunpack.c.h.b16 %v5771
    %v6424 = vunpack.c.l.b16 %v5772
    %v6425 = vunpack.c.h.b16 %v5772
    %v6426 = vunpack.c.l.b16 %v5773
    %v6427 = vunpack.c.h.b16 %v5773
    %v6428 = vunpack.c.l.b16 %v5774
    %v6429 = vunpack.c.h.b16 %v5774
    %v6430 = vunpack.c.l.b16 %v5775
    %v6431 = vunpack.c.h.b16 %v5775
    %v6432 = vunpack.c.l.b16 %v5776
    %v6433 = vunpack.c.h.b16 %v5776
    %v6434 = vunpack.c.l.b16 %v5777
    %v6435 = vunpack.c.h.b16 %v5777
    %v6436 = vunpack.c.l.b16 %v5778
    %v6437 = vunpack.c.h.b16 %v5778
    %v6438 = vunpack.c.l.b16 %v5779
    %v6439 = vunpack.c.h.b16 %v5779
    %v6440 = vpack.c.b16 %v6316, %v6312
    %v6441 = vpack.c.b16 %v6317, %v6313
    %v6442 = vpack.c.b16 %v6318, %v6314
    %v6443 = vpack.c.b16 %v6319, %v6315
    %v6444 = vpack.c.b16 %v6324, %v6320
    %v6445 = vpack.c.b16 %v6325, %v6321
    %v6446 = vpack.c.b16 %v6326, %v6322
    %v6447 = vpack.c.b16 %v6327, %v6323
    %v6448 = vpack.c.b16 %v6332, %v6328
    %v6449 = vpack.c.b16 %v6333, %v6329
    %v6450 = vpack.c.b16 %v6334, %v6330
    %v6451 = vpack.c.b16 %v6335, %v6331
    %v6452 = vpack.c.b16 %v6340, %v6336
    %v6453 = vpack.c.b16 %v6341, %v6337
    %v6454 = vpack.c.b16 %v6342, %v6338
    %v6455 = vpack.c.b16 %v6343, %v6339
    %v6456 = vpack.c.b16 %v6348, %v6344
    %v6457 = vpack.c.b16 %v6349, %v6345
    %v6458 = vpack.c.b16 %v6350, %v6346
    %v6459 = vpack.c.b16 %v6351, %v6347
    %v6460 = vpack.c.b16 %v6356, %v6352
    %v6461 = vpack.c.b16 %v6357, %v6353
    %v6462 = vpack.c.b16 %v6358, %v6354
    %v6463 = vpack.c.b16 %v6359, %v6355
    %v6464 = vpack.c.b16 %v6364, %v6360
    %v6465 = vpack.c.b16 %v6365, %v6361
    %v6466 = vpack.c.b16 %v6366, %v6362
    %v6467 = vpack.c.b16 %v6367, %v6363
    %v6468 = vpack.c.b16 %v6372, %v6368
    %v6469 = vpack.c.b16 %v6373, %v6369
    %v6470 = vpack.c.b16 %v6374, %v6370
    %v6471 = vpack.c.b16 %v6375, %v6371
    %v6472 = vpack.c.b16 %v6380, %v6376
    %v6473 = vpack.c.b16 %v6381, %v6377
    %v6474 = vpack.c.b16 %v6382, %v6378
    %v6475 = vpack.c.b16 %v6383, %v6379
    %v6476 = vpack.c.b16 %v6388, %v6384
    %v6477 = vpack.c.b16 %v6389, %v6385
    %v6478 = vpack.c.b16 %v6390, %v6386
    %v6479 = vpack.c.b16 %v6391, %v6387
    %v6480 = vpack.c.b16 %v6396, %v6392
    %v6481 = vpack.c.b16 %v6397, %v6393
    %v6482 = vpack.c.b16 %v6398, %v6394
    %v6483 = vpack.c.b16 %v6399, %v6395
    %v6484 = vpack.c.b16 %v6404, %v6400
    %v6485 = vpack.c.b16 %v6405, %v6401
    %v6486 = vpack.c.b16 %v6406, %v6402
    %v6487 = vpack.c.b16 %v6407, %v6403
    %v6488 = vpack.c.b16 %v6412, %v6408
    %v6489 = vpack.c.b16 %v6413, %v6409
    %v6490 = vpack.c.b16 %v6414, %v6410
    %v6491 = vpack.c.b16 %v6415, %v6411
    %v6492 = vpack.c.b16 %v6420, %v6416
    %v6493 = vpack.c.b16 %v6421, %v6417
    %v6494 = vpack.c.b16 %v6422, %v6418
    %v6495 = vpack.c.b16 %v6423, %v6419
    %v6496 = vpack.c.b16 %v6428, %v6424
    %v6497 = vpack.c.b16 %v6429, %v6425
    %v6498 = vpack.c.b16 %v6430, %v6426
    %v6499 = vpack.c.b16 %v6431, %v6427
    %v6500 = vpack.c.b16 %v6436, %v6432
    %v6501 = vpack.c.b16 %v6437, %v6433
    %v6502 = vpack.c.b16 %v6438, %v6434
    %v6503 = vpack.c.b16 %v6439, %v6435
    %6568 = vmatprep.subr.bf16.mxu0 %v6441
    %6569 = vmatpush1.bf16.msra.mxu0 %v6440
    %6570 = vmatprep.subr.bf16.mxu0 %v6445
    %6571 = vmatpush1.bf16.msra.mxu0 %v6444
    %6572 = vmatprep.subr.bf16.mxu0 %v6449
    %6573 = vmatpush1.bf16.msra.mxu0 %v6448
    %6574 = vmatprep.subr.bf16.mxu0 %v6453
    %6575 = vmatpush1.bf16.msra.mxu0 %v6452
    %6576 = vmatprep.subr.bf16.mxu0 %v6457
    %6577 = vmatpush1.bf16.msra.mxu0 %v6456
    %6578 = vmatprep.subr.bf16.mxu0 %v6461
    %6579 = vmatpush1.bf16.msra.mxu0 %v6460
    %6580 = vmatprep.subr.bf16.mxu0 %v6465
    %6581 = vmatpush1.bf16.msra.mxu0 %v6464
    %6582 = vmatprep.subr.bf16.mxu0 %v6469
    %6583 = vmatpush1.bf16.msra.mxu0 %v6468
    %6584 = vmatprep.subr.bf16.mxu0 %v6473
    %6585 = vmatpush1.bf16.msra.mxu0 %v6472
    %6586 = vmatprep.subr.bf16.mxu0 %v6477
    %6587 = vmatpush1.bf16.msra.mxu0 %v6476
    %6588 = vmatprep.subr.bf16.mxu0 %v6481
    %6589 = vmatpush1.bf16.msra.mxu0 %v6480
    %6590 = vmatprep.subr.bf16.mxu0 %v6485
    %6591 = vmatpush1.bf16.msra.mxu0 %v6484
    %6592 = vmatprep.subr.bf16.mxu0 %v6489
    %6593 = vmatpush1.bf16.msra.mxu0 %v6488
    %6594 = vmatprep.subr.bf16.mxu0 %v6493
    %6595 = vmatpush1.bf16.msra.mxu0 %v6492
    %6596 = vmatprep.subr.bf16.mxu0 %v6497
    %6597 = vmatpush1.bf16.msra.mxu0 %v6496
    %6598 = vmatprep.subr.bf16.mxu0 %v6501
    %6599 = vmatpush1.bf16.msra.mxu0 %v6500
    %6600 = vmatprep.mubr.bf16.mxu0 %v915
    %6601 = vmatmul.mubr.bf16.gmra.mrb[0].mxu0 %v914
    %v6602 = vpop.f32.mrb[0].mxu0
    %v6603 = vadd.f32 %v6201, %v6602
    %v6604 = vpop.f32.mrb[0].mxu0
    %v6605 = vadd.f32 %v6203, %v6604
    %v6606 = vpop.f32.mrb[0].mxu0
    %v6607 = vpop.f32.mrb[0].mxu0
    %6608 = vdwg.mxu0
    %6609 = vmatprep.subr.bf16.mxu0 %v6443
    %6610 = vmatpush1.bf16.msra.mxu0 %v6442
    %6611 = vmatprep.subr.bf16.mxu0 %v6447
    %6612 = vmatpush1.bf16.msra.mxu0 %v6446
    %6613 = vmatprep.subr.bf16.mxu0 %v6451
    %6614 = vmatpush1.bf16.msra.mxu0 %v6450
    %6615 = vmatprep.subr.bf16.mxu0 %v6455
    %6616 = vmatpush1.bf16.msra.mxu0 %v6454
    %6617 = vmatprep.subr.bf16.mxu0 %v6459
    %6618 = vmatpush1.bf16.msra.mxu0 %v6458
    %6619 = vmatprep.subr.bf16.mxu0 %v6463
    %6620 = vmatpush1.bf16.msra.mxu0 %v6462
    %6621 = vmatprep.subr.bf16.mxu0 %v6467
    %6622 = vmatpush1.bf16.msra.mxu0 %v6466
    %6623 = vmatprep.subr.bf16.mxu0 %v6471
    %6624 = vmatpush1.bf16.msra.mxu0 %v6470
    %6625 = vmatprep.subr.bf16.mxu0 %v6475
    %6626 = vmatpush1.bf16.msra.mxu0 %v6474
    %6627 = vmatprep.subr.bf16.mxu0 %v6479
    %6628 = vmatpush1.bf16.msra.mxu0 %v6478
    %6629 = vmatprep.subr.bf16.mxu0 %v6483
    %6630 = vmatpush1.bf16.msra.mxu0 %v6482
    %6631 = vmatprep.subr.bf16.mxu0 %v6487
    %6632 = vmatpush1.bf16.msra.mxu0 %v6486
    %6633 = vmatprep.subr.bf16.mxu0 %v6491
    %6634 = vmatpush1.bf16.msra.mxu0 %v6490
    %6635 = vmatprep.subr.bf16.mxu0 %v6495
    %6636 = vmatpush1.bf16.msra.mxu0 %v6494
    %6637 = vmatprep.subr.bf16.mxu0 %v6499
    %6638 = vmatpush1.bf16.msra.mxu0 %v6498
    %6639 = vmatprep.subr.bf16.mxu0 %v6503
    %6640 = vmatpush1.bf16.msra.mxu0 %v6502
    %6641 = vmatprep.mubr.bf16.mxu0 %v915
    %6642 = vmatmul.mubr.bf16.gmra.mrb[0].mxu0 %v914
    %v6643 = vpop.f32.mrb[0].mxu0
    %v6644 = vadd.f32 %v6242, %v6643
    %v6645 = vpop.f32.mrb[0].mxu0
    %v6646 = vadd.f32 %v6244, %v6645
    %v6647 = vpop.f32.mrb[0].mxu0
    %v6648 = vpop.f32.mrb[0].mxu0
    %6649 = vdwg.mxu0
    %v6650 = vld [vmem:[%s89] sm:$0xf]
    %v6652 = vlaneseq
    %v6653 = vshrl.u32 %v6652, 7
    %v6654 = vsub.s32 0, %v6653
    %v6655 = vrot.slane %v6650, %v6654
    %v6656 = vlaneseq
    %v6657 = vshrl.u32 %v6656, 7
    %v6658 = vsub.s32 1, %v6657
    %v6659 = vrot.slane %v6650, %v6658
    %v6660 = vlaneseq
    %v6661 = vshrl.u32 %v6660, 7
    %v6662 = vsub.s32 2, %v6661
    %v6663 = vrot.slane %v6650, %v6662
    %v6664 = vlaneseq
    %v6665 = vshrl.u32 %v6664, 7
    %v6666 = vsub.s32 3, %v6665
    %v6667 = vrot.slane %v6650, %v6666
    %v6672 = vadd.f32 %v6603, %v6655
    %v6673 = vadd.f32 %v6605, %v6659
    %v6674 = vadd.f32 %v6644, %v6663
    %v6675 = vadd.f32 %v6646, %v6667
    %v6676 = vmax.f32 %v6672, 0.0
    %v6677 = vmax.f32 %v6673, 0.0
    %v6678 = vmax.f32 %v6674, 0.0
    %v6679 = vmax.f32 %v6675, 0.0
    %v6680 = vpack.c.bf16 %v6676, %v6676
    %v6681 = vpack.c.bf16 %v6677, %v6677
    %v6682 = vpack.c.bf16 %v6678, %v6678
    %v6683 = vpack.c.bf16 %v6679, %v6679
    %v6684 = vld [vmem:[#allocation25] sm:$0xf]
    %v6685 = vld [vmem:[#allocation25 + $0x4] sm:$0xf]
    %v6686 = vld [vmem:[#allocation25 + $0x8] sm:$0xf]
    %v6687 = vld [vmem:[#allocation25 + $0xc] sm:$0xf]
    %v6688 = vld [vmem:[#allocation25 + $0x10] sm:$0xf]
    %v6689 = vld [vmem:[#allocation25 + $0x14] sm:$0xf]
    %v6690 = vld [vmem:[#allocation25 + $0x18] sm:$0xf]
    %v6691 = vld [vmem:[#allocation25 + $0x1c] sm:$0xf]
    %v6692 = vld [vmem:[#allocation25 + $0x20] sm:$0xf]
    %v6693 = vld [vmem:[#allocation25 + $0x24] sm:$0xf]
    %v6694 = vld [vmem:[#allocation25 + $0x28] sm:$0xf]
    %v6695 = vld [vmem:[#allocation25 + $0x2c] sm:$0xf]
    %v6696 = vld [vmem:[#allocation25 + $0x30] sm:$0xf]
    %v6697 = vld [vmem:[#allocation25 + $0x34] sm:$0xf]
    %v6698 = vld [vmem:[#allocation25 + $0x38] sm:$0xf]
    %v6699 = vld [vmem:[#allocation25 + $0x3c] sm:$0xf]
    %v6700 = vld [vmem:[#allocation25 + $0x40] sm:$0xf]
    %v6701 = vld [vmem:[#allocation25 + $0x44] sm:$0xf]
    %v6702 = vld [vmem:[#allocation25 + $0x48] sm:$0xf]
    %v6703 = vld [vmem:[#allocation25 + $0x4c] sm:$0xf]
    %v6704 = vld [vmem:[#allocation25 + $0x50] sm:$0xf]
    %v6705 = vld [vmem:[#allocation25 + $0x54] sm:$0xf]
    %v6706 = vld [vmem:[#allocation25 + $0x58] sm:$0xf]
    %v6707 = vld [vmem:[#allocation25 + $0x5c] sm:$0xf]
    %v6708 = vld [vmem:[#allocation25 + $0x60] sm:$0xf]
    %v6709 = vld [vmem:[#allocation25 + $0x64] sm:$0xf]
    %v6710 = vld [vmem:[#allocation25 + $0x68] sm:$0xf]
    %v6711 = vld [vmem:[#allocation25 + $0x6c] sm:$0xf]
    %v6712 = vld [vmem:[#allocation25 + $0x70] sm:$0xf]
    %v6713 = vld [vmem:[#allocation25 + $0x74] sm:$0xf]
    %v6714 = vld [vmem:[#allocation25 + $0x78] sm:$0xf]
    %v6715 = vld [vmem:[#allocation25 + $0x7c] sm:$0xf]
    %v6716 = vld [vmem:[#allocation25 + $0x80] sm:$0xf]
    %v6717 = vld [vmem:[#allocation25 + $0x84] sm:$0xf]
    %v6718 = vld [vmem:[#allocation25 + $0x88] sm:$0xf]
    %v6719 = vld [vmem:[#allocation25 + $0x8c] sm:$0xf]
    %v6720 = vld [vmem:[#allocation25 + $0x90] sm:$0xf]
    %v6721 = vld [vmem:[#allocation25 + $0x94] sm:$0xf]
    %v6722 = vld [vmem:[#allocation25 + $0x98] sm:$0xf]
    %v6723 = vld [vmem:[#allocation25 + $0x9c] sm:$0xf]
    %v6724 = vld [vmem:[#allocation25 + $0xa0] sm:$0xf]
    %v6725 = vld [vmem:[#allocation25 + $0xa4] sm:$0xf]
    %v6726 = vld [vmem:[#allocation25 + $0xa8] sm:$0xf]
    %v6727 = vld [vmem:[#allocation25 + $0xac] sm:$0xf]
    %v6728 = vld [vmem:[#allocation25 + $0xb0] sm:$0xf]
    %v6729 = vld [vmem:[#allocation25 + $0xb4] sm:$0xf]
    %v6730 = vld [vmem:[#allocation25 + $0xb8] sm:$0xf]
    %v6731 = vld [vmem:[#allocation25 + $0xbc] sm:$0xf]
    %v6732 = vld [vmem:[#allocation25 + $0xc0] sm:$0xf]
    %v6733 = vld [vmem:[#allocation25 + $0xc4] sm:$0xf]
    %v6734 = vld [vmem:[#allocation25 + $0xc8] sm:$0xf]
    %v6735 = vld [vmem:[#allocation25 + $0xcc] sm:$0xf]
    %v6736 = vld [vmem:[#allocation25 + $0xd0] sm:$0xf]
    %v6737 = vld [vmem:[#allocation25 + $0xd4] sm:$0xf]
    %v6738 = vld [vmem:[#allocation25 + $0xd8] sm:$0xf]
    %v6739 = vld [vmem:[#allocation25 + $0xdc] sm:$0xf]
    %v6740 = vld [vmem:[#allocation25 + $0xe0] sm:$0xf]
    %v6741 = vld [vmem:[#allocation25 + $0xe4] sm:$0xf]
    %v6742 = vld [vmem:[#allocation25 + $0xe8] sm:$0xf]
    %v6743 = vld [vmem:[#allocation25 + $0xec] sm:$0xf]
    %v6744 = vld [vmem:[#allocation25 + $0xf0] sm:$0xf]
    %v6745 = vld [vmem:[#allocation25 + $0xf4] sm:$0xf]
    %v6746 = vld [vmem:[#allocation25 + $0xf8] sm:$0xf]
    %v6747 = vld [vmem:[#allocation25 + $0xfc] sm:$0xf]
    %v6748 = vld [vmem:[%s93] sm:$0x1]
    %v6750 = vlaneseq
    %v6751 = vshrl.u32 %v6750, 7
    %v6752 = vsub.s32 0, %v6751
    %v6753 = vrot.slane %v6748, %v6752
    %v6819 = vunpack.c.l.b16 %v6684
    %v6820 = vunpack.c.l.b16 %v6685
    %v6821 = vunpack.c.l.b16 %v6686
    %v6822 = vunpack.c.l.b16 %v6687
    %v6823 = vunpack.c.l.b16 %v6688
    %v6824 = vunpack.c.l.b16 %v6689
    %v6825 = vunpack.c.l.b16 %v6690
    %v6826 = vunpack.c.l.b16 %v6691
    %v6827 = vunpack.c.l.b16 %v6692
    %v6828 = vunpack.c.l.b16 %v6693
    %v6829 = vunpack.c.l.b16 %v6694
    %v6830 = vunpack.c.l.b16 %v6695
    %v6831 = vunpack.c.l.b16 %v6696
    %v6832 = vunpack.c.l.b16 %v6697
    %v6833 = vunpack.c.l.b16 %v6698
    %v6834 = vunpack.c.l.b16 %v6699
    %v6835 = vunpack.c.l.b16 %v6700
    %v6836 = vunpack.c.l.b16 %v6701
    %v6837 = vunpack.c.l.b16 %v6702
    %v6838 = vunpack.c.l.b16 %v6703
    %v6839 = vunpack.c.l.b16 %v6704
    %v6840 = vunpack.c.l.b16 %v6705
    %v6841 = vunpack.c.l.b16 %v6706
    %v6842 = vunpack.c.l.b16 %v6707
    %v6843 = vunpack.c.l.b16 %v6708
    %v6844 = vunpack.c.l.b16 %v6709
    %v6845 = vunpack.c.l.b16 %v6710
    %v6846 = vunpack.c.l.b16 %v6711
    %v6847 = vunpack.c.l.b16 %v6712
    %v6848 = vunpack.c.l.b16 %v6713
    %v6849 = vunpack.c.l.b16 %v6714
    %v6850 = vunpack.c.l.b16 %v6715
    %v6851 = vunpack.c.l.b16 %v6716
    %v6852 = vunpack.c.l.b16 %v6717
    %v6853 = vunpack.c.l.b16 %v6718
    %v6854 = vunpack.c.l.b16 %v6719
    %v6855 = vunpack.c.l.b16 %v6720
    %v6856 = vunpack.c.l.b16 %v6721
    %v6857 = vunpack.c.l.b16 %v6722
    %v6858 = vunpack.c.l.b16 %v6723
    %v6859 = vunpack.c.l.b16 %v6724
    %v6860 = vunpack.c.l.b16 %v6725
    %v6861 = vunpack.c.l.b16 %v6726
    %v6862 = vunpack.c.l.b16 %v6727
    %v6863 = vunpack.c.l.b16 %v6728
    %v6864 = vunpack.c.l.b16 %v6729
    %v6865 = vunpack.c.l.b16 %v6730
    %v6866 = vunpack.c.l.b16 %v6731
    %v6867 = vunpack.c.l.b16 %v6732
    %v6868 = vunpack.c.l.b16 %v6733
    %v6869 = vunpack.c.l.b16 %v6734
    %v6870 = vunpack.c.l.b16 %v6735
    %v6871 = vunpack.c.l.b16 %v6736
    %v6872 = vunpack.c.l.b16 %v6737
    %v6873 = vunpack.c.l.b16 %v6738
    %v6874 = vunpack.c.l.b16 %v6739
    %v6875 = vunpack.c.l.b16 %v6740
    %v6876 = vunpack.c.l.b16 %v6741
    %v6877 = vunpack.c.l.b16 %v6742
    %v6878 = vunpack.c.l.b16 %v6743
    %v6879 = vunpack.c.l.b16 %v6744
    %v6880 = vunpack.c.l.b16 %v6745
    %v6881 = vunpack.c.l.b16 %v6746
    %v6882 = vunpack.c.l.b16 %v6747
    %v6883 = vpack.c.b16 %v6820, %v6819
    %v6884 = vpack.c.b16 %v6822, %v6821
    %v6885 = vpack.c.b16 %v6824, %v6823
    %v6886 = vpack.c.b16 %v6826, %v6825
    %v6887 = vpack.c.b16 %v6828, %v6827
    %v6888 = vpack.c.b16 %v6830, %v6829
    %v6889 = vpack.c.b16 %v6832, %v6831
    %v6890 = vpack.c.b16 %v6834, %v6833
    %v6891 = vpack.c.b16 %v6836, %v6835
    %v6892 = vpack.c.b16 %v6838, %v6837
    %v6893 = vpack.c.b16 %v6840, %v6839
    %v6894 = vpack.c.b16 %v6842, %v6841
    %v6895 = vpack.c.b16 %v6844, %v6843
    %v6896 = vpack.c.b16 %v6846, %v6845
    %v6897 = vpack.c.b16 %v6848, %v6847
    %v6898 = vpack.c.b16 %v6850, %v6849
    %v6899 = vpack.c.b16 %v6852, %v6851
    %v6900 = vpack.c.b16 %v6854, %v6853
    %v6901 = vpack.c.b16 %v6856, %v6855
    %v6902 = vpack.c.b16 %v6858, %v6857
    %v6903 = vpack.c.b16 %v6860, %v6859
    %v6904 = vpack.c.b16 %v6862, %v6861
    %v6905 = vpack.c.b16 %v6864, %v6863
    %v6906 = vpack.c.b16 %v6866, %v6865
    %v6907 = vpack.c.b16 %v6868, %v6867
    %v6908 = vpack.c.b16 %v6870, %v6869
    %v6909 = vpack.c.b16 %v6872, %v6871
    %v6910 = vpack.c.b16 %v6874, %v6873
    %v6911 = vpack.c.b16 %v6876, %v6875
    %v6912 = vpack.c.b16 %v6878, %v6877
    %v6913 = vpack.c.b16 %v6880, %v6879
    %v6914 = vpack.c.b16 %v6882, %v6881
    %6947 = vmatprep.subr.bf16.mxu0 0
    %6948 = vmatpush1.bf16.msra.mxu0 %v6883
    %6949 = vmatprep.subr.bf16.mxu0 0
    %6950 = vmatpush1.bf16.msra.mxu0 %v6884
    %6951 = vmatprep.subr.bf16.mxu0 0
    %6952 = vmatpush1.bf16.msra.mxu0 %v6885
    %6953 = vmatprep.subr.bf16.mxu0 0
    %6954 = vmatpush1.bf16.msra.mxu0 %v6886
    %6955 = vmatprep.subr.bf16.mxu0 0
    %6956 = vmatpush1.bf16.msra.mxu0 %v6887
    %6957 = vmatprep.subr.bf16.mxu0 0
    %6958 = vmatpush1.bf16.msra.mxu0 %v6888
    %6959 = vmatprep.subr.bf16.mxu0 0
    %6960 = vmatpush1.bf16.msra.mxu0 %v6889
    %6961 = vmatprep.subr.bf16.mxu0 0
    %6962 = vmatpush1.bf16.msra.mxu0 %v6890
    %6963 = vmatprep.subr.bf16.mxu0 0
    %6964 = vmatpush1.bf16.msra.mxu0 %v6891
    %6965 = vmatprep.subr.bf16.mxu0 0
    %6966 = vmatpush1.bf16.msra.mxu0 %v6892
    %6967 = vmatprep.subr.bf16.mxu0 0
    %6968 = vmatpush1.bf16.msra.mxu0 %v6893
    %6969 = vmatprep.subr.bf16.mxu0 0
    %6970 = vmatpush1.bf16.msra.mxu0 %v6894
    %6971 = vmatprep.subr.bf16.mxu0 0
    %6972 = vmatpush1.bf16.msra.mxu0 %v6895
    %6973 = vmatprep.subr.bf16.mxu0 0
    %6974 = vmatpush1.bf16.msra.mxu0 %v6896
    %6975 = vmatprep.subr.bf16.mxu0 0
    %6976 = vmatpush1.bf16.msra.mxu0 %v6897
    %6977 = vmatprep.subr.bf16.mxu0 0
    %6978 = vmatpush1.bf16.msra.mxu0 %v6898
    %6979 = vmatprep.mubr.bf16.mxu0 %v6681
    %6980 = vmatmul.mubr.bf16.gmra.mrb[0].mxu0 %v6680
    %v6981 = vpop.f32.mrb[0].mxu0
    %v6982 = vadd.f32 %v6753, %v6981
    %v6983 = vpop.f32.mrb[0].mxu0
    %v6984 = vpop.f32.mrb[0].mxu0
    %v6985 = vpop.f32.mrb[0].mxu0
    %6986 = vdwg.mxu0
    %6987 = vmatprep.subr.bf16.mxu0 0
    %6988 = vmatpush1.bf16.msra.mxu0 %v6899
    %6989 = vmatprep.subr.bf16.mxu0 0
    %6990 = vmatpush1.bf16.msra.mxu0 %v6900
    %6991 = vmatprep.subr.bf16.mxu0 0
    %6992 = vmatpush1.bf16.msra.mxu0 %v6901
    %6993 = vmatprep.subr.bf16.mxu0 0
    %6994 = vmatpush1.bf16.msra.mxu0 %v6902
    %6995 = vmatprep.subr.bf16.mxu0 0
    %6996 = vmatpush1.bf16.msra.mxu0 %v6903
    %6997 = vmatprep.subr.bf16.mxu0 0
    %6998 = vmatpush1.bf16.msra.mxu0 %v6904
    %6999 = vmatprep.subr.bf16.mxu0 0
    %7000 = vmatpush1.bf16.msra.mxu0 %v6905
    %7001 = vmatprep.subr.bf16.mxu0 0
    %7002 = vmatpush1.bf16.msra.mxu0 %v6906
    %7003 = vmatprep.subr.bf16.mxu0 0
    %7004 = vmatpush1.bf16.msra.mxu0 %v6907
    %7005 = vmatprep.subr.bf16.mxu0 0
    %7006 = vmatpush1.bf16.msra.mxu0 %v6908
    %7007 = vmatprep.subr.bf16.mxu0 0
    %7008 = vmatpush1.bf16.msra.mxu0 %v6909
    %7009 = vmatprep.subr.bf16.mxu0 0
    %7010 = vmatpush1.bf16.msra.mxu0 %v6910
    %7011 = vmatprep.subr.bf16.mxu0 0
    %7012 = vmatpush1.bf16.msra.mxu0 %v6911
    %7013 = vmatprep.subr.bf16.mxu0 0
    %7014 = vmatpush1.bf16.msra.mxu0 %v6912
    %7015 = vmatprep.subr.bf16.mxu0 0
    %7016 = vmatpush1.bf16.msra.mxu0 %v6913
    %7017 = vmatprep.subr.bf16.mxu0 0
    %7018 = vmatpush1.bf16.msra.mxu0 %v6914
    %7019 = vmatprep.mubr.bf16.mxu0 %v6683
    %7020 = vmatmul.mubr.bf16.gmra.mrb[0].mxu0 %v6682
    %v7021 = vpop.f32.mrb[0].mxu0
    %v7022 = vadd.f32 %v6982, %v7021
    %v7023 = vpop.f32.mrb[0].mxu0
    %v7024 = vpop.f32.mrb[0].mxu0
    %v7025 = vpop.f32.mrb[0].mxu0
    %7026 = vdwg.mxu0
    %v7027 = vmax.f32 %v7022, 0.0
    %v7028 = vld [vmem:[%s95] sm:$0x1]
    %v7030 = vlaneseq
    %v7031 = vshrl.u32 %v7030, 7
    %v7032 = vsub.s32 0, %v7031
    %v7033 = vrot.slane %v7028, %v7032
    %v7035 = vmul.f32 %v7027, %v7033
    %v7036 = vsel %vm376, %v7035, 0.0
    %7037 = vadd.xlane.f32.xlu0 %v7036
    %v7038 = vpop.xlane.xlu0 %7037
    %v7039 = vld [vmem:[#allocation8] sm:$0x1]
    %v7041 = vlaneseq
    %v7042 = vshrl.u32 %v7041, 7
    %v7043 = vsub.s32 0, %v7042
    %v7044 = vrot.slane %v7039, %v7043
    %v7046 = vadd.f32 %v7038, %v7044
    %v7047 = vxor.u32 %v7046, 2147483648
    %v7048 = vmul.f32 %v7047, 1.442695
    %v7049 = vpow.pop %v7048
    %v7050 = vadd.f32 %v7049, 1.0
    %v7051 = vrcp.pop %v7050
    %v7052 = vmul.f32 1.0, %v7051
    %v7053 = vmul.f32 %v5693, 0.4
    %v7054 = vmul.f32 %v5715, 0.3
    %v7055 = vadd.f32 %v7053, %v7054
    %v7056 = vmul.f32 %v7052, 0.3
    %v7057 = vadd.f32 %v7055, %v7056
    %v7058 = vmax.f32 %v7057, 0.1
    %v7059 = vmin.f32 %v7058, 0.95
    %v7060 = vsel %vm4027, %v7059, 0.95
    %v7061 = vmul.f32 %v4064, 0.2
    %v7062 = vmul.f32 %v4103, 0.2
    %v7063 = vadd.f32 %v7061, %v7062
    %v7064 = vmul.f32 %v1475, 0.3
    %v7065 = vadd.f32 %v7063, %v7064
    %v7066 = vsub.f32 1.0, %v2056
    %v7067 = vmul.f32 %v7066, 0.3
    %v7068 = vadd.f32 %v7065, %v7067
    %v7069 = vmul.f32 %v4198, 0.2
    %v7070 = vmul.f32 %v4236, 0.2
    %v7071 = vadd.f32 %v7069, %v7070
    %v7072 = vmul.f32 %v1613, 0.3
    %v7073 = vadd.f32 %v7071, %v7072
    %v7074 = vsub.f32 1.0, %v2091
    %v7075 = vmul.f32 %v7074, 0.3
    %v7076 = vadd.f32 %v7073, %v7075
    %v7077 = vadd.f32 %v7068, %v7076
    %v7078 = vadd.f32 %v7077, %v4015
    %v7079 = vmul.f32 %v7078, %v4014
    %v7080 = vlaneseq
    %v7081 = vand.u32 %v7080, 127
    %vm7082 = vcmp.eq.s32.totalorder %v7081, 0
    %v7083 = vsel %vm7082, 1, 0
    %vm7084 = vcmp.eq.s32.totalorder %v7083, 1
    %v7085 = vsel %vm7084, %v4064, 0.0
    %v7086 = vadd.f32 %v7085, 0.0
    %vm7087 = vcmp.eq.s32.totalorder %v7081, 1
    %v7088 = vsel %vm7087, 1, 0
    %vm7089 = vcmp.eq.s32.totalorder %v7088, 1
    %v7090 = vsel %vm7089, %v4103, 0.0
    %v7091 = vadd.f32 %v7086, %v7090
    %vm7092 = vcmp.eq.s32.totalorder %v7081, 2
    %v7093 = vsel %vm7092, 1, 0
    %vm7094 = vcmp.eq.s32.totalorder %v7093, 1
    %v7095 = vsel %vm7094, %v4124, 0.0
    %v7096 = vadd.f32 %v7091, %v7095
    %vm7097 = vcmp.eq.s32.totalorder %v7081, 3
    %v7098 = vsel %vm7097, 1, 0
    %vm7099 = vcmp.eq.s32.totalorder %v7098, 1
    %v7100 = vsel %vm7099, %v4149, 0.0
    %v7101 = vadd.f32 %v7096, %v7100
    %vm7102 = vcmp.eq.s32.totalorder %v7081, 4
    %v7103 = vsel %vm7102, 1, 0
    %vm7104 = vcmp.eq.s32.totalorder %v7103, 1
    %v7105 = vsel %vm7104, %v4172, 0.0
    %v7106 = vadd.f32 %v7101, %v7105
    %vm7107 = vcmp.eq.s32.totalorder %v7081, 5
    %v7108 = vsel %vm7107, 1, 0
    %vm7109 = vcmp.eq.s32.totalorder %v7108, 1
    %v7110 = vsel %vm7109, %v4198, 0.0
    %v7111 = vadd.f32 %v7106, %v7110
    %vm7112 = vcmp.eq.s32.totalorder %v7081, 6
    %v7113 = vsel %vm7112, 1, 0
    %vm7114 = vcmp.eq.s32.totalorder %v7113, 1
    %v7115 = vsel %vm7114, %v4236, 0.0
    %v7116 = vadd.f32 %v7111, %v7115
    %vm7117 = vcmp.eq.s32.totalorder %v7081, 7
    %v7118 = vsel %vm7117, 1, 0
    %vm7119 = vcmp.eq.s32.totalorder %v7118, 1
    %v7120 = vsel %vm7119, %v4256, 0.0
    %v7121 = vadd.f32 %v7116, %v7120
    %vm7122 = vcmp.eq.s32.totalorder %v7081, 8
    %v7123 = vsel %vm7122, 1, 0
    %vm7124 = vcmp.eq.s32.totalorder %v7123, 1
    %v7125 = vsel %vm7124, %v4281, 0.0
    %v7126 = vadd.f32 %v7121, %v7125
    %vm7127 = vcmp.eq.s32.totalorder %v7081, 9
    %v7128 = vsel %vm7127, 1, 0
    %vm7129 = vcmp.eq.s32.totalorder %v7128, 1
    %v7130 = vsel %vm7129, %v4304, 0.0
    %v7131 = vadd.f32 %v7126, %v7130
    %vm7132 = vcmp.eq.s32.totalorder %v7081, 10
    %v7133 = vsel %vm7132, 1, 0
    %vm7134 = vcmp.eq.s32.totalorder %v7133, 1
    %7136 = vset.pattern.permute.xlu0 0
    %7137 = vperm.xlu0 %7136, %v1475
    %v7138 = vpop.permute.xlu0 %7137
    %v7140 = vsel %vm7134, %v7138, 0.0
    %v7141 = vadd.f32 %v7131, %v7140
    %vm7142 = vcmp.eq.s32.totalorder %v7081, 11
    %v7143 = vsel %vm7142, 1, 0
    %vm7144 = vcmp.eq.s32.totalorder %v7143, 1
    %7146 = vset.pattern.permute.xlu0 0
    %7147 = vperm.xlu0 %7146, %v1613
    %v7148 = vpop.permute.xlu0 %7147
    %v7150 = vsel %vm7144, %v7148, 0.0
    %v7151 = vadd.f32 %v7141, %v7150
    %vm7152 = vcmp.eq.s32.totalorder %v7081, 12
    %v7153 = vsel %vm7152, 1, 0
    %vm7154 = vcmp.eq.s32.totalorder %v7153, 1
    %7156 = vset.pattern.permute.xlu0 0
    %7157 = vperm.xlu0 %7156, %v2056
    %v7158 = vpop.permute.xlu0 %7157
    %v7160 = vsel %vm7154, %v7158, 0.0
    %v7161 = vadd.f32 %v7151, %v7160
    %vm7162 = vcmp.eq.s32.totalorder %v7081, 13
    %v7163 = vsel %vm7162, 1, 0
    %vm7164 = vcmp.eq.s32.totalorder %v7163, 1
    %7166 = vset.pattern.permute.xlu0 0
    %7167 = vperm.xlu0 %7166, %v2091
    %v7168 = vpop.permute.xlu0 %7167
    %v7170 = vsel %vm7164, %v7168, 0.0
    %v7171 = vadd.f32 %v7161, %v7170
    %vm7172 = vcmp.eq.s32.totalorder %v7081, 14
    %v7173 = vsel %vm7172, 1, 0
    %vm7174 = vcmp.eq.s32.totalorder %v7173, 1
    %7176 = vset.pattern.permute.xlu0 0
    %7177 = vperm.xlu0 %7176, %v5682
    %v7178 = vpop.permute.xlu0 %7177
    %v7180 = vsel %vm7174, %v7178, 0.0
    %v7181 = vadd.f32 %v7171, %v7180
    %vm7182 = vcmp.eq.s32.totalorder %v7081, 15
    %v7183 = vsel %vm7182, 1, 0
    %vm7184 = vcmp.eq.s32.totalorder %v7183, 1
    %7186 = vset.pattern.permute.xlu0 0
    %7187 = vperm.xlu0 %7186, %v7060
    %v7188 = vpop.permute.xlu0 %7187
    %v7190 = vsel %vm7184, %v7188, 0.0
    %v7191 = vadd.f32 %v7181, %v7190
    %vm7192 = vcmp.eq.s32.totalorder %v7081, 16
    %v7193 = vsel %vm7192, 1, 0
    %vm7194 = vcmp.eq.s32.totalorder %v7193, 1
    %v7195 = vsel %vm7194, %v2635, 0.0
    %v7196 = vadd.f32 %v7191, %v7195
    %vm7197 = vcmp.eq.s32.totalorder %v7081, 17
    %v7198 = vsel %vm7197, 1, 0
    %vm7199 = vcmp.eq.s32.totalorder %v7198, 1
    %v7200 = vsel %vm7199, %v2650, 0.0
    %v7201 = vadd.f32 %v7196, %v7200
    %vm7202 = vcmp.eq.s32.totalorder %v7081, 18
    %v7203 = vsel %vm7202, 1, 0
    %vm7204 = vcmp.eq.s32.totalorder %v7203, 1
    %v7205 = vsel %vm7204, %v2676, 0.0
    %v7206 = vadd.f32 %v7201, %v7205
    %vm7207 = vcmp.eq.s32.totalorder %v7081, 19
    %v7208 = vsel %vm7207, 1, 0
    %vm7209 = vcmp.eq.s32.totalorder %v7208, 1
    %7211 = vset.pattern.permute.xlu0 0
    %7212 = vperm.xlu0 %7211, %v4011
    %v7213 = vpop.permute.xlu0 %7212
    %v7215 = vsel %vm7209, %v7213, 0.0
    %v7216 = vadd.f32 %v7206, %v7215
    %vm7217 = vcmp.eq.s32.totalorder %v7081, 20
    %v7218 = vsel %vm7217, 1, 0
    %vm7219 = vcmp.eq.s32.totalorder %v7218, 1
    %7221 = vset.pattern.permute.xlu0 0
    %7222 = vperm.xlu0 %7221, %v4015
    %v7223 = vpop.permute.xlu0 %7222
    %v7225 = vsel %vm7219, %v7223, 0.0
    %v7226 = vadd.f32 %v7216, %v7225
    %vm7227 = vcmp.eq.s32.totalorder %v7081, 21
    %v7228 = vsel %vm7227, 1, 0
    %vm7229 = vcmp.eq.s32.totalorder %v7228, 1
    %7231 = vset.pattern.permute.xlu0 0
    %7232 = vperm.xlu0 %7231, %v7079
    %v7233 = vpop.permute.xlu0 %7232
    %v7235 = vsel %vm7229, %v7233, 0.0
    %v7236 = vadd.f32 %v7226, %v7235
    %7237 = vst [vmem:[%s99] sm:$0xf] %v7236
    // Predicated region
    $region242: #{forward.1} parent=1 // pred_check
      _
    $region243: #{forward.1} parent=1 // pred_check_branch
      %7239 = sbr.rel (0) target = $region245
    $region244: #{forward.1} parent=1 // pred_region
      _
    $region245: #{forward.1} parent=1 // pred_fallthru
      _
    // Predicated region
    $region246: #{forward.1} parent=1 // pred_check
      _
    $region247: #{forward.1} parent=1 // pred_check_branch
      %7241 = sbr.rel (0) target = $region249
    $region248: #{forward.1} parent=1 // pred_region
      _
    $region249: #{forward.1} parent=1 // pred_fallthru
      _
    %7242 = vsyncpa [#allocation10], 1
    %7243 = vsyncpa [#allocation12], 1
    %7244 = vsyncpa [#allocation15], 1
    %7245 = vsyncpa [#allocation18], 1
    %7246 = vsyncpa [#allocation21], 1
    %7247 = vsyncpa [#allocation24], 1

</llo_original>
